<compile_context>
chip_gen: v7x
topology: tpu7x:2x2x1
jax: 0.10.0
libtpu: 0.0.40
codegen_flags: <defaults>
</compile_context>

<pallas_src>
import jax
import jax.numpy as jnp
from jax.experimental import pallas as pl
from jax.experimental.pallas import tpu as pltpu

H, W = 8, 8            # chess board spatial dims
HP, WP = H + 2, W + 2  # padded spatial dims (pad=1 each side)
C_IN = 12              # piece planes
C1 = 32
C2 = 64
HID = 128


def _pad_hw(t):
    """Zero-pad H and W by 1 on each side (SAME-conv halo), value-level."""
    bt, _, _, c = t.shape
    zc = jnp.zeros((bt, H, 1, c), t.dtype)
    t = jnp.concatenate([zc, t, zc], axis=2)          # (bt, H, WP, c)
    zr = jnp.zeros((bt, 1, WP, c), t.dtype)
    return jnp.concatenate([zr, t, zr], axis=1)       # (bt, HP, WP, c)


def _im2col(tp):
    """(bt, HP, WP, c) zero-padded -> (bt*H*W, 9*c): fold 3x3 taps into K."""
    bt, _, _, c = tp.shape
    taps = [tp[:, dh:dh + H, dw:dw + W, :]
            for dh in range(3) for dw in range(3)]
    return jnp.concatenate(taps, axis=-1).reshape(bt * H * W, 9 * c)


def chess_cnn_kernel(x_ref, w1_ref, b1_ref, w2_ref, b2_ref,
                     w3_ref, b3_ref, w4_ref, b4_ref, out_ref):
    bt = x_ref.shape[0]

    # ---- Conv2d(12 -> 32, 3x3, pad=1) + ReLU: one (bt*64,108)@(108,32) ----
    xb = x_ref[...].astype(jnp.bfloat16)
    h1 = jnp.dot(_im2col(_pad_hw(xb)), w1_ref[...],
                 preferred_element_type=jnp.float32)
    h1 = jnp.maximum(h1 + b1_ref[...], 0.0)               # (bt*64, 32) f32

    # ---- Conv2d(32 -> 64, 3x3, pad=1) + ReLU: one (bt*64,288)@(288,64) ----
    h1b = h1.astype(jnp.bfloat16).reshape(bt, H, W, C1)
    h2 = jnp.dot(_im2col(_pad_hw(h1b)), w2_ref[...],
                 preferred_element_type=jnp.float32)
    h2 = jnp.maximum(h2 + b2_ref[...], 0.0)               # (bt*64, 64) f32

    # ---- AdaptiveMaxPool2d(1) + Flatten: global spatial max -> (bt, 64) ----
    pooled = jnp.max(h2.reshape(bt, H * W, C2), axis=1)

    # ---- FC head (tiny vs the convs; kept in f32) ----
    f1 = jnp.dot(pooled, w3_ref[...], preferred_element_type=jnp.float32)
    f1 = jnp.maximum(f1 + b3_ref[...], 0.0)               # (bt, 128)
    out_ref[...] = jnp.dot(f1, w4_ref[...],
                           preferred_element_type=jnp.float32) + b4_ref[...]


def chess_cnn_forward(x_nhwc, params, *, block_boards=128):
    """x_nhwc: (N, 8, 8, 12) float32 -> logits (N, num_classes)."""
    N = x_nhwc.shape[0]
    nc = params["w4"].shape[1]
    ncp = ((nc + 127) // 128) * 128            # lane-dense logits block width

    bt = min(block_boards, N)
    if bt != N:                                # multi-tile: sublane-align out block
        bt = max(8, -(-bt // 8) * 8)
    n_tiles = -(-N // bt)
    n_pad = n_tiles * bt
    if n_pad != N:
        x_nhwc = jnp.pad(x_nhwc, ((0, n_pad - N), (0, 0), (0, 0), (0, 0)))

    # Pre-reshape conv weights for the folded-tap matmuls; bf16 MXU operands.
    # FC head stays f32; w4/b4 lane-padded to ncp with zeros.
    w1 = params["w1"].reshape(9 * C_IN, C1).astype(jnp.bfloat16)
    w2 = params["w2"].reshape(9 * C1, C2).astype(jnp.bfloat16)
    w3 = params["w3"].astype(jnp.float32)
    w4 = jnp.zeros((HID, ncp), jnp.float32).at[:, :nc].set(params["w4"])
    b4 = jnp.zeros((1, ncp), jnp.float32).at[:, :nc].set(params["b4"])
    b1, b2, b3 = params["b1"], params["b2"], params["b3"]

    def whole(a):                              # small resident full-array block
        return pl.BlockSpec(a.shape, lambda i, _n=a.ndim: (0,) * _n)

    out = pl.pallas_call(
        chess_cnn_kernel,
        out_shape=jax.ShapeDtypeStruct((n_pad, ncp), jnp.float32),
        grid_spec=pltpu.PrefetchScalarGridSpec(
            num_scalar_prefetch=0,
            grid=(n_tiles,),
            in_specs=[
                pl.BlockSpec((bt, H, W, C_IN), lambda i: (i, 0, 0, 0)),
                whole(w1), whole(b1), whole(w2), whole(b2),
                whole(w3), whole(b3), whole(w4), whole(b4),
            ],
            out_specs=pl.BlockSpec((bt, ncp), lambda i: (i, 0)),
        ),
        compiler_params=pltpu.CompilerParams(
            dimension_semantics=("parallel",),          # v7x: shard tiles on 2 TCs
            vmem_limit_bytes=48 * 1024 * 1024,          # fits v7x 64 MiB with headroom
        ),
    )(x_nhwc, w1, b1, w2, b2, w3, b3, w4, b4)

    return out[:N, :nc]


def init_params(key, num_classes):
    """Deterministic synthetic params (PyTorch-style uniform fan-in init)."""
    ks = jax.random.split(key, 8)

    def u(k, shape, fan_in):
        bound = 1.0 / jnp.sqrt(jnp.float32(fan_in))
        return jax.random.uniform(k, shape, jnp.float32, -bound, bound)

    return {
        "w1": u(ks[0], (9, C_IN, C1), 9 * C_IN),
        "b1": u(ks[1], (1, C1), 9 * C_IN),
        "w2": u(ks[2], (9, C1, C2), 9 * C1),
        "b2": u(ks[3], (1, C2), 9 * C1),
        "w3": u(ks[4], (C2, HID), C2),
        "b3": u(ks[5], (1, HID), C2),
        "w4": u(ks[6], (HID, num_classes), HID),
        "b4": u(ks[7], (1, num_classes), HID),
    }


def reference_forward(x_nhwc, params):
    """Pure-JAX f32 reference matching the PyTorch forward semantics."""
    def conv(x, w9, b):  # w9: (9, ci, co) -> (3, 3, ci, co) HWIO
        w = w9.reshape(3, 3, w9.shape[1], w9.shape[2])
        y = jax.lax.conv_general_dilated(
            x, w, window_strides=(1, 1), padding="SAME",
            dimension_numbers=("NHWC", "HWIO", "NHWC"))
        return jax.nn.relu(y + b.reshape(1, 1, 1, -1))

    h = conv(x_nhwc, params["w1"], params["b1"])
    h = conv(h, params["w2"], params["b2"])
    pooled = jnp.max(h, axis=(1, 2))                   # AdaptiveMaxPool2d(1)+Flatten
    f = jax.nn.relu(pooled @ params["w3"] + params["b3"])
    return f @ params["w4"] + params["b4"]


if __name__ == "__main__":
    num_classes = 16
    key = jax.random.PRNGKey(0)
    kx, kp = jax.random.split(key)

    N = 20  # small; exercises multi-tile grid (3 steps of 8) + ragged batch pad
    x = jax.random.normal(kx, (N, H, W, C_IN), jnp.float32)   # (N, 8, 8, 12) NHWC
    params = init_params(kp, num_classes)

    out = chess_cnn_forward(x, params, block_boards=8)
    out = jax.block_until_ready(out)
    assert out.shape == (N, num_classes)

    ref = reference_forward(x, params)
    err = jnp.max(jnp.abs(out - ref))
    assert jnp.allclose(out, ref, rtol=2e-2, atol=2e-2), f"max abs err {err}"

    print("KERNEL_OK")
</pallas_src>

<mosaic_0001>
module attributes {stable_mosaic.version = 11 : i64} {
  func.func @chess_cnn_kernel(%arg0: i32, %arg1: memref<8x8x8x12xf32, #tpu.memory_space<vmem>>, %arg2: memref<108x32xbf16, #tpu.memory_space<vmem>>, %arg3: memref<1x32xf32, #tpu.memory_space<vmem>>, %arg4: memref<288x64xbf16, #tpu.memory_space<vmem>>, %arg5: memref<1x64xf32, #tpu.memory_space<vmem>>, %arg6: memref<64x128xf32, #tpu.memory_space<vmem>>, %arg7: memref<1x128xf32, #tpu.memory_space<vmem>>, %arg8: memref<128x128xf32, #tpu.memory_space<vmem>>, %arg9: memref<1x128xf32, #tpu.memory_space<vmem>>, %arg10: memref<8x128xf32, #tpu.memory_space<vmem>>) attributes {dimension_semantics = [#tpu.dimension_semantics<parallel>], iteration_bounds = array<i64: 3>, scalar_prefetch = 0 : i64, scratch_operands = 0 : i64, tpu.core_type = #tpu.core_type<tc>, window_params = [{transform_indices = @transform_0, window_bounds = array<i64: 8, 8, 8, 12>}, {pipeline_mode = #tpu.pipeline_mode<synchronous>, transform_indices = @transform_1, window_bounds = array<i64: 108, 32>}, {pipeline_mode = #tpu.pipeline_mode<synchronous>, transform_indices = @transform_2, window_bounds = array<i64: 1, 32>}, {pipeline_mode = #tpu.pipeline_mode<synchronous>, transform_indices = @transform_3, window_bounds = array<i64: 288, 64>}, {pipeline_mode = #tpu.pipeline_mode<synchronous>, transform_indices = @transform_4, window_bounds = array<i64: 1, 64>}, {pipeline_mode = #tpu.pipeline_mode<synchronous>, transform_indices = @transform_5, window_bounds = array<i64: 64, 128>}, {pipeline_mode = #tpu.pipeline_mode<synchronous>, transform_indices = @transform_6, window_bounds = array<i64: 1, 128>}, {pipeline_mode = #tpu.pipeline_mode<synchronous>, transform_indices = @transform_7, window_bounds = array<i64: 128, 128>}, {pipeline_mode = #tpu.pipeline_mode<synchronous>, transform_indices = @transform_8, window_bounds = array<i64: 1, 128>}, {transform_indices = @transform_9, window_bounds = array<i64: 8, 128>}]} {
    %c0 = arith.constant 0 : index
    %c0_0 = arith.constant 0 : index
    %c0_1 = arith.constant 0 : index
    %c0_2 = arith.constant 0 : index
    %0 = vector.load %arg1[%c0, %c0_0, %c0_1, %c0_2] : memref<8x8x8x12xf32, #tpu.memory_space<vmem>>, vector<8x8x8x12xf32>
    %1 = arith.truncf %0 : vector<8x8x8x12xf32> to vector<8x8x8x12xbf16>
    %cst = arith.constant 0.000000e+00 : bf16
    %2 = vector.broadcast %cst : bf16 to vector<8x8x1x12xbf16>
    %3 = tpu.concatenate %2, %1, %2 in 2 : vector<8x8x1x12xbf16>, vector<8x8x8x12xbf16>, vector<8x8x1x12xbf16> -> vector<8x8x10x12xbf16>
    %cst_3 = arith.constant 0.000000e+00 : bf16
    %4 = vector.broadcast %cst_3 : bf16 to vector<8x1x10x12xbf16>
    %5 = tpu.concatenate %4, %3, %4 in 1 : vector<8x1x10x12xbf16>, vector<8x8x10x12xbf16>, vector<8x1x10x12xbf16> -> vector<8x10x10x12xbf16>
    %6 = vector.extract_strided_slice %5 {offsets = [0, 0, 0, 0], sizes = [8, 8, 8, 12], strides = [1, 1, 1, 1]} : vector<8x10x10x12xbf16> to vector<8x8x8x12xbf16>
    %7 = vector.extract_strided_slice %5 {offsets = [0, 0, 1, 0], sizes = [8, 8, 8, 12], strides = [1, 1, 1, 1]} : vector<8x10x10x12xbf16> to vector<8x8x8x12xbf16>
    %8 = vector.extract_strided_slice %5 {offsets = [0, 0, 2, 0], sizes = [8, 8, 8, 12], strides = [1, 1, 1, 1]} : vector<8x10x10x12xbf16> to vector<8x8x8x12xbf16>
    %9 = vector.extract_strided_slice %5 {offsets = [0, 1, 0, 0], sizes = [8, 8, 8, 12], strides = [1, 1, 1, 1]} : vector<8x10x10x12xbf16> to vector<8x8x8x12xbf16>
    %10 = vector.extract_strided_slice %5 {offsets = [0, 1, 1, 0], sizes = [8, 8, 8, 12], strides = [1, 1, 1, 1]} : vector<8x10x10x12xbf16> to vector<8x8x8x12xbf16>
    %11 = vector.extract_strided_slice %5 {offsets = [0, 1, 2, 0], sizes = [8, 8, 8, 12], strides = [1, 1, 1, 1]} : vector<8x10x10x12xbf16> to vector<8x8x8x12xbf16>
    %12 = vector.extract_strided_slice %5 {offsets = [0, 2, 0, 0], sizes = [8, 8, 8, 12], strides = [1, 1, 1, 1]} : vector<8x10x10x12xbf16> to vector<8x8x8x12xbf16>
    %13 = vector.extract_strided_slice %5 {offsets = [0, 2, 1, 0], sizes = [8, 8, 8, 12], strides = [1, 1, 1, 1]} : vector<8x10x10x12xbf16> to vector<8x8x8x12xbf16>
    %14 = vector.extract_strided_slice %5 {offsets = [0, 2, 2, 0], sizes = [8, 8, 8, 12], strides = [1, 1, 1, 1]} : vector<8x10x10x12xbf16> to vector<8x8x8x12xbf16>
    %15 = tpu.concatenate %6, %7, %8, %9, %10, %11, %12, %13, %14 in 3 : vector<8x8x8x12xbf16>, vector<8x8x8x12xbf16>, vector<8x8x8x12xbf16>, vector<8x8x8x12xbf16>, vector<8x8x8x12xbf16>, vector<8x8x8x12xbf16>, vector<8x8x8x12xbf16>, vector<8x8x8x12xbf16>, vector<8x8x8x12xbf16> -> vector<8x8x8x108xbf16>
    %16 = vector.shape_cast %15 : vector<8x8x8x108xbf16> to vector<512x108xbf16>
    %c0_4 = arith.constant 0 : index
    %c0_5 = arith.constant 0 : index
    %17 = vector.load %arg2[%c0_4, %c0_5] : memref<108x32xbf16, #tpu.memory_space<vmem>>, vector<108x32xbf16>
    %cst_6 = arith.constant dense<0.000000e+00> : vector<512x32xf32>
    %18 = tpu.matmul %16, %17, %cst_6 {dimension_numbers = #tpu.dot_dimension_numbers<[1], [0], [0], [1], [0, 0, 1, 1], [], []>} : vector<512x108xbf16>, vector<108x32xbf16>, vector<512x32xf32> -> vector<512x32xf32>
    %c0_7 = arith.constant 0 : index
    %c0_8 = arith.constant 0 : index
    %19 = vector.load %arg3[%c0_7, %c0_8] : memref<1x32xf32, #tpu.memory_space<vmem>>, vector<1x32xf32>
    %20 = vector.broadcast %19 : vector<1x32xf32> to vector<512x32xf32>
    %21 = arith.addf %18, %20 : vector<512x32xf32>
    %cst_9 = arith.constant 0.000000e+00 : f32
    %22 = vector.broadcast %cst_9 : f32 to vector<512x32xf32>
    %23 = arith.maximumf %21, %22 : vector<512x32xf32>
    %24 = arith.truncf %23 : vector<512x32xf32> to vector<512x32xbf16>
    %25 = vector.shape_cast %24 : vector<512x32xbf16> to vector<8x8x8x32xbf16>
    %cst_10 = arith.constant 0.000000e+00 : bf16
    %26 = vector.broadcast %cst_10 : bf16 to vector<8x8x1x32xbf16>
    %27 = tpu.concatenate %26, %25, %26 in 2 : vector<8x8x1x32xbf16>, vector<8x8x8x32xbf16>, vector<8x8x1x32xbf16> -> vector<8x8x10x32xbf16>
    %cst_11 = arith.constant 0.000000e+00 : bf16
    %28 = vector.broadcast %cst_11 : bf16 to vector<8x1x10x32xbf16>
    %29 = tpu.concatenate %28, %27, %28 in 1 : vector<8x1x10x32xbf16>, vector<8x8x10x32xbf16>, vector<8x1x10x32xbf16> -> vector<8x10x10x32xbf16>
    %30 = vector.extract_strided_slice %29 {offsets = [0, 0, 0, 0], sizes = [8, 8, 8, 32], strides = [1, 1, 1, 1]} : vector<8x10x10x32xbf16> to vector<8x8x8x32xbf16>
    %31 = vector.extract_strided_slice %29 {offsets = [0, 0, 1, 0], sizes = [8, 8, 8, 32], strides = [1, 1, 1, 1]} : vector<8x10x10x32xbf16> to vector<8x8x8x32xbf16>
    %32 = vector.extract_strided_slice %29 {offsets = [0, 0, 2, 0], sizes = [8, 8, 8, 32], strides = [1, 1, 1, 1]} : vector<8x10x10x32xbf16> to vector<8x8x8x32xbf16>
    %33 = vector.extract_strided_slice %29 {offsets = [0, 1, 0, 0], sizes = [8, 8, 8, 32], strides = [1, 1, 1, 1]} : vector<8x10x10x32xbf16> to vector<8x8x8x32xbf16>
    %34 = vector.extract_strided_slice %29 {offsets = [0, 1, 1, 0], sizes = [8, 8, 8, 32], strides = [1, 1, 1, 1]} : vector<8x10x10x32xbf16> to vector<8x8x8x32xbf16>
    %35 = vector.extract_strided_slice %29 {offsets = [0, 1, 2, 0], sizes = [8, 8, 8, 32], strides = [1, 1, 1, 1]} : vector<8x10x10x32xbf16> to vector<8x8x8x32xbf16>
    %36 = vector.extract_strided_slice %29 {offsets = [0, 2, 0, 0], sizes = [8, 8, 8, 32], strides = [1, 1, 1, 1]} : vector<8x10x10x32xbf16> to vector<8x8x8x32xbf16>
    %37 = vector.extract_strided_slice %29 {offsets = [0, 2, 1, 0], sizes = [8, 8, 8, 32], strides = [1, 1, 1, 1]} : vector<8x10x10x32xbf16> to vector<8x8x8x32xbf16>
    %38 = vector.extract_strided_slice %29 {offsets = [0, 2, 2, 0], sizes = [8, 8, 8, 32], strides = [1, 1, 1, 1]} : vector<8x10x10x32xbf16> to vector<8x8x8x32xbf16>
    %39 = tpu.concatenate %30, %31, %32, %33, %34, %35, %36, %37, %38 in 3 : vector<8x8x8x32xbf16>, vector<8x8x8x32xbf16>, vector<8x8x8x32xbf16>, vector<8x8x8x32xbf16>, vector<8x8x8x32xbf16>, vector<8x8x8x32xbf16>, vector<8x8x8x32xbf16>, vector<8x8x8x32xbf16>, vector<8x8x8x32xbf16> -> vector<8x8x8x288xbf16>
    %40 = vector.shape_cast %39 : vector<8x8x8x288xbf16> to vector<512x288xbf16>
    %c0_12 = arith.constant 0 : index
    %c0_13 = arith.constant 0 : index
    %41 = vector.load %arg4[%c0_12, %c0_13] : memref<288x64xbf16, #tpu.memory_space<vmem>>, vector<288x64xbf16>
    %cst_14 = arith.constant dense<0.000000e+00> : vector<512x64xf32>
    %42 = tpu.matmul %40, %41, %cst_14 {dimension_numbers = #tpu.dot_dimension_numbers<[1], [0], [0], [1], [0, 0, 1, 1], [], []>} : vector<512x288xbf16>, vector<288x64xbf16>, vector<512x64xf32> -> vector<512x64xf32>
    %c0_15 = arith.constant 0 : index
    %c0_16 = arith.constant 0 : index
    %43 = vector.load %arg5[%c0_15, %c0_16] : memref<1x64xf32, #tpu.memory_space<vmem>>, vector<1x64xf32>
    %44 = vector.broadcast %43 : vector<1x64xf32> to vector<512x64xf32>
    %45 = arith.addf %42, %44 : vector<512x64xf32>
    %cst_17 = arith.constant 0.000000e+00 : f32
    %46 = vector.broadcast %cst_17 : f32 to vector<512x64xf32>
    %47 = arith.maximumf %45, %46 : vector<512x64xf32>
    %48 = vector.shape_cast %47 : vector<512x64xf32> to vector<8x64x64xf32>
    %cst_18 = arith.constant dense<0xFF800000> : vector<8x64xf32>
    %49 = vector.multi_reduction <maximumf>, %48, %cst_18 [1] : vector<8x64x64xf32> to vector<8x64xf32>
    %c0_19 = arith.constant 0 : index
    %c0_20 = arith.constant 0 : index
    %50 = vector.load %arg6[%c0_19, %c0_20] : memref<64x128xf32, #tpu.memory_space<vmem>>, vector<64x128xf32>
    %cst_21 = arith.constant dense<0.000000e+00> : vector<8x128xf32>
    %51 = tpu.matmul %49, %50, %cst_21 {dimension_numbers = #tpu.dot_dimension_numbers<[1], [0], [0], [1], [0, 0, 1, 1], [], []>} : vector<8x64xf32>, vector<64x128xf32>, vector<8x128xf32> -> vector<8x128xf32>
    %c0_22 = arith.constant 0 : index
    %c0_23 = arith.constant 0 : index
    %52 = vector.load %arg7[%c0_22, %c0_23] : memref<1x128xf32, #tpu.memory_space<vmem>>, vector<1x128xf32>
    %53 = vector.broadcast %52 : vector<1x128xf32> to vector<8x128xf32>
    %54 = arith.addf %51, %53 : vector<8x128xf32>
    %cst_24 = arith.constant 0.000000e+00 : f32
    %55 = vector.broadcast %cst_24 : f32 to vector<8x128xf32>
    %56 = arith.maximumf %54, %55 : vector<8x128xf32>
    %c0_25 = arith.constant 0 : index
    %c0_26 = arith.constant 0 : index
    %57 = vector.load %arg8[%c0_25, %c0_26] : memref<128x128xf32, #tpu.memory_space<vmem>>, vector<128x128xf32>
    %cst_27 = arith.constant dense<0.000000e+00> : vector<8x128xf32>
    %58 = tpu.matmul %56, %57, %cst_27 {dimension_numbers = #tpu.dot_dimension_numbers<[1], [0], [0], [1], [0, 0, 1, 1], [], []>} : vector<8x128xf32>, vector<128x128xf32>, vector<8x128xf32> -> vector<8x128xf32>
    %c0_28 = arith.constant 0 : index
    %c0_29 = arith.constant 0 : index
    %59 = vector.load %arg9[%c0_28, %c0_29] : memref<1x128xf32, #tpu.memory_space<vmem>>, vector<1x128xf32>
    %60 = vector.broadcast %59 : vector<1x128xf32> to vector<8x128xf32>
    %61 = arith.addf %58, %60 : vector<8x128xf32>
    %c0_30 = arith.constant 0 : index
    %c0_31 = arith.constant 0 : index
    %62 = vector.load %arg10[%c0_30, %c0_31] : memref<8x128xf32, #tpu.memory_space<vmem>>, vector<8x128xf32>
    tpu.vector_store %arg10[%c0_30, %c0_31], %61 {strides = array<i32>} : memref<8x128xf32, #tpu.memory_space<vmem>>, vector<8x128xf32>,
    return
  }
  func.func @transform_0(%arg0: i32) -> (i32, i32, i32, i32) {
    %c0_i32 = arith.constant 0 : i32
    %c0_i32_0 = arith.constant 0 : i32
    %c0_i32_1 = arith.constant 0 : i32
    %c0_i32_2 = arith.constant 0 : i32
    return %arg0, %c0_i32, %c0_i32_0, %c0_i32_1 : i32, i32, i32, i32
  }
  func.func @transform_1(%arg0: i32) -> (i32, i32) {
    %c0_i32 = arith.constant 0 : i32
    %c0_i32_0 = arith.constant 0 : i32
    %c0_i32_1 = arith.constant 0 : i32
    return %c0_i32, %c0_i32_0 : i32, i32
  }
  func.func @transform_2(%arg0: i32) -> (i32, i32) {
    %c0_i32 = arith.constant 0 : i32
    %c0_i32_0 = arith.constant 0 : i32
    %c0_i32_1 = arith.constant 0 : i32
    return %c0_i32, %c0_i32_0 : i32, i32
  }
  func.func @transform_3(%arg0: i32) -> (i32, i32) {
    %c0_i32 = arith.constant 0 : i32
    %c0_i32_0 = arith.constant 0 : i32
    %c0_i32_1 = arith.constant 0 : i32
    return %c0_i32, %c0_i32_0 : i32, i32
  }
  func.func @transform_4(%arg0: i32) -> (i32, i32) {
    %c0_i32 = arith.constant 0 : i32
    %c0_i32_0 = arith.constant 0 : i32
    %c0_i32_1 = arith.constant 0 : i32
    return %c0_i32, %c0_i32_0 : i32, i32
  }
  func.func @transform_5(%arg0: i32) -> (i32, i32) {
    %c0_i32 = arith.constant 0 : i32
    %c0_i32_0 = arith.constant 0 : i32
    %c0_i32_1 = arith.constant 0 : i32
    return %c0_i32, %c0_i32_0 : i32, i32
  }
  func.func @transform_6(%arg0: i32) -> (i32, i32) {
    %c0_i32 = arith.constant 0 : i32
    %c0_i32_0 = arith.constant 0 : i32
    %c0_i32_1 = arith.constant 0 : i32
    return %c0_i32, %c0_i32_0 : i32, i32
  }
  func.func @transform_7(%arg0: i32) -> (i32, i32) {
    %c0_i32 = arith.constant 0 : i32
    %c0_i32_0 = arith.constant 0 : i32
    %c0_i32_1 = arith.constant 0 : i32
    return %c0_i32, %c0_i32_0 : i32, i32
  }
  func.func @transform_8(%arg0: i32) -> (i32, i32) {
    %c0_i32 = arith.constant 0 : i32
    %c0_i32_0 = arith.constant 0 : i32
    %c0_i32_1 = arith.constant 0 : i32
    return %c0_i32, %c0_i32_0 : i32, i32
  }
  func.func @transform_9(%arg0: i32) -> (i32, i32) {
    %c0_i32 = arith.constant 0 : i32
    %c0_i32_0 = arith.constant 0 : i32
    return %arg0, %c0_i32 : i32, i32
  }
}

</mosaic_0001>

<llo_original>
// kernel: tpu_custom_call.1
$region0: #{tpu_custom_call.1}
  #allocation0 [shape = 'u32[]', space=smem, size = 0x4, offset = 0x4, fixed_abs, tag = 'smem constant byte address 0x4 - core index']
  #allocation1 [shape = 'u32[144,128]{1,0:T(1,128)}', space=vmem, size = 0x12000, scoped, tag = 'internal scratch']
  %s0 = inlined_call_operand.vmem [shape: f32[24,8,8,12], index: 0, kind: input, shape index: {}]
  %s1 = inlined_call_operand.vmem [shape: bf16[108,32], index: 1, kind: input, shape index: {}]
  %s2 = inlined_call_operand.vmem [shape: f32[1,32], index: 2, kind: input, shape index: {}]
  %s3 = inlined_call_operand.vmem [shape: bf16[288,64], index: 3, kind: input, shape index: {}]
  %s4 = inlined_call_operand.vmem [shape: f32[1,64], index: 4, kind: input, shape index: {}]
  %s5 = inlined_call_operand.vmem [shape: f32[64,128], index: 5, kind: input, shape index: {}]
  %s6 = inlined_call_operand.vmem [shape: f32[1,128], index: 6, kind: input, shape index: {}]
  %s7 = inlined_call_operand.vmem [shape: f32[128,128], index: 7, kind: input, shape index: {}]
  %s8 = inlined_call_operand.vmem [shape: f32[1,128], index: 8, kind: input, shape index: {}]
  %s9 = inlined_call_operand.hbm [shape: f32[24,128], index: 9, kind: output, shape index: {}]
  %s10 = sld [smem:[#allocation0]]
  $region69: #{tpu_custom_call.1} parent=0
    _
  %s12 = ssub.s32 1, %s10
  %s13 = scalar_select 0, %s12, %s10
  $region1: #{tpu_custom_call.1} parent=0
    #allocation2 [shape = 'u8[8192]{0}', space=vmem, size = 0x2000, scoped, tag = 'output window, operand 0']
    #allocation3 [shape = 's32[2]{0}', space=sflag, size = 0x8, scoped, tag = 'scoped memory for tpu_custom_call.1']
    %14 = vsyncpa [#allocation3], 0
    %s15 = scalar_lea.sflag [#allocation3], 1
    %16 = vsyncpa %s15, 0
    loop: start=0, step=1, limit=5
    $region2: #{tpu_custom_call.1} parent=1 // loop_pre_header
      _
    $region3: #{tpu_custom_call.1} parent=1 // loop_header
      %s18 = sphi 0, %s22
      %p19 = scmp.ge.s32.totalorder %s18, 5
      %s28 = sphi 0, %s30
      %s31 = sphi 0, %s28
      %s32 = sphi 0, %s31
      %s48 = sphi 0, %s32
      %s52 = sphi 0, %s52
      %s54 = sphi 0, %s52
      %s55 = sphi 0, %s54
      %s69 = sphi 0, %s55
      %s73 = sphi 0, %s73
      %s75 = sphi 0, %s73
      %s76 = sphi 0, %s75
      %s90 = sphi 0, %s76
      %s94 = sphi 0, %s94
      %s96 = sphi 0, %s94
      %s97 = sphi 0, %s96
      %s111 = sphi 0, %s97
      %s115 = sphi 0, %s115
      %s117 = sphi 0, %s115
      %s118 = sphi 0, %s117
      %s132 = sphi 0, %s118
      %s136 = sphi 0, %s136
      %s138 = sphi 0, %s136
      %s139 = sphi 0, %s138
      %s153 = sphi 0, %s139
      %s157 = sphi 0, %s157
      %s159 = sphi 0, %s157
      %s160 = sphi 0, %s159
      %s174 = sphi 0, %s160
      %s178 = sphi 0, %s178
      %s180 = sphi 0, %s178
      %s181 = sphi 0, %s180
      %s195 = sphi 0, %s181
      %s199 = sphi 0, %s199
      %s201 = sphi 0, %s199
      %s202 = sphi 0, %s201
      %s216 = sphi 0, %s202
      %s222 = sphi 0, %s224
      %s225 = sphi 0, %s222
      %s226 = sphi 0, %s225
      %s242 = sphi 0, %s226
    $region4: #{tpu_custom_call.1} parent=1 // loop_header_branch
      %21 = sbr.rel (%p19) target = $region8
    $region5: #{tpu_custom_call.1} parent=1 // loop_body
      %s23 = ssub.s32 %s18, 1
      %s24 = ssub.s32 %s18, 2
      %s25 = sadd.s32 %s18, 1
      %s26 = ssub.s32 %s18, %s25
      %p27 = scmp.eq.s32.totalorder %s26, 0
      %s29 = sadd.s32 %s28, 1
      %s30 = scalar_select %p27, %s28, %s29
      %p33 = pneg %p27
      %p34 = scmp.eq.s32.totalorder %s18, 2
      %p35 = por %p33, %p34
      %p36 = scmp.ne.s32.totalorder %s28, %s31
      %p37 = scmp.eq.s32.totalorder %s18, 0
      %p38 = por %p36, %p37
      %p39 = scmp.ne.s32.totalorder %s28, %s31
      %p40 = scmp.eq.s32.totalorder %s23, 2
      %p41 = por %p39, %p40
      %p42 = scmp.ne.s32.totalorder %s31, %s32
      %p43 = scmp.eq.s32.totalorder %s23, 0
      %p44 = por %p42, %p43
      %p45 = scmp.ne.s32.totalorder %s31, %s32
      %p46 = scmp.eq.s32.totalorder %s24, 2
      %p47 = por %p45, %p46
      %p49 = scmp.ne.s32.totalorder %s32, %s48
      %p50 = scmp.eq.s32.totalorder %s24, 0
      %p51 = por %p49, %p50
      %s53 = sadd.s32 %s52, 1
      %p56 = scmp.eq.s32.totalorder %s18, 2
      %p57 = scmp.ne.s32.totalorder %s52, %s54
      %p58 = scmp.eq.s32.totalorder %s18, 0
      %p59 = por %p57, %p58
      %p60 = scmp.ne.s32.totalorder %s52, %s54
      %p61 = scmp.eq.s32.totalorder %s23, 2
      %p62 = por %p60, %p61
      %p63 = scmp.ne.s32.totalorder %s54, %s55
      %p64 = scmp.eq.s32.totalorder %s23, 0
      %p65 = por %p63, %p64
      %p66 = scmp.ne.s32.totalorder %s54, %s55
      %p67 = scmp.eq.s32.totalorder %s24, 2
      %p68 = por %p66, %p67
      %p70 = scmp.ne.s32.totalorder %s55, %s69
      %p71 = scmp.eq.s32.totalorder %s24, 0
      %p72 = por %p70, %p71
      %s74 = sadd.s32 %s73, 1
      %p77 = scmp.eq.s32.totalorder %s18, 2
      %p78 = scmp.ne.s32.totalorder %s73, %s75
      %p79 = scmp.eq.s32.totalorder %s18, 0
      %p80 = por %p78, %p79
      %p81 = scmp.ne.s32.totalorder %s73, %s75
      %p82 = scmp.eq.s32.totalorder %s23, 2
      %p83 = por %p81, %p82
      %p84 = scmp.ne.s32.totalorder %s75, %s76
      %p85 = scmp.eq.s32.totalorder %s23, 0
      %p86 = por %p84, %p85
      %p87 = scmp.ne.s32.totalorder %s75, %s76
      %p88 = scmp.eq.s32.totalorder %s24, 2
      %p89 = por %p87, %p88
      %p91 = scmp.ne.s32.totalorder %s76, %s90
      %p92 = scmp.eq.s32.totalorder %s24, 0
      %p93 = por %p91, %p92
      %s95 = sadd.s32 %s94, 1
      %p98 = scmp.eq.s32.totalorder %s18, 2
      %p99 = scmp.ne.s32.totalorder %s94, %s96
      %p100 = scmp.eq.s32.totalorder %s18, 0
      %p101 = por %p99, %p100
      %p102 = scmp.ne.s32.totalorder %s94, %s96
      %p103 = scmp.eq.s32.totalorder %s23, 2
      %p104 = por %p102, %p103
      %p105 = scmp.ne.s32.totalorder %s96, %s97
      %p106 = scmp.eq.s32.totalorder %s23, 0
      %p107 = por %p105, %p106
      %p108 = scmp.ne.s32.totalorder %s96, %s97
      %p109 = scmp.eq.s32.totalorder %s24, 2
      %p110 = por %p108, %p109
      %p112 = scmp.ne.s32.totalorder %s97, %s111
      %p113 = scmp.eq.s32.totalorder %s24, 0
      %p114 = por %p112, %p113
      %s116 = sadd.s32 %s115, 1
      %p119 = scmp.eq.s32.totalorder %s18, 2
      %p120 = scmp.ne.s32.totalorder %s115, %s117
      %p121 = scmp.eq.s32.totalorder %s18, 0
      %p122 = por %p120, %p121
      %p123 = scmp.ne.s32.totalorder %s115, %s117
      %p124 = scmp.eq.s32.totalorder %s23, 2
      %p125 = por %p123, %p124
      %p126 = scmp.ne.s32.totalorder %s117, %s118
      %p127 = scmp.eq.s32.totalorder %s23, 0
      %p128 = por %p126, %p127
      %p129 = scmp.ne.s32.totalorder %s117, %s118
      %p130 = scmp.eq.s32.totalorder %s24, 2
      %p131 = por %p129, %p130
      %p133 = scmp.ne.s32.totalorder %s118, %s132
      %p134 = scmp.eq.s32.totalorder %s24, 0
      %p135 = por %p133, %p134
      %s137 = sadd.s32 %s136, 1
      %p140 = scmp.eq.s32.totalorder %s18, 2
      %p141 = scmp.ne.s32.totalorder %s136, %s138
      %p142 = scmp.eq.s32.totalorder %s18, 0
      %p143 = por %p141, %p142
      %p144 = scmp.ne.s32.totalorder %s136, %s138
      %p145 = scmp.eq.s32.totalorder %s23, 2
      %p146 = por %p144, %p145
      %p147 = scmp.ne.s32.totalorder %s138, %s139
      %p148 = scmp.eq.s32.totalorder %s23, 0
      %p149 = por %p147, %p148
      %p150 = scmp.ne.s32.totalorder %s138, %s139
      %p151 = scmp.eq.s32.totalorder %s24, 2
      %p152 = por %p150, %p151
      %p154 = scmp.ne.s32.totalorder %s139, %s153
      %p155 = scmp.eq.s32.totalorder %s24, 0
      %p156 = por %p154, %p155
      %s158 = sadd.s32 %s157, 1
      %p161 = scmp.eq.s32.totalorder %s18, 2
      %p162 = scmp.ne.s32.totalorder %s157, %s159
      %p163 = scmp.eq.s32.totalorder %s18, 0
      %p164 = por %p162, %p163
      %p165 = scmp.ne.s32.totalorder %s157, %s159
      %p166 = scmp.eq.s32.totalorder %s23, 2
      %p167 = por %p165, %p166
      %p168 = scmp.ne.s32.totalorder %s159, %s160
      %p169 = scmp.eq.s32.totalorder %s23, 0
      %p170 = por %p168, %p169
      %p171 = scmp.ne.s32.totalorder %s159, %s160
      %p172 = scmp.eq.s32.totalorder %s24, 2
      %p173 = por %p171, %p172
      %p175 = scmp.ne.s32.totalorder %s160, %s174
      %p176 = scmp.eq.s32.totalorder %s24, 0
      %p177 = por %p175, %p176
      %s179 = sadd.s32 %s178, 1
      %p182 = scmp.eq.s32.totalorder %s18, 2
      %p183 = scmp.ne.s32.totalorder %s178, %s180
      %p184 = scmp.eq.s32.totalorder %s18, 0
      %p185 = por %p183, %p184
      %p186 = scmp.ne.s32.totalorder %s178, %s180
      %p187 = scmp.eq.s32.totalorder %s23, 2
      %p188 = por %p186, %p187
      %p189 = scmp.ne.s32.totalorder %s180, %s181
      %p190 = scmp.eq.s32.totalorder %s23, 0
      %p191 = por %p189, %p190
      %p192 = scmp.ne.s32.totalorder %s180, %s181
      %p193 = scmp.eq.s32.totalorder %s24, 2
      %p194 = por %p192, %p193
      %p196 = scmp.ne.s32.totalorder %s181, %s195
      %p197 = scmp.eq.s32.totalorder %s24, 0
      %p198 = por %p196, %p197
      %s200 = sadd.s32 %s199, 1
      %p203 = scmp.eq.s32.totalorder %s18, 2
      %p204 = scmp.ne.s32.totalorder %s199, %s201
      %p205 = scmp.eq.s32.totalorder %s18, 0
      %p206 = por %p204, %p205
      %p207 = scmp.ne.s32.totalorder %s199, %s201
      %p208 = scmp.eq.s32.totalorder %s23, 2
      %p209 = por %p207, %p208
      %p210 = scmp.ne.s32.totalorder %s201, %s202
      %p211 = scmp.eq.s32.totalorder %s23, 0
      %p212 = por %p210, %p211
      %p213 = scmp.ne.s32.totalorder %s201, %s202
      %p214 = scmp.eq.s32.totalorder %s24, 2
      %p215 = por %p213, %p214
      %p217 = scmp.ne.s32.totalorder %s202, %s216
      %p218 = scmp.eq.s32.totalorder %s24, 0
      %p219 = por %p217, %p218
      %s220 = ssub.s32 %s18, %s25
      %p221 = scmp.eq.s32.totalorder %s220, 0
      %s223 = sadd.s32 %s222, 1
      %s224 = scalar_select %p221, %s222, %s223
      %p227 = pneg %p221
      %p228 = scmp.eq.s32.totalorder %s18, 2
      %p229 = por %p227, %p228
      %p230 = scmp.ne.s32.totalorder %s222, %s225
      %p231 = scmp.eq.s32.totalorder %s18, 0
      %p232 = por %p230, %p231
      %p233 = scmp.ne.s32.totalorder %s222, %s225
      %p234 = scmp.eq.s32.totalorder %s23, 2
      %p235 = por %p233, %p234
      %p236 = scmp.ne.s32.totalorder %s225, %s226
      %p237 = scmp.eq.s32.totalorder %s23, 0
      %p238 = por %p236, %p237
      %p239 = scmp.ne.s32.totalorder %s225, %s226
      %p240 = scmp.eq.s32.totalorder %s24, 2
      %p241 = por %p239, %p240
      %p243 = scmp.ne.s32.totalorder %s226, %s242
      %p244 = scmp.eq.s32.totalorder %s24, 0
      %p245 = por %p243, %p244
      %p246 = scmp.le.s32.totalorder 1, %s18
      %p247 = scmp.lt.s32.totalorder %s18, 4
      %p248 = pnand %p246, %p247
      %p249 = pneg %p248
      // Predicated region
      $region9: #{tpu_custom_call.1} parent=5 // pred_check
        _
      $region10: #{tpu_custom_call.1} parent=5 // pred_check_branch
        %251 = sbr.rel (%p248) target = $region12
      $region11: #{tpu_custom_call.1} parent=5 // pred_region
        %s252 = ssub.s32 %s18, 1
        // Predicated region
        $region13: #{tpu_custom_call.1} parent=11 // pred_check
          %p253 = pneg %p65
        $region14: #{tpu_custom_call.1} parent=11 // pred_check_branch
          %255 = sbr.rel (%p253) target = $region16
        $region15: #{tpu_custom_call.1} parent=11 // pred_region
          _
        $region16: #{tpu_custom_call.1} parent=11 // pred_fallthru
          _
        // Predicated region
        $region17: #{tpu_custom_call.1} parent=11 // pred_check
          %p256 = pneg %p86
        $region18: #{tpu_custom_call.1} parent=11 // pred_check_branch
          %258 = sbr.rel (%p256) target = $region20
        $region19: #{tpu_custom_call.1} parent=11 // pred_region
          _
        $region20: #{tpu_custom_call.1} parent=11 // pred_fallthru
          _
        // Predicated region
        $region21: #{tpu_custom_call.1} parent=11 // pred_check
          %p259 = pneg %p107
        $region22: #{tpu_custom_call.1} parent=11 // pred_check_branch
          %261 = sbr.rel (%p259) target = $region24
        $region23: #{tpu_custom_call.1} parent=11 // pred_region
          _
        $region24: #{tpu_custom_call.1} parent=11 // pred_fallthru
          _
        // Predicated region
        $region25: #{tpu_custom_call.1} parent=11 // pred_check
          %p262 = pneg %p128
        $region26: #{tpu_custom_call.1} parent=11 // pred_check_branch
          %264 = sbr.rel (%p262) target = $region28
        $region27: #{tpu_custom_call.1} parent=11 // pred_region
          _
        $region28: #{tpu_custom_call.1} parent=11 // pred_fallthru
          _
        // Predicated region
        $region29: #{tpu_custom_call.1} parent=11 // pred_check
          %p265 = pneg %p149
        $region30: #{tpu_custom_call.1} parent=11 // pred_check_branch
          %267 = sbr.rel (%p265) target = $region32
        $region31: #{tpu_custom_call.1} parent=11 // pred_region
          _
        $region32: #{tpu_custom_call.1} parent=11 // pred_fallthru
          _
        // Predicated region
        $region33: #{tpu_custom_call.1} parent=11 // pred_check
          %p268 = pneg %p170
        $region34: #{tpu_custom_call.1} parent=11 // pred_check_branch
          %270 = sbr.rel (%p268) target = $region36
        $region35: #{tpu_custom_call.1} parent=11 // pred_region
          _
        $region36: #{tpu_custom_call.1} parent=11 // pred_fallthru
          _
        // Predicated region
        $region37: #{tpu_custom_call.1} parent=11 // pred_check
          %p271 = pneg %p191
        $region38: #{tpu_custom_call.1} parent=11 // pred_check_branch
          %273 = sbr.rel (%p271) target = $region40
        $region39: #{tpu_custom_call.1} parent=11 // pred_region
          _
        $region40: #{tpu_custom_call.1} parent=11 // pred_fallthru
          _
        // Predicated region
        $region41: #{tpu_custom_call.1} parent=11 // pred_check
          %p274 = pneg %p212
        $region42: #{tpu_custom_call.1} parent=11 // pred_check_branch
          %276 = sbr.rel (%p274) target = $region44
        $region43: #{tpu_custom_call.1} parent=11 // pred_region
          _
        $region44: #{tpu_custom_call.1} parent=11 // pred_fallthru
          _
      $region12: #{tpu_custom_call.1} parent=5 // pred_fallthru
        _
      %p277 = scmp.lt.s32.totalorder %s18, 3
      // Predicated region
      $region45: #{tpu_custom_call.1} parent=5 // pred_check
        %p278 = pneg %p277
      $region46: #{tpu_custom_call.1} parent=5 // pred_check_branch
        %280 = sbr.rel (%p278) target = $region48
      $region47: #{tpu_custom_call.1} parent=5 // pred_region
        // Predicated region
        $region49: #{tpu_custom_call.1} parent=47 // pred_check
          %p281 = pneg %p38
        $region50: #{tpu_custom_call.1} parent=47 // pred_check_branch
          %283 = sbr.rel (%p281) target = $region52
        $region51: #{tpu_custom_call.1} parent=47 // pred_region
          %s284 = smul.u32 8, %s18
          %p285 = scmp.lt.s32.totalorder %s284, 23
          %s286 = scalar_select %p285, %s284, 23
          %s287 = smul.addr %s286, 8
          %s288 = smul.addr %s287, 8
          %s289 = scalar_lea.vmem %s0, %s288
          %s290 = smul.u32 8, %s18
        $region52: #{tpu_custom_call.1} parent=47 // pred_fallthru
          _
      $region48: #{tpu_custom_call.1} parent=5 // pred_fallthru
        _
      %p291 = scmp.le.s32.totalorder 1, %s18
      %p292 = scmp.lt.s32.totalorder %s18, 4
      %p293 = pnand %p291, %p292
      %p294 = pneg %p293
      // Predicated region
      $region53: #{tpu_custom_call.1} parent=5 // pred_check
        _
      $region54: #{tpu_custom_call.1} parent=5 // pred_check_branch
        %296 = sbr.rel (%p293) target = $region56
      $region55: #{tpu_custom_call.1} parent=5 // pred_region
        %s297 = ssub.s32 %s18, 1
        %s298 = smul.u32 8, %s23
        %p299 = scmp.lt.s32.totalorder %s298, 23
        %s300 = scalar_select %p299, %s298, 23
        %s301 = smul.addr %s300, 8
        %s302 = smul.addr %s301, 8
        %s303 = scalar_lea.vmem %s0, %s302
        %p304 = pneg %p44
        %p305 = pneg %p41
        %p306 = pneg %p65
        %p307 = pneg %p62
        %p308 = pneg %p86
        %p309 = pneg %p83
        %p310 = pneg %p107
        %p311 = pneg %p104
        %p312 = pneg %p128
        %p313 = pneg %p125
        %p314 = pneg %p149
        %p315 = pneg %p146
        %p316 = pneg %p170
        %p317 = pneg %p167
        %p318 = pneg %p191
        %p319 = pneg %p188
        %p320 = pneg %p212
        %p321 = pneg %p209
        %p322 = pneg %p238
        %p323 = pneg %p235
        %s324 = sand.u32 %s225, 1
        %s325 = scalar_lea.sflag [#allocation3], %s324
        %s326 = sand.u32 %s225, 1
        %s327 = smul.addr %s326, 8
        %s328 = scalar_lea.vmem [#allocation2], %s327
        %s329 = smul.u32 8, %s23
        %p330 = scmp.lt.s32.totalorder %s329, 23
        %s331 = scalar_select %p330, %s329, 23
        %s332 = smul.addr %s331, 8
        %s333 = smul.addr %s332, 8
        %s334 = scalar_lea.vmem %s0, %s333
        %s335 = smul.u32 8, %s23
        %v337 = vld [vmem:[%s334] sm:$0xff]
        %v338 = vld [vmem:[%s334 + $0x8] sm:$0xff]
        %v339 = vld [vmem:[%s334 + $0x10] sm:$0xff]
        %v340 = vld [vmem:[%s334 + $0x18] sm:$0xff]
        %v341 = vld [vmem:[%s334 + $0x20] sm:$0xff]
        %v342 = vld [vmem:[%s334 + $0x28] sm:$0xff]
        %v343 = vld [vmem:[%s334 + $0x30] sm:$0xff]
        %v344 = vld [vmem:[%s334 + $0x38] sm:$0xff]
        %v345 = vld [vmem:[%s334 + $0x40] sm:$0xff]
        %v346 = vld [vmem:[%s334 + $0x48] sm:$0xff]
        %v347 = vld [vmem:[%s334 + $0x50] sm:$0xff]
        %v348 = vld [vmem:[%s334 + $0x58] sm:$0xff]
        %v349 = vld [vmem:[%s334 + $0x60] sm:$0xff]
        %v350 = vld [vmem:[%s334 + $0x68] sm:$0xff]
        %v351 = vld [vmem:[%s334 + $0x70] sm:$0xff]
        %v352 = vld [vmem:[%s334 + $0x78] sm:$0xff]
        %v353 = vld [vmem:[%s334 + $0x80] sm:$0xff]
        %v354 = vld [vmem:[%s334 + $0x88] sm:$0xff]
        %v355 = vld [vmem:[%s334 + $0x90] sm:$0xff]
        %v356 = vld [vmem:[%s334 + $0x98] sm:$0xff]
        %v357 = vld [vmem:[%s334 + $0xa0] sm:$0xff]
        %v358 = vld [vmem:[%s334 + $0xa8] sm:$0xff]
        %v359 = vld [vmem:[%s334 + $0xb0] sm:$0xff]
        %v360 = vld [vmem:[%s334 + $0xb8] sm:$0xff]
        %v361 = vld [vmem:[%s334 + $0xc0] sm:$0xff]
        %v362 = vld [vmem:[%s334 + $0xc8] sm:$0xff]
        %v363 = vld [vmem:[%s334 + $0xd0] sm:$0xff]
        %v364 = vld [vmem:[%s334 + $0xd8] sm:$0xff]
        %v365 = vld [vmem:[%s334 + $0xe0] sm:$0xff]
        %v366 = vld [vmem:[%s334 + $0xe8] sm:$0xff]
        %v367 = vld [vmem:[%s334 + $0xf0] sm:$0xff]
        %v368 = vld [vmem:[%s334 + $0xf8] sm:$0xff]
        %v369 = vld [vmem:[%s334 + $0x100] sm:$0xff]
        %v370 = vld [vmem:[%s334 + $0x108] sm:$0xff]
        %v371 = vld [vmem:[%s334 + $0x110] sm:$0xff]
        %v372 = vld [vmem:[%s334 + $0x118] sm:$0xff]
        %v373 = vld [vmem:[%s334 + $0x120] sm:$0xff]
        %v374 = vld [vmem:[%s334 + $0x128] sm:$0xff]
        %v375 = vld [vmem:[%s334 + $0x130] sm:$0xff]
        %v376 = vld [vmem:[%s334 + $0x138] sm:$0xff]
        %v377 = vld [vmem:[%s334 + $0x140] sm:$0xff]
        %v378 = vld [vmem:[%s334 + $0x148] sm:$0xff]
        %v379 = vld [vmem:[%s334 + $0x150] sm:$0xff]
        %v380 = vld [vmem:[%s334 + $0x158] sm:$0xff]
        %v381 = vld [vmem:[%s334 + $0x160] sm:$0xff]
        %v382 = vld [vmem:[%s334 + $0x168] sm:$0xff]
        %v383 = vld [vmem:[%s334 + $0x170] sm:$0xff]
        %v384 = vld [vmem:[%s334 + $0x178] sm:$0xff]
        %v385 = vld [vmem:[%s334 + $0x180] sm:$0xff]
        %v386 = vld [vmem:[%s334 + $0x188] sm:$0xff]
        %v387 = vld [vmem:[%s334 + $0x190] sm:$0xff]
        %v388 = vld [vmem:[%s334 + $0x198] sm:$0xff]
        %v389 = vld [vmem:[%s334 + $0x1a0] sm:$0xff]
        %v390 = vld [vmem:[%s334 + $0x1a8] sm:$0xff]
        %v391 = vld [vmem:[%s334 + $0x1b0] sm:$0xff]
        %v392 = vld [vmem:[%s334 + $0x1b8] sm:$0xff]
        %v393 = vld [vmem:[%s334 + $0x1c0] sm:$0xff]
        %v394 = vld [vmem:[%s334 + $0x1c8] sm:$0xff]
        %v395 = vld [vmem:[%s334 + $0x1d0] sm:$0xff]
        %v396 = vld [vmem:[%s334 + $0x1d8] sm:$0xff]
        %v397 = vld [vmem:[%s334 + $0x1e0] sm:$0xff]
        %v398 = vld [vmem:[%s334 + $0x1e8] sm:$0xff]
        %v399 = vld [vmem:[%s334 + $0x1f0] sm:$0xff]
        %v400 = vld [vmem:[%s334 + $0x1f8] sm:$0xff]
        %v401 = vpack.c.bf16 %v337, %v337
        %v402 = vpack.c.bf16 %v338, %v338
        %v403 = vpack.c.bf16 %v339, %v339
        %v404 = vpack.c.bf16 %v340, %v340
        %v405 = vpack.c.bf16 %v341, %v341
        %v406 = vpack.c.bf16 %v342, %v342
        %v407 = vpack.c.bf16 %v343, %v343
        %v408 = vpack.c.bf16 %v344, %v344
        %v409 = vpack.c.bf16 %v345, %v345
        %v410 = vpack.c.bf16 %v346, %v346
        %v411 = vpack.c.bf16 %v347, %v347
        %v412 = vpack.c.bf16 %v348, %v348
        %v413 = vpack.c.bf16 %v349, %v349
        %v414 = vpack.c.bf16 %v350, %v350
        %v415 = vpack.c.bf16 %v351, %v351
        %v416 = vpack.c.bf16 %v352, %v352
        %v417 = vpack.c.bf16 %v353, %v353
        %v418 = vpack.c.bf16 %v354, %v354
        %v419 = vpack.c.bf16 %v355, %v355
        %v420 = vpack.c.bf16 %v356, %v356
        %v421 = vpack.c.bf16 %v357, %v357
        %v422 = vpack.c.bf16 %v358, %v358
        %v423 = vpack.c.bf16 %v359, %v359
        %v424 = vpack.c.bf16 %v360, %v360
        %v425 = vpack.c.bf16 %v361, %v361
        %v426 = vpack.c.bf16 %v362, %v362
        %v427 = vpack.c.bf16 %v363, %v363
        %v428 = vpack.c.bf16 %v364, %v364
        %v429 = vpack.c.bf16 %v365, %v365
        %v430 = vpack.c.bf16 %v366, %v366
        %v431 = vpack.c.bf16 %v367, %v367
        %v432 = vpack.c.bf16 %v368, %v368
        %v433 = vpack.c.bf16 %v369, %v369
        %v434 = vpack.c.bf16 %v370, %v370
        %v435 = vpack.c.bf16 %v371, %v371
        %v436 = vpack.c.bf16 %v372, %v372
        %v437 = vpack.c.bf16 %v373, %v373
        %v438 = vpack.c.bf16 %v374, %v374
        %v439 = vpack.c.bf16 %v375, %v375
        %v440 = vpack.c.bf16 %v376, %v376
        %v441 = vpack.c.bf16 %v377, %v377
        %v442 = vpack.c.bf16 %v378, %v378
        %v443 = vpack.c.bf16 %v379, %v379
        %v444 = vpack.c.bf16 %v380, %v380
        %v445 = vpack.c.bf16 %v381, %v381
        %v446 = vpack.c.bf16 %v382, %v382
        %v447 = vpack.c.bf16 %v383, %v383
        %v448 = vpack.c.bf16 %v384, %v384
        %v449 = vpack.c.bf16 %v385, %v385
        %v450 = vpack.c.bf16 %v386, %v386
        %v451 = vpack.c.bf16 %v387, %v387
        %v452 = vpack.c.bf16 %v388, %v388
        %v453 = vpack.c.bf16 %v389, %v389
        %v454 = vpack.c.bf16 %v390, %v390
        %v455 = vpack.c.bf16 %v391, %v391
        %v456 = vpack.c.bf16 %v392, %v392
        %v457 = vpack.c.bf16 %v393, %v393
        %v458 = vpack.c.bf16 %v394, %v394
        %v459 = vpack.c.bf16 %v395, %v395
        %v460 = vpack.c.bf16 %v396, %v396
        %v461 = vpack.c.bf16 %v397, %v397
        %v462 = vpack.c.bf16 %v398, %v398
        %v463 = vpack.c.bf16 %v399, %v399
        %v464 = vpack.c.bf16 %v400, %v400
        %v466 = vshrl.u32 %v401, 16
        %v468 = vrot.slane %v466, 7
        %v469 = vshll.u32 %v401, 16
        %v471 = vor.u32 %v468, %v469
        %v473 = vshrl.u32 %v402, 16
        %v475 = vrot.slane %v473, 7
        %v476 = vshll.u32 %v402, 16
        %v478 = vor.u32 %v475, %v476
        %v480 = vshrl.u32 %v403, 16
        %v482 = vrot.slane %v480, 7
        %v483 = vshll.u32 %v403, 16
        %v485 = vor.u32 %v482, %v483
        %v487 = vshrl.u32 %v404, 16
        %v489 = vrot.slane %v487, 7
        %v490 = vshll.u32 %v404, 16
        %v492 = vor.u32 %v489, %v490
        %v494 = vshrl.u32 %v405, 16
        %v496 = vrot.slane %v494, 7
        %v497 = vshll.u32 %v405, 16
        %v499 = vor.u32 %v496, %v497
        %v501 = vshrl.u32 %v406, 16
        %v503 = vrot.slane %v501, 7
        %v504 = vshll.u32 %v406, 16
        %v506 = vor.u32 %v503, %v504
        %v508 = vshrl.u32 %v407, 16
        %v510 = vrot.slane %v508, 7
        %v511 = vshll.u32 %v407, 16
        %v513 = vor.u32 %v510, %v511
        %v515 = vshrl.u32 %v408, 16
        %v517 = vrot.slane %v515, 7
        %v518 = vshll.u32 %v408, 16
        %v520 = vor.u32 %v517, %v518
        %v522 = vshrl.u32 %v409, 16
        %v524 = vrot.slane %v522, 7
        %v525 = vshll.u32 %v409, 16
        %v527 = vor.u32 %v524, %v525
        %v529 = vshrl.u32 %v410, 16
        %v531 = vrot.slane %v529, 7
        %v532 = vshll.u32 %v410, 16
        %v534 = vor.u32 %v531, %v532
        %v536 = vshrl.u32 %v411, 16
        %v538 = vrot.slane %v536, 7
        %v539 = vshll.u32 %v411, 16
        %v541 = vor.u32 %v538, %v539
        %v543 = vshrl.u32 %v412, 16
        %v545 = vrot.slane %v543, 7
        %v546 = vshll.u32 %v412, 16
        %v548 = vor.u32 %v545, %v546
        %v550 = vshrl.u32 %v413, 16
        %v552 = vrot.slane %v550, 7
        %v553 = vshll.u32 %v413, 16
        %v555 = vor.u32 %v552, %v553
        %v557 = vshrl.u32 %v414, 16
        %v559 = vrot.slane %v557, 7
        %v560 = vshll.u32 %v414, 16
        %v562 = vor.u32 %v559, %v560
        %v564 = vshrl.u32 %v415, 16
        %v566 = vrot.slane %v564, 7
        %v567 = vshll.u32 %v415, 16
        %v569 = vor.u32 %v566, %v567
        %v571 = vshrl.u32 %v416, 16
        %v573 = vrot.slane %v571, 7
        %v574 = vshll.u32 %v416, 16
        %v576 = vor.u32 %v573, %v574
        %v578 = vshrl.u32 %v417, 16
        %v580 = vrot.slane %v578, 7
        %v581 = vshll.u32 %v417, 16
        %v583 = vor.u32 %v580, %v581
        %v585 = vshrl.u32 %v418, 16
        %v587 = vrot.slane %v585, 7
        %v588 = vshll.u32 %v418, 16
        %v590 = vor.u32 %v587, %v588
        %v592 = vshrl.u32 %v419, 16
        %v594 = vrot.slane %v592, 7
        %v595 = vshll.u32 %v419, 16
        %v597 = vor.u32 %v594, %v595
        %v599 = vshrl.u32 %v420, 16
        %v601 = vrot.slane %v599, 7
        %v602 = vshll.u32 %v420, 16
        %v604 = vor.u32 %v601, %v602
        %v606 = vshrl.u32 %v421, 16
        %v608 = vrot.slane %v606, 7
        %v609 = vshll.u32 %v421, 16
        %v611 = vor.u32 %v608, %v609
        %v613 = vshrl.u32 %v422, 16
        %v615 = vrot.slane %v613, 7
        %v616 = vshll.u32 %v422, 16
        %v618 = vor.u32 %v615, %v616
        %v620 = vshrl.u32 %v423, 16
        %v622 = vrot.slane %v620, 7
        %v623 = vshll.u32 %v423, 16
        %v625 = vor.u32 %v622, %v623
        %v627 = vshrl.u32 %v424, 16
        %v629 = vrot.slane %v627, 7
        %v630 = vshll.u32 %v424, 16
        %v632 = vor.u32 %v629, %v630
        %v634 = vshrl.u32 %v425, 16
        %v636 = vrot.slane %v634, 7
        %v637 = vshll.u32 %v425, 16
        %v639 = vor.u32 %v636, %v637
        %v641 = vshrl.u32 %v426, 16
        %v643 = vrot.slane %v641, 7
        %v644 = vshll.u32 %v426, 16
        %v646 = vor.u32 %v643, %v644
        %v648 = vshrl.u32 %v427, 16
        %v650 = vrot.slane %v648, 7
        %v651 = vshll.u32 %v427, 16
        %v653 = vor.u32 %v650, %v651
        %v655 = vshrl.u32 %v428, 16
        %v657 = vrot.slane %v655, 7
        %v658 = vshll.u32 %v428, 16
        %v660 = vor.u32 %v657, %v658
        %v662 = vshrl.u32 %v429, 16
        %v664 = vrot.slane %v662, 7
        %v665 = vshll.u32 %v429, 16
        %v667 = vor.u32 %v664, %v665
        %v669 = vshrl.u32 %v430, 16
        %v671 = vrot.slane %v669, 7
        %v672 = vshll.u32 %v430, 16
        %v674 = vor.u32 %v671, %v672
        %v676 = vshrl.u32 %v431, 16
        %v678 = vrot.slane %v676, 7
        %v679 = vshll.u32 %v431, 16
        %v681 = vor.u32 %v678, %v679
        %v683 = vshrl.u32 %v432, 16
        %v685 = vrot.slane %v683, 7
        %v686 = vshll.u32 %v432, 16
        %v688 = vor.u32 %v685, %v686
        %v690 = vshrl.u32 %v433, 16
        %v692 = vrot.slane %v690, 7
        %v693 = vshll.u32 %v433, 16
        %v695 = vor.u32 %v692, %v693
        %v697 = vshrl.u32 %v434, 16
        %v699 = vrot.slane %v697, 7
        %v700 = vshll.u32 %v434, 16
        %v702 = vor.u32 %v699, %v700
        %v704 = vshrl.u32 %v435, 16
        %v706 = vrot.slane %v704, 7
        %v707 = vshll.u32 %v435, 16
        %v709 = vor.u32 %v706, %v707
        %v711 = vshrl.u32 %v436, 16
        %v713 = vrot.slane %v711, 7
        %v714 = vshll.u32 %v436, 16
        %v716 = vor.u32 %v713, %v714
        %v718 = vshrl.u32 %v437, 16
        %v720 = vrot.slane %v718, 7
        %v721 = vshll.u32 %v437, 16
        %v723 = vor.u32 %v720, %v721
        %v725 = vshrl.u32 %v438, 16
        %v727 = vrot.slane %v725, 7
        %v728 = vshll.u32 %v438, 16
        %v730 = vor.u32 %v727, %v728
        %v732 = vshrl.u32 %v439, 16
        %v734 = vrot.slane %v732, 7
        %v735 = vshll.u32 %v439, 16
        %v737 = vor.u32 %v734, %v735
        %v739 = vshrl.u32 %v440, 16
        %v741 = vrot.slane %v739, 7
        %v742 = vshll.u32 %v440, 16
        %v744 = vor.u32 %v741, %v742
        %v746 = vshrl.u32 %v441, 16
        %v748 = vrot.slane %v746, 7
        %v749 = vshll.u32 %v441, 16
        %v751 = vor.u32 %v748, %v749
        %v753 = vshrl.u32 %v442, 16
        %v755 = vrot.slane %v753, 7
        %v756 = vshll.u32 %v442, 16
        %v758 = vor.u32 %v755, %v756
        %v760 = vshrl.u32 %v443, 16
        %v762 = vrot.slane %v760, 7
        %v763 = vshll.u32 %v443, 16
        %v765 = vor.u32 %v762, %v763
        %v767 = vshrl.u32 %v444, 16
        %v769 = vrot.slane %v767, 7
        %v770 = vshll.u32 %v444, 16
        %v772 = vor.u32 %v769, %v770
        %v774 = vshrl.u32 %v445, 16
        %v776 = vrot.slane %v774, 7
        %v777 = vshll.u32 %v445, 16
        %v779 = vor.u32 %v776, %v777
        %v781 = vshrl.u32 %v446, 16
        %v783 = vrot.slane %v781, 7
        %v784 = vshll.u32 %v446, 16
        %v786 = vor.u32 %v783, %v784
        %v788 = vshrl.u32 %v447, 16
        %v790 = vrot.slane %v788, 7
        %v791 = vshll.u32 %v447, 16
        %v793 = vor.u32 %v790, %v791
        %v795 = vshrl.u32 %v448, 16
        %v797 = vrot.slane %v795, 7
        %v798 = vshll.u32 %v448, 16
        %v800 = vor.u32 %v797, %v798
        %v802 = vshrl.u32 %v449, 16
        %v804 = vrot.slane %v802, 7
        %v805 = vshll.u32 %v449, 16
        %v807 = vor.u32 %v804, %v805
        %v809 = vshrl.u32 %v450, 16
        %v811 = vrot.slane %v809, 7
        %v812 = vshll.u32 %v450, 16
        %v814 = vor.u32 %v811, %v812
        %v816 = vshrl.u32 %v451, 16
        %v818 = vrot.slane %v816, 7
        %v819 = vshll.u32 %v451, 16
        %v821 = vor.u32 %v818, %v819
        %v823 = vshrl.u32 %v452, 16
        %v825 = vrot.slane %v823, 7
        %v826 = vshll.u32 %v452, 16
        %v828 = vor.u32 %v825, %v826
        %v830 = vshrl.u32 %v453, 16
        %v832 = vrot.slane %v830, 7
        %v833 = vshll.u32 %v453, 16
        %v835 = vor.u32 %v832, %v833
        %v837 = vshrl.u32 %v454, 16
        %v839 = vrot.slane %v837, 7
        %v840 = vshll.u32 %v454, 16
        %v842 = vor.u32 %v839, %v840
        %v844 = vshrl.u32 %v455, 16
        %v846 = vrot.slane %v844, 7
        %v847 = vshll.u32 %v455, 16
        %v849 = vor.u32 %v846, %v847
        %v851 = vshrl.u32 %v456, 16
        %v853 = vrot.slane %v851, 7
        %v854 = vshll.u32 %v456, 16
        %v856 = vor.u32 %v853, %v854
        %v858 = vshrl.u32 %v457, 16
        %v860 = vrot.slane %v858, 7
        %v861 = vshll.u32 %v457, 16
        %v863 = vor.u32 %v860, %v861
        %v865 = vshrl.u32 %v458, 16
        %v867 = vrot.slane %v865, 7
        %v868 = vshll.u32 %v458, 16
        %v870 = vor.u32 %v867, %v868
        %v872 = vshrl.u32 %v459, 16
        %v874 = vrot.slane %v872, 7
        %v875 = vshll.u32 %v459, 16
        %v877 = vor.u32 %v874, %v875
        %v879 = vshrl.u32 %v460, 16
        %v881 = vrot.slane %v879, 7
        %v882 = vshll.u32 %v460, 16
        %v884 = vor.u32 %v881, %v882
        %v886 = vshrl.u32 %v461, 16
        %v888 = vrot.slane %v886, 7
        %v889 = vshll.u32 %v461, 16
        %v891 = vor.u32 %v888, %v889
        %v893 = vshrl.u32 %v462, 16
        %v895 = vrot.slane %v893, 7
        %v896 = vshll.u32 %v462, 16
        %v898 = vor.u32 %v895, %v896
        %v900 = vshrl.u32 %v463, 16
        %v902 = vrot.slane %v900, 7
        %v903 = vshll.u32 %v463, 16
        %v905 = vor.u32 %v902, %v903
        %v907 = vshrl.u32 %v464, 16
        %v909 = vrot.slane %v907, 7
        %v910 = vshll.u32 %v464, 16
        %v912 = vor.u32 %v909, %v910
        %vm977 = vcmask 1040384
        %vm978 = vsmask.f32 256
        %vm979 = vmand %vm977, %vm978
        %v980 = vsel %vm979, 0, %v471
        %v981 = vsel %vm979, 0, %v478
        %v982 = vsel %vm979, 0, %v485
        %v983 = vsel %vm979, 0, %v492
        %v984 = vsel %vm979, 0, %v499
        %v985 = vsel %vm979, 0, %v506
        %v986 = vsel %vm979, 0, %v513
        %v987 = vsel %vm979, 0, %v520
        %v988 = vsel %vm979, 0, %v527
        %v989 = vsel %vm979, 0, %v534
        %v990 = vsel %vm979, 0, %v541
        %v991 = vsel %vm979, 0, %v548
        %v992 = vsel %vm979, 0, %v555
        %v993 = vsel %vm979, 0, %v562
        %v994 = vsel %vm979, 0, %v569
        %v995 = vsel %vm979, 0, %v576
        %v996 = vsel %vm979, 0, %v583
        %v997 = vsel %vm979, 0, %v590
        %v998 = vsel %vm979, 0, %v597
        %v999 = vsel %vm979, 0, %v604
        %v1000 = vsel %vm979, 0, %v611
        %v1001 = vsel %vm979, 0, %v618
        %v1002 = vsel %vm979, 0, %v625
        %v1003 = vsel %vm979, 0, %v632
        %v1004 = vsel %vm979, 0, %v639
        %v1005 = vsel %vm979, 0, %v646
        %v1006 = vsel %vm979, 0, %v653
        %v1007 = vsel %vm979, 0, %v660
        %v1008 = vsel %vm979, 0, %v667
        %v1009 = vsel %vm979, 0, %v674
        %v1010 = vsel %vm979, 0, %v681
        %v1011 = vsel %vm979, 0, %v688
        %v1012 = vsel %vm979, 0, %v695
        %v1013 = vsel %vm979, 0, %v702
        %v1014 = vsel %vm979, 0, %v709
        %v1015 = vsel %vm979, 0, %v716
        %v1016 = vsel %vm979, 0, %v723
        %v1017 = vsel %vm979, 0, %v730
        %v1018 = vsel %vm979, 0, %v737
        %v1019 = vsel %vm979, 0, %v744
        %v1020 = vsel %vm979, 0, %v751
        %v1021 = vsel %vm979, 0, %v758
        %v1022 = vsel %vm979, 0, %v765
        %v1023 = vsel %vm979, 0, %v772
        %v1024 = vsel %vm979, 0, %v779
        %v1025 = vsel %vm979, 0, %v786
        %v1026 = vsel %vm979, 0, %v793
        %v1027 = vsel %vm979, 0, %v800
        %v1028 = vsel %vm979, 0, %v807
        %v1029 = vsel %vm979, 0, %v814
        %v1030 = vsel %vm979, 0, %v821
        %v1031 = vsel %vm979, 0, %v828
        %v1032 = vsel %vm979, 0, %v835
        %v1033 = vsel %vm979, 0, %v842
        %v1034 = vsel %vm979, 0, %v849
        %v1035 = vsel %vm979, 0, %v856
        %v1036 = vsel %vm979, 0, %v863
        %v1037 = vsel %vm979, 0, %v870
        %v1038 = vsel %vm979, 0, %v877
        %v1039 = vsel %vm979, 0, %v884
        %v1040 = vsel %vm979, 0, %v891
        %v1041 = vsel %vm979, 0, %v898
        %v1042 = vsel %vm979, 0, %v905
        %v1043 = vsel %vm979, 0, %v912
        %vm1044 = vcmask 1044480
        %vm1045 = vsmask.f32 4352
        %vm1046 = vmand %vm1044, %vm1045
        %v1047 = vsel %vm1046, %v980, 0
        %v1048 = vsel %vm1046, %v981, 0
        %v1049 = vsel %vm1046, %v982, 0
        %v1050 = vsel %vm1046, %v983, 0
        %v1051 = vsel %vm1046, %v984, 0
        %v1052 = vsel %vm1046, %v985, 0
        %v1053 = vsel %vm1046, %v986, 0
        %v1054 = vsel %vm1046, %v987, 0
        %v1055 = vsel %vm1046, %v988, 0
        %v1056 = vsel %vm1046, %v989, 0
        %v1057 = vsel %vm1046, %v990, 0
        %v1058 = vsel %vm1046, %v991, 0
        %v1059 = vsel %vm1046, %v992, 0
        %v1060 = vsel %vm1046, %v993, 0
        %v1061 = vsel %vm1046, %v994, 0
        %v1062 = vsel %vm1046, %v995, 0
        %v1063 = vsel %vm1046, %v996, 0
        %v1064 = vsel %vm1046, %v997, 0
        %v1065 = vsel %vm1046, %v998, 0
        %v1066 = vsel %vm1046, %v999, 0
        %v1067 = vsel %vm1046, %v1000, 0
        %v1068 = vsel %vm1046, %v1001, 0
        %v1069 = vsel %vm1046, %v1002, 0
        %v1070 = vsel %vm1046, %v1003, 0
        %v1071 = vsel %vm1046, %v1004, 0
        %v1072 = vsel %vm1046, %v1005, 0
        %v1073 = vsel %vm1046, %v1006, 0
        %v1074 = vsel %vm1046, %v1007, 0
        %v1075 = vsel %vm1046, %v1008, 0
        %v1076 = vsel %vm1046, %v1009, 0
        %v1077 = vsel %vm1046, %v1010, 0
        %v1078 = vsel %vm1046, %v1011, 0
        %v1079 = vsel %vm1046, %v1012, 0
        %v1080 = vsel %vm1046, %v1013, 0
        %v1081 = vsel %vm1046, %v1014, 0
        %v1082 = vsel %vm1046, %v1015, 0
        %v1083 = vsel %vm1046, %v1016, 0
        %v1084 = vsel %vm1046, %v1017, 0
        %v1085 = vsel %vm1046, %v1018, 0
        %v1086 = vsel %vm1046, %v1019, 0
        %v1087 = vsel %vm1046, %v1020, 0
        %v1088 = vsel %vm1046, %v1021, 0
        %v1089 = vsel %vm1046, %v1022, 0
        %v1090 = vsel %vm1046, %v1023, 0
        %v1091 = vsel %vm1046, %v1024, 0
        %v1092 = vsel %vm1046, %v1025, 0
        %v1093 = vsel %vm1046, %v1026, 0
        %v1094 = vsel %vm1046, %v1027, 0
        %v1095 = vsel %vm1046, %v1028, 0
        %v1096 = vsel %vm1046, %v1029, 0
        %v1097 = vsel %vm1046, %v1030, 0
        %v1098 = vsel %vm1046, %v1031, 0
        %v1099 = vsel %vm1046, %v1032, 0
        %v1100 = vsel %vm1046, %v1033, 0
        %v1101 = vsel %vm1046, %v1034, 0
        %v1102 = vsel %vm1046, %v1035, 0
        %v1103 = vsel %vm1046, %v1036, 0
        %v1104 = vsel %vm1046, %v1037, 0
        %v1105 = vsel %vm1046, %v1038, 0
        %v1106 = vsel %vm1046, %v1039, 0
        %v1107 = vsel %vm1046, %v1040, 0
        %v1108 = vsel %vm1046, %v1041, 0
        %v1109 = vsel %vm1046, %v1042, 0
        %v1110 = vsel %vm1046, %v1043, 0
        %v1112 = vshrl.u32 0, 16
        %v1114 = vshll.u32 0, 16
        %v1116 = vrot.slane %v1114, 1
        %v1117 = vor.u32 %v1112, %v1116
        %v1119 = vshrl.u32 %v1047, 16
        %v1121 = vshll.u32 %v1047, 16
        %v1123 = vrot.slane %v1121, 1
        %v1124 = vor.u32 %v1119, %v1123
        %v1126 = vshrl.u32 %v1048, 16
        %v1128 = vshll.u32 %v1048, 16
        %v1130 = vrot.slane %v1128, 1
        %v1131 = vor.u32 %v1126, %v1130
        %v1133 = vshrl.u32 %v1049, 16
        %v1135 = vshll.u32 %v1049, 16
        %v1137 = vrot.slane %v1135, 1
        %v1138 = vor.u32 %v1133, %v1137
        %v1140 = vshrl.u32 %v1050, 16
        %v1142 = vshll.u32 %v1050, 16
        %v1144 = vrot.slane %v1142, 1
        %v1145 = vor.u32 %v1140, %v1144
        %v1147 = vshrl.u32 %v1051, 16
        %v1149 = vshll.u32 %v1051, 16
        %v1151 = vrot.slane %v1149, 1
        %v1152 = vor.u32 %v1147, %v1151
        %v1154 = vshrl.u32 %v1052, 16
        %v1156 = vshll.u32 %v1052, 16
        %v1158 = vrot.slane %v1156, 1
        %v1159 = vor.u32 %v1154, %v1158
        %v1161 = vshrl.u32 %v1053, 16
        %v1163 = vshll.u32 %v1053, 16
        %v1165 = vrot.slane %v1163, 1
        %v1166 = vor.u32 %v1161, %v1165
        %v1168 = vshrl.u32 %v1055, 16
        %v1170 = vshll.u32 %v1055, 16
        %v1172 = vrot.slane %v1170, 1
        %v1173 = vor.u32 %v1168, %v1172
        %v1175 = vshrl.u32 %v1056, 16
        %v1177 = vshll.u32 %v1056, 16
        %v1179 = vrot.slane %v1177, 1
        %v1180 = vor.u32 %v1175, %v1179
        %v1182 = vshrl.u32 %v1057, 16
        %v1184 = vshll.u32 %v1057, 16
        %v1186 = vrot.slane %v1184, 1
        %v1187 = vor.u32 %v1182, %v1186
        %v1189 = vshrl.u32 %v1058, 16
        %v1191 = vshll.u32 %v1058, 16
        %v1193 = vrot.slane %v1191, 1
        %v1194 = vor.u32 %v1189, %v1193
        %v1196 = vshrl.u32 %v1059, 16
        %v1198 = vshll.u32 %v1059, 16
        %v1200 = vrot.slane %v1198, 1
        %v1201 = vor.u32 %v1196, %v1200
        %v1203 = vshrl.u32 %v1060, 16
        %v1205 = vshll.u32 %v1060, 16
        %v1207 = vrot.slane %v1205, 1
        %v1208 = vor.u32 %v1203, %v1207
        %v1210 = vshrl.u32 %v1061, 16
        %v1212 = vshll.u32 %v1061, 16
        %v1214 = vrot.slane %v1212, 1
        %v1215 = vor.u32 %v1210, %v1214
        %v1217 = vshrl.u32 %v1063, 16
        %v1219 = vshll.u32 %v1063, 16
        %v1221 = vrot.slane %v1219, 1
        %v1222 = vor.u32 %v1217, %v1221
        %v1224 = vshrl.u32 %v1064, 16
        %v1226 = vshll.u32 %v1064, 16
        %v1228 = vrot.slane %v1226, 1
        %v1229 = vor.u32 %v1224, %v1228
        %v1231 = vshrl.u32 %v1065, 16
        %v1233 = vshll.u32 %v1065, 16
        %v1235 = vrot.slane %v1233, 1
        %v1236 = vor.u32 %v1231, %v1235
        %v1238 = vshrl.u32 %v1066, 16
        %v1240 = vshll.u32 %v1066, 16
        %v1242 = vrot.slane %v1240, 1
        %v1243 = vor.u32 %v1238, %v1242
        %v1245 = vshrl.u32 %v1067, 16
        %v1247 = vshll.u32 %v1067, 16
        %v1249 = vrot.slane %v1247, 1
        %v1250 = vor.u32 %v1245, %v1249
        %v1252 = vshrl.u32 %v1068, 16
        %v1254 = vshll.u32 %v1068, 16
        %v1256 = vrot.slane %v1254, 1
        %v1257 = vor.u32 %v1252, %v1256
        %v1259 = vshrl.u32 %v1069, 16
        %v1261 = vshll.u32 %v1069, 16
        %v1263 = vrot.slane %v1261, 1
        %v1264 = vor.u32 %v1259, %v1263
        %v1266 = vshrl.u32 %v1071, 16
        %v1268 = vshll.u32 %v1071, 16
        %v1270 = vrot.slane %v1268, 1
        %v1271 = vor.u32 %v1266, %v1270
        %v1273 = vshrl.u32 %v1072, 16
        %v1275 = vshll.u32 %v1072, 16
        %v1277 = vrot.slane %v1275, 1
        %v1278 = vor.u32 %v1273, %v1277
        %v1280 = vshrl.u32 %v1073, 16
        %v1282 = vshll.u32 %v1073, 16
        %v1284 = vrot.slane %v1282, 1
        %v1285 = vor.u32 %v1280, %v1284
        %v1287 = vshrl.u32 %v1074, 16
        %v1289 = vshll.u32 %v1074, 16
        %v1291 = vrot.slane %v1289, 1
        %v1292 = vor.u32 %v1287, %v1291
        %v1294 = vshrl.u32 %v1075, 16
        %v1296 = vshll.u32 %v1075, 16
        %v1298 = vrot.slane %v1296, 1
        %v1299 = vor.u32 %v1294, %v1298
        %v1301 = vshrl.u32 %v1076, 16
        %v1303 = vshll.u32 %v1076, 16
        %v1305 = vrot.slane %v1303, 1
        %v1306 = vor.u32 %v1301, %v1305
        %v1308 = vshrl.u32 %v1077, 16
        %v1310 = vshll.u32 %v1077, 16
        %v1312 = vrot.slane %v1310, 1
        %v1313 = vor.u32 %v1308, %v1312
        %v1315 = vshrl.u32 %v1079, 16
        %v1317 = vshll.u32 %v1079, 16
        %v1319 = vrot.slane %v1317, 1
        %v1320 = vor.u32 %v1315, %v1319
        %v1322 = vshrl.u32 %v1080, 16
        %v1324 = vshll.u32 %v1080, 16
        %v1326 = vrot.slane %v1324, 1
        %v1327 = vor.u32 %v1322, %v1326
        %v1329 = vshrl.u32 %v1081, 16
        %v1331 = vshll.u32 %v1081, 16
        %v1333 = vrot.slane %v1331, 1
        %v1334 = vor.u32 %v1329, %v1333
        %v1336 = vshrl.u32 %v1082, 16
        %v1338 = vshll.u32 %v1082, 16
        %v1340 = vrot.slane %v1338, 1
        %v1341 = vor.u32 %v1336, %v1340
        %v1343 = vshrl.u32 %v1083, 16
        %v1345 = vshll.u32 %v1083, 16
        %v1347 = vrot.slane %v1345, 1
        %v1348 = vor.u32 %v1343, %v1347
        %v1350 = vshrl.u32 %v1084, 16
        %v1352 = vshll.u32 %v1084, 16
        %v1354 = vrot.slane %v1352, 1
        %v1355 = vor.u32 %v1350, %v1354
        %v1357 = vshrl.u32 %v1085, 16
        %v1359 = vshll.u32 %v1085, 16
        %v1361 = vrot.slane %v1359, 1
        %v1362 = vor.u32 %v1357, %v1361
        %v1364 = vshrl.u32 %v1087, 16
        %v1366 = vshll.u32 %v1087, 16
        %v1368 = vrot.slane %v1366, 1
        %v1369 = vor.u32 %v1364, %v1368
        %v1371 = vshrl.u32 %v1088, 16
        %v1373 = vshll.u32 %v1088, 16
        %v1375 = vrot.slane %v1373, 1
        %v1376 = vor.u32 %v1371, %v1375
        %v1378 = vshrl.u32 %v1089, 16
        %v1380 = vshll.u32 %v1089, 16
        %v1382 = vrot.slane %v1380, 1
        %v1383 = vor.u32 %v1378, %v1382
        %v1385 = vshrl.u32 %v1090, 16
        %v1387 = vshll.u32 %v1090, 16
        %v1389 = vrot.slane %v1387, 1
        %v1390 = vor.u32 %v1385, %v1389
        %v1392 = vshrl.u32 %v1091, 16
        %v1394 = vshll.u32 %v1091, 16
        %v1396 = vrot.slane %v1394, 1
        %v1397 = vor.u32 %v1392, %v1396
        %v1399 = vshrl.u32 %v1092, 16
        %v1401 = vshll.u32 %v1092, 16
        %v1403 = vrot.slane %v1401, 1
        %v1404 = vor.u32 %v1399, %v1403
        %v1406 = vshrl.u32 %v1093, 16
        %v1408 = vshll.u32 %v1093, 16
        %v1410 = vrot.slane %v1408, 1
        %v1411 = vor.u32 %v1406, %v1410
        %v1413 = vshrl.u32 %v1095, 16
        %v1415 = vshll.u32 %v1095, 16
        %v1417 = vrot.slane %v1415, 1
        %v1418 = vor.u32 %v1413, %v1417
        %v1420 = vshrl.u32 %v1096, 16
        %v1422 = vshll.u32 %v1096, 16
        %v1424 = vrot.slane %v1422, 1
        %v1425 = vor.u32 %v1420, %v1424
        %v1427 = vshrl.u32 %v1097, 16
        %v1429 = vshll.u32 %v1097, 16
        %v1431 = vrot.slane %v1429, 1
        %v1432 = vor.u32 %v1427, %v1431
        %v1434 = vshrl.u32 %v1098, 16
        %v1436 = vshll.u32 %v1098, 16
        %v1438 = vrot.slane %v1436, 1
        %v1439 = vor.u32 %v1434, %v1438
        %v1441 = vshrl.u32 %v1099, 16
        %v1443 = vshll.u32 %v1099, 16
        %v1445 = vrot.slane %v1443, 1
        %v1446 = vor.u32 %v1441, %v1445
        %v1448 = vshrl.u32 %v1100, 16
        %v1450 = vshll.u32 %v1100, 16
        %v1452 = vrot.slane %v1450, 1
        %v1453 = vor.u32 %v1448, %v1452
        %v1455 = vshrl.u32 %v1101, 16
        %v1457 = vshll.u32 %v1101, 16
        %v1459 = vrot.slane %v1457, 1
        %v1460 = vor.u32 %v1455, %v1459
        %v1462 = vshrl.u32 %v1103, 16
        %v1464 = vshll.u32 %v1103, 16
        %v1466 = vrot.slane %v1464, 1
        %v1467 = vor.u32 %v1462, %v1466
        %v1469 = vshrl.u32 %v1104, 16
        %v1471 = vshll.u32 %v1104, 16
        %v1473 = vrot.slane %v1471, 1
        %v1474 = vor.u32 %v1469, %v1473
        %v1476 = vshrl.u32 %v1105, 16
        %v1478 = vshll.u32 %v1105, 16
        %v1480 = vrot.slane %v1478, 1
        %v1481 = vor.u32 %v1476, %v1480
        %v1483 = vshrl.u32 %v1106, 16
        %v1485 = vshll.u32 %v1106, 16
        %v1487 = vrot.slane %v1485, 1
        %v1488 = vor.u32 %v1483, %v1487
        %v1490 = vshrl.u32 %v1107, 16
        %v1492 = vshll.u32 %v1107, 16
        %v1494 = vrot.slane %v1492, 1
        %v1495 = vor.u32 %v1490, %v1494
        %v1497 = vshrl.u32 %v1108, 16
        %v1499 = vshll.u32 %v1108, 16
        %v1501 = vrot.slane %v1499, 1
        %v1502 = vor.u32 %v1497, %v1501
        %v1504 = vshrl.u32 %v1109, 16
        %v1506 = vshll.u32 %v1109, 16
        %v1508 = vrot.slane %v1506, 1
        %v1509 = vor.u32 %v1504, %v1508
        %1510 = vrot.lane.b32.xlu0 %v1117, 12
        %v1511 = vpop.permute.xlu0 %1510
        %1512 = vrot.lane.b32.xlu0 %v1124, 12
        %v1513 = vpop.permute.xlu0 %1512
        %1514 = vrot.lane.b32.xlu0 %v1131, 12
        %v1515 = vpop.permute.xlu0 %1514
        %1516 = vrot.lane.b32.xlu0 %v1138, 12
        %v1517 = vpop.permute.xlu0 %1516
        %1518 = vrot.lane.b32.xlu0 %v1145, 12
        %v1519 = vpop.permute.xlu0 %1518
        %1520 = vrot.lane.b32.xlu0 %v1152, 12
        %v1521 = vpop.permute.xlu0 %1520
        %1522 = vrot.lane.b32.xlu0 %v1159, 12
        %v1523 = vpop.permute.xlu0 %1522
        %1524 = vrot.lane.b32.xlu0 %v1166, 12
        %v1525 = vpop.permute.xlu0 %1524
        %1526 = vrot.lane.b32.xlu0 %v1173, 12
        %v1527 = vpop.permute.xlu0 %1526
        %1528 = vrot.lane.b32.xlu0 %v1180, 12
        %v1529 = vpop.permute.xlu0 %1528
        %1530 = vrot.lane.b32.xlu0 %v1187, 12
        %v1531 = vpop.permute.xlu0 %1530
        %1532 = vrot.lane.b32.xlu0 %v1194, 12
        %v1533 = vpop.permute.xlu0 %1532
        %1534 = vrot.lane.b32.xlu0 %v1201, 12
        %v1535 = vpop.permute.xlu0 %1534
        %1536 = vrot.lane.b32.xlu0 %v1208, 12
        %v1537 = vpop.permute.xlu0 %1536
        %1538 = vrot.lane.b32.xlu0 %v1215, 12
        %v1539 = vpop.permute.xlu0 %1538
        %1540 = vrot.lane.b32.xlu0 %v1222, 12
        %v1541 = vpop.permute.xlu0 %1540
        %1542 = vrot.lane.b32.xlu0 %v1229, 12
        %v1543 = vpop.permute.xlu0 %1542
        %1544 = vrot.lane.b32.xlu0 %v1236, 12
        %v1545 = vpop.permute.xlu0 %1544
        %1546 = vrot.lane.b32.xlu0 %v1243, 12
        %v1547 = vpop.permute.xlu0 %1546
        %1548 = vrot.lane.b32.xlu0 %v1250, 12
        %v1549 = vpop.permute.xlu0 %1548
        %1550 = vrot.lane.b32.xlu0 %v1257, 12
        %v1551 = vpop.permute.xlu0 %1550
        %1552 = vrot.lane.b32.xlu0 %v1264, 12
        %v1553 = vpop.permute.xlu0 %1552
        %1554 = vrot.lane.b32.xlu0 %v1271, 12
        %v1555 = vpop.permute.xlu0 %1554
        %1556 = vrot.lane.b32.xlu0 %v1278, 12
        %v1557 = vpop.permute.xlu0 %1556
        %1558 = vrot.lane.b32.xlu0 %v1285, 12
        %v1559 = vpop.permute.xlu0 %1558
        %1560 = vrot.lane.b32.xlu0 %v1292, 12
        %v1561 = vpop.permute.xlu0 %1560
        %1562 = vrot.lane.b32.xlu0 %v1299, 12
        %v1563 = vpop.permute.xlu0 %1562
        %1564 = vrot.lane.b32.xlu0 %v1306, 12
        %v1565 = vpop.permute.xlu0 %1564
        %1566 = vrot.lane.b32.xlu0 %v1313, 12
        %v1567 = vpop.permute.xlu0 %1566
        %1568 = vrot.lane.b32.xlu0 %v1320, 12
        %v1569 = vpop.permute.xlu0 %1568
        %1570 = vrot.lane.b32.xlu0 %v1327, 12
        %v1571 = vpop.permute.xlu0 %1570
        %1572 = vrot.lane.b32.xlu0 %v1334, 12
        %v1573 = vpop.permute.xlu0 %1572
        %1574 = vrot.lane.b32.xlu0 %v1341, 12
        %v1575 = vpop.permute.xlu0 %1574
        %1576 = vrot.lane.b32.xlu0 %v1348, 12
        %v1577 = vpop.permute.xlu0 %1576
        %1578 = vrot.lane.b32.xlu0 %v1355, 12
        %v1579 = vpop.permute.xlu0 %1578
        %1580 = vrot.lane.b32.xlu0 %v1362, 12
        %v1581 = vpop.permute.xlu0 %1580
        %1582 = vrot.lane.b32.xlu0 %v1369, 12
        %v1583 = vpop.permute.xlu0 %1582
        %1584 = vrot.lane.b32.xlu0 %v1376, 12
        %v1585 = vpop.permute.xlu0 %1584
        %1586 = vrot.lane.b32.xlu0 %v1383, 12
        %v1587 = vpop.permute.xlu0 %1586
        %1588 = vrot.lane.b32.xlu0 %v1390, 12
        %v1589 = vpop.permute.xlu0 %1588
        %1590 = vrot.lane.b32.xlu0 %v1397, 12
        %v1591 = vpop.permute.xlu0 %1590
        %1592 = vrot.lane.b32.xlu0 %v1404, 12
        %v1593 = vpop.permute.xlu0 %1592
        %1594 = vrot.lane.b32.xlu0 %v1411, 12
        %v1595 = vpop.permute.xlu0 %1594
        %1596 = vrot.lane.b32.xlu0 %v1418, 12
        %v1597 = vpop.permute.xlu0 %1596
        %1598 = vrot.lane.b32.xlu0 %v1425, 12
        %v1599 = vpop.permute.xlu0 %1598
        %1600 = vrot.lane.b32.xlu0 %v1432, 12
        %v1601 = vpop.permute.xlu0 %1600
        %1602 = vrot.lane.b32.xlu0 %v1439, 12
        %v1603 = vpop.permute.xlu0 %1602
        %1604 = vrot.lane.b32.xlu0 %v1446, 12
        %v1605 = vpop.permute.xlu0 %1604
        %1606 = vrot.lane.b32.xlu0 %v1453, 12
        %v1607 = vpop.permute.xlu0 %1606
        %1608 = vrot.lane.b32.xlu0 %v1460, 12
        %v1609 = vpop.permute.xlu0 %1608
        %1610 = vrot.lane.b32.xlu0 %v1467, 12
        %v1611 = vpop.permute.xlu0 %1610
        %1612 = vrot.lane.b32.xlu0 %v1474, 12
        %v1613 = vpop.permute.xlu0 %1612
        %1614 = vrot.lane.b32.xlu0 %v1481, 12
        %v1615 = vpop.permute.xlu0 %1614
        %1616 = vrot.lane.b32.xlu0 %v1488, 12
        %v1617 = vpop.permute.xlu0 %1616
        %1618 = vrot.lane.b32.xlu0 %v1495, 12
        %v1619 = vpop.permute.xlu0 %1618
        %1620 = vrot.lane.b32.xlu0 %v1502, 12
        %v1621 = vpop.permute.xlu0 %1620
        %1622 = vrot.lane.b32.xlu0 %v1509, 12
        %v1623 = vpop.permute.xlu0 %1622
        %v1681 = vrot.slane 0, 1
        %v1682 = vrot.slane %v1047, 1
        %v1683 = vrot.slane %v1048, 1
        %v1684 = vrot.slane %v1049, 1
        %v1685 = vrot.slane %v1050, 1
        %v1686 = vrot.slane %v1051, 1
        %v1687 = vrot.slane %v1052, 1
        %v1688 = vrot.slane %v1053, 1
        %v1689 = vrot.slane %v1055, 1
        %v1690 = vrot.slane %v1056, 1
        %v1691 = vrot.slane %v1057, 1
        %v1692 = vrot.slane %v1058, 1
        %v1693 = vrot.slane %v1059, 1
        %v1694 = vrot.slane %v1060, 1
        %v1695 = vrot.slane %v1061, 1
        %v1696 = vrot.slane %v1063, 1
        %v1697 = vrot.slane %v1064, 1
        %v1698 = vrot.slane %v1065, 1
        %v1699 = vrot.slane %v1066, 1
        %v1700 = vrot.slane %v1067, 1
        %v1701 = vrot.slane %v1068, 1
        %v1702 = vrot.slane %v1069, 1
        %v1703 = vrot.slane %v1071, 1
        %v1704 = vrot.slane %v1072, 1
        %v1705 = vrot.slane %v1073, 1
        %v1706 = vrot.slane %v1074, 1
        %v1707 = vrot.slane %v1075, 1
        %v1708 = vrot.slane %v1076, 1
        %v1709 = vrot.slane %v1077, 1
        %v1710 = vrot.slane %v1079, 1
        %v1711 = vrot.slane %v1080, 1
        %v1712 = vrot.slane %v1081, 1
        %v1713 = vrot.slane %v1082, 1
        %v1714 = vrot.slane %v1083, 1
        %v1715 = vrot.slane %v1084, 1
        %v1716 = vrot.slane %v1085, 1
        %v1717 = vrot.slane %v1087, 1
        %v1718 = vrot.slane %v1088, 1
        %v1719 = vrot.slane %v1089, 1
        %v1720 = vrot.slane %v1090, 1
        %v1721 = vrot.slane %v1091, 1
        %v1722 = vrot.slane %v1092, 1
        %v1723 = vrot.slane %v1093, 1
        %v1724 = vrot.slane %v1095, 1
        %v1725 = vrot.slane %v1096, 1
        %v1726 = vrot.slane %v1097, 1
        %v1727 = vrot.slane %v1098, 1
        %v1728 = vrot.slane %v1099, 1
        %v1729 = vrot.slane %v1100, 1
        %v1730 = vrot.slane %v1101, 1
        %v1731 = vrot.slane %v1103, 1
        %v1732 = vrot.slane %v1104, 1
        %v1733 = vrot.slane %v1105, 1
        %v1734 = vrot.slane %v1106, 1
        %v1735 = vrot.slane %v1107, 1
        %v1736 = vrot.slane %v1108, 1
        %v1737 = vrot.slane %v1109, 1
        %1738 = vrot.lane.b32.xlu0 %v1681, 24
        %v1739 = vpop.permute.xlu0 %1738
        %1740 = vrot.lane.b32.xlu0 %v1682, 24
        %v1741 = vpop.permute.xlu0 %1740
        %1742 = vrot.lane.b32.xlu0 %v1683, 24
        %v1743 = vpop.permute.xlu0 %1742
        %1744 = vrot.lane.b32.xlu0 %v1684, 24
        %v1745 = vpop.permute.xlu0 %1744
        %1746 = vrot.lane.b32.xlu0 %v1685, 24
        %v1747 = vpop.permute.xlu0 %1746
        %1748 = vrot.lane.b32.xlu0 %v1686, 24
        %v1749 = vpop.permute.xlu0 %1748
        %1750 = vrot.lane.b32.xlu0 %v1687, 24
        %v1751 = vpop.permute.xlu0 %1750
        %1752 = vrot.lane.b32.xlu0 %v1688, 24
        %v1753 = vpop.permute.xlu0 %1752
        %1754 = vrot.lane.b32.xlu0 %v1689, 24
        %v1755 = vpop.permute.xlu0 %1754
        %1756 = vrot.lane.b32.xlu0 %v1690, 24
        %v1757 = vpop.permute.xlu0 %1756
        %1758 = vrot.lane.b32.xlu0 %v1691, 24
        %v1759 = vpop.permute.xlu0 %1758
        %1760 = vrot.lane.b32.xlu0 %v1692, 24
        %v1761 = vpop.permute.xlu0 %1760
        %1762 = vrot.lane.b32.xlu0 %v1693, 24
        %v1763 = vpop.permute.xlu0 %1762
        %1764 = vrot.lane.b32.xlu0 %v1694, 24
        %v1765 = vpop.permute.xlu0 %1764
        %1766 = vrot.lane.b32.xlu0 %v1695, 24
        %v1767 = vpop.permute.xlu0 %1766
        %1768 = vrot.lane.b32.xlu0 %v1696, 24
        %v1769 = vpop.permute.xlu0 %1768
        %1770 = vrot.lane.b32.xlu0 %v1697, 24
        %v1771 = vpop.permute.xlu0 %1770
        %1772 = vrot.lane.b32.xlu0 %v1698, 24
        %v1773 = vpop.permute.xlu0 %1772
        %1774 = vrot.lane.b32.xlu0 %v1699, 24
        %v1775 = vpop.permute.xlu0 %1774
        %1776 = vrot.lane.b32.xlu0 %v1700, 24
        %v1777 = vpop.permute.xlu0 %1776
        %1778 = vrot.lane.b32.xlu0 %v1701, 24
        %v1779 = vpop.permute.xlu0 %1778
        %1780 = vrot.lane.b32.xlu0 %v1702, 24
        %v1781 = vpop.permute.xlu0 %1780
        %1782 = vrot.lane.b32.xlu0 %v1703, 24
        %v1783 = vpop.permute.xlu0 %1782
        %1784 = vrot.lane.b32.xlu0 %v1704, 24
        %v1785 = vpop.permute.xlu0 %1784
        %1786 = vrot.lane.b32.xlu0 %v1705, 24
        %v1787 = vpop.permute.xlu0 %1786
        %1788 = vrot.lane.b32.xlu0 %v1706, 24
        %v1789 = vpop.permute.xlu0 %1788
        %1790 = vrot.lane.b32.xlu0 %v1707, 24
        %v1791 = vpop.permute.xlu0 %1790
        %1792 = vrot.lane.b32.xlu0 %v1708, 24
        %v1793 = vpop.permute.xlu0 %1792
        %1794 = vrot.lane.b32.xlu0 %v1709, 24
        %v1795 = vpop.permute.xlu0 %1794
        %1796 = vrot.lane.b32.xlu0 %v1710, 24
        %v1797 = vpop.permute.xlu0 %1796
        %1798 = vrot.lane.b32.xlu0 %v1711, 24
        %v1799 = vpop.permute.xlu0 %1798
        %1800 = vrot.lane.b32.xlu0 %v1712, 24
        %v1801 = vpop.permute.xlu0 %1800
        %1802 = vrot.lane.b32.xlu0 %v1713, 24
        %v1803 = vpop.permute.xlu0 %1802
        %1804 = vrot.lane.b32.xlu0 %v1714, 24
        %v1805 = vpop.permute.xlu0 %1804
        %1806 = vrot.lane.b32.xlu0 %v1715, 24
        %v1807 = vpop.permute.xlu0 %1806
        %1808 = vrot.lane.b32.xlu0 %v1716, 24
        %v1809 = vpop.permute.xlu0 %1808
        %1810 = vrot.lane.b32.xlu0 %v1717, 24
        %v1811 = vpop.permute.xlu0 %1810
        %1812 = vrot.lane.b32.xlu0 %v1718, 24
        %v1813 = vpop.permute.xlu0 %1812
        %1814 = vrot.lane.b32.xlu0 %v1719, 24
        %v1815 = vpop.permute.xlu0 %1814
        %1816 = vrot.lane.b32.xlu0 %v1720, 24
        %v1817 = vpop.permute.xlu0 %1816
        %1818 = vrot.lane.b32.xlu0 %v1721, 24
        %v1819 = vpop.permute.xlu0 %1818
        %1820 = vrot.lane.b32.xlu0 %v1722, 24
        %v1821 = vpop.permute.xlu0 %1820
        %1822 = vrot.lane.b32.xlu0 %v1723, 24
        %v1823 = vpop.permute.xlu0 %1822
        %1824 = vrot.lane.b32.xlu0 %v1724, 24
        %v1825 = vpop.permute.xlu0 %1824
        %1826 = vrot.lane.b32.xlu0 %v1725, 24
        %v1827 = vpop.permute.xlu0 %1826
        %1828 = vrot.lane.b32.xlu0 %v1726, 24
        %v1829 = vpop.permute.xlu0 %1828
        %1830 = vrot.lane.b32.xlu0 %v1727, 24
        %v1831 = vpop.permute.xlu0 %1830
        %1832 = vrot.lane.b32.xlu0 %v1728, 24
        %v1833 = vpop.permute.xlu0 %1832
        %1834 = vrot.lane.b32.xlu0 %v1729, 24
        %v1835 = vpop.permute.xlu0 %1834
        %1836 = vrot.lane.b32.xlu0 %v1730, 24
        %v1837 = vpop.permute.xlu0 %1836
        %1838 = vrot.lane.b32.xlu0 %v1731, 24
        %v1839 = vpop.permute.xlu0 %1838
        %1840 = vrot.lane.b32.xlu0 %v1732, 24
        %v1841 = vpop.permute.xlu0 %1840
        %1842 = vrot.lane.b32.xlu0 %v1733, 24
        %v1843 = vpop.permute.xlu0 %1842
        %1844 = vrot.lane.b32.xlu0 %v1734, 24
        %v1845 = vpop.permute.xlu0 %1844
        %1846 = vrot.lane.b32.xlu0 %v1735, 24
        %v1847 = vpop.permute.xlu0 %1846
        %1848 = vrot.lane.b32.xlu0 %v1736, 24
        %v1849 = vpop.permute.xlu0 %1848
        %1850 = vrot.lane.b32.xlu0 %v1737, 24
        %v1851 = vpop.permute.xlu0 %1850
        %1860 = vrot.lane.b32.xlu0 %v1047, 36
        %v1861 = vpop.permute.xlu0 %1860
        %1862 = vrot.lane.b32.xlu0 %v1048, 36
        %v1863 = vpop.permute.xlu0 %1862
        %1864 = vrot.lane.b32.xlu0 %v1049, 36
        %v1865 = vpop.permute.xlu0 %1864
        %1866 = vrot.lane.b32.xlu0 %v1050, 36
        %v1867 = vpop.permute.xlu0 %1866
        %1868 = vrot.lane.b32.xlu0 %v1051, 36
        %v1869 = vpop.permute.xlu0 %1868
        %1870 = vrot.lane.b32.xlu0 %v1052, 36
        %v1871 = vpop.permute.xlu0 %1870
        %1872 = vrot.lane.b32.xlu0 %v1053, 36
        %v1873 = vpop.permute.xlu0 %1872
        %1874 = vrot.lane.b32.xlu0 %v1054, 36
        %v1875 = vpop.permute.xlu0 %1874
        %1876 = vrot.lane.b32.xlu0 %v1055, 36
        %v1877 = vpop.permute.xlu0 %1876
        %1878 = vrot.lane.b32.xlu0 %v1056, 36
        %v1879 = vpop.permute.xlu0 %1878
        %1880 = vrot.lane.b32.xlu0 %v1057, 36
        %v1881 = vpop.permute.xlu0 %1880
        %1882 = vrot.lane.b32.xlu0 %v1058, 36
        %v1883 = vpop.permute.xlu0 %1882
        %1884 = vrot.lane.b32.xlu0 %v1059, 36
        %v1885 = vpop.permute.xlu0 %1884
        %1886 = vrot.lane.b32.xlu0 %v1060, 36
        %v1887 = vpop.permute.xlu0 %1886
        %1888 = vrot.lane.b32.xlu0 %v1061, 36
        %v1889 = vpop.permute.xlu0 %1888
        %1890 = vrot.lane.b32.xlu0 %v1062, 36
        %v1891 = vpop.permute.xlu0 %1890
        %1892 = vrot.lane.b32.xlu0 %v1063, 36
        %v1893 = vpop.permute.xlu0 %1892
        %1894 = vrot.lane.b32.xlu0 %v1064, 36
        %v1895 = vpop.permute.xlu0 %1894
        %1896 = vrot.lane.b32.xlu0 %v1065, 36
        %v1897 = vpop.permute.xlu0 %1896
        %1898 = vrot.lane.b32.xlu0 %v1066, 36
        %v1899 = vpop.permute.xlu0 %1898
        %1900 = vrot.lane.b32.xlu0 %v1067, 36
        %v1901 = vpop.permute.xlu0 %1900
        %1902 = vrot.lane.b32.xlu0 %v1068, 36
        %v1903 = vpop.permute.xlu0 %1902
        %1904 = vrot.lane.b32.xlu0 %v1069, 36
        %v1905 = vpop.permute.xlu0 %1904
        %1906 = vrot.lane.b32.xlu0 %v1070, 36
        %v1907 = vpop.permute.xlu0 %1906
        %1908 = vrot.lane.b32.xlu0 %v1071, 36
        %v1909 = vpop.permute.xlu0 %1908
        %1910 = vrot.lane.b32.xlu0 %v1072, 36
        %v1911 = vpop.permute.xlu0 %1910
        %1912 = vrot.lane.b32.xlu0 %v1073, 36
        %v1913 = vpop.permute.xlu0 %1912
        %1914 = vrot.lane.b32.xlu0 %v1074, 36
        %v1915 = vpop.permute.xlu0 %1914
        %1916 = vrot.lane.b32.xlu0 %v1075, 36
        %v1917 = vpop.permute.xlu0 %1916
        %1918 = vrot.lane.b32.xlu0 %v1076, 36
        %v1919 = vpop.permute.xlu0 %1918
        %1920 = vrot.lane.b32.xlu0 %v1077, 36
        %v1921 = vpop.permute.xlu0 %1920
        %1922 = vrot.lane.b32.xlu0 %v1078, 36
        %v1923 = vpop.permute.xlu0 %1922
        %1924 = vrot.lane.b32.xlu0 %v1079, 36
        %v1925 = vpop.permute.xlu0 %1924
        %1926 = vrot.lane.b32.xlu0 %v1080, 36
        %v1927 = vpop.permute.xlu0 %1926
        %1928 = vrot.lane.b32.xlu0 %v1081, 36
        %v1929 = vpop.permute.xlu0 %1928
        %1930 = vrot.lane.b32.xlu0 %v1082, 36
        %v1931 = vpop.permute.xlu0 %1930
        %1932 = vrot.lane.b32.xlu0 %v1083, 36
        %v1933 = vpop.permute.xlu0 %1932
        %1934 = vrot.lane.b32.xlu0 %v1084, 36
        %v1935 = vpop.permute.xlu0 %1934
        %1936 = vrot.lane.b32.xlu0 %v1085, 36
        %v1937 = vpop.permute.xlu0 %1936
        %1938 = vrot.lane.b32.xlu0 %v1086, 36
        %v1939 = vpop.permute.xlu0 %1938
        %1940 = vrot.lane.b32.xlu0 %v1087, 36
        %v1941 = vpop.permute.xlu0 %1940
        %1942 = vrot.lane.b32.xlu0 %v1088, 36
        %v1943 = vpop.permute.xlu0 %1942
        %1944 = vrot.lane.b32.xlu0 %v1089, 36
        %v1945 = vpop.permute.xlu0 %1944
        %1946 = vrot.lane.b32.xlu0 %v1090, 36
        %v1947 = vpop.permute.xlu0 %1946
        %1948 = vrot.lane.b32.xlu0 %v1091, 36
        %v1949 = vpop.permute.xlu0 %1948
        %1950 = vrot.lane.b32.xlu0 %v1092, 36
        %v1951 = vpop.permute.xlu0 %1950
        %1952 = vrot.lane.b32.xlu0 %v1093, 36
        %v1953 = vpop.permute.xlu0 %1952
        %1954 = vrot.lane.b32.xlu0 %v1094, 36
        %v1955 = vpop.permute.xlu0 %1954
        %1956 = vrot.lane.b32.xlu0 %v1095, 36
        %v1957 = vpop.permute.xlu0 %1956
        %1958 = vrot.lane.b32.xlu0 %v1096, 36
        %v1959 = vpop.permute.xlu0 %1958
        %1960 = vrot.lane.b32.xlu0 %v1097, 36
        %v1961 = vpop.permute.xlu0 %1960
        %1962 = vrot.lane.b32.xlu0 %v1098, 36
        %v1963 = vpop.permute.xlu0 %1962
        %1964 = vrot.lane.b32.xlu0 %v1099, 36
        %v1965 = vpop.permute.xlu0 %1964
        %1966 = vrot.lane.b32.xlu0 %v1100, 36
        %v1967 = vpop.permute.xlu0 %1966
        %1968 = vrot.lane.b32.xlu0 %v1101, 36
        %v1969 = vpop.permute.xlu0 %1968
        %1970 = vrot.lane.b32.xlu0 %v1102, 36
        %v1971 = vpop.permute.xlu0 %1970
        %1972 = vrot.lane.b32.xlu0 %v1103, 36
        %v1973 = vpop.permute.xlu0 %1972
        %1974 = vrot.lane.b32.xlu0 %v1104, 36
        %v1975 = vpop.permute.xlu0 %1974
        %1976 = vrot.lane.b32.xlu0 %v1105, 36
        %v1977 = vpop.permute.xlu0 %1976
        %1978 = vrot.lane.b32.xlu0 %v1106, 36
        %v1979 = vpop.permute.xlu0 %1978
        %1980 = vrot.lane.b32.xlu0 %v1107, 36
        %v1981 = vpop.permute.xlu0 %1980
        %1982 = vrot.lane.b32.xlu0 %v1108, 36
        %v1983 = vpop.permute.xlu0 %1982
        %1984 = vrot.lane.b32.xlu0 %v1109, 36
        %v1985 = vpop.permute.xlu0 %1984
        %1986 = vrot.lane.b32.xlu0 %v1110, 36
        %v1987 = vpop.permute.xlu0 %1986
        %v1989 = vshrl.u32 %v1054, 16
        %v1991 = vshll.u32 %v1054, 16
        %v1993 = vrot.slane %v1991, 1
        %v1994 = vor.u32 %v1989, %v1993
        %v1996 = vshrl.u32 %v1062, 16
        %v1998 = vshll.u32 %v1062, 16
        %v2000 = vrot.slane %v1998, 1
        %v2001 = vor.u32 %v1996, %v2000
        %v2003 = vshrl.u32 %v1070, 16
        %v2005 = vshll.u32 %v1070, 16
        %v2007 = vrot.slane %v2005, 1
        %v2008 = vor.u32 %v2003, %v2007
        %v2010 = vshrl.u32 %v1078, 16
        %v2012 = vshll.u32 %v1078, 16
        %v2014 = vrot.slane %v2012, 1
        %v2015 = vor.u32 %v2010, %v2014
        %v2017 = vshrl.u32 %v1086, 16
        %v2019 = vshll.u32 %v1086, 16
        %v2021 = vrot.slane %v2019, 1
        %v2022 = vor.u32 %v2017, %v2021
        %v2024 = vshrl.u32 %v1094, 16
        %v2026 = vshll.u32 %v1094, 16
        %v2028 = vrot.slane %v2026, 1
        %v2029 = vor.u32 %v2024, %v2028
        %v2031 = vshrl.u32 %v1102, 16
        %v2033 = vshll.u32 %v1102, 16
        %v2035 = vrot.slane %v2033, 1
        %v2036 = vor.u32 %v2031, %v2035
        %v2038 = vshrl.u32 %v1110, 16
        %v2040 = vshll.u32 %v1110, 16
        %v2042 = vrot.slane %v2040, 1
        %v2043 = vor.u32 %v2038, %v2042
        %2044 = vrot.lane.b32.xlu0 %v1124, 48
        %v2045 = vpop.permute.xlu0 %2044
        %2046 = vrot.lane.b32.xlu0 %v1131, 48
        %v2047 = vpop.permute.xlu0 %2046
        %2048 = vrot.lane.b32.xlu0 %v1138, 48
        %v2049 = vpop.permute.xlu0 %2048
        %2050 = vrot.lane.b32.xlu0 %v1145, 48
        %v2051 = vpop.permute.xlu0 %2050
        %2052 = vrot.lane.b32.xlu0 %v1152, 48
        %v2053 = vpop.permute.xlu0 %2052
        %2054 = vrot.lane.b32.xlu0 %v1159, 48
        %v2055 = vpop.permute.xlu0 %2054
        %2056 = vrot.lane.b32.xlu0 %v1166, 48
        %v2057 = vpop.permute.xlu0 %2056
        %2058 = vrot.lane.b32.xlu0 %v1994, 48
        %v2059 = vpop.permute.xlu0 %2058
        %2060 = vrot.lane.b32.xlu0 %v1173, 48
        %v2061 = vpop.permute.xlu0 %2060
        %2062 = vrot.lane.b32.xlu0 %v1180, 48
        %v2063 = vpop.permute.xlu0 %2062
        %2064 = vrot.lane.b32.xlu0 %v1187, 48
        %v2065 = vpop.permute.xlu0 %2064
        %2066 = vrot.lane.b32.xlu0 %v1194, 48
        %v2067 = vpop.permute.xlu0 %2066
        %2068 = vrot.lane.b32.xlu0 %v1201, 48
        %v2069 = vpop.permute.xlu0 %2068
        %2070 = vrot.lane.b32.xlu0 %v1208, 48
        %v2071 = vpop.permute.xlu0 %2070
        %2072 = vrot.lane.b32.xlu0 %v1215, 48
        %v2073 = vpop.permute.xlu0 %2072
        %2074 = vrot.lane.b32.xlu0 %v2001, 48
        %v2075 = vpop.permute.xlu0 %2074
        %2076 = vrot.lane.b32.xlu0 %v1222, 48
        %v2077 = vpop.permute.xlu0 %2076
        %2078 = vrot.lane.b32.xlu0 %v1229, 48
        %v2079 = vpop.permute.xlu0 %2078
        %2080 = vrot.lane.b32.xlu0 %v1236, 48
        %v2081 = vpop.permute.xlu0 %2080
        %2082 = vrot.lane.b32.xlu0 %v1243, 48
        %v2083 = vpop.permute.xlu0 %2082
        %2084 = vrot.lane.b32.xlu0 %v1250, 48
        %v2085 = vpop.permute.xlu0 %2084
        %2086 = vrot.lane.b32.xlu0 %v1257, 48
        %v2087 = vpop.permute.xlu0 %2086
        %2088 = vrot.lane.b32.xlu0 %v1264, 48
        %v2089 = vpop.permute.xlu0 %2088
        %2090 = vrot.lane.b32.xlu0 %v2008, 48
        %v2091 = vpop.permute.xlu0 %2090
        %2092 = vrot.lane.b32.xlu0 %v1271, 48
        %v2093 = vpop.permute.xlu0 %2092
        %2094 = vrot.lane.b32.xlu0 %v1278, 48
        %v2095 = vpop.permute.xlu0 %2094
        %2096 = vrot.lane.b32.xlu0 %v1285, 48
        %v2097 = vpop.permute.xlu0 %2096
        %2098 = vrot.lane.b32.xlu0 %v1292, 48
        %v2099 = vpop.permute.xlu0 %2098
        %2100 = vrot.lane.b32.xlu0 %v1299, 48
        %v2101 = vpop.permute.xlu0 %2100
        %2102 = vrot.lane.b32.xlu0 %v1306, 48
        %v2103 = vpop.permute.xlu0 %2102
        %2104 = vrot.lane.b32.xlu0 %v1313, 48
        %v2105 = vpop.permute.xlu0 %2104
        %2106 = vrot.lane.b32.xlu0 %v2015, 48
        %v2107 = vpop.permute.xlu0 %2106
        %2108 = vrot.lane.b32.xlu0 %v1320, 48
        %v2109 = vpop.permute.xlu0 %2108
        %2110 = vrot.lane.b32.xlu0 %v1327, 48
        %v2111 = vpop.permute.xlu0 %2110
        %2112 = vrot.lane.b32.xlu0 %v1334, 48
        %v2113 = vpop.permute.xlu0 %2112
        %2114 = vrot.lane.b32.xlu0 %v1341, 48
        %v2115 = vpop.permute.xlu0 %2114
        %2116 = vrot.lane.b32.xlu0 %v1348, 48
        %v2117 = vpop.permute.xlu0 %2116
        %2118 = vrot.lane.b32.xlu0 %v1355, 48
        %v2119 = vpop.permute.xlu0 %2118
        %2120 = vrot.lane.b32.xlu0 %v1362, 48
        %v2121 = vpop.permute.xlu0 %2120
        %2122 = vrot.lane.b32.xlu0 %v2022, 48
        %v2123 = vpop.permute.xlu0 %2122
        %2124 = vrot.lane.b32.xlu0 %v1369, 48
        %v2125 = vpop.permute.xlu0 %2124
        %2126 = vrot.lane.b32.xlu0 %v1376, 48
        %v2127 = vpop.permute.xlu0 %2126
        %2128 = vrot.lane.b32.xlu0 %v1383, 48
        %v2129 = vpop.permute.xlu0 %2128
        %2130 = vrot.lane.b32.xlu0 %v1390, 48
        %v2131 = vpop.permute.xlu0 %2130
        %2132 = vrot.lane.b32.xlu0 %v1397, 48
        %v2133 = vpop.permute.xlu0 %2132
        %2134 = vrot.lane.b32.xlu0 %v1404, 48
        %v2135 = vpop.permute.xlu0 %2134
        %2136 = vrot.lane.b32.xlu0 %v1411, 48
        %v2137 = vpop.permute.xlu0 %2136
        %2138 = vrot.lane.b32.xlu0 %v2029, 48
        %v2139 = vpop.permute.xlu0 %2138
        %2140 = vrot.lane.b32.xlu0 %v1418, 48
        %v2141 = vpop.permute.xlu0 %2140
        %2142 = vrot.lane.b32.xlu0 %v1425, 48
        %v2143 = vpop.permute.xlu0 %2142
        %2144 = vrot.lane.b32.xlu0 %v1432, 48
        %v2145 = vpop.permute.xlu0 %2144
        %2146 = vrot.lane.b32.xlu0 %v1439, 48
        %v2147 = vpop.permute.xlu0 %2146
        %2148 = vrot.lane.b32.xlu0 %v1446, 48
        %v2149 = vpop.permute.xlu0 %2148
        %2150 = vrot.lane.b32.xlu0 %v1453, 48
        %v2151 = vpop.permute.xlu0 %2150
        %2152 = vrot.lane.b32.xlu0 %v1460, 48
        %v2153 = vpop.permute.xlu0 %2152
        %2154 = vrot.lane.b32.xlu0 %v2036, 48
        %v2155 = vpop.permute.xlu0 %2154
        %2156 = vrot.lane.b32.xlu0 %v1467, 48
        %v2157 = vpop.permute.xlu0 %2156
        %2158 = vrot.lane.b32.xlu0 %v1474, 48
        %v2159 = vpop.permute.xlu0 %2158
        %2160 = vrot.lane.b32.xlu0 %v1481, 48
        %v2161 = vpop.permute.xlu0 %2160
        %2162 = vrot.lane.b32.xlu0 %v1488, 48
        %v2163 = vpop.permute.xlu0 %2162
        %2164 = vrot.lane.b32.xlu0 %v1495, 48
        %v2165 = vpop.permute.xlu0 %2164
        %2166 = vrot.lane.b32.xlu0 %v1502, 48
        %v2167 = vpop.permute.xlu0 %2166
        %2168 = vrot.lane.b32.xlu0 %v1509, 48
        %v2169 = vpop.permute.xlu0 %2168
        %2170 = vrot.lane.b32.xlu0 %v2043, 48
        %v2171 = vpop.permute.xlu0 %2170
        %v2172 = vrot.slane %v1054, 1
        %v2173 = vrot.slane %v1062, 1
        %v2174 = vrot.slane %v1070, 1
        %v2175 = vrot.slane %v1078, 1
        %v2176 = vrot.slane %v1086, 1
        %v2177 = vrot.slane %v1094, 1
        %v2178 = vrot.slane %v1102, 1
        %v2179 = vrot.slane %v1110, 1
        %2180 = vrot.lane.b32.xlu0 %v1682, 60
        %v2181 = vpop.permute.xlu0 %2180
        %2182 = vrot.lane.b32.xlu0 %v1683, 60
        %v2183 = vpop.permute.xlu0 %2182
        %2184 = vrot.lane.b32.xlu0 %v1684, 60
        %v2185 = vpop.permute.xlu0 %2184
        %2186 = vrot.lane.b32.xlu0 %v1685, 60
        %v2187 = vpop.permute.xlu0 %2186
        %2188 = vrot.lane.b32.xlu0 %v1686, 60
        %v2189 = vpop.permute.xlu0 %2188
        %2190 = vrot.lane.b32.xlu0 %v1687, 60
        %v2191 = vpop.permute.xlu0 %2190
        %2192 = vrot.lane.b32.xlu0 %v1688, 60
        %v2193 = vpop.permute.xlu0 %2192
        %2194 = vrot.lane.b32.xlu0 %v2172, 60
        %v2195 = vpop.permute.xlu0 %2194
        %2196 = vrot.lane.b32.xlu0 %v1689, 60
        %v2197 = vpop.permute.xlu0 %2196
        %2198 = vrot.lane.b32.xlu0 %v1690, 60
        %v2199 = vpop.permute.xlu0 %2198
        %2200 = vrot.lane.b32.xlu0 %v1691, 60
        %v2201 = vpop.permute.xlu0 %2200
        %2202 = vrot.lane.b32.xlu0 %v1692, 60
        %v2203 = vpop.permute.xlu0 %2202
        %2204 = vrot.lane.b32.xlu0 %v1693, 60
        %v2205 = vpop.permute.xlu0 %2204
        %2206 = vrot.lane.b32.xlu0 %v1694, 60
        %v2207 = vpop.permute.xlu0 %2206
        %2208 = vrot.lane.b32.xlu0 %v1695, 60
        %v2209 = vpop.permute.xlu0 %2208
        %2210 = vrot.lane.b32.xlu0 %v2173, 60
        %v2211 = vpop.permute.xlu0 %2210
        %2212 = vrot.lane.b32.xlu0 %v1696, 60
        %v2213 = vpop.permute.xlu0 %2212
        %2214 = vrot.lane.b32.xlu0 %v1697, 60
        %v2215 = vpop.permute.xlu0 %2214
        %2216 = vrot.lane.b32.xlu0 %v1698, 60
        %v2217 = vpop.permute.xlu0 %2216
        %2218 = vrot.lane.b32.xlu0 %v1699, 60
        %v2219 = vpop.permute.xlu0 %2218
        %2220 = vrot.lane.b32.xlu0 %v1700, 60
        %v2221 = vpop.permute.xlu0 %2220
        %2222 = vrot.lane.b32.xlu0 %v1701, 60
        %v2223 = vpop.permute.xlu0 %2222
        %2224 = vrot.lane.b32.xlu0 %v1702, 60
        %v2225 = vpop.permute.xlu0 %2224
        %2226 = vrot.lane.b32.xlu0 %v2174, 60
        %v2227 = vpop.permute.xlu0 %2226
        %2228 = vrot.lane.b32.xlu0 %v1703, 60
        %v2229 = vpop.permute.xlu0 %2228
        %2230 = vrot.lane.b32.xlu0 %v1704, 60
        %v2231 = vpop.permute.xlu0 %2230
        %2232 = vrot.lane.b32.xlu0 %v1705, 60
        %v2233 = vpop.permute.xlu0 %2232
        %2234 = vrot.lane.b32.xlu0 %v1706, 60
        %v2235 = vpop.permute.xlu0 %2234
        %2236 = vrot.lane.b32.xlu0 %v1707, 60
        %v2237 = vpop.permute.xlu0 %2236
        %2238 = vrot.lane.b32.xlu0 %v1708, 60
        %v2239 = vpop.permute.xlu0 %2238
        %2240 = vrot.lane.b32.xlu0 %v1709, 60
        %v2241 = vpop.permute.xlu0 %2240
        %2242 = vrot.lane.b32.xlu0 %v2175, 60
        %v2243 = vpop.permute.xlu0 %2242
        %2244 = vrot.lane.b32.xlu0 %v1710, 60
        %v2245 = vpop.permute.xlu0 %2244
        %2246 = vrot.lane.b32.xlu0 %v1711, 60
        %v2247 = vpop.permute.xlu0 %2246
        %2248 = vrot.lane.b32.xlu0 %v1712, 60
        %v2249 = vpop.permute.xlu0 %2248
        %2250 = vrot.lane.b32.xlu0 %v1713, 60
        %v2251 = vpop.permute.xlu0 %2250
        %2252 = vrot.lane.b32.xlu0 %v1714, 60
        %v2253 = vpop.permute.xlu0 %2252
        %2254 = vrot.lane.b32.xlu0 %v1715, 60
        %v2255 = vpop.permute.xlu0 %2254
        %2256 = vrot.lane.b32.xlu0 %v1716, 60
        %v2257 = vpop.permute.xlu0 %2256
        %2258 = vrot.lane.b32.xlu0 %v2176, 60
        %v2259 = vpop.permute.xlu0 %2258
        %2260 = vrot.lane.b32.xlu0 %v1717, 60
        %v2261 = vpop.permute.xlu0 %2260
        %2262 = vrot.lane.b32.xlu0 %v1718, 60
        %v2263 = vpop.permute.xlu0 %2262
        %2264 = vrot.lane.b32.xlu0 %v1719, 60
        %v2265 = vpop.permute.xlu0 %2264
        %2266 = vrot.lane.b32.xlu0 %v1720, 60
        %v2267 = vpop.permute.xlu0 %2266
        %2268 = vrot.lane.b32.xlu0 %v1721, 60
        %v2269 = vpop.permute.xlu0 %2268
        %2270 = vrot.lane.b32.xlu0 %v1722, 60
        %v2271 = vpop.permute.xlu0 %2270
        %2272 = vrot.lane.b32.xlu0 %v1723, 60
        %v2273 = vpop.permute.xlu0 %2272
        %2274 = vrot.lane.b32.xlu0 %v2177, 60
        %v2275 = vpop.permute.xlu0 %2274
        %2276 = vrot.lane.b32.xlu0 %v1724, 60
        %v2277 = vpop.permute.xlu0 %2276
        %2278 = vrot.lane.b32.xlu0 %v1725, 60
        %v2279 = vpop.permute.xlu0 %2278
        %2280 = vrot.lane.b32.xlu0 %v1726, 60
        %v2281 = vpop.permute.xlu0 %2280
        %2282 = vrot.lane.b32.xlu0 %v1727, 60
        %v2283 = vpop.permute.xlu0 %2282
        %2284 = vrot.lane.b32.xlu0 %v1728, 60
        %v2285 = vpop.permute.xlu0 %2284
        %2286 = vrot.lane.b32.xlu0 %v1729, 60
        %v2287 = vpop.permute.xlu0 %2286
        %2288 = vrot.lane.b32.xlu0 %v1730, 60
        %v2289 = vpop.permute.xlu0 %2288
        %2290 = vrot.lane.b32.xlu0 %v2178, 60
        %v2291 = vpop.permute.xlu0 %2290
        %2292 = vrot.lane.b32.xlu0 %v1731, 60
        %v2293 = vpop.permute.xlu0 %2292
        %2294 = vrot.lane.b32.xlu0 %v1732, 60
        %v2295 = vpop.permute.xlu0 %2294
        %2296 = vrot.lane.b32.xlu0 %v1733, 60
        %v2297 = vpop.permute.xlu0 %2296
        %2298 = vrot.lane.b32.xlu0 %v1734, 60
        %v2299 = vpop.permute.xlu0 %2298
        %2300 = vrot.lane.b32.xlu0 %v1735, 60
        %v2301 = vpop.permute.xlu0 %2300
        %2302 = vrot.lane.b32.xlu0 %v1736, 60
        %v2303 = vpop.permute.xlu0 %2302
        %2304 = vrot.lane.b32.xlu0 %v1737, 60
        %v2305 = vpop.permute.xlu0 %2304
        %2306 = vrot.lane.b32.xlu0 %v2179, 60
        %v2307 = vpop.permute.xlu0 %2306
        %2308 = vrot.lane.b32.xlu0 %v1048, 72
        %v2309 = vpop.permute.xlu0 %2308
        %2310 = vrot.lane.b32.xlu0 %v1049, 72
        %v2311 = vpop.permute.xlu0 %2310
        %2312 = vrot.lane.b32.xlu0 %v1050, 72
        %v2313 = vpop.permute.xlu0 %2312
        %2314 = vrot.lane.b32.xlu0 %v1051, 72
        %v2315 = vpop.permute.xlu0 %2314
        %2316 = vrot.lane.b32.xlu0 %v1052, 72
        %v2317 = vpop.permute.xlu0 %2316
        %2318 = vrot.lane.b32.xlu0 %v1053, 72
        %v2319 = vpop.permute.xlu0 %2318
        %2320 = vrot.lane.b32.xlu0 %v1054, 72
        %v2321 = vpop.permute.xlu0 %2320
        %2322 = vrot.lane.b32.xlu0 0, 72
        %v2323 = vpop.permute.xlu0 %2322
        %2324 = vrot.lane.b32.xlu0 %v1056, 72
        %v2325 = vpop.permute.xlu0 %2324
        %2326 = vrot.lane.b32.xlu0 %v1057, 72
        %v2327 = vpop.permute.xlu0 %2326
        %2328 = vrot.lane.b32.xlu0 %v1058, 72
        %v2329 = vpop.permute.xlu0 %2328
        %2330 = vrot.lane.b32.xlu0 %v1059, 72
        %v2331 = vpop.permute.xlu0 %2330
        %2332 = vrot.lane.b32.xlu0 %v1060, 72
        %v2333 = vpop.permute.xlu0 %2332
        %2334 = vrot.lane.b32.xlu0 %v1061, 72
        %v2335 = vpop.permute.xlu0 %2334
        %2336 = vrot.lane.b32.xlu0 %v1062, 72
        %v2337 = vpop.permute.xlu0 %2336
        %2338 = vrot.lane.b32.xlu0 %v1064, 72
        %v2339 = vpop.permute.xlu0 %2338
        %2340 = vrot.lane.b32.xlu0 %v1065, 72
        %v2341 = vpop.permute.xlu0 %2340
        %2342 = vrot.lane.b32.xlu0 %v1066, 72
        %v2343 = vpop.permute.xlu0 %2342
        %2344 = vrot.lane.b32.xlu0 %v1067, 72
        %v2345 = vpop.permute.xlu0 %2344
        %2346 = vrot.lane.b32.xlu0 %v1068, 72
        %v2347 = vpop.permute.xlu0 %2346
        %2348 = vrot.lane.b32.xlu0 %v1069, 72
        %v2349 = vpop.permute.xlu0 %2348
        %2350 = vrot.lane.b32.xlu0 %v1070, 72
        %v2351 = vpop.permute.xlu0 %2350
        %2352 = vrot.lane.b32.xlu0 %v1072, 72
        %v2353 = vpop.permute.xlu0 %2352
        %2354 = vrot.lane.b32.xlu0 %v1073, 72
        %v2355 = vpop.permute.xlu0 %2354
        %2356 = vrot.lane.b32.xlu0 %v1074, 72
        %v2357 = vpop.permute.xlu0 %2356
        %2358 = vrot.lane.b32.xlu0 %v1075, 72
        %v2359 = vpop.permute.xlu0 %2358
        %2360 = vrot.lane.b32.xlu0 %v1076, 72
        %v2361 = vpop.permute.xlu0 %2360
        %2362 = vrot.lane.b32.xlu0 %v1077, 72
        %v2363 = vpop.permute.xlu0 %2362
        %2364 = vrot.lane.b32.xlu0 %v1078, 72
        %v2365 = vpop.permute.xlu0 %2364
        %2366 = vrot.lane.b32.xlu0 %v1080, 72
        %v2367 = vpop.permute.xlu0 %2366
        %2368 = vrot.lane.b32.xlu0 %v1081, 72
        %v2369 = vpop.permute.xlu0 %2368
        %2370 = vrot.lane.b32.xlu0 %v1082, 72
        %v2371 = vpop.permute.xlu0 %2370
        %2372 = vrot.lane.b32.xlu0 %v1083, 72
        %v2373 = vpop.permute.xlu0 %2372
        %2374 = vrot.lane.b32.xlu0 %v1084, 72
        %v2375 = vpop.permute.xlu0 %2374
        %2376 = vrot.lane.b32.xlu0 %v1085, 72
        %v2377 = vpop.permute.xlu0 %2376
        %2378 = vrot.lane.b32.xlu0 %v1086, 72
        %v2379 = vpop.permute.xlu0 %2378
        %2380 = vrot.lane.b32.xlu0 %v1088, 72
        %v2381 = vpop.permute.xlu0 %2380
        %2382 = vrot.lane.b32.xlu0 %v1089, 72
        %v2383 = vpop.permute.xlu0 %2382
        %2384 = vrot.lane.b32.xlu0 %v1090, 72
        %v2385 = vpop.permute.xlu0 %2384
        %2386 = vrot.lane.b32.xlu0 %v1091, 72
        %v2387 = vpop.permute.xlu0 %2386
        %2388 = vrot.lane.b32.xlu0 %v1092, 72
        %v2389 = vpop.permute.xlu0 %2388
        %2390 = vrot.lane.b32.xlu0 %v1093, 72
        %v2391 = vpop.permute.xlu0 %2390
        %2392 = vrot.lane.b32.xlu0 %v1094, 72
        %v2393 = vpop.permute.xlu0 %2392
        %2394 = vrot.lane.b32.xlu0 %v1096, 72
        %v2395 = vpop.permute.xlu0 %2394
        %2396 = vrot.lane.b32.xlu0 %v1097, 72
        %v2397 = vpop.permute.xlu0 %2396
        %2398 = vrot.lane.b32.xlu0 %v1098, 72
        %v2399 = vpop.permute.xlu0 %2398
        %2400 = vrot.lane.b32.xlu0 %v1099, 72
        %v2401 = vpop.permute.xlu0 %2400
        %2402 = vrot.lane.b32.xlu0 %v1100, 72
        %v2403 = vpop.permute.xlu0 %2402
        %2404 = vrot.lane.b32.xlu0 %v1101, 72
        %v2405 = vpop.permute.xlu0 %2404
        %2406 = vrot.lane.b32.xlu0 %v1102, 72
        %v2407 = vpop.permute.xlu0 %2406
        %2408 = vrot.lane.b32.xlu0 %v1104, 72
        %v2409 = vpop.permute.xlu0 %2408
        %2410 = vrot.lane.b32.xlu0 %v1105, 72
        %v2411 = vpop.permute.xlu0 %2410
        %2412 = vrot.lane.b32.xlu0 %v1106, 72
        %v2413 = vpop.permute.xlu0 %2412
        %2414 = vrot.lane.b32.xlu0 %v1107, 72
        %v2415 = vpop.permute.xlu0 %2414
        %2416 = vrot.lane.b32.xlu0 %v1108, 72
        %v2417 = vpop.permute.xlu0 %2416
        %2418 = vrot.lane.b32.xlu0 %v1109, 72
        %v2419 = vpop.permute.xlu0 %2418
        %2420 = vrot.lane.b32.xlu0 %v1110, 72
        %v2421 = vpop.permute.xlu0 %2420
        %2422 = vrot.lane.b32.xlu0 %v1131, 84
        %v2423 = vpop.permute.xlu0 %2422
        %2424 = vrot.lane.b32.xlu0 %v1138, 84
        %v2425 = vpop.permute.xlu0 %2424
        %2426 = vrot.lane.b32.xlu0 %v1145, 84
        %v2427 = vpop.permute.xlu0 %2426
        %2428 = vrot.lane.b32.xlu0 %v1152, 84
        %v2429 = vpop.permute.xlu0 %2428
        %2430 = vrot.lane.b32.xlu0 %v1159, 84
        %v2431 = vpop.permute.xlu0 %2430
        %2432 = vrot.lane.b32.xlu0 %v1166, 84
        %v2433 = vpop.permute.xlu0 %2432
        %2434 = vrot.lane.b32.xlu0 %v1994, 84
        %v2435 = vpop.permute.xlu0 %2434
        %2436 = vrot.lane.b32.xlu0 %v1117, 84
        %v2437 = vpop.permute.xlu0 %2436
        %2438 = vrot.lane.b32.xlu0 %v1180, 84
        %v2439 = vpop.permute.xlu0 %2438
        %2440 = vrot.lane.b32.xlu0 %v1187, 84
        %v2441 = vpop.permute.xlu0 %2440
        %2442 = vrot.lane.b32.xlu0 %v1194, 84
        %v2443 = vpop.permute.xlu0 %2442
        %2444 = vrot.lane.b32.xlu0 %v1201, 84
        %v2445 = vpop.permute.xlu0 %2444
        %2446 = vrot.lane.b32.xlu0 %v1208, 84
        %v2447 = vpop.permute.xlu0 %2446
        %2448 = vrot.lane.b32.xlu0 %v1215, 84
        %v2449 = vpop.permute.xlu0 %2448
        %2450 = vrot.lane.b32.xlu0 %v2001, 84
        %v2451 = vpop.permute.xlu0 %2450
        %2452 = vrot.lane.b32.xlu0 %v1229, 84
        %v2453 = vpop.permute.xlu0 %2452
        %2454 = vrot.lane.b32.xlu0 %v1236, 84
        %v2455 = vpop.permute.xlu0 %2454
        %2456 = vrot.lane.b32.xlu0 %v1243, 84
        %v2457 = vpop.permute.xlu0 %2456
        %2458 = vrot.lane.b32.xlu0 %v1250, 84
        %v2459 = vpop.permute.xlu0 %2458
        %2460 = vrot.lane.b32.xlu0 %v1257, 84
        %v2461 = vpop.permute.xlu0 %2460
        %2462 = vrot.lane.b32.xlu0 %v1264, 84
        %v2463 = vpop.permute.xlu0 %2462
        %2464 = vrot.lane.b32.xlu0 %v2008, 84
        %v2465 = vpop.permute.xlu0 %2464
        %2466 = vrot.lane.b32.xlu0 %v1278, 84
        %v2467 = vpop.permute.xlu0 %2466
        %2468 = vrot.lane.b32.xlu0 %v1285, 84
        %v2469 = vpop.permute.xlu0 %2468
        %2470 = vrot.lane.b32.xlu0 %v1292, 84
        %v2471 = vpop.permute.xlu0 %2470
        %2472 = vrot.lane.b32.xlu0 %v1299, 84
        %v2473 = vpop.permute.xlu0 %2472
        %2474 = vrot.lane.b32.xlu0 %v1306, 84
        %v2475 = vpop.permute.xlu0 %2474
        %2476 = vrot.lane.b32.xlu0 %v1313, 84
        %v2477 = vpop.permute.xlu0 %2476
        %2478 = vrot.lane.b32.xlu0 %v2015, 84
        %v2479 = vpop.permute.xlu0 %2478
        %2480 = vrot.lane.b32.xlu0 %v1327, 84
        %v2481 = vpop.permute.xlu0 %2480
        %2482 = vrot.lane.b32.xlu0 %v1334, 84
        %v2483 = vpop.permute.xlu0 %2482
        %2484 = vrot.lane.b32.xlu0 %v1341, 84
        %v2485 = vpop.permute.xlu0 %2484
        %2486 = vrot.lane.b32.xlu0 %v1348, 84
        %v2487 = vpop.permute.xlu0 %2486
        %2488 = vrot.lane.b32.xlu0 %v1355, 84
        %v2489 = vpop.permute.xlu0 %2488
        %2490 = vrot.lane.b32.xlu0 %v1362, 84
        %v2491 = vpop.permute.xlu0 %2490
        %2492 = vrot.lane.b32.xlu0 %v2022, 84
        %v2493 = vpop.permute.xlu0 %2492
        %2494 = vrot.lane.b32.xlu0 %v1376, 84
        %v2495 = vpop.permute.xlu0 %2494
        %2496 = vrot.lane.b32.xlu0 %v1383, 84
        %v2497 = vpop.permute.xlu0 %2496
        %2498 = vrot.lane.b32.xlu0 %v1390, 84
        %v2499 = vpop.permute.xlu0 %2498
        %2500 = vrot.lane.b32.xlu0 %v1397, 84
        %v2501 = vpop.permute.xlu0 %2500
        %2502 = vrot.lane.b32.xlu0 %v1404, 84
        %v2503 = vpop.permute.xlu0 %2502
        %2504 = vrot.lane.b32.xlu0 %v1411, 84
        %v2505 = vpop.permute.xlu0 %2504
        %2506 = vrot.lane.b32.xlu0 %v2029, 84
        %v2507 = vpop.permute.xlu0 %2506
        %2508 = vrot.lane.b32.xlu0 %v1425, 84
        %v2509 = vpop.permute.xlu0 %2508
        %2510 = vrot.lane.b32.xlu0 %v1432, 84
        %v2511 = vpop.permute.xlu0 %2510
        %2512 = vrot.lane.b32.xlu0 %v1439, 84
        %v2513 = vpop.permute.xlu0 %2512
        %2514 = vrot.lane.b32.xlu0 %v1446, 84
        %v2515 = vpop.permute.xlu0 %2514
        %2516 = vrot.lane.b32.xlu0 %v1453, 84
        %v2517 = vpop.permute.xlu0 %2516
        %2518 = vrot.lane.b32.xlu0 %v1460, 84
        %v2519 = vpop.permute.xlu0 %2518
        %2520 = vrot.lane.b32.xlu0 %v2036, 84
        %v2521 = vpop.permute.xlu0 %2520
        %2522 = vrot.lane.b32.xlu0 %v1474, 84
        %v2523 = vpop.permute.xlu0 %2522
        %2524 = vrot.lane.b32.xlu0 %v1481, 84
        %v2525 = vpop.permute.xlu0 %2524
        %2526 = vrot.lane.b32.xlu0 %v1488, 84
        %v2527 = vpop.permute.xlu0 %2526
        %2528 = vrot.lane.b32.xlu0 %v1495, 84
        %v2529 = vpop.permute.xlu0 %2528
        %2530 = vrot.lane.b32.xlu0 %v1502, 84
        %v2531 = vpop.permute.xlu0 %2530
        %2532 = vrot.lane.b32.xlu0 %v1509, 84
        %v2533 = vpop.permute.xlu0 %2532
        %2534 = vrot.lane.b32.xlu0 %v2043, 84
        %v2535 = vpop.permute.xlu0 %2534
        %2536 = vrot.lane.b32.xlu0 %v1683, 96
        %v2537 = vpop.permute.xlu0 %2536
        %2538 = vrot.lane.b32.xlu0 %v1684, 96
        %v2539 = vpop.permute.xlu0 %2538
        %2540 = vrot.lane.b32.xlu0 %v1685, 96
        %v2541 = vpop.permute.xlu0 %2540
        %2542 = vrot.lane.b32.xlu0 %v1686, 96
        %v2543 = vpop.permute.xlu0 %2542
        %2544 = vrot.lane.b32.xlu0 %v1687, 96
        %v2545 = vpop.permute.xlu0 %2544
        %2546 = vrot.lane.b32.xlu0 %v1688, 96
        %v2547 = vpop.permute.xlu0 %2546
        %2548 = vrot.lane.b32.xlu0 %v2172, 96
        %v2549 = vpop.permute.xlu0 %2548
        %2550 = vrot.lane.b32.xlu0 %v1681, 96
        %v2551 = vpop.permute.xlu0 %2550
        %2552 = vrot.lane.b32.xlu0 %v1690, 96
        %v2553 = vpop.permute.xlu0 %2552
        %2554 = vrot.lane.b32.xlu0 %v1691, 96
        %v2555 = vpop.permute.xlu0 %2554
        %2556 = vrot.lane.b32.xlu0 %v1692, 96
        %v2557 = vpop.permute.xlu0 %2556
        %2558 = vrot.lane.b32.xlu0 %v1693, 96
        %v2559 = vpop.permute.xlu0 %2558
        %2560 = vrot.lane.b32.xlu0 %v1694, 96
        %v2561 = vpop.permute.xlu0 %2560
        %2562 = vrot.lane.b32.xlu0 %v1695, 96
        %v2563 = vpop.permute.xlu0 %2562
        %2564 = vrot.lane.b32.xlu0 %v2173, 96
        %v2565 = vpop.permute.xlu0 %2564
        %2566 = vrot.lane.b32.xlu0 %v1697, 96
        %v2567 = vpop.permute.xlu0 %2566
        %2568 = vrot.lane.b32.xlu0 %v1698, 96
        %v2569 = vpop.permute.xlu0 %2568
        %2570 = vrot.lane.b32.xlu0 %v1699, 96
        %v2571 = vpop.permute.xlu0 %2570
        %2572 = vrot.lane.b32.xlu0 %v1700, 96
        %v2573 = vpop.permute.xlu0 %2572
        %2574 = vrot.lane.b32.xlu0 %v1701, 96
        %v2575 = vpop.permute.xlu0 %2574
        %2576 = vrot.lane.b32.xlu0 %v1702, 96
        %v2577 = vpop.permute.xlu0 %2576
        %2578 = vrot.lane.b32.xlu0 %v2174, 96
        %v2579 = vpop.permute.xlu0 %2578
        %2580 = vrot.lane.b32.xlu0 %v1704, 96
        %v2581 = vpop.permute.xlu0 %2580
        %2582 = vrot.lane.b32.xlu0 %v1705, 96
        %v2583 = vpop.permute.xlu0 %2582
        %2584 = vrot.lane.b32.xlu0 %v1706, 96
        %v2585 = vpop.permute.xlu0 %2584
        %2586 = vrot.lane.b32.xlu0 %v1707, 96
        %v2587 = vpop.permute.xlu0 %2586
        %2588 = vrot.lane.b32.xlu0 %v1708, 96
        %v2589 = vpop.permute.xlu0 %2588
        %2590 = vrot.lane.b32.xlu0 %v1709, 96
        %v2591 = vpop.permute.xlu0 %2590
        %2592 = vrot.lane.b32.xlu0 %v2175, 96
        %v2593 = vpop.permute.xlu0 %2592
        %2594 = vrot.lane.b32.xlu0 %v1711, 96
        %v2595 = vpop.permute.xlu0 %2594
        %2596 = vrot.lane.b32.xlu0 %v1712, 96
        %v2597 = vpop.permute.xlu0 %2596
        %2598 = vrot.lane.b32.xlu0 %v1713, 96
        %v2599 = vpop.permute.xlu0 %2598
        %2600 = vrot.lane.b32.xlu0 %v1714, 96
        %v2601 = vpop.permute.xlu0 %2600
        %2602 = vrot.lane.b32.xlu0 %v1715, 96
        %v2603 = vpop.permute.xlu0 %2602
        %2604 = vrot.lane.b32.xlu0 %v1716, 96
        %v2605 = vpop.permute.xlu0 %2604
        %2606 = vrot.lane.b32.xlu0 %v2176, 96
        %v2607 = vpop.permute.xlu0 %2606
        %2608 = vrot.lane.b32.xlu0 %v1718, 96
        %v2609 = vpop.permute.xlu0 %2608
        %2610 = vrot.lane.b32.xlu0 %v1719, 96
        %v2611 = vpop.permute.xlu0 %2610
        %2612 = vrot.lane.b32.xlu0 %v1720, 96
        %v2613 = vpop.permute.xlu0 %2612
        %2614 = vrot.lane.b32.xlu0 %v1721, 96
        %v2615 = vpop.permute.xlu0 %2614
        %2616 = vrot.lane.b32.xlu0 %v1722, 96
        %v2617 = vpop.permute.xlu0 %2616
        %2618 = vrot.lane.b32.xlu0 %v1723, 96
        %v2619 = vpop.permute.xlu0 %2618
        %2620 = vrot.lane.b32.xlu0 %v2177, 96
        %v2621 = vpop.permute.xlu0 %2620
        %2622 = vrot.lane.b32.xlu0 %v1725, 96
        %v2623 = vpop.permute.xlu0 %2622
        %2624 = vrot.lane.b32.xlu0 %v1726, 96
        %v2625 = vpop.permute.xlu0 %2624
        %2626 = vrot.lane.b32.xlu0 %v1727, 96
        %v2627 = vpop.permute.xlu0 %2626
        %2628 = vrot.lane.b32.xlu0 %v1728, 96
        %v2629 = vpop.permute.xlu0 %2628
        %2630 = vrot.lane.b32.xlu0 %v1729, 96
        %v2631 = vpop.permute.xlu0 %2630
        %2632 = vrot.lane.b32.xlu0 %v1730, 96
        %v2633 = vpop.permute.xlu0 %2632
        %2634 = vrot.lane.b32.xlu0 %v2178, 96
        %v2635 = vpop.permute.xlu0 %2634
        %2636 = vrot.lane.b32.xlu0 %v1732, 96
        %v2637 = vpop.permute.xlu0 %2636
        %2638 = vrot.lane.b32.xlu0 %v1733, 96
        %v2639 = vpop.permute.xlu0 %2638
        %2640 = vrot.lane.b32.xlu0 %v1734, 96
        %v2641 = vpop.permute.xlu0 %2640
        %2642 = vrot.lane.b32.xlu0 %v1735, 96
        %v2643 = vpop.permute.xlu0 %2642
        %2644 = vrot.lane.b32.xlu0 %v1736, 96
        %v2645 = vpop.permute.xlu0 %2644
        %2646 = vrot.lane.b32.xlu0 %v1737, 96
        %v2647 = vpop.permute.xlu0 %2646
        %2648 = vrot.lane.b32.xlu0 %v2179, 96
        %v2649 = vpop.permute.xlu0 %2648
        %vm2650 = vcmask 97280
        %v2652 = vsel %vm2650, 0, %v1511
        %v2654 = vsel %vm2650, %v1047, %v1513
        %v2656 = vsel %vm2650, %v1048, %v1515
        %v2658 = vsel %vm2650, %v1049, %v1517
        %v2660 = vsel %vm2650, %v1050, %v1519
        %v2662 = vsel %vm2650, %v1051, %v1521
        %v2664 = vsel %vm2650, %v1052, %v1523
        %v2666 = vsel %vm2650, %v1053, %v1525
        %v2668 = vsel %vm2650, %v1055, %v1527
        %v2670 = vsel %vm2650, %v1056, %v1529
        %v2672 = vsel %vm2650, %v1057, %v1531
        %v2674 = vsel %vm2650, %v1058, %v1533
        %v2676 = vsel %vm2650, %v1059, %v1535
        %v2678 = vsel %vm2650, %v1060, %v1537
        %v2680 = vsel %vm2650, %v1061, %v1539
        %v2682 = vsel %vm2650, %v1063, %v1541
        %v2684 = vsel %vm2650, %v1064, %v1543
        %v2686 = vsel %vm2650, %v1065, %v1545
        %v2688 = vsel %vm2650, %v1066, %v1547
        %v2690 = vsel %vm2650, %v1067, %v1549
        %v2692 = vsel %vm2650, %v1068, %v1551
        %v2694 = vsel %vm2650, %v1069, %v1553
        %v2696 = vsel %vm2650, %v1071, %v1555
        %v2698 = vsel %vm2650, %v1072, %v1557
        %v2700 = vsel %vm2650, %v1073, %v1559
        %v2702 = vsel %vm2650, %v1074, %v1561
        %v2704 = vsel %vm2650, %v1075, %v1563
        %v2706 = vsel %vm2650, %v1076, %v1565
        %v2708 = vsel %vm2650, %v1077, %v1567
        %v2710 = vsel %vm2650, %v1079, %v1569
        %v2712 = vsel %vm2650, %v1080, %v1571
        %v2714 = vsel %vm2650, %v1081, %v1573
        %v2716 = vsel %vm2650, %v1082, %v1575
        %v2718 = vsel %vm2650, %v1083, %v1577
        %v2720 = vsel %vm2650, %v1084, %v1579
        %v2722 = vsel %vm2650, %v1085, %v1581
        %v2724 = vsel %vm2650, %v1087, %v1583
        %v2726 = vsel %vm2650, %v1088, %v1585
        %v2728 = vsel %vm2650, %v1089, %v1587
        %v2730 = vsel %vm2650, %v1090, %v1589
        %v2732 = vsel %vm2650, %v1091, %v1591
        %v2734 = vsel %vm2650, %v1092, %v1593
        %v2736 = vsel %vm2650, %v1093, %v1595
        %v2738 = vsel %vm2650, %v1095, %v1597
        %v2740 = vsel %vm2650, %v1096, %v1599
        %v2742 = vsel %vm2650, %v1097, %v1601
        %v2744 = vsel %vm2650, %v1098, %v1603
        %v2746 = vsel %vm2650, %v1099, %v1605
        %v2748 = vsel %vm2650, %v1100, %v1607
        %v2750 = vsel %vm2650, %v1101, %v1609
        %v2752 = vsel %vm2650, %v1103, %v1611
        %v2754 = vsel %vm2650, %v1104, %v1613
        %v2756 = vsel %vm2650, %v1105, %v1615
        %v2758 = vsel %vm2650, %v1106, %v1617
        %v2760 = vsel %vm2650, %v1107, %v1619
        %v2762 = vsel %vm2650, %v1108, %v1621
        %v2764 = vsel %vm2650, %v1109, %v1623
        %vm2765 = vcmask 195584
        %v2767 = vsel %vm2765, %v2652, %v1739
        %v2769 = vsel %vm2765, %v2654, %v1741
        %v2771 = vsel %vm2765, %v2656, %v1743
        %v2773 = vsel %vm2765, %v2658, %v1745
        %v2775 = vsel %vm2765, %v2660, %v1747
        %v2777 = vsel %vm2765, %v2662, %v1749
        %v2779 = vsel %vm2765, %v2664, %v1751
        %v2781 = vsel %vm2765, %v2666, %v1753
        %v2783 = vsel %vm2765, %v2668, %v1755
        %v2785 = vsel %vm2765, %v2670, %v1757
        %v2787 = vsel %vm2765, %v2672, %v1759
        %v2789 = vsel %vm2765, %v2674, %v1761
        %v2791 = vsel %vm2765, %v2676, %v1763
        %v2793 = vsel %vm2765, %v2678, %v1765
        %v2795 = vsel %vm2765, %v2680, %v1767
        %v2797 = vsel %vm2765, %v2682, %v1769
        %v2799 = vsel %vm2765, %v2684, %v1771
        %v2801 = vsel %vm2765, %v2686, %v1773
        %v2803 = vsel %vm2765, %v2688, %v1775
        %v2805 = vsel %vm2765, %v2690, %v1777
        %v2807 = vsel %vm2765, %v2692, %v1779
        %v2809 = vsel %vm2765, %v2694, %v1781
        %v2811 = vsel %vm2765, %v2696, %v1783
        %v2813 = vsel %vm2765, %v2698, %v1785
        %v2815 = vsel %vm2765, %v2700, %v1787
        %v2817 = vsel %vm2765, %v2702, %v1789
        %v2819 = vsel %vm2765, %v2704, %v1791
        %v2821 = vsel %vm2765, %v2706, %v1793
        %v2823 = vsel %vm2765, %v2708, %v1795
        %v2825 = vsel %vm2765, %v2710, %v1797
        %v2827 = vsel %vm2765, %v2712, %v1799
        %v2829 = vsel %vm2765, %v2714, %v1801
        %v2831 = vsel %vm2765, %v2716, %v1803
        %v2833 = vsel %vm2765, %v2718, %v1805
        %v2835 = vsel %vm2765, %v2720, %v1807
        %v2837 = vsel %vm2765, %v2722, %v1809
        %v2839 = vsel %vm2765, %v2724, %v1811
        %v2841 = vsel %vm2765, %v2726, %v1813
        %v2843 = vsel %vm2765, %v2728, %v1815
        %v2845 = vsel %vm2765, %v2730, %v1817
        %v2847 = vsel %vm2765, %v2732, %v1819
        %v2849 = vsel %vm2765, %v2734, %v1821
        %v2851 = vsel %vm2765, %v2736, %v1823
        %v2853 = vsel %vm2765, %v2738, %v1825
        %v2855 = vsel %vm2765, %v2740, %v1827
        %v2857 = vsel %vm2765, %v2742, %v1829
        %v2859 = vsel %vm2765, %v2744, %v1831
        %v2861 = vsel %vm2765, %v2746, %v1833
        %v2863 = vsel %vm2765, %v2748, %v1835
        %v2865 = vsel %vm2765, %v2750, %v1837
        %v2867 = vsel %vm2765, %v2752, %v1839
        %v2869 = vsel %vm2765, %v2754, %v1841
        %v2871 = vsel %vm2765, %v2756, %v1843
        %v2873 = vsel %vm2765, %v2758, %v1845
        %v2875 = vsel %vm2765, %v2760, %v1847
        %v2877 = vsel %vm2765, %v2762, %v1849
        %v2879 = vsel %vm2765, %v2764, %v1851
        %vm2880 = vcmask 293888
        %v2882 = vsel %vm2880, %v2767, %v1861
        %v2884 = vsel %vm2880, %v2769, %v1863
        %v2886 = vsel %vm2880, %v2771, %v1865
        %v2888 = vsel %vm2880, %v2773, %v1867
        %v2890 = vsel %vm2880, %v2775, %v1869
        %v2892 = vsel %vm2880, %v2777, %v1871
        %v2894 = vsel %vm2880, %v2779, %v1873
        %v2896 = vsel %vm2880, %v2781, %v1875
        %v2898 = vsel %vm2880, %v2767, %v1877
        %v2900 = vsel %vm2880, %v2783, %v1879
        %v2902 = vsel %vm2880, %v2785, %v1881
        %v2904 = vsel %vm2880, %v2787, %v1883
        %v2906 = vsel %vm2880, %v2789, %v1885
        %v2908 = vsel %vm2880, %v2791, %v1887
        %v2910 = vsel %vm2880, %v2793, %v1889
        %v2912 = vsel %vm2880, %v2795, %v1891
        %v2914 = vsel %vm2880, %v2767, %v1893
        %v2916 = vsel %vm2880, %v2797, %v1895
        %v2918 = vsel %vm2880, %v2799, %v1897
        %v2920 = vsel %vm2880, %v2801, %v1899
        %v2922 = vsel %vm2880, %v2803, %v1901
        %v2924 = vsel %vm2880, %v2805, %v1903
        %v2926 = vsel %vm2880, %v2807, %v1905
        %v2928 = vsel %vm2880, %v2809, %v1907
        %v2930 = vsel %vm2880, %v2767, %v1909
        %v2932 = vsel %vm2880, %v2811, %v1911
        %v2934 = vsel %vm2880, %v2813, %v1913
        %v2936 = vsel %vm2880, %v2815, %v1915
        %v2938 = vsel %vm2880, %v2817, %v1917
        %v2940 = vsel %vm2880, %v2819, %v1919
        %v2942 = vsel %vm2880, %v2821, %v1921
        %v2944 = vsel %vm2880, %v2823, %v1923
        %v2946 = vsel %vm2880, %v2767, %v1925
        %v2948 = vsel %vm2880, %v2825, %v1927
        %v2950 = vsel %vm2880, %v2827, %v1929
        %v2952 = vsel %vm2880, %v2829, %v1931
        %v2954 = vsel %vm2880, %v2831, %v1933
        %v2956 = vsel %vm2880, %v2833, %v1935
        %v2958 = vsel %vm2880, %v2835, %v1937
        %v2960 = vsel %vm2880, %v2837, %v1939
        %v2962 = vsel %vm2880, %v2767, %v1941
        %v2964 = vsel %vm2880, %v2839, %v1943
        %v2966 = vsel %vm2880, %v2841, %v1945
        %v2968 = vsel %vm2880, %v2843, %v1947
        %v2970 = vsel %vm2880, %v2845, %v1949
        %v2972 = vsel %vm2880, %v2847, %v1951
        %v2974 = vsel %vm2880, %v2849, %v1953
        %v2976 = vsel %vm2880, %v2851, %v1955
        %v2978 = vsel %vm2880, %v2767, %v1957
        %v2980 = vsel %vm2880, %v2853, %v1959
        %v2982 = vsel %vm2880, %v2855, %v1961
        %v2984 = vsel %vm2880, %v2857, %v1963
        %v2986 = vsel %vm2880, %v2859, %v1965
        %v2988 = vsel %vm2880, %v2861, %v1967
        %v2990 = vsel %vm2880, %v2863, %v1969
        %v2992 = vsel %vm2880, %v2865, %v1971
        %v2994 = vsel %vm2880, %v2767, %v1973
        %v2996 = vsel %vm2880, %v2867, %v1975
        %v2998 = vsel %vm2880, %v2869, %v1977
        %v3000 = vsel %vm2880, %v2871, %v1979
        %v3002 = vsel %vm2880, %v2873, %v1981
        %v3004 = vsel %vm2880, %v2875, %v1983
        %v3006 = vsel %vm2880, %v2877, %v1985
        %v3008 = vsel %vm2880, %v2879, %v1987
        %vm3009 = vcmask 392192
        %v3011 = vsel %vm3009, %v2882, %v2045
        %v3013 = vsel %vm3009, %v2884, %v2047
        %v3015 = vsel %vm3009, %v2886, %v2049
        %v3017 = vsel %vm3009, %v2888, %v2051
        %v3019 = vsel %vm3009, %v2890, %v2053
        %v3021 = vsel %vm3009, %v2892, %v2055
        %v3023 = vsel %vm3009, %v2894, %v2057
        %v3025 = vsel %vm3009, %v2896, %v2059
        %v3027 = vsel %vm3009, %v2898, %v2061
        %v3029 = vsel %vm3009, %v2900, %v2063
        %v3031 = vsel %vm3009, %v2902, %v2065
        %v3033 = vsel %vm3009, %v2904, %v2067
        %v3035 = vsel %vm3009, %v2906, %v2069
        %v3037 = vsel %vm3009, %v2908, %v2071
        %v3039 = vsel %vm3009, %v2910, %v2073
        %v3041 = vsel %vm3009, %v2912, %v2075
        %v3043 = vsel %vm3009, %v2914, %v2077
        %v3045 = vsel %vm3009, %v2916, %v2079
        %v3047 = vsel %vm3009, %v2918, %v2081
        %v3049 = vsel %vm3009, %v2920, %v2083
        %v3051 = vsel %vm3009, %v2922, %v2085
        %v3053 = vsel %vm3009, %v2924, %v2087
        %v3055 = vsel %vm3009, %v2926, %v2089
        %v3057 = vsel %vm3009, %v2928, %v2091
        %v3059 = vsel %vm3009, %v2930, %v2093
        %v3061 = vsel %vm3009, %v2932, %v2095
        %v3063 = vsel %vm3009, %v2934, %v2097
        %v3065 = vsel %vm3009, %v2936, %v2099
        %v3067 = vsel %vm3009, %v2938, %v2101
        %v3069 = vsel %vm3009, %v2940, %v2103
        %v3071 = vsel %vm3009, %v2942, %v2105
        %v3073 = vsel %vm3009, %v2944, %v2107
        %v3075 = vsel %vm3009, %v2946, %v2109
        %v3077 = vsel %vm3009, %v2948, %v2111
        %v3079 = vsel %vm3009, %v2950, %v2113
        %v3081 = vsel %vm3009, %v2952, %v2115
        %v3083 = vsel %vm3009, %v2954, %v2117
        %v3085 = vsel %vm3009, %v2956, %v2119
        %v3087 = vsel %vm3009, %v2958, %v2121
        %v3089 = vsel %vm3009, %v2960, %v2123
        %v3091 = vsel %vm3009, %v2962, %v2125
        %v3093 = vsel %vm3009, %v2964, %v2127
        %v3095 = vsel %vm3009, %v2966, %v2129
        %v3097 = vsel %vm3009, %v2968, %v2131
        %v3099 = vsel %vm3009, %v2970, %v2133
        %v3101 = vsel %vm3009, %v2972, %v2135
        %v3103 = vsel %vm3009, %v2974, %v2137
        %v3105 = vsel %vm3009, %v2976, %v2139
        %v3107 = vsel %vm3009, %v2978, %v2141
        %v3109 = vsel %vm3009, %v2980, %v2143
        %v3111 = vsel %vm3009, %v2982, %v2145
        %v3113 = vsel %vm3009, %v2984, %v2147
        %v3115 = vsel %vm3009, %v2986, %v2149
        %v3117 = vsel %vm3009, %v2988, %v2151
        %v3119 = vsel %vm3009, %v2990, %v2153
        %v3121 = vsel %vm3009, %v2992, %v2155
        %v3123 = vsel %vm3009, %v2994, %v2157
        %v3125 = vsel %vm3009, %v2996, %v2159
        %v3127 = vsel %vm3009, %v2998, %v2161
        %v3129 = vsel %vm3009, %v3000, %v2163
        %v3131 = vsel %vm3009, %v3002, %v2165
        %v3133 = vsel %vm3009, %v3004, %v2167
        %v3135 = vsel %vm3009, %v3006, %v2169
        %v3137 = vsel %vm3009, %v3008, %v2171
        %vm3138 = vcmask 490496
        %v3140 = vsel %vm3138, %v3011, %v2181
        %v3142 = vsel %vm3138, %v3013, %v2183
        %v3144 = vsel %vm3138, %v3015, %v2185
        %v3146 = vsel %vm3138, %v3017, %v2187
        %v3148 = vsel %vm3138, %v3019, %v2189
        %v3150 = vsel %vm3138, %v3021, %v2191
        %v3152 = vsel %vm3138, %v3023, %v2193
        %v3154 = vsel %vm3138, %v3025, %v2195
        %v3156 = vsel %vm3138, %v3027, %v2197
        %v3158 = vsel %vm3138, %v3029, %v2199
        %v3160 = vsel %vm3138, %v3031, %v2201
        %v3162 = vsel %vm3138, %v3033, %v2203
        %v3164 = vsel %vm3138, %v3035, %v2205
        %v3166 = vsel %vm3138, %v3037, %v2207
        %v3168 = vsel %vm3138, %v3039, %v2209
        %v3170 = vsel %vm3138, %v3041, %v2211
        %v3172 = vsel %vm3138, %v3043, %v2213
        %v3174 = vsel %vm3138, %v3045, %v2215
        %v3176 = vsel %vm3138, %v3047, %v2217
        %v3178 = vsel %vm3138, %v3049, %v2219
        %v3180 = vsel %vm3138, %v3051, %v2221
        %v3182 = vsel %vm3138, %v3053, %v2223
        %v3184 = vsel %vm3138, %v3055, %v2225
        %v3186 = vsel %vm3138, %v3057, %v2227
        %v3188 = vsel %vm3138, %v3059, %v2229
        %v3190 = vsel %vm3138, %v3061, %v2231
        %v3192 = vsel %vm3138, %v3063, %v2233
        %v3194 = vsel %vm3138, %v3065, %v2235
        %v3196 = vsel %vm3138, %v3067, %v2237
        %v3198 = vsel %vm3138, %v3069, %v2239
        %v3200 = vsel %vm3138, %v3071, %v2241
        %v3202 = vsel %vm3138, %v3073, %v2243
        %v3204 = vsel %vm3138, %v3075, %v2245
        %v3206 = vsel %vm3138, %v3077, %v2247
        %v3208 = vsel %vm3138, %v3079, %v2249
        %v3210 = vsel %vm3138, %v3081, %v2251
        %v3212 = vsel %vm3138, %v3083, %v2253
        %v3214 = vsel %vm3138, %v3085, %v2255
        %v3216 = vsel %vm3138, %v3087, %v2257
        %v3218 = vsel %vm3138, %v3089, %v2259
        %v3220 = vsel %vm3138, %v3091, %v2261
        %v3222 = vsel %vm3138, %v3093, %v2263
        %v3224 = vsel %vm3138, %v3095, %v2265
        %v3226 = vsel %vm3138, %v3097, %v2267
        %v3228 = vsel %vm3138, %v3099, %v2269
        %v3230 = vsel %vm3138, %v3101, %v2271
        %v3232 = vsel %vm3138, %v3103, %v2273
        %v3234 = vsel %vm3138, %v3105, %v2275
        %v3236 = vsel %vm3138, %v3107, %v2277
        %v3238 = vsel %vm3138, %v3109, %v2279
        %v3240 = vsel %vm3138, %v3111, %v2281
        %v3242 = vsel %vm3138, %v3113, %v2283
        %v3244 = vsel %vm3138, %v3115, %v2285
        %v3246 = vsel %vm3138, %v3117, %v2287
        %v3248 = vsel %vm3138, %v3119, %v2289
        %v3250 = vsel %vm3138, %v3121, %v2291
        %v3252 = vsel %vm3138, %v3123, %v2293
        %v3254 = vsel %vm3138, %v3125, %v2295
        %v3256 = vsel %vm3138, %v3127, %v2297
        %v3258 = vsel %vm3138, %v3129, %v2299
        %v3260 = vsel %vm3138, %v3131, %v2301
        %v3262 = vsel %vm3138, %v3133, %v2303
        %v3264 = vsel %vm3138, %v3135, %v2305
        %v3266 = vsel %vm3138, %v3137, %v2307
        %vm3267 = vcmask 588800
        %v3269 = vsel %vm3267, %v3140, %v2309
        %v3271 = vsel %vm3267, %v3142, %v2311
        %v3273 = vsel %vm3267, %v3144, %v2313
        %v3275 = vsel %vm3267, %v3146, %v2315
        %v3277 = vsel %vm3267, %v3148, %v2317
        %v3279 = vsel %vm3267, %v3150, %v2319
        %v3281 = vsel %vm3267, %v3152, %v2321
        %v3283 = vsel %vm3267, %v3154, %v2323
        %v3285 = vsel %vm3267, %v3156, %v2325
        %v3287 = vsel %vm3267, %v3158, %v2327
        %v3289 = vsel %vm3267, %v3160, %v2329
        %v3291 = vsel %vm3267, %v3162, %v2331
        %v3293 = vsel %vm3267, %v3164, %v2333
        %v3295 = vsel %vm3267, %v3166, %v2335
        %v3297 = vsel %vm3267, %v3168, %v2337
        %v3298 = vsel %vm3267, %v3170, %v2323
        %v3300 = vsel %vm3267, %v3172, %v2339
        %v3302 = vsel %vm3267, %v3174, %v2341
        %v3304 = vsel %vm3267, %v3176, %v2343
        %v3306 = vsel %vm3267, %v3178, %v2345
        %v3308 = vsel %vm3267, %v3180, %v2347
        %v3310 = vsel %vm3267, %v3182, %v2349
        %v3312 = vsel %vm3267, %v3184, %v2351
        %v3313 = vsel %vm3267, %v3186, %v2323
        %v3315 = vsel %vm3267, %v3188, %v2353
        %v3317 = vsel %vm3267, %v3190, %v2355
        %v3319 = vsel %vm3267, %v3192, %v2357
        %v3321 = vsel %vm3267, %v3194, %v2359
        %v3323 = vsel %vm3267, %v3196, %v2361
        %v3325 = vsel %vm3267, %v3198, %v2363
        %v3327 = vsel %vm3267, %v3200, %v2365
        %v3328 = vsel %vm3267, %v3202, %v2323
        %v3330 = vsel %vm3267, %v3204, %v2367
        %v3332 = vsel %vm3267, %v3206, %v2369
        %v3334 = vsel %vm3267, %v3208, %v2371
        %v3336 = vsel %vm3267, %v3210, %v2373
        %v3338 = vsel %vm3267, %v3212, %v2375
        %v3340 = vsel %vm3267, %v3214, %v2377
        %v3342 = vsel %vm3267, %v3216, %v2379
        %v3343 = vsel %vm3267, %v3218, %v2323
        %v3345 = vsel %vm3267, %v3220, %v2381
        %v3347 = vsel %vm3267, %v3222, %v2383
        %v3349 = vsel %vm3267, %v3224, %v2385
        %v3351 = vsel %vm3267, %v3226, %v2387
        %v3353 = vsel %vm3267, %v3228, %v2389
        %v3355 = vsel %vm3267, %v3230, %v2391
        %v3357 = vsel %vm3267, %v3232, %v2393
        %v3358 = vsel %vm3267, %v3234, %v2323
        %v3360 = vsel %vm3267, %v3236, %v2395
        %v3362 = vsel %vm3267, %v3238, %v2397
        %v3364 = vsel %vm3267, %v3240, %v2399
        %v3366 = vsel %vm3267, %v3242, %v2401
        %v3368 = vsel %vm3267, %v3244, %v2403
        %v3370 = vsel %vm3267, %v3246, %v2405
        %v3372 = vsel %vm3267, %v3248, %v2407
        %v3373 = vsel %vm3267, %v3250, %v2323
        %v3375 = vsel %vm3267, %v3252, %v2409
        %v3377 = vsel %vm3267, %v3254, %v2411
        %v3379 = vsel %vm3267, %v3256, %v2413
        %v3381 = vsel %vm3267, %v3258, %v2415
        %v3383 = vsel %vm3267, %v3260, %v2417
        %v3385 = vsel %vm3267, %v3262, %v2419
        %v3387 = vsel %vm3267, %v3264, %v2421
        %v3388 = vsel %vm3267, %v3266, %v2323
        %vm3389 = vcmask 687104
        %v3391 = vsel %vm3389, %v3269, %v2423
        %v3393 = vsel %vm3389, %v3271, %v2425
        %v3395 = vsel %vm3389, %v3273, %v2427
        %v3397 = vsel %vm3389, %v3275, %v2429
        %v3399 = vsel %vm3389, %v3277, %v2431
        %v3401 = vsel %vm3389, %v3279, %v2433
        %v3403 = vsel %vm3389, %v3281, %v2435
        %v3405 = vsel %vm3389, %v3283, %v2437
        %v3407 = vsel %vm3389, %v3285, %v2439
        %v3409 = vsel %vm3389, %v3287, %v2441
        %v3411 = vsel %vm3389, %v3289, %v2443
        %v3413 = vsel %vm3389, %v3291, %v2445
        %v3415 = vsel %vm3389, %v3293, %v2447
        %v3417 = vsel %vm3389, %v3295, %v2449
        %v3419 = vsel %vm3389, %v3297, %v2451
        %v3420 = vsel %vm3389, %v3298, %v2437
        %v3422 = vsel %vm3389, %v3300, %v2453
        %v3424 = vsel %vm3389, %v3302, %v2455
        %v3426 = vsel %vm3389, %v3304, %v2457
        %v3428 = vsel %vm3389, %v3306, %v2459
        %v3430 = vsel %vm3389, %v3308, %v2461
        %v3432 = vsel %vm3389, %v3310, %v2463
        %v3434 = vsel %vm3389, %v3312, %v2465
        %v3435 = vsel %vm3389, %v3313, %v2437
        %v3437 = vsel %vm3389, %v3315, %v2467
        %v3439 = vsel %vm3389, %v3317, %v2469
        %v3441 = vsel %vm3389, %v3319, %v2471
        %v3443 = vsel %vm3389, %v3321, %v2473
        %v3445 = vsel %vm3389, %v3323, %v2475
        %v3447 = vsel %vm3389, %v3325, %v2477
        %v3449 = vsel %vm3389, %v3327, %v2479
        %v3450 = vsel %vm3389, %v3328, %v2437
        %v3452 = vsel %vm3389, %v3330, %v2481
        %v3454 = vsel %vm3389, %v3332, %v2483
        %v3456 = vsel %vm3389, %v3334, %v2485
        %v3458 = vsel %vm3389, %v3336, %v2487
        %v3460 = vsel %vm3389, %v3338, %v2489
        %v3462 = vsel %vm3389, %v3340, %v2491
        %v3464 = vsel %vm3389, %v3342, %v2493
        %v3465 = vsel %vm3389, %v3343, %v2437
        %v3467 = vsel %vm3389, %v3345, %v2495
        %v3469 = vsel %vm3389, %v3347, %v2497
        %v3471 = vsel %vm3389, %v3349, %v2499
        %v3473 = vsel %vm3389, %v3351, %v2501
        %v3475 = vsel %vm3389, %v3353, %v2503
        %v3477 = vsel %vm3389, %v3355, %v2505
        %v3479 = vsel %vm3389, %v3357, %v2507
        %v3480 = vsel %vm3389, %v3358, %v2437
        %v3482 = vsel %vm3389, %v3360, %v2509
        %v3484 = vsel %vm3389, %v3362, %v2511
        %v3486 = vsel %vm3389, %v3364, %v2513
        %v3488 = vsel %vm3389, %v3366, %v2515
        %v3490 = vsel %vm3389, %v3368, %v2517
        %v3492 = vsel %vm3389, %v3370, %v2519
        %v3494 = vsel %vm3389, %v3372, %v2521
        %v3495 = vsel %vm3389, %v3373, %v2437
        %v3497 = vsel %vm3389, %v3375, %v2523
        %v3499 = vsel %vm3389, %v3377, %v2525
        %v3501 = vsel %vm3389, %v3379, %v2527
        %v3503 = vsel %vm3389, %v3381, %v2529
        %v3505 = vsel %vm3389, %v3383, %v2531
        %v3507 = vsel %vm3389, %v3385, %v2533
        %v3509 = vsel %vm3389, %v3387, %v2535
        %v3510 = vsel %vm3389, %v3388, %v2437
        %vm3511 = vcmask 785408
        %v3513 = vsel %vm3511, %v3391, %v2537
        %v3515 = vsel %vm3511, %v3393, %v2539
        %v3517 = vsel %vm3511, %v3395, %v2541
        %v3519 = vsel %vm3511, %v3397, %v2543
        %v3521 = vsel %vm3511, %v3399, %v2545
        %v3523 = vsel %vm3511, %v3401, %v2547
        %v3525 = vsel %vm3511, %v3403, %v2549
        %v3527 = vsel %vm3511, %v3405, %v2551
        %v3529 = vsel %vm3511, %v3407, %v2553
        %v3531 = vsel %vm3511, %v3409, %v2555
        %v3533 = vsel %vm3511, %v3411, %v2557
        %v3535 = vsel %vm3511, %v3413, %v2559
        %v3537 = vsel %vm3511, %v3415, %v2561
        %v3539 = vsel %vm3511, %v3417, %v2563
        %v3541 = vsel %vm3511, %v3419, %v2565
        %v3542 = vsel %vm3511, %v3420, %v2551
        %v3544 = vsel %vm3511, %v3422, %v2567
        %v3546 = vsel %vm3511, %v3424, %v2569
        %v3548 = vsel %vm3511, %v3426, %v2571
        %v3550 = vsel %vm3511, %v3428, %v2573
        %v3552 = vsel %vm3511, %v3430, %v2575
        %v3554 = vsel %vm3511, %v3432, %v2577
        %v3556 = vsel %vm3511, %v3434, %v2579
        %v3557 = vsel %vm3511, %v3435, %v2551
        %v3559 = vsel %vm3511, %v3437, %v2581
        %v3561 = vsel %vm3511, %v3439, %v2583
        %v3563 = vsel %vm3511, %v3441, %v2585
        %v3565 = vsel %vm3511, %v3443, %v2587
        %v3567 = vsel %vm3511, %v3445, %v2589
        %v3569 = vsel %vm3511, %v3447, %v2591
        %v3571 = vsel %vm3511, %v3449, %v2593
        %v3572 = vsel %vm3511, %v3450, %v2551
        %v3574 = vsel %vm3511, %v3452, %v2595
        %v3576 = vsel %vm3511, %v3454, %v2597
        %v3578 = vsel %vm3511, %v3456, %v2599
        %v3580 = vsel %vm3511, %v3458, %v2601
        %v3582 = vsel %vm3511, %v3460, %v2603
        %v3584 = vsel %vm3511, %v3462, %v2605
        %v3586 = vsel %vm3511, %v3464, %v2607
        %v3587 = vsel %vm3511, %v3465, %v2551
        %v3589 = vsel %vm3511, %v3467, %v2609
        %v3591 = vsel %vm3511, %v3469, %v2611
        %v3593 = vsel %vm3511, %v3471, %v2613
        %v3595 = vsel %vm3511, %v3473, %v2615
        %v3597 = vsel %vm3511, %v3475, %v2617
        %v3599 = vsel %vm3511, %v3477, %v2619
        %v3601 = vsel %vm3511, %v3479, %v2621
        %v3602 = vsel %vm3511, %v3480, %v2551
        %v3604 = vsel %vm3511, %v3482, %v2623
        %v3606 = vsel %vm3511, %v3484, %v2625
        %v3608 = vsel %vm3511, %v3486, %v2627
        %v3610 = vsel %vm3511, %v3488, %v2629
        %v3612 = vsel %vm3511, %v3490, %v2631
        %v3614 = vsel %vm3511, %v3492, %v2633
        %v3616 = vsel %vm3511, %v3494, %v2635
        %v3617 = vsel %vm3511, %v3495, %v2551
        %v3619 = vsel %vm3511, %v3497, %v2637
        %v3621 = vsel %vm3511, %v3499, %v2639
        %v3623 = vsel %vm3511, %v3501, %v2641
        %v3625 = vsel %vm3511, %v3503, %v2643
        %v3627 = vsel %vm3511, %v3505, %v2645
        %v3629 = vsel %vm3511, %v3507, %v2647
        %v3631 = vsel %vm3511, %v3509, %v2649
        %v3632 = vsel %vm3511, %v3510, %v2551
        %v3633 = vld [vmem:[%s1] sm:$0xf]
        %v3634 = vld [vmem:[%s1 + $0x4] sm:$0xf]
        %v3635 = vld [vmem:[%s1 + $0x8] sm:$0xf]
        %v3636 = vld [vmem:[%s1 + $0xc] sm:$0xf]
        %v3637 = vld [vmem:[%s1 + $0x10] sm:$0xf]
        %v3638 = vld [vmem:[%s1 + $0x14] sm:$0xf]
        %v3639 = vld [vmem:[%s1 + $0x18] sm:$0xf]
        %v3640 = vld [vmem:[%s1 + $0x1c] sm:$0xf]
        %v3641 = vld [vmem:[%s1 + $0x20] sm:$0xf]
        %v3642 = vld [vmem:[%s1 + $0x24] sm:$0xf]
        %v3643 = vld [vmem:[%s1 + $0x28] sm:$0xf]
        %v3644 = vld [vmem:[%s1 + $0x2c] sm:$0xf]
        %v3645 = vld [vmem:[%s1 + $0x30] sm:$0xf]
        %v3646 = vld [vmem:[%s1 + $0x34] sm:$0x3]
        %v3647 = vld [vmem:[%s2] sm:$0x1]
        %v3649 = vlaneseq
        %v3650 = vshrl.u32 %v3649, 7
        %v3651 = vsub.s32 0, %v3650
        %v3652 = vrot.slane %v3647, %v3651
        %v3718 = vunpack.c.l.b16 %v3513
        %v3719 = vunpack.c.l.b16 %v3515
        %v3720 = vunpack.c.l.b16 %v3517
        %v3721 = vunpack.c.l.b16 %v3519
        %v3722 = vunpack.c.l.b16 %v3521
        %v3723 = vunpack.c.l.b16 %v3523
        %v3724 = vunpack.c.l.b16 %v3525
        %v3725 = vunpack.c.l.b16 %v3527
        %v3726 = vunpack.c.l.b16 %v3529
        %v3727 = vunpack.c.l.b16 %v3531
        %v3728 = vunpack.c.l.b16 %v3533
        %v3729 = vunpack.c.l.b16 %v3535
        %v3730 = vunpack.c.l.b16 %v3537
        %v3731 = vunpack.c.l.b16 %v3539
        %v3732 = vunpack.c.l.b16 %v3541
        %v3733 = vunpack.c.l.b16 %v3542
        %v3734 = vunpack.c.l.b16 %v3544
        %v3735 = vunpack.c.l.b16 %v3546
        %v3736 = vunpack.c.l.b16 %v3548
        %v3737 = vunpack.c.l.b16 %v3550
        %v3738 = vunpack.c.l.b16 %v3552
        %v3739 = vunpack.c.l.b16 %v3554
        %v3740 = vunpack.c.l.b16 %v3556
        %v3741 = vunpack.c.l.b16 %v3557
        %v3742 = vunpack.c.l.b16 %v3559
        %v3743 = vunpack.c.l.b16 %v3561
        %v3744 = vunpack.c.l.b16 %v3563
        %v3745 = vunpack.c.l.b16 %v3565
        %v3746 = vunpack.c.l.b16 %v3567
        %v3747 = vunpack.c.l.b16 %v3569
        %v3748 = vunpack.c.l.b16 %v3571
        %v3749 = vunpack.c.l.b16 %v3572
        %v3750 = vunpack.c.l.b16 %v3574
        %v3751 = vunpack.c.l.b16 %v3576
        %v3752 = vunpack.c.l.b16 %v3578
        %v3753 = vunpack.c.l.b16 %v3580
        %v3754 = vunpack.c.l.b16 %v3582
        %v3755 = vunpack.c.l.b16 %v3584
        %v3756 = vunpack.c.l.b16 %v3586
        %v3757 = vunpack.c.l.b16 %v3587
        %v3758 = vunpack.c.l.b16 %v3589
        %v3759 = vunpack.c.l.b16 %v3591
        %v3760 = vunpack.c.l.b16 %v3593
        %v3761 = vunpack.c.l.b16 %v3595
        %v3762 = vunpack.c.l.b16 %v3597
        %v3763 = vunpack.c.l.b16 %v3599
        %v3764 = vunpack.c.l.b16 %v3601
        %v3765 = vunpack.c.l.b16 %v3602
        %v3766 = vunpack.c.l.b16 %v3604
        %v3767 = vunpack.c.l.b16 %v3606
        %v3768 = vunpack.c.l.b16 %v3608
        %v3769 = vunpack.c.l.b16 %v3610
        %v3770 = vunpack.c.l.b16 %v3612
        %v3771 = vunpack.c.l.b16 %v3614
        %v3772 = vunpack.c.l.b16 %v3616
        %v3773 = vunpack.c.l.b16 %v3617
        %v3774 = vunpack.c.l.b16 %v3619
        %v3775 = vunpack.c.l.b16 %v3621
        %v3776 = vunpack.c.l.b16 %v3623
        %v3777 = vunpack.c.l.b16 %v3625
        %v3778 = vunpack.c.l.b16 %v3627
        %v3779 = vunpack.c.l.b16 %v3629
        %v3780 = vunpack.c.l.b16 %v3631
        %v3781 = vunpack.c.l.b16 %v3632
        %v3782 = vpack.c.b16 %v3719, %v3718
        %v3783 = vpack.c.b16 %v3721, %v3720
        %v3784 = vpack.c.b16 %v3723, %v3722
        %v3785 = vpack.c.b16 %v3725, %v3724
        %v3786 = vpack.c.b16 %v3727, %v3726
        %v3787 = vpack.c.b16 %v3729, %v3728
        %v3788 = vpack.c.b16 %v3731, %v3730
        %v3789 = vpack.c.b16 %v3733, %v3732
        %v3790 = vpack.c.b16 %v3735, %v3734
        %v3791 = vpack.c.b16 %v3737, %v3736
        %v3792 = vpack.c.b16 %v3739, %v3738
        %v3793 = vpack.c.b16 %v3741, %v3740
        %v3794 = vpack.c.b16 %v3743, %v3742
        %v3795 = vpack.c.b16 %v3745, %v3744
        %v3796 = vpack.c.b16 %v3747, %v3746
        %v3797 = vpack.c.b16 %v3749, %v3748
        %v3798 = vpack.c.b16 %v3751, %v3750
        %v3799 = vpack.c.b16 %v3753, %v3752
        %v3800 = vpack.c.b16 %v3755, %v3754
        %v3801 = vpack.c.b16 %v3757, %v3756
        %v3802 = vpack.c.b16 %v3759, %v3758
        %v3803 = vpack.c.b16 %v3761, %v3760
        %v3804 = vpack.c.b16 %v3763, %v3762
        %v3805 = vpack.c.b16 %v3765, %v3764
        %v3806 = vpack.c.b16 %v3767, %v3766
        %v3807 = vpack.c.b16 %v3769, %v3768
        %v3808 = vpack.c.b16 %v3771, %v3770
        %v3809 = vpack.c.b16 %v3773, %v3772
        %v3810 = vpack.c.b16 %v3775, %v3774
        %v3811 = vpack.c.b16 %v3777, %v3776
        %v3812 = vpack.c.b16 %v3779, %v3778
        %v3813 = vpack.c.b16 %v3781, %v3780
        %v3828 = vunpack.c.l.b16 %v3633
        %v3829 = vunpack.c.l.b16 %v3634
        %v3830 = vunpack.c.l.b16 %v3635
        %v3831 = vunpack.c.l.b16 %v3636
        %v3832 = vunpack.c.l.b16 %v3637
        %v3833 = vunpack.c.l.b16 %v3638
        %v3834 = vunpack.c.l.b16 %v3639
        %v3835 = vunpack.c.l.b16 %v3640
        %v3836 = vunpack.c.l.b16 %v3641
        %v3837 = vunpack.c.l.b16 %v3642
        %v3838 = vunpack.c.l.b16 %v3643
        %v3839 = vunpack.c.l.b16 %v3644
        %v3840 = vunpack.c.l.b16 %v3645
        %v3841 = vunpack.c.l.b16 %v3646
        %v3842 = vpack.c.b16 %v3829, %v3828
        %v3843 = vpack.c.b16 %v3831, %v3830
        %v3844 = vpack.c.b16 %v3833, %v3832
        %v3845 = vpack.c.b16 %v3835, %v3834
        %v3846 = vpack.c.b16 %v3837, %v3836
        %v3847 = vpack.c.b16 %v3839, %v3838
        %v3848 = vpack.c.b16 %v3841, %v3840
        %vm3855 = vcmask 883712
        %v3857 = vsel %vm3855, %v3782, 0
        %v3860 = vsel %vm3855, %v3783, 0
        %v3863 = vsel %vm3855, %v3784, 0
        %v3866 = vsel %vm3855, %v3785, 0
        %v3869 = vsel %vm3855, %v3786, 0
        %v3872 = vsel %vm3855, %v3787, 0
        %v3875 = vsel %vm3855, %v3788, 0
        %v3878 = vsel %vm3855, %v3789, 0
        %v3881 = vsel %vm3855, %v3790, 0
        %v3884 = vsel %vm3855, %v3791, 0
        %v3887 = vsel %vm3855, %v3792, 0
        %v3890 = vsel %vm3855, %v3793, 0
        %v3893 = vsel %vm3855, %v3794, 0
        %v3896 = vsel %vm3855, %v3795, 0
        %v3899 = vsel %vm3855, %v3796, 0
        %v3902 = vsel %vm3855, %v3797, 0
        %v3905 = vsel %vm3855, %v3798, 0
        %v3908 = vsel %vm3855, %v3799, 0
        %v3911 = vsel %vm3855, %v3800, 0
        %v3914 = vsel %vm3855, %v3801, 0
        %v3917 = vsel %vm3855, %v3802, 0
        %v3920 = vsel %vm3855, %v3803, 0
        %v3923 = vsel %vm3855, %v3804, 0
        %v3926 = vsel %vm3855, %v3805, 0
        %v3929 = vsel %vm3855, %v3806, 0
        %v3932 = vsel %vm3855, %v3807, 0
        %v3935 = vsel %vm3855, %v3808, 0
        %v3938 = vsel %vm3855, %v3809, 0
        %v3941 = vsel %vm3855, %v3810, 0
        %v3944 = vsel %vm3855, %v3811, 0
        %v3947 = vsel %vm3855, %v3812, 0
        %v3950 = vsel %vm3855, %v3813, 0
        %vm3952 = vcmask 1045504
        %v3954 = vsel %vm3952, %v3848, 0
        %3956 = vmatprep.subr.bf16.mxu0 0
        %3957 = vmatpush1.bf16.msra.mxu0 %v3842
        %3958 = vmatprep.subr.bf16.mxu0 0
        %3959 = vmatpush1.bf16.msra.mxu0 %v3843
        %3960 = vmatprep.subr.bf16.mxu0 0
        %3961 = vmatpush1.bf16.msra.mxu0 %v3844
        %3962 = vmatprep.subr.bf16.mxu0 0
        %3963 = vmatpush1.bf16.msra.mxu0 %v3845
        %3964 = vmatprep.subr.bf16.mxu0 0
        %3965 = vmatpush1.bf16.msra.mxu0 %v3846
        %3966 = vmatprep.subr.bf16.mxu0 0
        %3967 = vmatpush1.bf16.msra.mxu0 %v3847
        %3968 = vmatprep.subr.bf16.mxu0 0
        %3969 = vmatpush1.bf16.msra.mxu0 %v3954
        %3970 = vmatprep.subr.bf16.mxu0 0
        %3971 = vmatpush1.bf16.msra.mxu0 0
        %3972 = vmatprep.subr.bf16.mxu0 0
        %3973 = vmatpush1.bf16.msra.mxu0 0
        %3974 = vmatprep.subr.bf16.mxu0 0
        %3975 = vmatpush1.bf16.msra.mxu0 0
        %3976 = vmatprep.subr.bf16.mxu0 0
        %3977 = vmatpush1.bf16.msra.mxu0 0
        %3978 = vmatprep.subr.bf16.mxu0 0
        %3979 = vmatpush1.bf16.msra.mxu0 0
        %3980 = vmatprep.subr.bf16.mxu0 0
        %3981 = vmatpush1.bf16.msra.mxu0 0
        %3982 = vmatprep.subr.bf16.mxu0 0
        %3983 = vmatpush1.bf16.msra.mxu0 0
        %3984 = vmatprep.subr.bf16.mxu0 0
        %3985 = vmatpush1.bf16.msra.mxu0 0
        %3986 = vmatprep.subr.bf16.mxu0 0
        %3987 = vmatpush1.bf16.msra.mxu0 0
        %3988 = vmatprep.mubr.bf16.mxu0 0
        %3989 = vmatmul.mubr.bf16.gmra.mrb[0].mxu0 %v3857
        %v3990 = vpop.f32.mrb[0].mxu0
        %v3991 = vadd.f32 %v3652, %v3990
        %v3992 = vpop.f32.mrb[0].mxu0
        %v3993 = vpop.f32.mrb[0].mxu0
        %v3994 = vadd.f32 %v3652, %v3993
        %v3995 = vpop.f32.mrb[0].mxu0
        %3996 = vmatprep.mubr.bf16.mxu0 0
        %3997 = vmatmul.mubr.bf16.gmra.mrb[0].mxu0 %v3860
        %v3998 = vpop.f32.mrb[0].mxu0
        %v3999 = vadd.f32 %v3652, %v3998
        %v4000 = vpop.f32.mrb[0].mxu0
        %v4001 = vpop.f32.mrb[0].mxu0
        %v4002 = vadd.f32 %v3652, %v4001
        %v4003 = vpop.f32.mrb[0].mxu0
        %4004 = vmatprep.mubr.bf16.mxu0 0
        %4005 = vmatmul.mubr.bf16.gmra.mrb[0].mxu0 %v3863
        %v4006 = vpop.f32.mrb[0].mxu0
        %v4007 = vadd.f32 %v3652, %v4006
        %v4008 = vpop.f32.mrb[0].mxu0
        %v4009 = vpop.f32.mrb[0].mxu0
        %v4010 = vadd.f32 %v3652, %v4009
        %v4011 = vpop.f32.mrb[0].mxu0
        %4012 = vmatprep.mubr.bf16.mxu0 0
        %4013 = vmatmul.mubr.bf16.gmra.mrb[0].mxu0 %v3866
        %v4014 = vpop.f32.mrb[0].mxu0
        %v4015 = vadd.f32 %v3652, %v4014
        %v4016 = vpop.f32.mrb[0].mxu0
        %v4017 = vpop.f32.mrb[0].mxu0
        %v4018 = vadd.f32 %v3652, %v4017
        %v4019 = vpop.f32.mrb[0].mxu0
        %4020 = vmatprep.mubr.bf16.mxu0 0
        %4021 = vmatmul.mubr.bf16.gmra.mrb[0].mxu0 %v3869
        %v4022 = vpop.f32.mrb[0].mxu0
        %v4023 = vadd.f32 %v3652, %v4022
        %v4024 = vpop.f32.mrb[0].mxu0
        %v4025 = vpop.f32.mrb[0].mxu0
        %v4026 = vadd.f32 %v3652, %v4025
        %v4027 = vpop.f32.mrb[0].mxu0
        %4028 = vmatprep.mubr.bf16.mxu0 0
        %4029 = vmatmul.mubr.bf16.gmra.mrb[0].mxu0 %v3872
        %v4030 = vpop.f32.mrb[0].mxu0
        %v4031 = vadd.f32 %v3652, %v4030
        %v4032 = vpop.f32.mrb[0].mxu0
        %v4033 = vpop.f32.mrb[0].mxu0
        %v4034 = vadd.f32 %v3652, %v4033
        %v4035 = vpop.f32.mrb[0].mxu0
        %4036 = vmatprep.mubr.bf16.mxu0 0
        %4037 = vmatmul.mubr.bf16.gmra.mrb[0].mxu0 %v3875
        %v4038 = vpop.f32.mrb[0].mxu0
        %v4039 = vadd.f32 %v3652, %v4038
        %v4040 = vpop.f32.mrb[0].mxu0
        %v4041 = vpop.f32.mrb[0].mxu0
        %v4042 = vadd.f32 %v3652, %v4041
        %v4043 = vpop.f32.mrb[0].mxu0
        %4044 = vmatprep.mubr.bf16.mxu0 0
        %4045 = vmatmul.mubr.bf16.gmra.mrb[0].mxu0 %v3878
        %v4046 = vpop.f32.mrb[0].mxu0
        %v4047 = vadd.f32 %v3652, %v4046
        %v4048 = vpop.f32.mrb[0].mxu0
        %v4049 = vpop.f32.mrb[0].mxu0
        %v4050 = vadd.f32 %v3652, %v4049
        %v4051 = vpop.f32.mrb[0].mxu0
        %4052 = vmatprep.mubr.bf16.mxu0 0
        %4053 = vmatmul.mubr.bf16.gmra.mrb[0].mxu0 %v3881
        %v4054 = vpop.f32.mrb[0].mxu0
        %v4055 = vadd.f32 %v3652, %v4054
        %v4056 = vpop.f32.mrb[0].mxu0
        %v4057 = vpop.f32.mrb[0].mxu0
        %v4058 = vadd.f32 %v3652, %v4057
        %v4059 = vpop.f32.mrb[0].mxu0
        %4060 = vmatprep.mubr.bf16.mxu0 0
        %4061 = vmatmul.mubr.bf16.gmra.mrb[0].mxu0 %v3884
        %v4062 = vpop.f32.mrb[0].mxu0
        %v4063 = vadd.f32 %v3652, %v4062
        %v4064 = vpop.f32.mrb[0].mxu0
        %v4065 = vpop.f32.mrb[0].mxu0
        %v4066 = vadd.f32 %v3652, %v4065
        %v4067 = vpop.f32.mrb[0].mxu0
        %4068 = vmatprep.mubr.bf16.mxu0 0
        %4069 = vmatmul.mubr.bf16.gmra.mrb[0].mxu0 %v3887
        %v4070 = vpop.f32.mrb[0].mxu0
        %v4071 = vadd.f32 %v3652, %v4070
        %v4072 = vpop.f32.mrb[0].mxu0
        %v4073 = vpop.f32.mrb[0].mxu0
        %v4074 = vadd.f32 %v3652, %v4073
        %v4075 = vpop.f32.mrb[0].mxu0
        %4076 = vmatprep.mubr.bf16.mxu0 0
        %4077 = vmatmul.mubr.bf16.gmra.mrb[0].mxu0 %v3890
        %v4078 = vpop.f32.mrb[0].mxu0
        %v4079 = vadd.f32 %v3652, %v4078
        %v4080 = vpop.f32.mrb[0].mxu0
        %v4081 = vpop.f32.mrb[0].mxu0
        %v4082 = vadd.f32 %v3652, %v4081
        %v4083 = vpop.f32.mrb[0].mxu0
        %4084 = vmatprep.mubr.bf16.mxu0 0
        %4085 = vmatmul.mubr.bf16.gmra.mrb[0].mxu0 %v3893
        %v4086 = vpop.f32.mrb[0].mxu0
        %v4087 = vadd.f32 %v3652, %v4086
        %v4088 = vpop.f32.mrb[0].mxu0
        %v4089 = vpop.f32.mrb[0].mxu0
        %v4090 = vadd.f32 %v3652, %v4089
        %v4091 = vpop.f32.mrb[0].mxu0
        %4092 = vmatprep.mubr.bf16.mxu0 0
        %4093 = vmatmul.mubr.bf16.gmra.mrb[0].mxu0 %v3896
        %v4094 = vpop.f32.mrb[0].mxu0
        %v4095 = vadd.f32 %v3652, %v4094
        %v4096 = vpop.f32.mrb[0].mxu0
        %v4097 = vpop.f32.mrb[0].mxu0
        %v4098 = vadd.f32 %v3652, %v4097
        %v4099 = vpop.f32.mrb[0].mxu0
        %4100 = vmatprep.mubr.bf16.mxu0 0
        %4101 = vmatmul.mubr.bf16.gmra.mrb[0].mxu0 %v3899
        %v4102 = vpop.f32.mrb[0].mxu0
        %v4103 = vadd.f32 %v3652, %v4102
        %v4104 = vpop.f32.mrb[0].mxu0
        %v4105 = vpop.f32.mrb[0].mxu0
        %v4106 = vadd.f32 %v3652, %v4105
        %v4107 = vpop.f32.mrb[0].mxu0
        %4108 = vmatprep.mubr.bf16.mxu0 0
        %4109 = vmatmul.mubr.bf16.gmra.mrb[0].mxu0 %v3902
        %v4110 = vpop.f32.mrb[0].mxu0
        %v4111 = vadd.f32 %v3652, %v4110
        %v4112 = vpop.f32.mrb[0].mxu0
        %v4113 = vpop.f32.mrb[0].mxu0
        %v4114 = vadd.f32 %v3652, %v4113
        %v4115 = vpop.f32.mrb[0].mxu0
        %4116 = vmatprep.mubr.bf16.mxu0 0
        %4117 = vmatmul.mubr.bf16.gmra.mrb[0].mxu0 %v3905
        %v4118 = vpop.f32.mrb[0].mxu0
        %v4119 = vadd.f32 %v3652, %v4118
        %v4120 = vpop.f32.mrb[0].mxu0
        %v4121 = vpop.f32.mrb[0].mxu0
        %v4122 = vadd.f32 %v3652, %v4121
        %v4123 = vpop.f32.mrb[0].mxu0
        %4124 = vmatprep.mubr.bf16.mxu0 0
        %4125 = vmatmul.mubr.bf16.gmra.mrb[0].mxu0 %v3908
        %v4126 = vpop.f32.mrb[0].mxu0
        %v4127 = vadd.f32 %v3652, %v4126
        %v4128 = vpop.f32.mrb[0].mxu0
        %v4129 = vpop.f32.mrb[0].mxu0
        %v4130 = vadd.f32 %v3652, %v4129
        %v4131 = vpop.f32.mrb[0].mxu0
        %4132 = vmatprep.mubr.bf16.mxu0 0
        %4133 = vmatmul.mubr.bf16.gmra.mrb[0].mxu0 %v3911
        %v4134 = vpop.f32.mrb[0].mxu0
        %v4135 = vadd.f32 %v3652, %v4134
        %v4136 = vpop.f32.mrb[0].mxu0
        %v4137 = vpop.f32.mrb[0].mxu0
        %v4138 = vadd.f32 %v3652, %v4137
        %v4139 = vpop.f32.mrb[0].mxu0
        %4140 = vmatprep.mubr.bf16.mxu0 0
        %4141 = vmatmul.mubr.bf16.gmra.mrb[0].mxu0 %v3914
        %v4142 = vpop.f32.mrb[0].mxu0
        %v4143 = vadd.f32 %v3652, %v4142
        %v4144 = vpop.f32.mrb[0].mxu0
        %v4145 = vpop.f32.mrb[0].mxu0
        %v4146 = vadd.f32 %v3652, %v4145
        %v4147 = vpop.f32.mrb[0].mxu0
        %4148 = vmatprep.mubr.bf16.mxu0 0
        %4149 = vmatmul.mubr.bf16.gmra.mrb[0].mxu0 %v3917
        %v4150 = vpop.f32.mrb[0].mxu0
        %v4151 = vadd.f32 %v3652, %v4150
        %v4152 = vpop.f32.mrb[0].mxu0
        %v4153 = vpop.f32.mrb[0].mxu0
        %v4154 = vadd.f32 %v3652, %v4153
        %v4155 = vpop.f32.mrb[0].mxu0
        %4156 = vmatprep.mubr.bf16.mxu0 0
        %4157 = vmatmul.mubr.bf16.gmra.mrb[0].mxu0 %v3920
        %v4158 = vpop.f32.mrb[0].mxu0
        %v4159 = vadd.f32 %v3652, %v4158
        %v4160 = vpop.f32.mrb[0].mxu0
        %v4161 = vpop.f32.mrb[0].mxu0
        %v4162 = vadd.f32 %v3652, %v4161
        %v4163 = vpop.f32.mrb[0].mxu0
        %4164 = vmatprep.mubr.bf16.mxu0 0
        %4165 = vmatmul.mubr.bf16.gmra.mrb[0].mxu0 %v3923
        %v4166 = vpop.f32.mrb[0].mxu0
        %v4167 = vadd.f32 %v3652, %v4166
        %v4168 = vpop.f32.mrb[0].mxu0
        %v4169 = vpop.f32.mrb[0].mxu0
        %v4170 = vadd.f32 %v3652, %v4169
        %v4171 = vpop.f32.mrb[0].mxu0
        %4172 = vmatprep.mubr.bf16.mxu0 0
        %4173 = vmatmul.mubr.bf16.gmra.mrb[0].mxu0 %v3926
        %v4174 = vpop.f32.mrb[0].mxu0
        %v4175 = vadd.f32 %v3652, %v4174
        %v4176 = vpop.f32.mrb[0].mxu0
        %v4177 = vpop.f32.mrb[0].mxu0
        %v4178 = vadd.f32 %v3652, %v4177
        %v4179 = vpop.f32.mrb[0].mxu0
        %4180 = vmatprep.mubr.bf16.mxu0 0
        %4181 = vmatmul.mubr.bf16.gmra.mrb[0].mxu0 %v3929
        %v4182 = vpop.f32.mrb[0].mxu0
        %v4183 = vadd.f32 %v3652, %v4182
        %v4184 = vpop.f32.mrb[0].mxu0
        %v4185 = vpop.f32.mrb[0].mxu0
        %v4186 = vadd.f32 %v3652, %v4185
        %v4187 = vpop.f32.mrb[0].mxu0
        %4188 = vmatprep.mubr.bf16.mxu0 0
        %4189 = vmatmul.mubr.bf16.gmra.mrb[0].mxu0 %v3932
        %v4190 = vpop.f32.mrb[0].mxu0
        %v4191 = vadd.f32 %v3652, %v4190
        %v4192 = vpop.f32.mrb[0].mxu0
        %v4193 = vpop.f32.mrb[0].mxu0
        %v4194 = vadd.f32 %v3652, %v4193
        %v4195 = vpop.f32.mrb[0].mxu0
        %4196 = vmatprep.mubr.bf16.mxu0 0
        %4197 = vmatmul.mubr.bf16.gmra.mrb[0].mxu0 %v3935
        %v4198 = vpop.f32.mrb[0].mxu0
        %v4199 = vadd.f32 %v3652, %v4198
        %v4200 = vpop.f32.mrb[0].mxu0
        %v4201 = vpop.f32.mrb[0].mxu0
        %v4202 = vadd.f32 %v3652, %v4201
        %v4203 = vpop.f32.mrb[0].mxu0
        %4204 = vmatprep.mubr.bf16.mxu0 0
        %4205 = vmatmul.mubr.bf16.gmra.mrb[0].mxu0 %v3938
        %v4206 = vpop.f32.mrb[0].mxu0
        %v4207 = vadd.f32 %v3652, %v4206
        %v4208 = vpop.f32.mrb[0].mxu0
        %v4209 = vpop.f32.mrb[0].mxu0
        %v4210 = vadd.f32 %v3652, %v4209
        %v4211 = vpop.f32.mrb[0].mxu0
        %4212 = vmatprep.mubr.bf16.mxu0 0
        %4213 = vmatmul.mubr.bf16.gmra.mrb[0].mxu0 %v3941
        %v4214 = vpop.f32.mrb[0].mxu0
        %v4215 = vadd.f32 %v3652, %v4214
        %v4216 = vpop.f32.mrb[0].mxu0
        %v4217 = vpop.f32.mrb[0].mxu0
        %v4218 = vadd.f32 %v3652, %v4217
        %v4219 = vpop.f32.mrb[0].mxu0
        %4220 = vmatprep.mubr.bf16.mxu0 0
        %4221 = vmatmul.mubr.bf16.gmra.mrb[0].mxu0 %v3944
        %v4222 = vpop.f32.mrb[0].mxu0
        %v4223 = vadd.f32 %v3652, %v4222
        %v4224 = vpop.f32.mrb[0].mxu0
        %v4225 = vpop.f32.mrb[0].mxu0
        %v4226 = vadd.f32 %v3652, %v4225
        %v4227 = vpop.f32.mrb[0].mxu0
        %4228 = vmatprep.mubr.bf16.mxu0 0
        %4229 = vmatmul.mubr.bf16.gmra.mrb[0].mxu0 %v3947
        %v4230 = vpop.f32.mrb[0].mxu0
        %v4231 = vadd.f32 %v3652, %v4230
        %v4232 = vpop.f32.mrb[0].mxu0
        %v4233 = vpop.f32.mrb[0].mxu0
        %v4234 = vadd.f32 %v3652, %v4233
        %v4235 = vpop.f32.mrb[0].mxu0
        %4236 = vmatprep.mubr.bf16.mxu0 0
        %4237 = vmatmul.mubr.bf16.gmra.mrb[0].mxu0 %v3950
        %v4238 = vpop.f32.mrb[0].mxu0
        %v4239 = vadd.f32 %v3652, %v4238
        %v4240 = vpop.f32.mrb[0].mxu0
        %v4241 = vpop.f32.mrb[0].mxu0
        %v4242 = vadd.f32 %v3652, %v4241
        %v4243 = vpop.f32.mrb[0].mxu0
        %4244 = vdwg.mxu0
        %v4245 = vmax.f32 %v3991, 0.0
        %v4246 = vmax.f32 %v3994, 0.0
        %v4247 = vmax.f32 %v3999, 0.0
        %v4248 = vmax.f32 %v4002, 0.0
        %v4249 = vmax.f32 %v4007, 0.0
        %v4250 = vmax.f32 %v4010, 0.0
        %v4251 = vmax.f32 %v4015, 0.0
        %v4252 = vmax.f32 %v4018, 0.0
        %v4253 = vmax.f32 %v4023, 0.0
        %v4254 = vmax.f32 %v4026, 0.0
        %v4255 = vmax.f32 %v4031, 0.0
        %v4256 = vmax.f32 %v4034, 0.0
        %v4257 = vmax.f32 %v4039, 0.0
        %v4258 = vmax.f32 %v4042, 0.0
        %v4259 = vmax.f32 %v4047, 0.0
        %v4260 = vmax.f32 %v4050, 0.0
        %v4261 = vmax.f32 %v4055, 0.0
        %v4262 = vmax.f32 %v4058, 0.0
        %v4263 = vmax.f32 %v4063, 0.0
        %v4264 = vmax.f32 %v4066, 0.0
        %v4265 = vmax.f32 %v4071, 0.0
        %v4266 = vmax.f32 %v4074, 0.0
        %v4267 = vmax.f32 %v4079, 0.0
        %v4268 = vmax.f32 %v4082, 0.0
        %v4269 = vmax.f32 %v4087, 0.0
        %v4270 = vmax.f32 %v4090, 0.0
        %v4271 = vmax.f32 %v4095, 0.0
        %v4272 = vmax.f32 %v4098, 0.0
        %v4273 = vmax.f32 %v4103, 0.0
        %v4274 = vmax.f32 %v4106, 0.0
        %v4275 = vmax.f32 %v4111, 0.0
        %v4276 = vmax.f32 %v4114, 0.0
        %v4277 = vmax.f32 %v4119, 0.0
        %v4278 = vmax.f32 %v4122, 0.0
        %v4279 = vmax.f32 %v4127, 0.0
        %v4280 = vmax.f32 %v4130, 0.0
        %v4281 = vmax.f32 %v4135, 0.0
        %v4282 = vmax.f32 %v4138, 0.0
        %v4283 = vmax.f32 %v4143, 0.0
        %v4284 = vmax.f32 %v4146, 0.0
        %v4285 = vmax.f32 %v4151, 0.0
        %v4286 = vmax.f32 %v4154, 0.0
        %v4287 = vmax.f32 %v4159, 0.0
        %v4288 = vmax.f32 %v4162, 0.0
        %v4289 = vmax.f32 %v4167, 0.0
        %v4290 = vmax.f32 %v4170, 0.0
        %v4291 = vmax.f32 %v4175, 0.0
        %v4292 = vmax.f32 %v4178, 0.0
        %v4293 = vmax.f32 %v4183, 0.0
        %v4294 = vmax.f32 %v4186, 0.0
        %v4295 = vmax.f32 %v4191, 0.0
        %v4296 = vmax.f32 %v4194, 0.0
        %v4297 = vmax.f32 %v4199, 0.0
        %v4298 = vmax.f32 %v4202, 0.0
        %v4299 = vmax.f32 %v4207, 0.0
        %v4300 = vmax.f32 %v4210, 0.0
        %v4301 = vmax.f32 %v4215, 0.0
        %v4302 = vmax.f32 %v4218, 0.0
        %v4303 = vmax.f32 %v4223, 0.0
        %v4304 = vmax.f32 %v4226, 0.0
        %v4305 = vmax.f32 %v4231, 0.0
        %v4306 = vmax.f32 %v4234, 0.0
        %v4307 = vmax.f32 %v4239, 0.0
        %v4308 = vmax.f32 %v4242, 0.0
        %v4309 = vpack.c.bf16 %v4246, %v4245
        %v4310 = vpack.c.bf16 %v4248, %v4247
        %v4311 = vpack.c.bf16 %v4250, %v4249
        %v4312 = vpack.c.bf16 %v4252, %v4251
        %v4313 = vpack.c.bf16 %v4254, %v4253
        %v4314 = vpack.c.bf16 %v4256, %v4255
        %v4315 = vpack.c.bf16 %v4258, %v4257
        %v4316 = vpack.c.bf16 %v4260, %v4259
        %v4317 = vpack.c.bf16 %v4262, %v4261
        %v4318 = vpack.c.bf16 %v4264, %v4263
        %v4319 = vpack.c.bf16 %v4266, %v4265
        %v4320 = vpack.c.bf16 %v4268, %v4267
        %v4321 = vpack.c.bf16 %v4270, %v4269
        %v4322 = vpack.c.bf16 %v4272, %v4271
        %v4323 = vpack.c.bf16 %v4274, %v4273
        %v4324 = vpack.c.bf16 %v4276, %v4275
        %v4325 = vpack.c.bf16 %v4278, %v4277
        %v4326 = vpack.c.bf16 %v4280, %v4279
        %v4327 = vpack.c.bf16 %v4282, %v4281
        %v4328 = vpack.c.bf16 %v4284, %v4283
        %v4329 = vpack.c.bf16 %v4286, %v4285
        %v4330 = vpack.c.bf16 %v4288, %v4287
        %v4331 = vpack.c.bf16 %v4290, %v4289
        %v4332 = vpack.c.bf16 %v4292, %v4291
        %v4333 = vpack.c.bf16 %v4294, %v4293
        %v4334 = vpack.c.bf16 %v4296, %v4295
        %v4335 = vpack.c.bf16 %v4298, %v4297
        %v4336 = vpack.c.bf16 %v4300, %v4299
        %v4337 = vpack.c.bf16 %v4302, %v4301
        %v4338 = vpack.c.bf16 %v4304, %v4303
        %v4339 = vpack.c.bf16 %v4306, %v4305
        %v4340 = vpack.c.bf16 %v4308, %v4307
        %v4373 = vunpack.c.l.b16 %v4309
        %v4374 = vunpack.c.h.b16 %v4309
        %v4375 = vunpack.c.l.b16 %v4310
        %v4376 = vunpack.c.h.b16 %v4310
        %v4377 = vunpack.c.l.b16 %v4311
        %v4378 = vunpack.c.h.b16 %v4311
        %v4379 = vunpack.c.l.b16 %v4312
        %v4380 = vunpack.c.h.b16 %v4312
        %v4381 = vunpack.c.l.b16 %v4313
        %v4382 = vunpack.c.h.b16 %v4313
        %v4383 = vunpack.c.l.b16 %v4314
        %v4384 = vunpack.c.h.b16 %v4314
        %v4385 = vunpack.c.l.b16 %v4315
        %v4386 = vunpack.c.h.b16 %v4315
        %v4387 = vunpack.c.l.b16 %v4316
        %v4388 = vunpack.c.h.b16 %v4316
        %v4389 = vunpack.c.l.b16 %v4317
        %v4390 = vunpack.c.h.b16 %v4317
        %v4391 = vunpack.c.l.b16 %v4318
        %v4392 = vunpack.c.h.b16 %v4318
        %v4393 = vunpack.c.l.b16 %v4319
        %v4394 = vunpack.c.h.b16 %v4319
        %v4395 = vunpack.c.l.b16 %v4320
        %v4396 = vunpack.c.h.b16 %v4320
        %v4397 = vunpack.c.l.b16 %v4321
        %v4398 = vunpack.c.h.b16 %v4321
        %v4399 = vunpack.c.l.b16 %v4322
        %v4400 = vunpack.c.h.b16 %v4322
        %v4401 = vunpack.c.l.b16 %v4323
        %v4402 = vunpack.c.h.b16 %v4323
        %v4403 = vunpack.c.l.b16 %v4324
        %v4404 = vunpack.c.h.b16 %v4324
        %v4405 = vunpack.c.l.b16 %v4325
        %v4406 = vunpack.c.h.b16 %v4325
        %v4407 = vunpack.c.l.b16 %v4326
        %v4408 = vunpack.c.h.b16 %v4326
        %v4409 = vunpack.c.l.b16 %v4327
        %v4410 = vunpack.c.h.b16 %v4327
        %v4411 = vunpack.c.l.b16 %v4328
        %v4412 = vunpack.c.h.b16 %v4328
        %v4413 = vunpack.c.l.b16 %v4329
        %v4414 = vunpack.c.h.b16 %v4329
        %v4415 = vunpack.c.l.b16 %v4330
        %v4416 = vunpack.c.h.b16 %v4330
        %v4417 = vunpack.c.l.b16 %v4331
        %v4418 = vunpack.c.h.b16 %v4331
        %v4419 = vunpack.c.l.b16 %v4332
        %v4420 = vunpack.c.h.b16 %v4332
        %v4421 = vunpack.c.l.b16 %v4333
        %v4422 = vunpack.c.h.b16 %v4333
        %v4423 = vunpack.c.l.b16 %v4334
        %v4424 = vunpack.c.h.b16 %v4334
        %v4425 = vunpack.c.l.b16 %v4335
        %v4426 = vunpack.c.h.b16 %v4335
        %v4427 = vunpack.c.l.b16 %v4336
        %v4428 = vunpack.c.h.b16 %v4336
        %v4429 = vunpack.c.l.b16 %v4337
        %v4430 = vunpack.c.h.b16 %v4337
        %v4431 = vunpack.c.l.b16 %v4338
        %v4432 = vunpack.c.h.b16 %v4338
        %v4433 = vunpack.c.l.b16 %v4339
        %v4434 = vunpack.c.h.b16 %v4339
        %v4435 = vunpack.c.l.b16 %v4340
        %v4436 = vunpack.c.h.b16 %v4340
        %v4437 = vpack.c.b16 %v4373, %v4373
        %v4438 = vpack.c.b16 %v4374, %v4374
        %v4439 = vpack.c.b16 %v4375, %v4375
        %v4440 = vpack.c.b16 %v4376, %v4376
        %v4441 = vpack.c.b16 %v4377, %v4377
        %v4442 = vpack.c.b16 %v4378, %v4378
        %v4443 = vpack.c.b16 %v4379, %v4379
        %v4444 = vpack.c.b16 %v4380, %v4380
        %v4445 = vpack.c.b16 %v4381, %v4381
        %v4446 = vpack.c.b16 %v4382, %v4382
        %v4447 = vpack.c.b16 %v4383, %v4383
        %v4448 = vpack.c.b16 %v4384, %v4384
        %v4449 = vpack.c.b16 %v4385, %v4385
        %v4450 = vpack.c.b16 %v4386, %v4386
        %v4451 = vpack.c.b16 %v4387, %v4387
        %v4452 = vpack.c.b16 %v4388, %v4388
        %v4453 = vpack.c.b16 %v4389, %v4389
        %v4454 = vpack.c.b16 %v4390, %v4390
        %v4455 = vpack.c.b16 %v4391, %v4391
        %v4456 = vpack.c.b16 %v4392, %v4392
        %v4457 = vpack.c.b16 %v4393, %v4393
        %v4458 = vpack.c.b16 %v4394, %v4394
        %v4459 = vpack.c.b16 %v4395, %v4395
        %v4460 = vpack.c.b16 %v4396, %v4396
        %v4461 = vpack.c.b16 %v4397, %v4397
        %v4462 = vpack.c.b16 %v4398, %v4398
        %v4463 = vpack.c.b16 %v4399, %v4399
        %v4464 = vpack.c.b16 %v4400, %v4400
        %v4465 = vpack.c.b16 %v4401, %v4401
        %v4466 = vpack.c.b16 %v4402, %v4402
        %v4467 = vpack.c.b16 %v4403, %v4403
        %v4468 = vpack.c.b16 %v4404, %v4404
        %v4469 = vpack.c.b16 %v4405, %v4405
        %v4470 = vpack.c.b16 %v4406, %v4406
        %v4471 = vpack.c.b16 %v4407, %v4407
        %v4472 = vpack.c.b16 %v4408, %v4408
        %v4473 = vpack.c.b16 %v4409, %v4409
        %v4474 = vpack.c.b16 %v4410, %v4410
        %v4475 = vpack.c.b16 %v4411, %v4411
        %v4476 = vpack.c.b16 %v4412, %v4412
        %v4477 = vpack.c.b16 %v4413, %v4413
        %v4478 = vpack.c.b16 %v4414, %v4414
        %v4479 = vpack.c.b16 %v4415, %v4415
        %v4480 = vpack.c.b16 %v4416, %v4416
        %v4481 = vpack.c.b16 %v4417, %v4417
        %v4482 = vpack.c.b16 %v4418, %v4418
        %v4483 = vpack.c.b16 %v4419, %v4419
        %v4484 = vpack.c.b16 %v4420, %v4420
        %v4485 = vpack.c.b16 %v4421, %v4421
        %v4486 = vpack.c.b16 %v4422, %v4422
        %v4487 = vpack.c.b16 %v4423, %v4423
        %v4488 = vpack.c.b16 %v4424, %v4424
        %v4489 = vpack.c.b16 %v4425, %v4425
        %v4490 = vpack.c.b16 %v4426, %v4426
        %v4491 = vpack.c.b16 %v4427, %v4427
        %v4492 = vpack.c.b16 %v4428, %v4428
        %v4493 = vpack.c.b16 %v4429, %v4429
        %v4494 = vpack.c.b16 %v4430, %v4430
        %v4495 = vpack.c.b16 %v4431, %v4431
        %v4496 = vpack.c.b16 %v4432, %v4432
        %v4497 = vpack.c.b16 %v4433, %v4433
        %v4498 = vpack.c.b16 %v4434, %v4434
        %v4499 = vpack.c.b16 %v4435, %v4435
        %v4500 = vpack.c.b16 %v4436, %v4436
        %v4502 = vshrl.u32 %v4437, 16
        %v4504 = vrot.slane %v4502, 7
        %v4505 = vshll.u32 %v4437, 16
        %v4507 = vor.u32 %v4504, %v4505
        %v4509 = vshrl.u32 %v4438, 16
        %v4511 = vrot.slane %v4509, 7
        %v4512 = vshll.u32 %v4438, 16
        %v4514 = vor.u32 %v4511, %v4512
        %v4516 = vshrl.u32 %v4439, 16
        %v4518 = vrot.slane %v4516, 7
        %v4519 = vshll.u32 %v4439, 16
        %v4521 = vor.u32 %v4518, %v4519
        %v4523 = vshrl.u32 %v4440, 16
        %v4525 = vrot.slane %v4523, 7
        %v4526 = vshll.u32 %v4440, 16
        %v4528 = vor.u32 %v4525, %v4526
        %v4530 = vshrl.u32 %v4441, 16
        %v4532 = vrot.slane %v4530, 7
        %v4533 = vshll.u32 %v4441, 16
        %v4535 = vor.u32 %v4532, %v4533
        %v4537 = vshrl.u32 %v4442, 16
        %v4539 = vrot.slane %v4537, 7
        %v4540 = vshll.u32 %v4442, 16
        %v4542 = vor.u32 %v4539, %v4540
        %v4544 = vshrl.u32 %v4443, 16
        %v4546 = vrot.slane %v4544, 7
        %v4547 = vshll.u32 %v4443, 16
        %v4549 = vor.u32 %v4546, %v4547
        %v4551 = vshrl.u32 %v4444, 16
        %v4553 = vrot.slane %v4551, 7
        %v4554 = vshll.u32 %v4444, 16
        %v4556 = vor.u32 %v4553, %v4554
        %v4558 = vshrl.u32 %v4445, 16
        %v4560 = vrot.slane %v4558, 7
        %v4561 = vshll.u32 %v4445, 16
        %v4563 = vor.u32 %v4560, %v4561
        %v4565 = vshrl.u32 %v4446, 16
        %v4567 = vrot.slane %v4565, 7
        %v4568 = vshll.u32 %v4446, 16
        %v4570 = vor.u32 %v4567, %v4568
        %v4572 = vshrl.u32 %v4447, 16
        %v4574 = vrot.slane %v4572, 7
        %v4575 = vshll.u32 %v4447, 16
        %v4577 = vor.u32 %v4574, %v4575
        %v4579 = vshrl.u32 %v4448, 16
        %v4581 = vrot.slane %v4579, 7
        %v4582 = vshll.u32 %v4448, 16
        %v4584 = vor.u32 %v4581, %v4582
        %v4586 = vshrl.u32 %v4449, 16
        %v4588 = vrot.slane %v4586, 7
        %v4589 = vshll.u32 %v4449, 16
        %v4591 = vor.u32 %v4588, %v4589
        %v4593 = vshrl.u32 %v4450, 16
        %v4595 = vrot.slane %v4593, 7
        %v4596 = vshll.u32 %v4450, 16
        %v4598 = vor.u32 %v4595, %v4596
        %v4600 = vshrl.u32 %v4451, 16
        %v4602 = vrot.slane %v4600, 7
        %v4603 = vshll.u32 %v4451, 16
        %v4605 = vor.u32 %v4602, %v4603
        %v4607 = vshrl.u32 %v4452, 16
        %v4609 = vrot.slane %v4607, 7
        %v4610 = vshll.u32 %v4452, 16
        %v4612 = vor.u32 %v4609, %v4610
        %v4614 = vshrl.u32 %v4453, 16
        %v4616 = vrot.slane %v4614, 7
        %v4617 = vshll.u32 %v4453, 16
        %v4619 = vor.u32 %v4616, %v4617
        %v4621 = vshrl.u32 %v4454, 16
        %v4623 = vrot.slane %v4621, 7
        %v4624 = vshll.u32 %v4454, 16
        %v4626 = vor.u32 %v4623, %v4624
        %v4628 = vshrl.u32 %v4455, 16
        %v4630 = vrot.slane %v4628, 7
        %v4631 = vshll.u32 %v4455, 16
        %v4633 = vor.u32 %v4630, %v4631
        %v4635 = vshrl.u32 %v4456, 16
        %v4637 = vrot.slane %v4635, 7
        %v4638 = vshll.u32 %v4456, 16
        %v4640 = vor.u32 %v4637, %v4638
        %v4642 = vshrl.u32 %v4457, 16
        %v4644 = vrot.slane %v4642, 7
        %v4645 = vshll.u32 %v4457, 16
        %v4647 = vor.u32 %v4644, %v4645
        %v4649 = vshrl.u32 %v4458, 16
        %v4651 = vrot.slane %v4649, 7
        %v4652 = vshll.u32 %v4458, 16
        %v4654 = vor.u32 %v4651, %v4652
        %v4656 = vshrl.u32 %v4459, 16
        %v4658 = vrot.slane %v4656, 7
        %v4659 = vshll.u32 %v4459, 16
        %v4661 = vor.u32 %v4658, %v4659
        %v4663 = vshrl.u32 %v4460, 16
        %v4665 = vrot.slane %v4663, 7
        %v4666 = vshll.u32 %v4460, 16
        %v4668 = vor.u32 %v4665, %v4666
        %v4670 = vshrl.u32 %v4461, 16
        %v4672 = vrot.slane %v4670, 7
        %v4673 = vshll.u32 %v4461, 16
        %v4675 = vor.u32 %v4672, %v4673
        %v4677 = vshrl.u32 %v4462, 16
        %v4679 = vrot.slane %v4677, 7
        %v4680 = vshll.u32 %v4462, 16
        %v4682 = vor.u32 %v4679, %v4680
        %v4684 = vshrl.u32 %v4463, 16
        %v4686 = vrot.slane %v4684, 7
        %v4687 = vshll.u32 %v4463, 16
        %v4689 = vor.u32 %v4686, %v4687
        %v4691 = vshrl.u32 %v4464, 16
        %v4693 = vrot.slane %v4691, 7
        %v4694 = vshll.u32 %v4464, 16
        %v4696 = vor.u32 %v4693, %v4694
        %v4698 = vshrl.u32 %v4465, 16
        %v4700 = vrot.slane %v4698, 7
        %v4701 = vshll.u32 %v4465, 16
        %v4703 = vor.u32 %v4700, %v4701
        %v4705 = vshrl.u32 %v4466, 16
        %v4707 = vrot.slane %v4705, 7
        %v4708 = vshll.u32 %v4466, 16
        %v4710 = vor.u32 %v4707, %v4708
        %v4712 = vshrl.u32 %v4467, 16
        %v4714 = vrot.slane %v4712, 7
        %v4715 = vshll.u32 %v4467, 16
        %v4717 = vor.u32 %v4714, %v4715
        %v4719 = vshrl.u32 %v4468, 16
        %v4721 = vrot.slane %v4719, 7
        %v4722 = vshll.u32 %v4468, 16
        %v4724 = vor.u32 %v4721, %v4722
        %v4726 = vshrl.u32 %v4469, 16
        %v4728 = vrot.slane %v4726, 7
        %v4729 = vshll.u32 %v4469, 16
        %v4731 = vor.u32 %v4728, %v4729
        %v4733 = vshrl.u32 %v4470, 16
        %v4735 = vrot.slane %v4733, 7
        %v4736 = vshll.u32 %v4470, 16
        %v4738 = vor.u32 %v4735, %v4736
        %v4740 = vshrl.u32 %v4471, 16
        %v4742 = vrot.slane %v4740, 7
        %v4743 = vshll.u32 %v4471, 16
        %v4745 = vor.u32 %v4742, %v4743
        %v4747 = vshrl.u32 %v4472, 16
        %v4749 = vrot.slane %v4747, 7
        %v4750 = vshll.u32 %v4472, 16
        %v4752 = vor.u32 %v4749, %v4750
        %v4754 = vshrl.u32 %v4473, 16
        %v4756 = vrot.slane %v4754, 7
        %v4757 = vshll.u32 %v4473, 16
        %v4759 = vor.u32 %v4756, %v4757
        %v4761 = vshrl.u32 %v4474, 16
        %v4763 = vrot.slane %v4761, 7
        %v4764 = vshll.u32 %v4474, 16
        %v4766 = vor.u32 %v4763, %v4764
        %v4768 = vshrl.u32 %v4475, 16
        %v4770 = vrot.slane %v4768, 7
        %v4771 = vshll.u32 %v4475, 16
        %v4773 = vor.u32 %v4770, %v4771
        %v4775 = vshrl.u32 %v4476, 16
        %v4777 = vrot.slane %v4775, 7
        %v4778 = vshll.u32 %v4476, 16
        %v4780 = vor.u32 %v4777, %v4778
        %v4782 = vshrl.u32 %v4477, 16
        %v4784 = vrot.slane %v4782, 7
        %v4785 = vshll.u32 %v4477, 16
        %v4787 = vor.u32 %v4784, %v4785
        %v4789 = vshrl.u32 %v4478, 16
        %v4791 = vrot.slane %v4789, 7
        %v4792 = vshll.u32 %v4478, 16
        %v4794 = vor.u32 %v4791, %v4792
        %v4796 = vshrl.u32 %v4479, 16
        %v4798 = vrot.slane %v4796, 7
        %v4799 = vshll.u32 %v4479, 16
        %v4801 = vor.u32 %v4798, %v4799
        %v4803 = vshrl.u32 %v4480, 16
        %v4805 = vrot.slane %v4803, 7
        %v4806 = vshll.u32 %v4480, 16
        %v4808 = vor.u32 %v4805, %v4806
        %v4810 = vshrl.u32 %v4481, 16
        %v4812 = vrot.slane %v4810, 7
        %v4813 = vshll.u32 %v4481, 16
        %v4815 = vor.u32 %v4812, %v4813
        %v4817 = vshrl.u32 %v4482, 16
        %v4819 = vrot.slane %v4817, 7
        %v4820 = vshll.u32 %v4482, 16
        %v4822 = vor.u32 %v4819, %v4820
        %v4824 = vshrl.u32 %v4483, 16
        %v4826 = vrot.slane %v4824, 7
        %v4827 = vshll.u32 %v4483, 16
        %v4829 = vor.u32 %v4826, %v4827
        %v4831 = vshrl.u32 %v4484, 16
        %v4833 = vrot.slane %v4831, 7
        %v4834 = vshll.u32 %v4484, 16
        %v4836 = vor.u32 %v4833, %v4834
        %v4838 = vshrl.u32 %v4485, 16
        %v4840 = vrot.slane %v4838, 7
        %v4841 = vshll.u32 %v4485, 16
        %v4843 = vor.u32 %v4840, %v4841
        %v4845 = vshrl.u32 %v4486, 16
        %v4847 = vrot.slane %v4845, 7
        %v4848 = vshll.u32 %v4486, 16
        %v4850 = vor.u32 %v4847, %v4848
        %v4852 = vshrl.u32 %v4487, 16
        %v4854 = vrot.slane %v4852, 7
        %v4855 = vshll.u32 %v4487, 16
        %v4857 = vor.u32 %v4854, %v4855
        %v4859 = vshrl.u32 %v4488, 16
        %v4861 = vrot.slane %v4859, 7
        %v4862 = vshll.u32 %v4488, 16
        %v4864 = vor.u32 %v4861, %v4862
        %v4866 = vshrl.u32 %v4489, 16
        %v4868 = vrot.slane %v4866, 7
        %v4869 = vshll.u32 %v4489, 16
        %v4871 = vor.u32 %v4868, %v4869
        %v4873 = vshrl.u32 %v4490, 16
        %v4875 = vrot.slane %v4873, 7
        %v4876 = vshll.u32 %v4490, 16
        %v4878 = vor.u32 %v4875, %v4876
        %v4880 = vshrl.u32 %v4491, 16
        %v4882 = vrot.slane %v4880, 7
        %v4883 = vshll.u32 %v4491, 16
        %v4885 = vor.u32 %v4882, %v4883
        %v4887 = vshrl.u32 %v4492, 16
        %v4889 = vrot.slane %v4887, 7
        %v4890 = vshll.u32 %v4492, 16
        %v4892 = vor.u32 %v4889, %v4890
        %v4894 = vshrl.u32 %v4493, 16
        %v4896 = vrot.slane %v4894, 7
        %v4897 = vshll.u32 %v4493, 16
        %v4899 = vor.u32 %v4896, %v4897
        %v4901 = vshrl.u32 %v4494, 16
        %v4903 = vrot.slane %v4901, 7
        %v4904 = vshll.u32 %v4494, 16
        %v4906 = vor.u32 %v4903, %v4904
        %v4908 = vshrl.u32 %v4495, 16
        %v4910 = vrot.slane %v4908, 7
        %v4911 = vshll.u32 %v4495, 16
        %v4913 = vor.u32 %v4910, %v4911
        %v4915 = vshrl.u32 %v4496, 16
        %v4917 = vrot.slane %v4915, 7
        %v4918 = vshll.u32 %v4496, 16
        %v4920 = vor.u32 %v4917, %v4918
        %v4922 = vshrl.u32 %v4497, 16
        %v4924 = vrot.slane %v4922, 7
        %v4925 = vshll.u32 %v4497, 16
        %v4927 = vor.u32 %v4924, %v4925
        %v4929 = vshrl.u32 %v4498, 16
        %v4931 = vrot.slane %v4929, 7
        %v4932 = vshll.u32 %v4498, 16
        %v4934 = vor.u32 %v4931, %v4932
        %v4936 = vshrl.u32 %v4499, 16
        %v4938 = vrot.slane %v4936, 7
        %v4939 = vshll.u32 %v4499, 16
        %v4941 = vor.u32 %v4938, %v4939
        %v4943 = vshrl.u32 %v4500, 16
        %v4945 = vrot.slane %v4943, 7
        %v4946 = vshll.u32 %v4500, 16
        %v4948 = vor.u32 %v4945, %v4946
        %v5013 = vsel %vm979, 0, %v4507
        %v5014 = vsel %vm979, 0, %v4514
        %v5015 = vsel %vm979, 0, %v4521
        %v5016 = vsel %vm979, 0, %v4528
        %v5017 = vsel %vm979, 0, %v4535
        %v5018 = vsel %vm979, 0, %v4542
        %v5019 = vsel %vm979, 0, %v4549
        %v5020 = vsel %vm979, 0, %v4556
        %v5021 = vsel %vm979, 0, %v4563
        %v5022 = vsel %vm979, 0, %v4570
        %v5023 = vsel %vm979, 0, %v4577
        %v5024 = vsel %vm979, 0, %v4584
        %v5025 = vsel %vm979, 0, %v4591
        %v5026 = vsel %vm979, 0, %v4598
        %v5027 = vsel %vm979, 0, %v4605
        %v5028 = vsel %vm979, 0, %v4612
        %v5029 = vsel %vm979, 0, %v4619
        %v5030 = vsel %vm979, 0, %v4626
        %v5031 = vsel %vm979, 0, %v4633
        %v5032 = vsel %vm979, 0, %v4640
        %v5033 = vsel %vm979, 0, %v4647
        %v5034 = vsel %vm979, 0, %v4654
        %v5035 = vsel %vm979, 0, %v4661
        %v5036 = vsel %vm979, 0, %v4668
        %v5037 = vsel %vm979, 0, %v4675
        %v5038 = vsel %vm979, 0, %v4682
        %v5039 = vsel %vm979, 0, %v4689
        %v5040 = vsel %vm979, 0, %v4696
        %v5041 = vsel %vm979, 0, %v4703
        %v5042 = vsel %vm979, 0, %v4710
        %v5043 = vsel %vm979, 0, %v4717
        %v5044 = vsel %vm979, 0, %v4724
        %v5045 = vsel %vm979, 0, %v4731
        %v5046 = vsel %vm979, 0, %v4738
        %v5047 = vsel %vm979, 0, %v4745
        %v5048 = vsel %vm979, 0, %v4752
        %v5049 = vsel %vm979, 0, %v4759
        %v5050 = vsel %vm979, 0, %v4766
        %v5051 = vsel %vm979, 0, %v4773
        %v5052 = vsel %vm979, 0, %v4780
        %v5053 = vsel %vm979, 0, %v4787
        %v5054 = vsel %vm979, 0, %v4794
        %v5055 = vsel %vm979, 0, %v4801
        %v5056 = vsel %vm979, 0, %v4808
        %v5057 = vsel %vm979, 0, %v4815
        %v5058 = vsel %vm979, 0, %v4822
        %v5059 = vsel %vm979, 0, %v4829
        %v5060 = vsel %vm979, 0, %v4836
        %v5061 = vsel %vm979, 0, %v4843
        %v5062 = vsel %vm979, 0, %v4850
        %v5063 = vsel %vm979, 0, %v4857
        %v5064 = vsel %vm979, 0, %v4864
        %v5065 = vsel %vm979, 0, %v4871
        %v5066 = vsel %vm979, 0, %v4878
        %v5067 = vsel %vm979, 0, %v4885
        %v5068 = vsel %vm979, 0, %v4892
        %v5069 = vsel %vm979, 0, %v4899
        %v5070 = vsel %vm979, 0, %v4906
        %v5071 = vsel %vm979, 0, %v4913
        %v5072 = vsel %vm979, 0, %v4920
        %v5073 = vsel %vm979, 0, %v4927
        %v5074 = vsel %vm979, 0, %v4934
        %v5075 = vsel %vm979, 0, %v4941
        %v5076 = vsel %vm979, 0, %v4948
        %v5077 = vsel %vm1046, %v5013, 0
        %v5078 = vsel %vm1046, %v5014, 0
        %v5079 = vsel %vm1046, %v5015, 0
        %v5080 = vsel %vm1046, %v5016, 0
        %v5081 = vsel %vm1046, %v5017, 0
        %v5082 = vsel %vm1046, %v5018, 0
        %v5083 = vsel %vm1046, %v5019, 0
        %v5084 = vsel %vm1046, %v5020, 0
        %v5085 = vsel %vm1046, %v5021, 0
        %v5086 = vsel %vm1046, %v5022, 0
        %v5087 = vsel %vm1046, %v5023, 0
        %v5088 = vsel %vm1046, %v5024, 0
        %v5089 = vsel %vm1046, %v5025, 0
        %v5090 = vsel %vm1046, %v5026, 0
        %v5091 = vsel %vm1046, %v5027, 0
        %v5092 = vsel %vm1046, %v5028, 0
        %v5093 = vsel %vm1046, %v5029, 0
        %v5094 = vsel %vm1046, %v5030, 0
        %v5095 = vsel %vm1046, %v5031, 0
        %v5096 = vsel %vm1046, %v5032, 0
        %v5097 = vsel %vm1046, %v5033, 0
        %v5098 = vsel %vm1046, %v5034, 0
        %v5099 = vsel %vm1046, %v5035, 0
        %v5100 = vsel %vm1046, %v5036, 0
        %v5101 = vsel %vm1046, %v5037, 0
        %v5102 = vsel %vm1046, %v5038, 0
        %v5103 = vsel %vm1046, %v5039, 0
        %v5104 = vsel %vm1046, %v5040, 0
        %v5105 = vsel %vm1046, %v5041, 0
        %v5106 = vsel %vm1046, %v5042, 0
        %v5107 = vsel %vm1046, %v5043, 0
        %v5108 = vsel %vm1046, %v5044, 0
        %v5109 = vsel %vm1046, %v5045, 0
        %v5110 = vsel %vm1046, %v5046, 0
        %v5111 = vsel %vm1046, %v5047, 0
        %v5112 = vsel %vm1046, %v5048, 0
        %v5113 = vsel %vm1046, %v5049, 0
        %v5114 = vsel %vm1046, %v5050, 0
        %v5115 = vsel %vm1046, %v5051, 0
        %v5116 = vsel %vm1046, %v5052, 0
        %v5117 = vsel %vm1046, %v5053, 0
        %v5118 = vsel %vm1046, %v5054, 0
        %v5119 = vsel %vm1046, %v5055, 0
        %v5120 = vsel %vm1046, %v5056, 0
        %v5121 = vsel %vm1046, %v5057, 0
        %v5122 = vsel %vm1046, %v5058, 0
        %v5123 = vsel %vm1046, %v5059, 0
        %v5124 = vsel %vm1046, %v5060, 0
        %v5125 = vsel %vm1046, %v5061, 0
        %v5126 = vsel %vm1046, %v5062, 0
        %v5127 = vsel %vm1046, %v5063, 0
        %v5128 = vsel %vm1046, %v5064, 0
        %v5129 = vsel %vm1046, %v5065, 0
        %v5130 = vsel %vm1046, %v5066, 0
        %v5131 = vsel %vm1046, %v5067, 0
        %v5132 = vsel %vm1046, %v5068, 0
        %v5133 = vsel %vm1046, %v5069, 0
        %v5134 = vsel %vm1046, %v5070, 0
        %v5135 = vsel %vm1046, %v5071, 0
        %v5136 = vsel %vm1046, %v5072, 0
        %v5137 = vsel %vm1046, %v5073, 0
        %v5138 = vsel %vm1046, %v5074, 0
        %v5139 = vsel %vm1046, %v5075, 0
        %v5140 = vsel %vm1046, %v5076, 0
        %v5142 = vshrl.u32 %v5077, 16
        %v5144 = vshll.u32 %v5077, 16
        %v5146 = vrot.slane %v5144, 1
        %v5147 = vor.u32 %v5142, %v5146
        %v5149 = vshrl.u32 %v5078, 16
        %v5151 = vshll.u32 %v5078, 16
        %v5153 = vrot.slane %v5151, 1
        %v5154 = vor.u32 %v5149, %v5153
        %v5156 = vshrl.u32 %v5079, 16
        %v5158 = vshll.u32 %v5079, 16
        %v5160 = vrot.slane %v5158, 1
        %v5161 = vor.u32 %v5156, %v5160
        %v5163 = vshrl.u32 %v5080, 16
        %v5165 = vshll.u32 %v5080, 16
        %v5167 = vrot.slane %v5165, 1
        %v5168 = vor.u32 %v5163, %v5167
        %v5170 = vshrl.u32 %v5081, 16
        %v5172 = vshll.u32 %v5081, 16
        %v5174 = vrot.slane %v5172, 1
        %v5175 = vor.u32 %v5170, %v5174
        %v5177 = vshrl.u32 %v5082, 16
        %v5179 = vshll.u32 %v5082, 16
        %v5181 = vrot.slane %v5179, 1
        %v5182 = vor.u32 %v5177, %v5181
        %v5184 = vshrl.u32 %v5083, 16
        %v5186 = vshll.u32 %v5083, 16
        %v5188 = vrot.slane %v5186, 1
        %v5189 = vor.u32 %v5184, %v5188
        %v5191 = vshrl.u32 %v5085, 16
        %v5193 = vshll.u32 %v5085, 16
        %v5195 = vrot.slane %v5193, 1
        %v5196 = vor.u32 %v5191, %v5195
        %v5198 = vshrl.u32 %v5086, 16
        %v5200 = vshll.u32 %v5086, 16
        %v5202 = vrot.slane %v5200, 1
        %v5203 = vor.u32 %v5198, %v5202
        %v5205 = vshrl.u32 %v5087, 16
        %v5207 = vshll.u32 %v5087, 16
        %v5209 = vrot.slane %v5207, 1
        %v5210 = vor.u32 %v5205, %v5209
        %v5212 = vshrl.u32 %v5088, 16
        %v5214 = vshll.u32 %v5088, 16
        %v5216 = vrot.slane %v5214, 1
        %v5217 = vor.u32 %v5212, %v5216
        %v5219 = vshrl.u32 %v5089, 16
        %v5221 = vshll.u32 %v5089, 16
        %v5223 = vrot.slane %v5221, 1
        %v5224 = vor.u32 %v5219, %v5223
        %v5226 = vshrl.u32 %v5090, 16
        %v5228 = vshll.u32 %v5090, 16
        %v5230 = vrot.slane %v5228, 1
        %v5231 = vor.u32 %v5226, %v5230
        %v5233 = vshrl.u32 %v5091, 16
        %v5235 = vshll.u32 %v5091, 16
        %v5237 = vrot.slane %v5235, 1
        %v5238 = vor.u32 %v5233, %v5237
        %v5240 = vshrl.u32 %v5093, 16
        %v5242 = vshll.u32 %v5093, 16
        %v5244 = vrot.slane %v5242, 1
        %v5245 = vor.u32 %v5240, %v5244
        %v5247 = vshrl.u32 %v5094, 16
        %v5249 = vshll.u32 %v5094, 16
        %v5251 = vrot.slane %v5249, 1
        %v5252 = vor.u32 %v5247, %v5251
        %v5254 = vshrl.u32 %v5095, 16
        %v5256 = vshll.u32 %v5095, 16
        %v5258 = vrot.slane %v5256, 1
        %v5259 = vor.u32 %v5254, %v5258
        %v5261 = vshrl.u32 %v5096, 16
        %v5263 = vshll.u32 %v5096, 16
        %v5265 = vrot.slane %v5263, 1
        %v5266 = vor.u32 %v5261, %v5265
        %v5268 = vshrl.u32 %v5097, 16
        %v5270 = vshll.u32 %v5097, 16
        %v5272 = vrot.slane %v5270, 1
        %v5273 = vor.u32 %v5268, %v5272
        %v5275 = vshrl.u32 %v5098, 16
        %v5277 = vshll.u32 %v5098, 16
        %v5279 = vrot.slane %v5277, 1
        %v5280 = vor.u32 %v5275, %v5279
        %v5282 = vshrl.u32 %v5099, 16
        %v5284 = vshll.u32 %v5099, 16
        %v5286 = vrot.slane %v5284, 1
        %v5287 = vor.u32 %v5282, %v5286
        %v5289 = vshrl.u32 %v5101, 16
        %v5291 = vshll.u32 %v5101, 16
        %v5293 = vrot.slane %v5291, 1
        %v5294 = vor.u32 %v5289, %v5293
        %v5296 = vshrl.u32 %v5102, 16
        %v5298 = vshll.u32 %v5102, 16
        %v5300 = vrot.slane %v5298, 1
        %v5301 = vor.u32 %v5296, %v5300
        %v5303 = vshrl.u32 %v5103, 16
        %v5305 = vshll.u32 %v5103, 16
        %v5307 = vrot.slane %v5305, 1
        %v5308 = vor.u32 %v5303, %v5307
        %v5310 = vshrl.u32 %v5104, 16
        %v5312 = vshll.u32 %v5104, 16
        %v5314 = vrot.slane %v5312, 1
        %v5315 = vor.u32 %v5310, %v5314
        %v5317 = vshrl.u32 %v5105, 16
        %v5319 = vshll.u32 %v5105, 16
        %v5321 = vrot.slane %v5319, 1
        %v5322 = vor.u32 %v5317, %v5321
        %v5324 = vshrl.u32 %v5106, 16
        %v5326 = vshll.u32 %v5106, 16
        %v5328 = vrot.slane %v5326, 1
        %v5329 = vor.u32 %v5324, %v5328
        %v5331 = vshrl.u32 %v5107, 16
        %v5333 = vshll.u32 %v5107, 16
        %v5335 = vrot.slane %v5333, 1
        %v5336 = vor.u32 %v5331, %v5335
        %v5338 = vshrl.u32 %v5109, 16
        %v5340 = vshll.u32 %v5109, 16
        %v5342 = vrot.slane %v5340, 1
        %v5343 = vor.u32 %v5338, %v5342
        %v5345 = vshrl.u32 %v5110, 16
        %v5347 = vshll.u32 %v5110, 16
        %v5349 = vrot.slane %v5347, 1
        %v5350 = vor.u32 %v5345, %v5349
        %v5352 = vshrl.u32 %v5111, 16
        %v5354 = vshll.u32 %v5111, 16
        %v5356 = vrot.slane %v5354, 1
        %v5357 = vor.u32 %v5352, %v5356
        %v5359 = vshrl.u32 %v5112, 16
        %v5361 = vshll.u32 %v5112, 16
        %v5363 = vrot.slane %v5361, 1
        %v5364 = vor.u32 %v5359, %v5363
        %v5366 = vshrl.u32 %v5113, 16
        %v5368 = vshll.u32 %v5113, 16
        %v5370 = vrot.slane %v5368, 1
        %v5371 = vor.u32 %v5366, %v5370
        %v5373 = vshrl.u32 %v5114, 16
        %v5375 = vshll.u32 %v5114, 16
        %v5377 = vrot.slane %v5375, 1
        %v5378 = vor.u32 %v5373, %v5377
        %v5380 = vshrl.u32 %v5115, 16
        %v5382 = vshll.u32 %v5115, 16
        %v5384 = vrot.slane %v5382, 1
        %v5385 = vor.u32 %v5380, %v5384
        %v5387 = vshrl.u32 %v5117, 16
        %v5389 = vshll.u32 %v5117, 16
        %v5391 = vrot.slane %v5389, 1
        %v5392 = vor.u32 %v5387, %v5391
        %v5394 = vshrl.u32 %v5118, 16
        %v5396 = vshll.u32 %v5118, 16
        %v5398 = vrot.slane %v5396, 1
        %v5399 = vor.u32 %v5394, %v5398
        %v5401 = vshrl.u32 %v5119, 16
        %v5403 = vshll.u32 %v5119, 16
        %v5405 = vrot.slane %v5403, 1
        %v5406 = vor.u32 %v5401, %v5405
        %v5408 = vshrl.u32 %v5120, 16
        %v5410 = vshll.u32 %v5120, 16
        %v5412 = vrot.slane %v5410, 1
        %v5413 = vor.u32 %v5408, %v5412
        %v5415 = vshrl.u32 %v5121, 16
        %v5417 = vshll.u32 %v5121, 16
        %v5419 = vrot.slane %v5417, 1
        %v5420 = vor.u32 %v5415, %v5419
        %v5422 = vshrl.u32 %v5122, 16
        %v5424 = vshll.u32 %v5122, 16
        %v5426 = vrot.slane %v5424, 1
        %v5427 = vor.u32 %v5422, %v5426
        %v5429 = vshrl.u32 %v5123, 16
        %v5431 = vshll.u32 %v5123, 16
        %v5433 = vrot.slane %v5431, 1
        %v5434 = vor.u32 %v5429, %v5433
        %v5436 = vshrl.u32 %v5125, 16
        %v5438 = vshll.u32 %v5125, 16
        %v5440 = vrot.slane %v5438, 1
        %v5441 = vor.u32 %v5436, %v5440
        %v5443 = vshrl.u32 %v5126, 16
        %v5445 = vshll.u32 %v5126, 16
        %v5447 = vrot.slane %v5445, 1
        %v5448 = vor.u32 %v5443, %v5447
        %v5450 = vshrl.u32 %v5127, 16
        %v5452 = vshll.u32 %v5127, 16
        %v5454 = vrot.slane %v5452, 1
        %v5455 = vor.u32 %v5450, %v5454
        %v5457 = vshrl.u32 %v5128, 16
        %v5459 = vshll.u32 %v5128, 16
        %v5461 = vrot.slane %v5459, 1
        %v5462 = vor.u32 %v5457, %v5461
        %v5464 = vshrl.u32 %v5129, 16
        %v5466 = vshll.u32 %v5129, 16
        %v5468 = vrot.slane %v5466, 1
        %v5469 = vor.u32 %v5464, %v5468
        %v5471 = vshrl.u32 %v5130, 16
        %v5473 = vshll.u32 %v5130, 16
        %v5475 = vrot.slane %v5473, 1
        %v5476 = vor.u32 %v5471, %v5475
        %v5478 = vshrl.u32 %v5131, 16
        %v5480 = vshll.u32 %v5131, 16
        %v5482 = vrot.slane %v5480, 1
        %v5483 = vor.u32 %v5478, %v5482
        %v5485 = vshrl.u32 %v5133, 16
        %v5487 = vshll.u32 %v5133, 16
        %v5489 = vrot.slane %v5487, 1
        %v5490 = vor.u32 %v5485, %v5489
        %v5492 = vshrl.u32 %v5134, 16
        %v5494 = vshll.u32 %v5134, 16
        %v5496 = vrot.slane %v5494, 1
        %v5497 = vor.u32 %v5492, %v5496
        %v5499 = vshrl.u32 %v5135, 16
        %v5501 = vshll.u32 %v5135, 16
        %v5503 = vrot.slane %v5501, 1
        %v5504 = vor.u32 %v5499, %v5503
        %v5506 = vshrl.u32 %v5136, 16
        %v5508 = vshll.u32 %v5136, 16
        %v5510 = vrot.slane %v5508, 1
        %v5511 = vor.u32 %v5506, %v5510
        %v5513 = vshrl.u32 %v5137, 16
        %v5515 = vshll.u32 %v5137, 16
        %v5517 = vrot.slane %v5515, 1
        %v5518 = vor.u32 %v5513, %v5517
        %v5520 = vshrl.u32 %v5138, 16
        %v5522 = vshll.u32 %v5138, 16
        %v5524 = vrot.slane %v5522, 1
        %v5525 = vor.u32 %v5520, %v5524
        %v5527 = vshrl.u32 %v5139, 16
        %v5529 = vshll.u32 %v5139, 16
        %v5531 = vrot.slane %v5529, 1
        %v5532 = vor.u32 %v5527, %v5531
        %5533 = vrot.lane.b32.xlu0 %v1117, 32
        %v5534 = vpop.permute.xlu0 %5533
        %5535 = vrot.lane.b32.xlu0 %v5147, 32
        %v5536 = vpop.permute.xlu0 %5535
        %5537 = vrot.lane.b32.xlu0 %v5154, 32
        %v5538 = vpop.permute.xlu0 %5537
        %5539 = vrot.lane.b32.xlu0 %v5161, 32
        %v5540 = vpop.permute.xlu0 %5539
        %5541 = vrot.lane.b32.xlu0 %v5168, 32
        %v5542 = vpop.permute.xlu0 %5541
        %5543 = vrot.lane.b32.xlu0 %v5175, 32
        %v5544 = vpop.permute.xlu0 %5543
        %5545 = vrot.lane.b32.xlu0 %v5182, 32
        %v5546 = vpop.permute.xlu0 %5545
        %5547 = vrot.lane.b32.xlu0 %v5189, 32
        %v5548 = vpop.permute.xlu0 %5547
        %5549 = vrot.lane.b32.xlu0 %v5196, 32
        %v5550 = vpop.permute.xlu0 %5549
        %5551 = vrot.lane.b32.xlu0 %v5203, 32
        %v5552 = vpop.permute.xlu0 %5551
        %5553 = vrot.lane.b32.xlu0 %v5210, 32
        %v5554 = vpop.permute.xlu0 %5553
        %5555 = vrot.lane.b32.xlu0 %v5217, 32
        %v5556 = vpop.permute.xlu0 %5555
        %5557 = vrot.lane.b32.xlu0 %v5224, 32
        %v5558 = vpop.permute.xlu0 %5557
        %5559 = vrot.lane.b32.xlu0 %v5231, 32
        %v5560 = vpop.permute.xlu0 %5559
        %5561 = vrot.lane.b32.xlu0 %v5238, 32
        %v5562 = vpop.permute.xlu0 %5561
        %5563 = vrot.lane.b32.xlu0 %v5245, 32
        %v5564 = vpop.permute.xlu0 %5563
        %5565 = vrot.lane.b32.xlu0 %v5252, 32
        %v5566 = vpop.permute.xlu0 %5565
        %5567 = vrot.lane.b32.xlu0 %v5259, 32
        %v5568 = vpop.permute.xlu0 %5567
        %5569 = vrot.lane.b32.xlu0 %v5266, 32
        %v5570 = vpop.permute.xlu0 %5569
        %5571 = vrot.lane.b32.xlu0 %v5273, 32
        %v5572 = vpop.permute.xlu0 %5571
        %5573 = vrot.lane.b32.xlu0 %v5280, 32
        %v5574 = vpop.permute.xlu0 %5573
        %5575 = vrot.lane.b32.xlu0 %v5287, 32
        %v5576 = vpop.permute.xlu0 %5575
        %5577 = vrot.lane.b32.xlu0 %v5294, 32
        %v5578 = vpop.permute.xlu0 %5577
        %5579 = vrot.lane.b32.xlu0 %v5301, 32
        %v5580 = vpop.permute.xlu0 %5579
        %5581 = vrot.lane.b32.xlu0 %v5308, 32
        %v5582 = vpop.permute.xlu0 %5581
        %5583 = vrot.lane.b32.xlu0 %v5315, 32
        %v5584 = vpop.permute.xlu0 %5583
        %5585 = vrot.lane.b32.xlu0 %v5322, 32
        %v5586 = vpop.permute.xlu0 %5585
        %5587 = vrot.lane.b32.xlu0 %v5329, 32
        %v5588 = vpop.permute.xlu0 %5587
        %5589 = vrot.lane.b32.xlu0 %v5336, 32
        %v5590 = vpop.permute.xlu0 %5589
        %5591 = vrot.lane.b32.xlu0 %v5343, 32
        %v5592 = vpop.permute.xlu0 %5591
        %5593 = vrot.lane.b32.xlu0 %v5350, 32
        %v5594 = vpop.permute.xlu0 %5593
        %5595 = vrot.lane.b32.xlu0 %v5357, 32
        %v5596 = vpop.permute.xlu0 %5595
        %5597 = vrot.lane.b32.xlu0 %v5364, 32
        %v5598 = vpop.permute.xlu0 %5597
        %5599 = vrot.lane.b32.xlu0 %v5371, 32
        %v5600 = vpop.permute.xlu0 %5599
        %5601 = vrot.lane.b32.xlu0 %v5378, 32
        %v5602 = vpop.permute.xlu0 %5601
        %5603 = vrot.lane.b32.xlu0 %v5385, 32
        %v5604 = vpop.permute.xlu0 %5603
        %5605 = vrot.lane.b32.xlu0 %v5392, 32
        %v5606 = vpop.permute.xlu0 %5605
        %5607 = vrot.lane.b32.xlu0 %v5399, 32
        %v5608 = vpop.permute.xlu0 %5607
        %5609 = vrot.lane.b32.xlu0 %v5406, 32
        %v5610 = vpop.permute.xlu0 %5609
        %5611 = vrot.lane.b32.xlu0 %v5413, 32
        %v5612 = vpop.permute.xlu0 %5611
        %5613 = vrot.lane.b32.xlu0 %v5420, 32
        %v5614 = vpop.permute.xlu0 %5613
        %5615 = vrot.lane.b32.xlu0 %v5427, 32
        %v5616 = vpop.permute.xlu0 %5615
        %5617 = vrot.lane.b32.xlu0 %v5434, 32
        %v5618 = vpop.permute.xlu0 %5617
        %5619 = vrot.lane.b32.xlu0 %v5441, 32
        %v5620 = vpop.permute.xlu0 %5619
        %5621 = vrot.lane.b32.xlu0 %v5448, 32
        %v5622 = vpop.permute.xlu0 %5621
        %5623 = vrot.lane.b32.xlu0 %v5455, 32
        %v5624 = vpop.permute.xlu0 %5623
        %5625 = vrot.lane.b32.xlu0 %v5462, 32
        %v5626 = vpop.permute.xlu0 %5625
        %5627 = vrot.lane.b32.xlu0 %v5469, 32
        %v5628 = vpop.permute.xlu0 %5627
        %5629 = vrot.lane.b32.xlu0 %v5476, 32
        %v5630 = vpop.permute.xlu0 %5629
        %5631 = vrot.lane.b32.xlu0 %v5483, 32
        %v5632 = vpop.permute.xlu0 %5631
        %5633 = vrot.lane.b32.xlu0 %v5490, 32
        %v5634 = vpop.permute.xlu0 %5633
        %5635 = vrot.lane.b32.xlu0 %v5497, 32
        %v5636 = vpop.permute.xlu0 %5635
        %5637 = vrot.lane.b32.xlu0 %v5504, 32
        %v5638 = vpop.permute.xlu0 %5637
        %5639 = vrot.lane.b32.xlu0 %v5511, 32
        %v5640 = vpop.permute.xlu0 %5639
        %5641 = vrot.lane.b32.xlu0 %v5518, 32
        %v5642 = vpop.permute.xlu0 %5641
        %5643 = vrot.lane.b32.xlu0 %v5525, 32
        %v5644 = vpop.permute.xlu0 %5643
        %5645 = vrot.lane.b32.xlu0 %v5532, 32
        %v5646 = vpop.permute.xlu0 %5645
        %v5703 = vrot.slane %v5077, 1
        %v5704 = vrot.slane %v5078, 1
        %v5705 = vrot.slane %v5079, 1
        %v5706 = vrot.slane %v5080, 1
        %v5707 = vrot.slane %v5081, 1
        %v5708 = vrot.slane %v5082, 1
        %v5709 = vrot.slane %v5083, 1
        %v5710 = vrot.slane %v5085, 1
        %v5711 = vrot.slane %v5086, 1
        %v5712 = vrot.slane %v5087, 1
        %v5713 = vrot.slane %v5088, 1
        %v5714 = vrot.slane %v5089, 1
        %v5715 = vrot.slane %v5090, 1
        %v5716 = vrot.slane %v5091, 1
        %v5717 = vrot.slane %v5093, 1
        %v5718 = vrot.slane %v5094, 1
        %v5719 = vrot.slane %v5095, 1
        %v5720 = vrot.slane %v5096, 1
        %v5721 = vrot.slane %v5097, 1
        %v5722 = vrot.slane %v5098, 1
        %v5723 = vrot.slane %v5099, 1
        %v5724 = vrot.slane %v5101, 1
        %v5725 = vrot.slane %v5102, 1
        %v5726 = vrot.slane %v5103, 1
        %v5727 = vrot.slane %v5104, 1
        %v5728 = vrot.slane %v5105, 1
        %v5729 = vrot.slane %v5106, 1
        %v5730 = vrot.slane %v5107, 1
        %v5731 = vrot.slane %v5109, 1
        %v5732 = vrot.slane %v5110, 1
        %v5733 = vrot.slane %v5111, 1
        %v5734 = vrot.slane %v5112, 1
        %v5735 = vrot.slane %v5113, 1
        %v5736 = vrot.slane %v5114, 1
        %v5737 = vrot.slane %v5115, 1
        %v5738 = vrot.slane %v5117, 1
        %v5739 = vrot.slane %v5118, 1
        %v5740 = vrot.slane %v5119, 1
        %v5741 = vrot.slane %v5120, 1
        %v5742 = vrot.slane %v5121, 1
        %v5743 = vrot.slane %v5122, 1
        %v5744 = vrot.slane %v5123, 1
        %v5745 = vrot.slane %v5125, 1
        %v5746 = vrot.slane %v5126, 1
        %v5747 = vrot.slane %v5127, 1
        %v5748 = vrot.slane %v5128, 1
        %v5749 = vrot.slane %v5129, 1
        %v5750 = vrot.slane %v5130, 1
        %v5751 = vrot.slane %v5131, 1
        %v5752 = vrot.slane %v5133, 1
        %v5753 = vrot.slane %v5134, 1
        %v5754 = vrot.slane %v5135, 1
        %v5755 = vrot.slane %v5136, 1
        %v5756 = vrot.slane %v5137, 1
        %v5757 = vrot.slane %v5138, 1
        %v5758 = vrot.slane %v5139, 1
        %5759 = vrot.lane.b32.xlu0 %v1681, 64
        %v5760 = vpop.permute.xlu0 %5759
        %5761 = vrot.lane.b32.xlu0 %v5703, 64
        %v5762 = vpop.permute.xlu0 %5761
        %5763 = vrot.lane.b32.xlu0 %v5704, 64
        %v5764 = vpop.permute.xlu0 %5763
        %5765 = vrot.lane.b32.xlu0 %v5705, 64
        %v5766 = vpop.permute.xlu0 %5765
        %5767 = vrot.lane.b32.xlu0 %v5706, 64
        %v5768 = vpop.permute.xlu0 %5767
        %5769 = vrot.lane.b32.xlu0 %v5707, 64
        %v5770 = vpop.permute.xlu0 %5769
        %5771 = vrot.lane.b32.xlu0 %v5708, 64
        %v5772 = vpop.permute.xlu0 %5771
        %5773 = vrot.lane.b32.xlu0 %v5709, 64
        %v5774 = vpop.permute.xlu0 %5773
        %5775 = vrot.lane.b32.xlu0 %v5710, 64
        %v5776 = vpop.permute.xlu0 %5775
        %5777 = vrot.lane.b32.xlu0 %v5711, 64
        %v5778 = vpop.permute.xlu0 %5777
        %5779 = vrot.lane.b32.xlu0 %v5712, 64
        %v5780 = vpop.permute.xlu0 %5779
        %5781 = vrot.lane.b32.xlu0 %v5713, 64
        %v5782 = vpop.permute.xlu0 %5781
        %5783 = vrot.lane.b32.xlu0 %v5714, 64
        %v5784 = vpop.permute.xlu0 %5783
        %5785 = vrot.lane.b32.xlu0 %v5715, 64
        %v5786 = vpop.permute.xlu0 %5785
        %5787 = vrot.lane.b32.xlu0 %v5716, 64
        %v5788 = vpop.permute.xlu0 %5787
        %5789 = vrot.lane.b32.xlu0 %v5717, 64
        %v5790 = vpop.permute.xlu0 %5789
        %5791 = vrot.lane.b32.xlu0 %v5718, 64
        %v5792 = vpop.permute.xlu0 %5791
        %5793 = vrot.lane.b32.xlu0 %v5719, 64
        %v5794 = vpop.permute.xlu0 %5793
        %5795 = vrot.lane.b32.xlu0 %v5720, 64
        %v5796 = vpop.permute.xlu0 %5795
        %5797 = vrot.lane.b32.xlu0 %v5721, 64
        %v5798 = vpop.permute.xlu0 %5797
        %5799 = vrot.lane.b32.xlu0 %v5722, 64
        %v5800 = vpop.permute.xlu0 %5799
        %5801 = vrot.lane.b32.xlu0 %v5723, 64
        %v5802 = vpop.permute.xlu0 %5801
        %5803 = vrot.lane.b32.xlu0 %v5724, 64
        %v5804 = vpop.permute.xlu0 %5803
        %5805 = vrot.lane.b32.xlu0 %v5725, 64
        %v5806 = vpop.permute.xlu0 %5805
        %5807 = vrot.lane.b32.xlu0 %v5726, 64
        %v5808 = vpop.permute.xlu0 %5807
        %5809 = vrot.lane.b32.xlu0 %v5727, 64
        %v5810 = vpop.permute.xlu0 %5809
        %5811 = vrot.lane.b32.xlu0 %v5728, 64
        %v5812 = vpop.permute.xlu0 %5811
        %5813 = vrot.lane.b32.xlu0 %v5729, 64
        %v5814 = vpop.permute.xlu0 %5813
        %5815 = vrot.lane.b32.xlu0 %v5730, 64
        %v5816 = vpop.permute.xlu0 %5815
        %5817 = vrot.lane.b32.xlu0 %v5731, 64
        %v5818 = vpop.permute.xlu0 %5817
        %5819 = vrot.lane.b32.xlu0 %v5732, 64
        %v5820 = vpop.permute.xlu0 %5819
        %5821 = vrot.lane.b32.xlu0 %v5733, 64
        %v5822 = vpop.permute.xlu0 %5821
        %5823 = vrot.lane.b32.xlu0 %v5734, 64
        %v5824 = vpop.permute.xlu0 %5823
        %5825 = vrot.lane.b32.xlu0 %v5735, 64
        %v5826 = vpop.permute.xlu0 %5825
        %5827 = vrot.lane.b32.xlu0 %v5736, 64
        %v5828 = vpop.permute.xlu0 %5827
        %5829 = vrot.lane.b32.xlu0 %v5737, 64
        %v5830 = vpop.permute.xlu0 %5829
        %5831 = vrot.lane.b32.xlu0 %v5738, 64
        %v5832 = vpop.permute.xlu0 %5831
        %5833 = vrot.lane.b32.xlu0 %v5739, 64
        %v5834 = vpop.permute.xlu0 %5833
        %5835 = vrot.lane.b32.xlu0 %v5740, 64
        %v5836 = vpop.permute.xlu0 %5835
        %5837 = vrot.lane.b32.xlu0 %v5741, 64
        %v5838 = vpop.permute.xlu0 %5837
        %5839 = vrot.lane.b32.xlu0 %v5742, 64
        %v5840 = vpop.permute.xlu0 %5839
        %5841 = vrot.lane.b32.xlu0 %v5743, 64
        %v5842 = vpop.permute.xlu0 %5841
        %5843 = vrot.lane.b32.xlu0 %v5744, 64
        %v5844 = vpop.permute.xlu0 %5843
        %5845 = vrot.lane.b32.xlu0 %v5745, 64
        %v5846 = vpop.permute.xlu0 %5845
        %5847 = vrot.lane.b32.xlu0 %v5746, 64
        %v5848 = vpop.permute.xlu0 %5847
        %5849 = vrot.lane.b32.xlu0 %v5747, 64
        %v5850 = vpop.permute.xlu0 %5849
        %5851 = vrot.lane.b32.xlu0 %v5748, 64
        %v5852 = vpop.permute.xlu0 %5851
        %5853 = vrot.lane.b32.xlu0 %v5749, 64
        %v5854 = vpop.permute.xlu0 %5853
        %5855 = vrot.lane.b32.xlu0 %v5750, 64
        %v5856 = vpop.permute.xlu0 %5855
        %5857 = vrot.lane.b32.xlu0 %v5751, 64
        %v5858 = vpop.permute.xlu0 %5857
        %5859 = vrot.lane.b32.xlu0 %v5752, 64
        %v5860 = vpop.permute.xlu0 %5859
        %5861 = vrot.lane.b32.xlu0 %v5753, 64
        %v5862 = vpop.permute.xlu0 %5861
        %5863 = vrot.lane.b32.xlu0 %v5754, 64
        %v5864 = vpop.permute.xlu0 %5863
        %5865 = vrot.lane.b32.xlu0 %v5755, 64
        %v5866 = vpop.permute.xlu0 %5865
        %5867 = vrot.lane.b32.xlu0 %v5756, 64
        %v5868 = vpop.permute.xlu0 %5867
        %5869 = vrot.lane.b32.xlu0 %v5757, 64
        %v5870 = vpop.permute.xlu0 %5869
        %5871 = vrot.lane.b32.xlu0 %v5758, 64
        %v5872 = vpop.permute.xlu0 %5871
        %5881 = vrot.lane.b32.xlu0 %v5077, 96
        %v5882 = vpop.permute.xlu0 %5881
        %5883 = vrot.lane.b32.xlu0 %v5078, 96
        %v5884 = vpop.permute.xlu0 %5883
        %5885 = vrot.lane.b32.xlu0 %v5079, 96
        %v5886 = vpop.permute.xlu0 %5885
        %5887 = vrot.lane.b32.xlu0 %v5080, 96
        %v5888 = vpop.permute.xlu0 %5887
        %5889 = vrot.lane.b32.xlu0 %v5081, 96
        %v5890 = vpop.permute.xlu0 %5889
        %5891 = vrot.lane.b32.xlu0 %v5082, 96
        %v5892 = vpop.permute.xlu0 %5891
        %5893 = vrot.lane.b32.xlu0 %v5083, 96
        %v5894 = vpop.permute.xlu0 %5893
        %5895 = vrot.lane.b32.xlu0 %v5084, 96
        %v5896 = vpop.permute.xlu0 %5895
        %5897 = vrot.lane.b32.xlu0 %v5085, 96
        %v5898 = vpop.permute.xlu0 %5897
        %5899 = vrot.lane.b32.xlu0 %v5086, 96
        %v5900 = vpop.permute.xlu0 %5899
        %5901 = vrot.lane.b32.xlu0 %v5087, 96
        %v5902 = vpop.permute.xlu0 %5901
        %5903 = vrot.lane.b32.xlu0 %v5088, 96
        %v5904 = vpop.permute.xlu0 %5903
        %5905 = vrot.lane.b32.xlu0 %v5089, 96
        %v5906 = vpop.permute.xlu0 %5905
        %5907 = vrot.lane.b32.xlu0 %v5090, 96
        %v5908 = vpop.permute.xlu0 %5907
        %5909 = vrot.lane.b32.xlu0 %v5091, 96
        %v5910 = vpop.permute.xlu0 %5909
        %5911 = vrot.lane.b32.xlu0 %v5092, 96
        %v5912 = vpop.permute.xlu0 %5911
        %5913 = vrot.lane.b32.xlu0 %v5093, 96
        %v5914 = vpop.permute.xlu0 %5913
        %5915 = vrot.lane.b32.xlu0 %v5094, 96
        %v5916 = vpop.permute.xlu0 %5915
        %5917 = vrot.lane.b32.xlu0 %v5095, 96
        %v5918 = vpop.permute.xlu0 %5917
        %5919 = vrot.lane.b32.xlu0 %v5096, 96
        %v5920 = vpop.permute.xlu0 %5919
        %5921 = vrot.lane.b32.xlu0 %v5097, 96
        %v5922 = vpop.permute.xlu0 %5921
        %5923 = vrot.lane.b32.xlu0 %v5098, 96
        %v5924 = vpop.permute.xlu0 %5923
        %5925 = vrot.lane.b32.xlu0 %v5099, 96
        %v5926 = vpop.permute.xlu0 %5925
        %5927 = vrot.lane.b32.xlu0 %v5100, 96
        %v5928 = vpop.permute.xlu0 %5927
        %5929 = vrot.lane.b32.xlu0 %v5101, 96
        %v5930 = vpop.permute.xlu0 %5929
        %5931 = vrot.lane.b32.xlu0 %v5102, 96
        %v5932 = vpop.permute.xlu0 %5931
        %5933 = vrot.lane.b32.xlu0 %v5103, 96
        %v5934 = vpop.permute.xlu0 %5933
        %5935 = vrot.lane.b32.xlu0 %v5104, 96
        %v5936 = vpop.permute.xlu0 %5935
        %5937 = vrot.lane.b32.xlu0 %v5105, 96
        %v5938 = vpop.permute.xlu0 %5937
        %5939 = vrot.lane.b32.xlu0 %v5106, 96
        %v5940 = vpop.permute.xlu0 %5939
        %5941 = vrot.lane.b32.xlu0 %v5107, 96
        %v5942 = vpop.permute.xlu0 %5941
        %5943 = vrot.lane.b32.xlu0 %v5108, 96
        %v5944 = vpop.permute.xlu0 %5943
        %5945 = vrot.lane.b32.xlu0 %v5109, 96
        %v5946 = vpop.permute.xlu0 %5945
        %5947 = vrot.lane.b32.xlu0 %v5110, 96
        %v5948 = vpop.permute.xlu0 %5947
        %5949 = vrot.lane.b32.xlu0 %v5111, 96
        %v5950 = vpop.permute.xlu0 %5949
        %5951 = vrot.lane.b32.xlu0 %v5112, 96
        %v5952 = vpop.permute.xlu0 %5951
        %5953 = vrot.lane.b32.xlu0 %v5113, 96
        %v5954 = vpop.permute.xlu0 %5953
        %5955 = vrot.lane.b32.xlu0 %v5114, 96
        %v5956 = vpop.permute.xlu0 %5955
        %5957 = vrot.lane.b32.xlu0 %v5115, 96
        %v5958 = vpop.permute.xlu0 %5957
        %5959 = vrot.lane.b32.xlu0 %v5116, 96
        %v5960 = vpop.permute.xlu0 %5959
        %5961 = vrot.lane.b32.xlu0 %v5117, 96
        %v5962 = vpop.permute.xlu0 %5961
        %5963 = vrot.lane.b32.xlu0 %v5118, 96
        %v5964 = vpop.permute.xlu0 %5963
        %5965 = vrot.lane.b32.xlu0 %v5119, 96
        %v5966 = vpop.permute.xlu0 %5965
        %5967 = vrot.lane.b32.xlu0 %v5120, 96
        %v5968 = vpop.permute.xlu0 %5967
        %5969 = vrot.lane.b32.xlu0 %v5121, 96
        %v5970 = vpop.permute.xlu0 %5969
        %5971 = vrot.lane.b32.xlu0 %v5122, 96
        %v5972 = vpop.permute.xlu0 %5971
        %5973 = vrot.lane.b32.xlu0 %v5123, 96
        %v5974 = vpop.permute.xlu0 %5973
        %5975 = vrot.lane.b32.xlu0 %v5124, 96
        %v5976 = vpop.permute.xlu0 %5975
        %5977 = vrot.lane.b32.xlu0 %v5125, 96
        %v5978 = vpop.permute.xlu0 %5977
        %5979 = vrot.lane.b32.xlu0 %v5126, 96
        %v5980 = vpop.permute.xlu0 %5979
        %5981 = vrot.lane.b32.xlu0 %v5127, 96
        %v5982 = vpop.permute.xlu0 %5981
        %5983 = vrot.lane.b32.xlu0 %v5128, 96
        %v5984 = vpop.permute.xlu0 %5983
        %5985 = vrot.lane.b32.xlu0 %v5129, 96
        %v5986 = vpop.permute.xlu0 %5985
        %5987 = vrot.lane.b32.xlu0 %v5130, 96
        %v5988 = vpop.permute.xlu0 %5987
        %5989 = vrot.lane.b32.xlu0 %v5131, 96
        %v5990 = vpop.permute.xlu0 %5989
        %5991 = vrot.lane.b32.xlu0 %v5132, 96
        %v5992 = vpop.permute.xlu0 %5991
        %5993 = vrot.lane.b32.xlu0 %v5133, 96
        %v5994 = vpop.permute.xlu0 %5993
        %5995 = vrot.lane.b32.xlu0 %v5134, 96
        %v5996 = vpop.permute.xlu0 %5995
        %5997 = vrot.lane.b32.xlu0 %v5135, 96
        %v5998 = vpop.permute.xlu0 %5997
        %5999 = vrot.lane.b32.xlu0 %v5136, 96
        %v6000 = vpop.permute.xlu0 %5999
        %6001 = vrot.lane.b32.xlu0 %v5137, 96
        %v6002 = vpop.permute.xlu0 %6001
        %6003 = vrot.lane.b32.xlu0 %v5138, 96
        %v6004 = vpop.permute.xlu0 %6003
        %6005 = vrot.lane.b32.xlu0 %v5139, 96
        %v6006 = vpop.permute.xlu0 %6005
        %6007 = vrot.lane.b32.xlu0 %v5140, 96
        %v6008 = vpop.permute.xlu0 %6007
        %v6010 = vshrl.u32 %v5084, 16
        %v6012 = vshll.u32 %v5084, 16
        %v6014 = vrot.slane %v6012, 1
        %v6015 = vor.u32 %v6010, %v6014
        %v6017 = vshrl.u32 %v5092, 16
        %v6019 = vshll.u32 %v5092, 16
        %v6021 = vrot.slane %v6019, 1
        %v6022 = vor.u32 %v6017, %v6021
        %v6024 = vshrl.u32 %v5100, 16
        %v6026 = vshll.u32 %v5100, 16
        %v6028 = vrot.slane %v6026, 1
        %v6029 = vor.u32 %v6024, %v6028
        %v6031 = vshrl.u32 %v5108, 16
        %v6033 = vshll.u32 %v5108, 16
        %v6035 = vrot.slane %v6033, 1
        %v6036 = vor.u32 %v6031, %v6035
        %v6038 = vshrl.u32 %v5116, 16
        %v6040 = vshll.u32 %v5116, 16
        %v6042 = vrot.slane %v6040, 1
        %v6043 = vor.u32 %v6038, %v6042
        %v6045 = vshrl.u32 %v5124, 16
        %v6047 = vshll.u32 %v5124, 16
        %v6049 = vrot.slane %v6047, 1
        %v6050 = vor.u32 %v6045, %v6049
        %v6052 = vshrl.u32 %v5132, 16
        %v6054 = vshll.u32 %v5132, 16
        %v6056 = vrot.slane %v6054, 1
        %v6057 = vor.u32 %v6052, %v6056
        %v6059 = vshrl.u32 %v5140, 16
        %v6061 = vshll.u32 %v5140, 16
        %v6063 = vrot.slane %v6061, 1
        %v6064 = vor.u32 %v6059, %v6063
        %v6065 = vrot.slane %v5084, 1
        %v6066 = vrot.slane %v5092, 1
        %v6067 = vrot.slane %v5100, 1
        %v6068 = vrot.slane %v5108, 1
        %v6069 = vrot.slane %v5116, 1
        %v6070 = vrot.slane %v5124, 1
        %v6071 = vrot.slane %v5132, 1
        %v6072 = vrot.slane %v5140, 1
        %6073 = vrot.lane.b32.xlu0 %v5703, 32
        %v6074 = vpop.permute.xlu0 %6073
        %6075 = vrot.lane.b32.xlu0 %v5704, 32
        %v6076 = vpop.permute.xlu0 %6075
        %6077 = vrot.lane.b32.xlu0 %v5705, 32
        %v6078 = vpop.permute.xlu0 %6077
        %6079 = vrot.lane.b32.xlu0 %v5706, 32
        %v6080 = vpop.permute.xlu0 %6079
        %6081 = vrot.lane.b32.xlu0 %v5707, 32
        %v6082 = vpop.permute.xlu0 %6081
        %6083 = vrot.lane.b32.xlu0 %v5708, 32
        %v6084 = vpop.permute.xlu0 %6083
        %6085 = vrot.lane.b32.xlu0 %v5709, 32
        %v6086 = vpop.permute.xlu0 %6085
        %6087 = vrot.lane.b32.xlu0 %v6065, 32
        %v6088 = vpop.permute.xlu0 %6087
        %6089 = vrot.lane.b32.xlu0 %v5710, 32
        %v6090 = vpop.permute.xlu0 %6089
        %6091 = vrot.lane.b32.xlu0 %v5711, 32
        %v6092 = vpop.permute.xlu0 %6091
        %6093 = vrot.lane.b32.xlu0 %v5712, 32
        %v6094 = vpop.permute.xlu0 %6093
        %6095 = vrot.lane.b32.xlu0 %v5713, 32
        %v6096 = vpop.permute.xlu0 %6095
        %6097 = vrot.lane.b32.xlu0 %v5714, 32
        %v6098 = vpop.permute.xlu0 %6097
        %6099 = vrot.lane.b32.xlu0 %v5715, 32
        %v6100 = vpop.permute.xlu0 %6099
        %6101 = vrot.lane.b32.xlu0 %v5716, 32
        %v6102 = vpop.permute.xlu0 %6101
        %6103 = vrot.lane.b32.xlu0 %v6066, 32
        %v6104 = vpop.permute.xlu0 %6103
        %6105 = vrot.lane.b32.xlu0 %v5717, 32
        %v6106 = vpop.permute.xlu0 %6105
        %6107 = vrot.lane.b32.xlu0 %v5718, 32
        %v6108 = vpop.permute.xlu0 %6107
        %6109 = vrot.lane.b32.xlu0 %v5719, 32
        %v6110 = vpop.permute.xlu0 %6109
        %6111 = vrot.lane.b32.xlu0 %v5720, 32
        %v6112 = vpop.permute.xlu0 %6111
        %6113 = vrot.lane.b32.xlu0 %v5721, 32
        %v6114 = vpop.permute.xlu0 %6113
        %6115 = vrot.lane.b32.xlu0 %v5722, 32
        %v6116 = vpop.permute.xlu0 %6115
        %6117 = vrot.lane.b32.xlu0 %v5723, 32
        %v6118 = vpop.permute.xlu0 %6117
        %6119 = vrot.lane.b32.xlu0 %v6067, 32
        %v6120 = vpop.permute.xlu0 %6119
        %6121 = vrot.lane.b32.xlu0 %v5724, 32
        %v6122 = vpop.permute.xlu0 %6121
        %6123 = vrot.lane.b32.xlu0 %v5725, 32
        %v6124 = vpop.permute.xlu0 %6123
        %6125 = vrot.lane.b32.xlu0 %v5726, 32
        %v6126 = vpop.permute.xlu0 %6125
        %6127 = vrot.lane.b32.xlu0 %v5727, 32
        %v6128 = vpop.permute.xlu0 %6127
        %6129 = vrot.lane.b32.xlu0 %v5728, 32
        %v6130 = vpop.permute.xlu0 %6129
        %6131 = vrot.lane.b32.xlu0 %v5729, 32
        %v6132 = vpop.permute.xlu0 %6131
        %6133 = vrot.lane.b32.xlu0 %v5730, 32
        %v6134 = vpop.permute.xlu0 %6133
        %6135 = vrot.lane.b32.xlu0 %v6068, 32
        %v6136 = vpop.permute.xlu0 %6135
        %6137 = vrot.lane.b32.xlu0 %v5731, 32
        %v6138 = vpop.permute.xlu0 %6137
        %6139 = vrot.lane.b32.xlu0 %v5732, 32
        %v6140 = vpop.permute.xlu0 %6139
        %6141 = vrot.lane.b32.xlu0 %v5733, 32
        %v6142 = vpop.permute.xlu0 %6141
        %6143 = vrot.lane.b32.xlu0 %v5734, 32
        %v6144 = vpop.permute.xlu0 %6143
        %6145 = vrot.lane.b32.xlu0 %v5735, 32
        %v6146 = vpop.permute.xlu0 %6145
        %6147 = vrot.lane.b32.xlu0 %v5736, 32
        %v6148 = vpop.permute.xlu0 %6147
        %6149 = vrot.lane.b32.xlu0 %v5737, 32
        %v6150 = vpop.permute.xlu0 %6149
        %6151 = vrot.lane.b32.xlu0 %v6069, 32
        %v6152 = vpop.permute.xlu0 %6151
        %6153 = vrot.lane.b32.xlu0 %v5738, 32
        %v6154 = vpop.permute.xlu0 %6153
        %6155 = vrot.lane.b32.xlu0 %v5739, 32
        %v6156 = vpop.permute.xlu0 %6155
        %6157 = vrot.lane.b32.xlu0 %v5740, 32
        %v6158 = vpop.permute.xlu0 %6157
        %6159 = vrot.lane.b32.xlu0 %v5741, 32
        %v6160 = vpop.permute.xlu0 %6159
        %6161 = vrot.lane.b32.xlu0 %v5742, 32
        %v6162 = vpop.permute.xlu0 %6161
        %6163 = vrot.lane.b32.xlu0 %v5743, 32
        %v6164 = vpop.permute.xlu0 %6163
        %6165 = vrot.lane.b32.xlu0 %v5744, 32
        %v6166 = vpop.permute.xlu0 %6165
        %6167 = vrot.lane.b32.xlu0 %v6070, 32
        %v6168 = vpop.permute.xlu0 %6167
        %6169 = vrot.lane.b32.xlu0 %v5745, 32
        %v6170 = vpop.permute.xlu0 %6169
        %6171 = vrot.lane.b32.xlu0 %v5746, 32
        %v6172 = vpop.permute.xlu0 %6171
        %6173 = vrot.lane.b32.xlu0 %v5747, 32
        %v6174 = vpop.permute.xlu0 %6173
        %6175 = vrot.lane.b32.xlu0 %v5748, 32
        %v6176 = vpop.permute.xlu0 %6175
        %6177 = vrot.lane.b32.xlu0 %v5749, 32
        %v6178 = vpop.permute.xlu0 %6177
        %6179 = vrot.lane.b32.xlu0 %v5750, 32
        %v6180 = vpop.permute.xlu0 %6179
        %6181 = vrot.lane.b32.xlu0 %v5751, 32
        %v6182 = vpop.permute.xlu0 %6181
        %6183 = vrot.lane.b32.xlu0 %v6071, 32
        %v6184 = vpop.permute.xlu0 %6183
        %6185 = vrot.lane.b32.xlu0 %v5752, 32
        %v6186 = vpop.permute.xlu0 %6185
        %6187 = vrot.lane.b32.xlu0 %v5753, 32
        %v6188 = vpop.permute.xlu0 %6187
        %6189 = vrot.lane.b32.xlu0 %v5754, 32
        %v6190 = vpop.permute.xlu0 %6189
        %6191 = vrot.lane.b32.xlu0 %v5755, 32
        %v6192 = vpop.permute.xlu0 %6191
        %6193 = vrot.lane.b32.xlu0 %v5756, 32
        %v6194 = vpop.permute.xlu0 %6193
        %6195 = vrot.lane.b32.xlu0 %v5757, 32
        %v6196 = vpop.permute.xlu0 %6195
        %6197 = vrot.lane.b32.xlu0 %v5758, 32
        %v6198 = vpop.permute.xlu0 %6197
        %6199 = vrot.lane.b32.xlu0 %v6072, 32
        %v6200 = vpop.permute.xlu0 %6199
        %6201 = vrot.lane.b32.xlu0 %v5078, 64
        %v6202 = vpop.permute.xlu0 %6201
        %6203 = vrot.lane.b32.xlu0 %v5079, 64
        %v6204 = vpop.permute.xlu0 %6203
        %6205 = vrot.lane.b32.xlu0 %v5080, 64
        %v6206 = vpop.permute.xlu0 %6205
        %6207 = vrot.lane.b32.xlu0 %v5081, 64
        %v6208 = vpop.permute.xlu0 %6207
        %6209 = vrot.lane.b32.xlu0 %v5082, 64
        %v6210 = vpop.permute.xlu0 %6209
        %6211 = vrot.lane.b32.xlu0 %v5083, 64
        %v6212 = vpop.permute.xlu0 %6211
        %6213 = vrot.lane.b32.xlu0 %v5084, 64
        %v6214 = vpop.permute.xlu0 %6213
        %6215 = vrot.lane.b32.xlu0 0, 64
        %v6216 = vpop.permute.xlu0 %6215
        %6217 = vrot.lane.b32.xlu0 %v5086, 64
        %v6218 = vpop.permute.xlu0 %6217
        %6219 = vrot.lane.b32.xlu0 %v5087, 64
        %v6220 = vpop.permute.xlu0 %6219
        %6221 = vrot.lane.b32.xlu0 %v5088, 64
        %v6222 = vpop.permute.xlu0 %6221
        %6223 = vrot.lane.b32.xlu0 %v5089, 64
        %v6224 = vpop.permute.xlu0 %6223
        %6225 = vrot.lane.b32.xlu0 %v5090, 64
        %v6226 = vpop.permute.xlu0 %6225
        %6227 = vrot.lane.b32.xlu0 %v5091, 64
        %v6228 = vpop.permute.xlu0 %6227
        %6229 = vrot.lane.b32.xlu0 %v5092, 64
        %v6230 = vpop.permute.xlu0 %6229
        %6231 = vrot.lane.b32.xlu0 %v5094, 64
        %v6232 = vpop.permute.xlu0 %6231
        %6233 = vrot.lane.b32.xlu0 %v5095, 64
        %v6234 = vpop.permute.xlu0 %6233
        %6235 = vrot.lane.b32.xlu0 %v5096, 64
        %v6236 = vpop.permute.xlu0 %6235
        %6237 = vrot.lane.b32.xlu0 %v5097, 64
        %v6238 = vpop.permute.xlu0 %6237
        %6239 = vrot.lane.b32.xlu0 %v5098, 64
        %v6240 = vpop.permute.xlu0 %6239
        %6241 = vrot.lane.b32.xlu0 %v5099, 64
        %v6242 = vpop.permute.xlu0 %6241
        %6243 = vrot.lane.b32.xlu0 %v5100, 64
        %v6244 = vpop.permute.xlu0 %6243
        %6245 = vrot.lane.b32.xlu0 %v5102, 64
        %v6246 = vpop.permute.xlu0 %6245
        %6247 = vrot.lane.b32.xlu0 %v5103, 64
        %v6248 = vpop.permute.xlu0 %6247
        %6249 = vrot.lane.b32.xlu0 %v5104, 64
        %v6250 = vpop.permute.xlu0 %6249
        %6251 = vrot.lane.b32.xlu0 %v5105, 64
        %v6252 = vpop.permute.xlu0 %6251
        %6253 = vrot.lane.b32.xlu0 %v5106, 64
        %v6254 = vpop.permute.xlu0 %6253
        %6255 = vrot.lane.b32.xlu0 %v5107, 64
        %v6256 = vpop.permute.xlu0 %6255
        %6257 = vrot.lane.b32.xlu0 %v5108, 64
        %v6258 = vpop.permute.xlu0 %6257
        %6259 = vrot.lane.b32.xlu0 %v5110, 64
        %v6260 = vpop.permute.xlu0 %6259
        %6261 = vrot.lane.b32.xlu0 %v5111, 64
        %v6262 = vpop.permute.xlu0 %6261
        %6263 = vrot.lane.b32.xlu0 %v5112, 64
        %v6264 = vpop.permute.xlu0 %6263
        %6265 = vrot.lane.b32.xlu0 %v5113, 64
        %v6266 = vpop.permute.xlu0 %6265
        %6267 = vrot.lane.b32.xlu0 %v5114, 64
        %v6268 = vpop.permute.xlu0 %6267
        %6269 = vrot.lane.b32.xlu0 %v5115, 64
        %v6270 = vpop.permute.xlu0 %6269
        %6271 = vrot.lane.b32.xlu0 %v5116, 64
        %v6272 = vpop.permute.xlu0 %6271
        %6273 = vrot.lane.b32.xlu0 %v5118, 64
        %v6274 = vpop.permute.xlu0 %6273
        %6275 = vrot.lane.b32.xlu0 %v5119, 64
        %v6276 = vpop.permute.xlu0 %6275
        %6277 = vrot.lane.b32.xlu0 %v5120, 64
        %v6278 = vpop.permute.xlu0 %6277
        %6279 = vrot.lane.b32.xlu0 %v5121, 64
        %v6280 = vpop.permute.xlu0 %6279
        %6281 = vrot.lane.b32.xlu0 %v5122, 64
        %v6282 = vpop.permute.xlu0 %6281
        %6283 = vrot.lane.b32.xlu0 %v5123, 64
        %v6284 = vpop.permute.xlu0 %6283
        %6285 = vrot.lane.b32.xlu0 %v5124, 64
        %v6286 = vpop.permute.xlu0 %6285
        %6287 = vrot.lane.b32.xlu0 %v5126, 64
        %v6288 = vpop.permute.xlu0 %6287
        %6289 = vrot.lane.b32.xlu0 %v5127, 64
        %v6290 = vpop.permute.xlu0 %6289
        %6291 = vrot.lane.b32.xlu0 %v5128, 64
        %v6292 = vpop.permute.xlu0 %6291
        %6293 = vrot.lane.b32.xlu0 %v5129, 64
        %v6294 = vpop.permute.xlu0 %6293
        %6295 = vrot.lane.b32.xlu0 %v5130, 64
        %v6296 = vpop.permute.xlu0 %6295
        %6297 = vrot.lane.b32.xlu0 %v5131, 64
        %v6298 = vpop.permute.xlu0 %6297
        %6299 = vrot.lane.b32.xlu0 %v5132, 64
        %v6300 = vpop.permute.xlu0 %6299
        %6301 = vrot.lane.b32.xlu0 %v5134, 64
        %v6302 = vpop.permute.xlu0 %6301
        %6303 = vrot.lane.b32.xlu0 %v5135, 64
        %v6304 = vpop.permute.xlu0 %6303
        %6305 = vrot.lane.b32.xlu0 %v5136, 64
        %v6306 = vpop.permute.xlu0 %6305
        %6307 = vrot.lane.b32.xlu0 %v5137, 64
        %v6308 = vpop.permute.xlu0 %6307
        %6309 = vrot.lane.b32.xlu0 %v5138, 64
        %v6310 = vpop.permute.xlu0 %6309
        %6311 = vrot.lane.b32.xlu0 %v5139, 64
        %v6312 = vpop.permute.xlu0 %6311
        %6313 = vrot.lane.b32.xlu0 %v5140, 64
        %v6314 = vpop.permute.xlu0 %6313
        %6315 = vrot.lane.b32.xlu0 %v5154, 96
        %v6316 = vpop.permute.xlu0 %6315
        %6317 = vrot.lane.b32.xlu0 %v5161, 96
        %v6318 = vpop.permute.xlu0 %6317
        %6319 = vrot.lane.b32.xlu0 %v5168, 96
        %v6320 = vpop.permute.xlu0 %6319
        %6321 = vrot.lane.b32.xlu0 %v5175, 96
        %v6322 = vpop.permute.xlu0 %6321
        %6323 = vrot.lane.b32.xlu0 %v5182, 96
        %v6324 = vpop.permute.xlu0 %6323
        %6325 = vrot.lane.b32.xlu0 %v5189, 96
        %v6326 = vpop.permute.xlu0 %6325
        %6327 = vrot.lane.b32.xlu0 %v6015, 96
        %v6328 = vpop.permute.xlu0 %6327
        %6329 = vrot.lane.b32.xlu0 %v1117, 96
        %v6330 = vpop.permute.xlu0 %6329
        %6331 = vrot.lane.b32.xlu0 %v5203, 96
        %v6332 = vpop.permute.xlu0 %6331
        %6333 = vrot.lane.b32.xlu0 %v5210, 96
        %v6334 = vpop.permute.xlu0 %6333
        %6335 = vrot.lane.b32.xlu0 %v5217, 96
        %v6336 = vpop.permute.xlu0 %6335
        %6337 = vrot.lane.b32.xlu0 %v5224, 96
        %v6338 = vpop.permute.xlu0 %6337
        %6339 = vrot.lane.b32.xlu0 %v5231, 96
        %v6340 = vpop.permute.xlu0 %6339
        %6341 = vrot.lane.b32.xlu0 %v5238, 96
        %v6342 = vpop.permute.xlu0 %6341
        %6343 = vrot.lane.b32.xlu0 %v6022, 96
        %v6344 = vpop.permute.xlu0 %6343
        %6345 = vrot.lane.b32.xlu0 %v5252, 96
        %v6346 = vpop.permute.xlu0 %6345
        %6347 = vrot.lane.b32.xlu0 %v5259, 96
        %v6348 = vpop.permute.xlu0 %6347
        %6349 = vrot.lane.b32.xlu0 %v5266, 96
        %v6350 = vpop.permute.xlu0 %6349
        %6351 = vrot.lane.b32.xlu0 %v5273, 96
        %v6352 = vpop.permute.xlu0 %6351
        %6353 = vrot.lane.b32.xlu0 %v5280, 96
        %v6354 = vpop.permute.xlu0 %6353
        %6355 = vrot.lane.b32.xlu0 %v5287, 96
        %v6356 = vpop.permute.xlu0 %6355
        %6357 = vrot.lane.b32.xlu0 %v6029, 96
        %v6358 = vpop.permute.xlu0 %6357
        %6359 = vrot.lane.b32.xlu0 %v5301, 96
        %v6360 = vpop.permute.xlu0 %6359
        %6361 = vrot.lane.b32.xlu0 %v5308, 96
        %v6362 = vpop.permute.xlu0 %6361
        %6363 = vrot.lane.b32.xlu0 %v5315, 96
        %v6364 = vpop.permute.xlu0 %6363
        %6365 = vrot.lane.b32.xlu0 %v5322, 96
        %v6366 = vpop.permute.xlu0 %6365
        %6367 = vrot.lane.b32.xlu0 %v5329, 96
        %v6368 = vpop.permute.xlu0 %6367
        %6369 = vrot.lane.b32.xlu0 %v5336, 96
        %v6370 = vpop.permute.xlu0 %6369
        %6371 = vrot.lane.b32.xlu0 %v6036, 96
        %v6372 = vpop.permute.xlu0 %6371
        %6373 = vrot.lane.b32.xlu0 %v5350, 96
        %v6374 = vpop.permute.xlu0 %6373
        %6375 = vrot.lane.b32.xlu0 %v5357, 96
        %v6376 = vpop.permute.xlu0 %6375
        %6377 = vrot.lane.b32.xlu0 %v5364, 96
        %v6378 = vpop.permute.xlu0 %6377
        %6379 = vrot.lane.b32.xlu0 %v5371, 96
        %v6380 = vpop.permute.xlu0 %6379
        %6381 = vrot.lane.b32.xlu0 %v5378, 96
        %v6382 = vpop.permute.xlu0 %6381
        %6383 = vrot.lane.b32.xlu0 %v5385, 96
        %v6384 = vpop.permute.xlu0 %6383
        %6385 = vrot.lane.b32.xlu0 %v6043, 96
        %v6386 = vpop.permute.xlu0 %6385
        %6387 = vrot.lane.b32.xlu0 %v5399, 96
        %v6388 = vpop.permute.xlu0 %6387
        %6389 = vrot.lane.b32.xlu0 %v5406, 96
        %v6390 = vpop.permute.xlu0 %6389
        %6391 = vrot.lane.b32.xlu0 %v5413, 96
        %v6392 = vpop.permute.xlu0 %6391
        %6393 = vrot.lane.b32.xlu0 %v5420, 96
        %v6394 = vpop.permute.xlu0 %6393
        %6395 = vrot.lane.b32.xlu0 %v5427, 96
        %v6396 = vpop.permute.xlu0 %6395
        %6397 = vrot.lane.b32.xlu0 %v5434, 96
        %v6398 = vpop.permute.xlu0 %6397
        %6399 = vrot.lane.b32.xlu0 %v6050, 96
        %v6400 = vpop.permute.xlu0 %6399
        %6401 = vrot.lane.b32.xlu0 %v5448, 96
        %v6402 = vpop.permute.xlu0 %6401
        %6403 = vrot.lane.b32.xlu0 %v5455, 96
        %v6404 = vpop.permute.xlu0 %6403
        %6405 = vrot.lane.b32.xlu0 %v5462, 96
        %v6406 = vpop.permute.xlu0 %6405
        %6407 = vrot.lane.b32.xlu0 %v5469, 96
        %v6408 = vpop.permute.xlu0 %6407
        %6409 = vrot.lane.b32.xlu0 %v5476, 96
        %v6410 = vpop.permute.xlu0 %6409
        %6411 = vrot.lane.b32.xlu0 %v5483, 96
        %v6412 = vpop.permute.xlu0 %6411
        %6413 = vrot.lane.b32.xlu0 %v6057, 96
        %v6414 = vpop.permute.xlu0 %6413
        %6415 = vrot.lane.b32.xlu0 %v5497, 96
        %v6416 = vpop.permute.xlu0 %6415
        %6417 = vrot.lane.b32.xlu0 %v5504, 96
        %v6418 = vpop.permute.xlu0 %6417
        %6419 = vrot.lane.b32.xlu0 %v5511, 96
        %v6420 = vpop.permute.xlu0 %6419
        %6421 = vrot.lane.b32.xlu0 %v5518, 96
        %v6422 = vpop.permute.xlu0 %6421
        %6423 = vrot.lane.b32.xlu0 %v5525, 96
        %v6424 = vpop.permute.xlu0 %6423
        %6425 = vrot.lane.b32.xlu0 %v5532, 96
        %v6426 = vpop.permute.xlu0 %6425
        %6427 = vrot.lane.b32.xlu0 %v6064, 96
        %v6428 = vpop.permute.xlu0 %6427
        %vm6429 = vcmask 261120
        %v6431 = vsel %vm6429, 0, %v5534
        %v6433 = vsel %vm6429, %v5077, %v5536
        %v6435 = vsel %vm6429, %v5078, %v5538
        %v6437 = vsel %vm6429, %v5079, %v5540
        %v6439 = vsel %vm6429, %v5080, %v5542
        %v6441 = vsel %vm6429, %v5081, %v5544
        %v6443 = vsel %vm6429, %v5082, %v5546
        %v6445 = vsel %vm6429, %v5083, %v5548
        %v6447 = vsel %vm6429, %v5085, %v5550
        %v6449 = vsel %vm6429, %v5086, %v5552
        %v6451 = vsel %vm6429, %v5087, %v5554
        %v6453 = vsel %vm6429, %v5088, %v5556
        %v6455 = vsel %vm6429, %v5089, %v5558
        %v6457 = vsel %vm6429, %v5090, %v5560
        %v6459 = vsel %vm6429, %v5091, %v5562
        %v6461 = vsel %vm6429, %v5093, %v5564
        %v6463 = vsel %vm6429, %v5094, %v5566
        %v6465 = vsel %vm6429, %v5095, %v5568
        %v6467 = vsel %vm6429, %v5096, %v5570
        %v6469 = vsel %vm6429, %v5097, %v5572
        %v6471 = vsel %vm6429, %v5098, %v5574
        %v6473 = vsel %vm6429, %v5099, %v5576
        %v6475 = vsel %vm6429, %v5101, %v5578
        %v6477 = vsel %vm6429, %v5102, %v5580
        %v6479 = vsel %vm6429, %v5103, %v5582
        %v6481 = vsel %vm6429, %v5104, %v5584
        %v6483 = vsel %vm6429, %v5105, %v5586
        %v6485 = vsel %vm6429, %v5106, %v5588
        %v6487 = vsel %vm6429, %v5107, %v5590
        %v6489 = vsel %vm6429, %v5109, %v5592
        %v6491 = vsel %vm6429, %v5110, %v5594
        %v6493 = vsel %vm6429, %v5111, %v5596
        %v6495 = vsel %vm6429, %v5112, %v5598
        %v6497 = vsel %vm6429, %v5113, %v5600
        %v6499 = vsel %vm6429, %v5114, %v5602
        %v6501 = vsel %vm6429, %v5115, %v5604
        %v6503 = vsel %vm6429, %v5117, %v5606
        %v6505 = vsel %vm6429, %v5118, %v5608
        %v6507 = vsel %vm6429, %v5119, %v5610
        %v6509 = vsel %vm6429, %v5120, %v5612
        %v6511 = vsel %vm6429, %v5121, %v5614
        %v6513 = vsel %vm6429, %v5122, %v5616
        %v6515 = vsel %vm6429, %v5123, %v5618
        %v6517 = vsel %vm6429, %v5125, %v5620
        %v6519 = vsel %vm6429, %v5126, %v5622
        %v6521 = vsel %vm6429, %v5127, %v5624
        %v6523 = vsel %vm6429, %v5128, %v5626
        %v6525 = vsel %vm6429, %v5129, %v5628
        %v6527 = vsel %vm6429, %v5130, %v5630
        %v6529 = vsel %vm6429, %v5131, %v5632
        %v6531 = vsel %vm6429, %v5133, %v5634
        %v6533 = vsel %vm6429, %v5134, %v5636
        %v6535 = vsel %vm6429, %v5135, %v5638
        %v6537 = vsel %vm6429, %v5136, %v5640
        %v6539 = vsel %vm6429, %v5137, %v5642
        %v6541 = vsel %vm6429, %v5138, %v5644
        %v6543 = vsel %vm6429, %v5139, %v5646
        %vm6544 = vcmask 523264
        %v6546 = vsel %vm6544, %v6431, %v5760
        %v6548 = vsel %vm6544, %v6433, %v5762
        %v6550 = vsel %vm6544, %v6435, %v5764
        %v6552 = vsel %vm6544, %v6437, %v5766
        %v6554 = vsel %vm6544, %v6439, %v5768
        %v6556 = vsel %vm6544, %v6441, %v5770
        %v6558 = vsel %vm6544, %v6443, %v5772
        %v6560 = vsel %vm6544, %v6445, %v5774
        %v6562 = vsel %vm6544, %v6447, %v5776
        %v6564 = vsel %vm6544, %v6449, %v5778
        %v6566 = vsel %vm6544, %v6451, %v5780
        %v6568 = vsel %vm6544, %v6453, %v5782
        %v6570 = vsel %vm6544, %v6455, %v5784
        %v6572 = vsel %vm6544, %v6457, %v5786
        %v6574 = vsel %vm6544, %v6459, %v5788
        %v6576 = vsel %vm6544, %v6461, %v5790
        %v6578 = vsel %vm6544, %v6463, %v5792
        %v6580 = vsel %vm6544, %v6465, %v5794
        %v6582 = vsel %vm6544, %v6467, %v5796
        %v6584 = vsel %vm6544, %v6469, %v5798
        %v6586 = vsel %vm6544, %v6471, %v5800
        %v6588 = vsel %vm6544, %v6473, %v5802
        %v6590 = vsel %vm6544, %v6475, %v5804
        %v6592 = vsel %vm6544, %v6477, %v5806
        %v6594 = vsel %vm6544, %v6479, %v5808
        %v6596 = vsel %vm6544, %v6481, %v5810
        %v6598 = vsel %vm6544, %v6483, %v5812
        %v6600 = vsel %vm6544, %v6485, %v5814
        %v6602 = vsel %vm6544, %v6487, %v5816
        %v6604 = vsel %vm6544, %v6489, %v5818
        %v6606 = vsel %vm6544, %v6491, %v5820
        %v6608 = vsel %vm6544, %v6493, %v5822
        %v6610 = vsel %vm6544, %v6495, %v5824
        %v6612 = vsel %vm6544, %v6497, %v5826
        %v6614 = vsel %vm6544, %v6499, %v5828
        %v6616 = vsel %vm6544, %v6501, %v5830
        %v6618 = vsel %vm6544, %v6503, %v5832
        %v6620 = vsel %vm6544, %v6505, %v5834
        %v6622 = vsel %vm6544, %v6507, %v5836
        %v6624 = vsel %vm6544, %v6509, %v5838
        %v6626 = vsel %vm6544, %v6511, %v5840
        %v6628 = vsel %vm6544, %v6513, %v5842
        %v6630 = vsel %vm6544, %v6515, %v5844
        %v6632 = vsel %vm6544, %v6517, %v5846
        %v6634 = vsel %vm6544, %v6519, %v5848
        %v6636 = vsel %vm6544, %v6521, %v5850
        %v6638 = vsel %vm6544, %v6523, %v5852
        %v6640 = vsel %vm6544, %v6525, %v5854
        %v6642 = vsel %vm6544, %v6527, %v5856
        %v6644 = vsel %vm6544, %v6529, %v5858
        %v6646 = vsel %vm6544, %v6531, %v5860
        %v6648 = vsel %vm6544, %v6533, %v5862
        %v6650 = vsel %vm6544, %v6535, %v5864
        %v6652 = vsel %vm6544, %v6537, %v5866
        %v6654 = vsel %vm6544, %v6539, %v5868
        %v6656 = vsel %vm6544, %v6541, %v5870
        %v6658 = vsel %vm6544, %v6543, %v5872
        %v6660 = vsel %vm3511, %v6546, %v5882
        %v6662 = vsel %vm3511, %v6548, %v5884
        %v6664 = vsel %vm3511, %v6550, %v5886
        %v6666 = vsel %vm3511, %v6552, %v5888
        %v6668 = vsel %vm3511, %v6554, %v5890
        %v6670 = vsel %vm3511, %v6556, %v5892
        %v6672 = vsel %vm3511, %v6558, %v5894
        %v6674 = vsel %vm3511, %v6560, %v5896
        %v6676 = vsel %vm3511, %v6546, %v5898
        %v6678 = vsel %vm3511, %v6562, %v5900
        %v6680 = vsel %vm3511, %v6564, %v5902
        %v6682 = vsel %vm3511, %v6566, %v5904
        %v6684 = vsel %vm3511, %v6568, %v5906
        %v6686 = vsel %vm3511, %v6570, %v5908
        %v6688 = vsel %vm3511, %v6572, %v5910
        %v6690 = vsel %vm3511, %v6574, %v5912
        %v6692 = vsel %vm3511, %v6546, %v5914
        %v6694 = vsel %vm3511, %v6576, %v5916
        %v6696 = vsel %vm3511, %v6578, %v5918
        %v6698 = vsel %vm3511, %v6580, %v5920
        %v6700 = vsel %vm3511, %v6582, %v5922
        %v6702 = vsel %vm3511, %v6584, %v5924
        %v6704 = vsel %vm3511, %v6586, %v5926
        %v6706 = vsel %vm3511, %v6588, %v5928
        %v6708 = vsel %vm3511, %v6546, %v5930
        %v6710 = vsel %vm3511, %v6590, %v5932
        %v6712 = vsel %vm3511, %v6592, %v5934
        %v6714 = vsel %vm3511, %v6594, %v5936
        %v6716 = vsel %vm3511, %v6596, %v5938
        %v6718 = vsel %vm3511, %v6598, %v5940
        %v6720 = vsel %vm3511, %v6600, %v5942
        %v6722 = vsel %vm3511, %v6602, %v5944
        %v6724 = vsel %vm3511, %v6546, %v5946
        %v6726 = vsel %vm3511, %v6604, %v5948
        %v6728 = vsel %vm3511, %v6606, %v5950
        %v6730 = vsel %vm3511, %v6608, %v5952
        %v6732 = vsel %vm3511, %v6610, %v5954
        %v6734 = vsel %vm3511, %v6612, %v5956
        %v6736 = vsel %vm3511, %v6614, %v5958
        %v6738 = vsel %vm3511, %v6616, %v5960
        %v6740 = vsel %vm3511, %v6546, %v5962
        %v6742 = vsel %vm3511, %v6618, %v5964
        %v6744 = vsel %vm3511, %v6620, %v5966
        %v6746 = vsel %vm3511, %v6622, %v5968
        %v6748 = vsel %vm3511, %v6624, %v5970
        %v6750 = vsel %vm3511, %v6626, %v5972
        %v6752 = vsel %vm3511, %v6628, %v5974
        %v6754 = vsel %vm3511, %v6630, %v5976
        %v6756 = vsel %vm3511, %v6546, %v5978
        %v6758 = vsel %vm3511, %v6632, %v5980
        %v6760 = vsel %vm3511, %v6634, %v5982
        %v6762 = vsel %vm3511, %v6636, %v5984
        %v6764 = vsel %vm3511, %v6638, %v5986
        %v6766 = vsel %vm3511, %v6640, %v5988
        %v6768 = vsel %vm3511, %v6642, %v5990
        %v6770 = vsel %vm3511, %v6644, %v5992
        %v6772 = vsel %vm3511, %v6546, %v5994
        %v6774 = vsel %vm3511, %v6646, %v5996
        %v6776 = vsel %vm3511, %v6648, %v5998
        %v6778 = vsel %vm3511, %v6650, %v6000
        %v6780 = vsel %vm3511, %v6652, %v6002
        %v6782 = vsel %vm3511, %v6654, %v6004
        %v6784 = vsel %vm3511, %v6656, %v6006
        %v6786 = vsel %vm3511, %v6658, %v6008
        %v6789 = vsel %vm6429, %v5147, %v6074
        %v6792 = vsel %vm6429, %v5154, %v6076
        %v6795 = vsel %vm6429, %v5161, %v6078
        %v6798 = vsel %vm6429, %v5168, %v6080
        %v6801 = vsel %vm6429, %v5175, %v6082
        %v6804 = vsel %vm6429, %v5182, %v6084
        %v6807 = vsel %vm6429, %v5189, %v6086
        %v6810 = vsel %vm6429, %v6015, %v6088
        %v6813 = vsel %vm6429, %v5196, %v6090
        %v6816 = vsel %vm6429, %v5203, %v6092
        %v6819 = vsel %vm6429, %v5210, %v6094
        %v6822 = vsel %vm6429, %v5217, %v6096
        %v6825 = vsel %vm6429, %v5224, %v6098
        %v6828 = vsel %vm6429, %v5231, %v6100
        %v6831 = vsel %vm6429, %v5238, %v6102
        %v6834 = vsel %vm6429, %v6022, %v6104
        %v6837 = vsel %vm6429, %v5245, %v6106
        %v6840 = vsel %vm6429, %v5252, %v6108
        %v6843 = vsel %vm6429, %v5259, %v6110
        %v6846 = vsel %vm6429, %v5266, %v6112
        %v6849 = vsel %vm6429, %v5273, %v6114
        %v6852 = vsel %vm6429, %v5280, %v6116
        %v6855 = vsel %vm6429, %v5287, %v6118
        %v6858 = vsel %vm6429, %v6029, %v6120
        %v6861 = vsel %vm6429, %v5294, %v6122
        %v6864 = vsel %vm6429, %v5301, %v6124
        %v6867 = vsel %vm6429, %v5308, %v6126
        %v6870 = vsel %vm6429, %v5315, %v6128
        %v6873 = vsel %vm6429, %v5322, %v6130
        %v6876 = vsel %vm6429, %v5329, %v6132
        %v6879 = vsel %vm6429, %v5336, %v6134
        %v6882 = vsel %vm6429, %v6036, %v6136
        %v6885 = vsel %vm6429, %v5343, %v6138
        %v6888 = vsel %vm6429, %v5350, %v6140
        %v6891 = vsel %vm6429, %v5357, %v6142
        %v6894 = vsel %vm6429, %v5364, %v6144
        %v6897 = vsel %vm6429, %v5371, %v6146
        %v6900 = vsel %vm6429, %v5378, %v6148
        %v6903 = vsel %vm6429, %v5385, %v6150
        %v6906 = vsel %vm6429, %v6043, %v6152
        %v6909 = vsel %vm6429, %v5392, %v6154
        %v6912 = vsel %vm6429, %v5399, %v6156
        %v6915 = vsel %vm6429, %v5406, %v6158
        %v6918 = vsel %vm6429, %v5413, %v6160
        %v6921 = vsel %vm6429, %v5420, %v6162
        %v6924 = vsel %vm6429, %v5427, %v6164
        %v6927 = vsel %vm6429, %v5434, %v6166
        %v6930 = vsel %vm6429, %v6050, %v6168
        %v6933 = vsel %vm6429, %v5441, %v6170
        %v6936 = vsel %vm6429, %v5448, %v6172
        %v6939 = vsel %vm6429, %v5455, %v6174
        %v6942 = vsel %vm6429, %v5462, %v6176
        %v6945 = vsel %vm6429, %v5469, %v6178
        %v6948 = vsel %vm6429, %v5476, %v6180
        %v6951 = vsel %vm6429, %v5483, %v6182
        %v6954 = vsel %vm6429, %v6057, %v6184
        %v6957 = vsel %vm6429, %v5490, %v6186
        %v6960 = vsel %vm6429, %v5497, %v6188
        %v6963 = vsel %vm6429, %v5504, %v6190
        %v6966 = vsel %vm6429, %v5511, %v6192
        %v6969 = vsel %vm6429, %v5518, %v6194
        %v6972 = vsel %vm6429, %v5525, %v6196
        %v6975 = vsel %vm6429, %v5532, %v6198
        %v6978 = vsel %vm6429, %v6064, %v6200
        %v6980 = vsel %vm6544, %v6789, %v6202
        %v6982 = vsel %vm6544, %v6792, %v6204
        %v6984 = vsel %vm6544, %v6795, %v6206
        %v6986 = vsel %vm6544, %v6798, %v6208
        %v6988 = vsel %vm6544, %v6801, %v6210
        %v6990 = vsel %vm6544, %v6804, %v6212
        %v6992 = vsel %vm6544, %v6807, %v6214
        %v6994 = vsel %vm6544, %v6810, %v6216
        %v6996 = vsel %vm6544, %v6813, %v6218
        %v6998 = vsel %vm6544, %v6816, %v6220
        %v7000 = vsel %vm6544, %v6819, %v6222
        %v7002 = vsel %vm6544, %v6822, %v6224
        %v7004 = vsel %vm6544, %v6825, %v6226
        %v7006 = vsel %vm6544, %v6828, %v6228
        %v7008 = vsel %vm6544, %v6831, %v6230
        %v7009 = vsel %vm6544, %v6834, %v6216
        %v7011 = vsel %vm6544, %v6837, %v6232
        %v7013 = vsel %vm6544, %v6840, %v6234
        %v7015 = vsel %vm6544, %v6843, %v6236
        %v7017 = vsel %vm6544, %v6846, %v6238
        %v7019 = vsel %vm6544, %v6849, %v6240
        %v7021 = vsel %vm6544, %v6852, %v6242
        %v7023 = vsel %vm6544, %v6855, %v6244
        %v7024 = vsel %vm6544, %v6858, %v6216
        %v7026 = vsel %vm6544, %v6861, %v6246
        %v7028 = vsel %vm6544, %v6864, %v6248
        %v7030 = vsel %vm6544, %v6867, %v6250
        %v7032 = vsel %vm6544, %v6870, %v6252
        %v7034 = vsel %vm6544, %v6873, %v6254
        %v7036 = vsel %vm6544, %v6876, %v6256
        %v7038 = vsel %vm6544, %v6879, %v6258
        %v7039 = vsel %vm6544, %v6882, %v6216
        %v7041 = vsel %vm6544, %v6885, %v6260
        %v7043 = vsel %vm6544, %v6888, %v6262
        %v7045 = vsel %vm6544, %v6891, %v6264
        %v7047 = vsel %vm6544, %v6894, %v6266
        %v7049 = vsel %vm6544, %v6897, %v6268
        %v7051 = vsel %vm6544, %v6900, %v6270
        %v7053 = vsel %vm6544, %v6903, %v6272
        %v7054 = vsel %vm6544, %v6906, %v6216
        %v7056 = vsel %vm6544, %v6909, %v6274
        %v7058 = vsel %vm6544, %v6912, %v6276
        %v7060 = vsel %vm6544, %v6915, %v6278
        %v7062 = vsel %vm6544, %v6918, %v6280
        %v7064 = vsel %vm6544, %v6921, %v6282
        %v7066 = vsel %vm6544, %v6924, %v6284
        %v7068 = vsel %vm6544, %v6927, %v6286
        %v7069 = vsel %vm6544, %v6930, %v6216
        %v7071 = vsel %vm6544, %v6933, %v6288
        %v7073 = vsel %vm6544, %v6936, %v6290
        %v7075 = vsel %vm6544, %v6939, %v6292
        %v7077 = vsel %vm6544, %v6942, %v6294
        %v7079 = vsel %vm6544, %v6945, %v6296
        %v7081 = vsel %vm6544, %v6948, %v6298
        %v7083 = vsel %vm6544, %v6951, %v6300
        %v7084 = vsel %vm6544, %v6954, %v6216
        %v7086 = vsel %vm6544, %v6957, %v6302
        %v7088 = vsel %vm6544, %v6960, %v6304
        %v7090 = vsel %vm6544, %v6963, %v6306
        %v7092 = vsel %vm6544, %v6966, %v6308
        %v7094 = vsel %vm6544, %v6969, %v6310
        %v7096 = vsel %vm6544, %v6972, %v6312
        %v7098 = vsel %vm6544, %v6975, %v6314
        %v7099 = vsel %vm6544, %v6978, %v6216
        %v7101 = vsel %vm3511, %v6980, %v6316
        %v7103 = vsel %vm3511, %v6982, %v6318
        %v7105 = vsel %vm3511, %v6984, %v6320
        %v7107 = vsel %vm3511, %v6986, %v6322
        %v7109 = vsel %vm3511, %v6988, %v6324
        %v7111 = vsel %vm3511, %v6990, %v6326
        %v7113 = vsel %vm3511, %v6992, %v6328
        %v7115 = vsel %vm3511, %v6994, %v6330
        %v7117 = vsel %vm3511, %v6996, %v6332
        %v7119 = vsel %vm3511, %v6998, %v6334
        %v7121 = vsel %vm3511, %v7000, %v6336
        %v7123 = vsel %vm3511, %v7002, %v6338
        %v7125 = vsel %vm3511, %v7004, %v6340
        %v7127 = vsel %vm3511, %v7006, %v6342
        %v7129 = vsel %vm3511, %v7008, %v6344
        %v7130 = vsel %vm3511, %v7009, %v6330
        %v7132 = vsel %vm3511, %v7011, %v6346
        %v7134 = vsel %vm3511, %v7013, %v6348
        %v7136 = vsel %vm3511, %v7015, %v6350
        %v7138 = vsel %vm3511, %v7017, %v6352
        %v7140 = vsel %vm3511, %v7019, %v6354
        %v7142 = vsel %vm3511, %v7021, %v6356
        %v7144 = vsel %vm3511, %v7023, %v6358
        %v7145 = vsel %vm3511, %v7024, %v6330
        %v7147 = vsel %vm3511, %v7026, %v6360
        %v7149 = vsel %vm3511, %v7028, %v6362
        %v7151 = vsel %vm3511, %v7030, %v6364
        %v7153 = vsel %vm3511, %v7032, %v6366
        %v7155 = vsel %vm3511, %v7034, %v6368
        %v7157 = vsel %vm3511, %v7036, %v6370
        %v7159 = vsel %vm3511, %v7038, %v6372
        %v7160 = vsel %vm3511, %v7039, %v6330
        %v7162 = vsel %vm3511, %v7041, %v6374
        %v7164 = vsel %vm3511, %v7043, %v6376
        %v7166 = vsel %vm3511, %v7045, %v6378
        %v7168 = vsel %vm3511, %v7047, %v6380
        %v7170 = vsel %vm3511, %v7049, %v6382
        %v7172 = vsel %vm3511, %v7051, %v6384
        %v7174 = vsel %vm3511, %v7053, %v6386
        %v7175 = vsel %vm3511, %v7054, %v6330
        %v7177 = vsel %vm3511, %v7056, %v6388
        %v7179 = vsel %vm3511, %v7058, %v6390
        %v7181 = vsel %vm3511, %v7060, %v6392
        %v7183 = vsel %vm3511, %v7062, %v6394
        %v7185 = vsel %vm3511, %v7064, %v6396
        %v7187 = vsel %vm3511, %v7066, %v6398
        %v7189 = vsel %vm3511, %v7068, %v6400
        %v7190 = vsel %vm3511, %v7069, %v6330
        %v7192 = vsel %vm3511, %v7071, %v6402
        %v7194 = vsel %vm3511, %v7073, %v6404
        %v7196 = vsel %vm3511, %v7075, %v6406
        %v7198 = vsel %vm3511, %v7077, %v6408
        %v7200 = vsel %vm3511, %v7079, %v6410
        %v7202 = vsel %vm3511, %v7081, %v6412
        %v7204 = vsel %vm3511, %v7083, %v6414
        %v7205 = vsel %vm3511, %v7084, %v6330
        %v7207 = vsel %vm3511, %v7086, %v6416
        %v7209 = vsel %vm3511, %v7088, %v6418
        %v7211 = vsel %vm3511, %v7090, %v6420
        %v7213 = vsel %vm3511, %v7092, %v6422
        %v7215 = vsel %vm3511, %v7094, %v6424
        %v7217 = vsel %vm3511, %v7096, %v6426
        %v7219 = vsel %vm3511, %v7098, %v6428
        %v7220 = vsel %vm3511, %v7099, %v6330
        %v7349 = vunpack.c.l.b16 %v6660
        %v7350 = vunpack.c.l.b16 %v7101
        %v7351 = vunpack.c.l.b16 %v5704
        %v7352 = vunpack.c.l.b16 %v6662
        %v7353 = vunpack.c.l.b16 %v7103
        %v7354 = vunpack.c.l.b16 %v5705
        %v7355 = vunpack.c.l.b16 %v6664
        %v7356 = vunpack.c.l.b16 %v7105
        %v7357 = vunpack.c.l.b16 %v5706
        %v7358 = vunpack.c.l.b16 %v6666
        %v7359 = vunpack.c.l.b16 %v7107
        %v7360 = vunpack.c.l.b16 %v5707
        %v7361 = vunpack.c.l.b16 %v6668
        %v7362 = vunpack.c.l.b16 %v7109
        %v7363 = vunpack.c.l.b16 %v5708
        %v7364 = vunpack.c.l.b16 %v6670
        %v7365 = vunpack.c.l.b16 %v7111
        %v7366 = vunpack.c.l.b16 %v5709
        %v7367 = vunpack.c.l.b16 %v6672
        %v7368 = vunpack.c.l.b16 %v7113
        %v7369 = vunpack.c.l.b16 %v6065
        %v7370 = vunpack.c.l.b16 %v6674
        %v7371 = vunpack.c.l.b16 %v7115
        %v7372 = vunpack.c.l.b16 %v1681
        %v7373 = vunpack.c.l.b16 %v6676
        %v7374 = vunpack.c.l.b16 %v7117
        %v7375 = vunpack.c.l.b16 %v5711
        %v7376 = vunpack.c.l.b16 %v6678
        %v7377 = vunpack.c.l.b16 %v7119
        %v7378 = vunpack.c.l.b16 %v5712
        %v7379 = vunpack.c.l.b16 %v6680
        %v7380 = vunpack.c.l.b16 %v7121
        %v7381 = vunpack.c.l.b16 %v5713
        %v7382 = vunpack.c.l.b16 %v6682
        %v7383 = vunpack.c.l.b16 %v7123
        %v7384 = vunpack.c.l.b16 %v5714
        %v7385 = vunpack.c.l.b16 %v6684
        %v7386 = vunpack.c.l.b16 %v7125
        %v7387 = vunpack.c.l.b16 %v5715
        %v7388 = vunpack.c.l.b16 %v6686
        %v7389 = vunpack.c.l.b16 %v7127
        %v7390 = vunpack.c.l.b16 %v5716
        %v7391 = vunpack.c.l.b16 %v6688
        %v7392 = vunpack.c.l.b16 %v7129
        %v7393 = vunpack.c.l.b16 %v6066
        %v7394 = vunpack.c.l.b16 %v6690
        %v7395 = vunpack.c.l.b16 %v7130
        %v7396 = vunpack.c.l.b16 %v6692
        %v7397 = vunpack.c.l.b16 %v7132
        %v7398 = vunpack.c.l.b16 %v5718
        %v7399 = vunpack.c.l.b16 %v6694
        %v7400 = vunpack.c.l.b16 %v7134
        %v7401 = vunpack.c.l.b16 %v5719
        %v7402 = vunpack.c.l.b16 %v6696
        %v7403 = vunpack.c.l.b16 %v7136
        %v7404 = vunpack.c.l.b16 %v5720
        %v7405 = vunpack.c.l.b16 %v6698
        %v7406 = vunpack.c.l.b16 %v7138
        %v7407 = vunpack.c.l.b16 %v5721
        %v7408 = vunpack.c.l.b16 %v6700
        %v7409 = vunpack.c.l.b16 %v7140
        %v7410 = vunpack.c.l.b16 %v5722
        %v7411 = vunpack.c.l.b16 %v6702
        %v7412 = vunpack.c.l.b16 %v7142
        %v7413 = vunpack.c.l.b16 %v5723
        %v7414 = vunpack.c.l.b16 %v6704
        %v7415 = vunpack.c.l.b16 %v7144
        %v7416 = vunpack.c.l.b16 %v6067
        %v7417 = vunpack.c.l.b16 %v6706
        %v7418 = vunpack.c.l.b16 %v7145
        %v7419 = vunpack.c.l.b16 %v6708
        %v7420 = vunpack.c.l.b16 %v7147
        %v7421 = vunpack.c.l.b16 %v5725
        %v7422 = vunpack.c.l.b16 %v6710
        %v7423 = vunpack.c.l.b16 %v7149
        %v7424 = vunpack.c.l.b16 %v5726
        %v7425 = vunpack.c.l.b16 %v6712
        %v7426 = vunpack.c.l.b16 %v7151
        %v7427 = vunpack.c.l.b16 %v5727
        %v7428 = vunpack.c.l.b16 %v6714
        %v7429 = vunpack.c.l.b16 %v7153
        %v7430 = vunpack.c.l.b16 %v5728
        %v7431 = vunpack.c.l.b16 %v6716
        %v7432 = vunpack.c.l.b16 %v7155
        %v7433 = vunpack.c.l.b16 %v5729
        %v7434 = vunpack.c.l.b16 %v6718
        %v7435 = vunpack.c.l.b16 %v7157
        %v7436 = vunpack.c.l.b16 %v5730
        %v7437 = vunpack.c.l.b16 %v6720
        %v7438 = vunpack.c.l.b16 %v7159
        %v7439 = vunpack.c.l.b16 %v6068
        %v7440 = vunpack.c.l.b16 %v6722
        %v7441 = vunpack.c.l.b16 %v7160
        %v7442 = vunpack.c.l.b16 %v6724
        %v7443 = vunpack.c.l.b16 %v7162
        %v7444 = vunpack.c.l.b16 %v5732
        %v7445 = vunpack.c.l.b16 %v6726
        %v7446 = vunpack.c.l.b16 %v7164
        %v7447 = vunpack.c.l.b16 %v5733
        %v7448 = vunpack.c.l.b16 %v6728
        %v7449 = vunpack.c.l.b16 %v7166
        %v7450 = vunpack.c.l.b16 %v5734
        %v7451 = vunpack.c.l.b16 %v6730
        %v7452 = vunpack.c.l.b16 %v7168
        %v7453 = vunpack.c.l.b16 %v5735
        %v7454 = vunpack.c.l.b16 %v6732
        %v7455 = vunpack.c.l.b16 %v7170
        %v7456 = vunpack.c.l.b16 %v5736
        %v7457 = vunpack.c.l.b16 %v6734
        %v7458 = vunpack.c.l.b16 %v7172
        %v7459 = vunpack.c.l.b16 %v5737
        %v7460 = vunpack.c.l.b16 %v6736
        %v7461 = vunpack.c.l.b16 %v7174
        %v7462 = vunpack.c.l.b16 %v6069
        %v7463 = vunpack.c.l.b16 %v6738
        %v7464 = vunpack.c.l.b16 %v7175
        %v7465 = vunpack.c.l.b16 %v6740
        %v7466 = vunpack.c.l.b16 %v7177
        %v7467 = vunpack.c.l.b16 %v5739
        %v7468 = vunpack.c.l.b16 %v6742
        %v7469 = vunpack.c.l.b16 %v7179
        %v7470 = vunpack.c.l.b16 %v5740
        %v7471 = vunpack.c.l.b16 %v6744
        %v7472 = vunpack.c.l.b16 %v7181
        %v7473 = vunpack.c.l.b16 %v5741
        %v7474 = vunpack.c.l.b16 %v6746
        %v7475 = vunpack.c.l.b16 %v7183
        %v7476 = vunpack.c.l.b16 %v5742
        %v7477 = vunpack.c.l.b16 %v6748
        %v7478 = vunpack.c.l.b16 %v7185
        %v7479 = vunpack.c.l.b16 %v5743
        %v7480 = vunpack.c.l.b16 %v6750
        %v7481 = vunpack.c.l.b16 %v7187
        %v7482 = vunpack.c.l.b16 %v5744
        %v7483 = vunpack.c.l.b16 %v6752
        %v7484 = vunpack.c.l.b16 %v7189
        %v7485 = vunpack.c.l.b16 %v6070
        %v7486 = vunpack.c.l.b16 %v6754
        %v7487 = vunpack.c.l.b16 %v7190
        %v7488 = vunpack.c.l.b16 %v6756
        %v7489 = vunpack.c.l.b16 %v7192
        %v7490 = vunpack.c.l.b16 %v5746
        %v7491 = vunpack.c.l.b16 %v6758
        %v7492 = vunpack.c.l.b16 %v7194
        %v7493 = vunpack.c.l.b16 %v5747
        %v7494 = vunpack.c.l.b16 %v6760
        %v7495 = vunpack.c.l.b16 %v7196
        %v7496 = vunpack.c.l.b16 %v5748
        %v7497 = vunpack.c.l.b16 %v6762
        %v7498 = vunpack.c.l.b16 %v7198
        %v7499 = vunpack.c.l.b16 %v5749
        %v7500 = vunpack.c.l.b16 %v6764
        %v7501 = vunpack.c.l.b16 %v7200
        %v7502 = vunpack.c.l.b16 %v5750
        %v7503 = vunpack.c.l.b16 %v6766
        %v7504 = vunpack.c.l.b16 %v7202
        %v7505 = vunpack.c.l.b16 %v5751
        %v7506 = vunpack.c.l.b16 %v6768
        %v7507 = vunpack.c.l.b16 %v7204
        %v7508 = vunpack.c.l.b16 %v6071
        %v7509 = vunpack.c.l.b16 %v6770
        %v7510 = vunpack.c.l.b16 %v7205
        %v7511 = vunpack.c.l.b16 %v6772
        %v7512 = vunpack.c.l.b16 %v7207
        %v7513 = vunpack.c.l.b16 %v5753
        %v7514 = vunpack.c.l.b16 %v6774
        %v7515 = vunpack.c.l.b16 %v7209
        %v7516 = vunpack.c.l.b16 %v5754
        %v7517 = vunpack.c.l.b16 %v6776
        %v7518 = vunpack.c.l.b16 %v7211
        %v7519 = vunpack.c.l.b16 %v5755
        %v7520 = vunpack.c.l.b16 %v6778
        %v7521 = vunpack.c.l.b16 %v7213
        %v7522 = vunpack.c.l.b16 %v5756
        %v7523 = vunpack.c.l.b16 %v6780
        %v7524 = vunpack.c.l.b16 %v7215
        %v7525 = vunpack.c.l.b16 %v5757
        %v7526 = vunpack.c.l.b16 %v6782
        %v7527 = vunpack.c.l.b16 %v7217
        %v7528 = vunpack.c.l.b16 %v5758
        %v7529 = vunpack.c.l.b16 %v6784
        %v7530 = vunpack.c.l.b16 %v7219
        %v7531 = vunpack.c.l.b16 %v6072
        %v7532 = vunpack.c.l.b16 %v6786
        %v7533 = vunpack.c.l.b16 %v7220
        %v7534 = vld [vmem:[%s3] sm:$0xf]
        %v7535 = vld [vmem:[%s3 + $0x4] sm:$0xf]
        %v7536 = vld [vmem:[%s3 + $0x8] sm:$0xf]
        %v7537 = vld [vmem:[%s3 + $0xc] sm:$0xf]
        %v7538 = vld [vmem:[%s3 + $0x10] sm:$0xf]
        %v7539 = vld [vmem:[%s3 + $0x14] sm:$0xf]
        %v7540 = vld [vmem:[%s3 + $0x18] sm:$0xf]
        %v7541 = vld [vmem:[%s3 + $0x1c] sm:$0xf]
        %v7542 = vld [vmem:[%s3 + $0x20] sm:$0xf]
        %v7543 = vld [vmem:[%s3 + $0x24] sm:$0xf]
        %v7544 = vld [vmem:[%s3 + $0x28] sm:$0xf]
        %v7545 = vld [vmem:[%s3 + $0x2c] sm:$0xf]
        %v7546 = vld [vmem:[%s3 + $0x30] sm:$0xf]
        %v7547 = vld [vmem:[%s3 + $0x34] sm:$0xf]
        %v7548 = vld [vmem:[%s3 + $0x38] sm:$0xf]
        %v7549 = vld [vmem:[%s3 + $0x3c] sm:$0xf]
        %v7550 = vld [vmem:[%s3 + $0x40] sm:$0xf]
        %v7551 = vld [vmem:[%s3 + $0x44] sm:$0xf]
        %v7552 = vld [vmem:[%s3 + $0x48] sm:$0xf]
        %v7553 = vld [vmem:[%s3 + $0x4c] sm:$0xf]
        %v7554 = vld [vmem:[%s3 + $0x50] sm:$0xf]
        %v7555 = vld [vmem:[%s3 + $0x54] sm:$0xf]
        %v7556 = vld [vmem:[%s3 + $0x58] sm:$0xf]
        %v7557 = vld [vmem:[%s3 + $0x5c] sm:$0xf]
        %v7558 = vld [vmem:[%s3 + $0x60] sm:$0xf]
        %v7559 = vld [vmem:[%s3 + $0x64] sm:$0xf]
        %v7560 = vld [vmem:[%s3 + $0x68] sm:$0xf]
        %v7561 = vld [vmem:[%s3 + $0x6c] sm:$0xf]
        %v7562 = vld [vmem:[%s3 + $0x70] sm:$0xf]
        %v7563 = vld [vmem:[%s3 + $0x74] sm:$0xf]
        %v7564 = vld [vmem:[%s3 + $0x78] sm:$0xf]
        %v7565 = vld [vmem:[%s3 + $0x7c] sm:$0xf]
        %v7566 = vld [vmem:[%s3 + $0x80] sm:$0xf]
        %v7567 = vld [vmem:[%s3 + $0x84] sm:$0xf]
        %v7568 = vld [vmem:[%s3 + $0x88] sm:$0xf]
        %v7569 = vld [vmem:[%s3 + $0x8c] sm:$0xf]
        %v7570 = vld [vmem:[%s4] sm:$0x1]
        %v7572 = vlaneseq
        %v7573 = vshrl.u32 %v7572, 7
        %v7574 = vsub.s32 0, %v7573
        %v7575 = vrot.slane %v7570, %v7574
        %v7577 = vpack.c.b16 %v7352, %v7349
        %v7578 = vpack.c.b16 %v7353, %v7350
        %v7579 = vpack.c.b16 %v7354, %v7351
        %v7580 = vpack.c.b16 %v7358, %v7355
        %v7581 = vpack.c.b16 %v7359, %v7356
        %v7582 = vpack.c.b16 %v7360, %v7357
        %v7583 = vpack.c.b16 %v7364, %v7361
        %v7584 = vpack.c.b16 %v7365, %v7362
        %v7585 = vpack.c.b16 %v7366, %v7363
        %v7586 = vpack.c.b16 %v7370, %v7367
        %v7587 = vpack.c.b16 %v7371, %v7368
        %v7588 = vpack.c.b16 %v7372, %v7369
        %v7589 = vpack.c.b16 %v7376, %v7373
        %v7590 = vpack.c.b16 %v7377, %v7374
        %v7591 = vpack.c.b16 %v7378, %v7375
        %v7592 = vpack.c.b16 %v7382, %v7379
        %v7593 = vpack.c.b16 %v7383, %v7380
        %v7594 = vpack.c.b16 %v7384, %v7381
        %v7595 = vpack.c.b16 %v7388, %v7385
        %v7596 = vpack.c.b16 %v7389, %v7386
        %v7597 = vpack.c.b16 %v7390, %v7387
        %v7598 = vpack.c.b16 %v7394, %v7391
        %v7599 = vpack.c.b16 %v7395, %v7392
        %v7600 = vpack.c.b16 %v7372, %v7393
        %v7601 = vpack.c.b16 %v7399, %v7396
        %v7602 = vpack.c.b16 %v7400, %v7397
        %v7603 = vpack.c.b16 %v7401, %v7398
        %v7604 = vpack.c.b16 %v7405, %v7402
        %v7605 = vpack.c.b16 %v7406, %v7403
        %v7606 = vpack.c.b16 %v7407, %v7404
        %v7607 = vpack.c.b16 %v7411, %v7408
        %v7608 = vpack.c.b16 %v7412, %v7409
        %v7609 = vpack.c.b16 %v7413, %v7410
        %v7610 = vpack.c.b16 %v7417, %v7414
        %v7611 = vpack.c.b16 %v7418, %v7415
        %v7612 = vpack.c.b16 %v7372, %v7416
        %v7613 = vpack.c.b16 %v7422, %v7419
        %v7614 = vpack.c.b16 %v7423, %v7420
        %v7615 = vpack.c.b16 %v7424, %v7421
        %v7616 = vpack.c.b16 %v7428, %v7425
        %v7617 = vpack.c.b16 %v7429, %v7426
        %v7618 = vpack.c.b16 %v7430, %v7427
        %v7619 = vpack.c.b16 %v7434, %v7431
        %v7620 = vpack.c.b16 %v7435, %v7432
        %v7621 = vpack.c.b16 %v7436, %v7433
        %v7622 = vpack.c.b16 %v7440, %v7437
        %v7623 = vpack.c.b16 %v7441, %v7438
        %v7624 = vpack.c.b16 %v7372, %v7439
        %v7625 = vpack.c.b16 %v7445, %v7442
        %v7626 = vpack.c.b16 %v7446, %v7443
        %v7627 = vpack.c.b16 %v7447, %v7444
        %v7628 = vpack.c.b16 %v7451, %v7448
        %v7629 = vpack.c.b16 %v7452, %v7449
        %v7630 = vpack.c.b16 %v7453, %v7450
        %v7631 = vpack.c.b16 %v7457, %v7454
        %v7632 = vpack.c.b16 %v7458, %v7455
        %v7633 = vpack.c.b16 %v7459, %v7456
        %v7634 = vpack.c.b16 %v7463, %v7460
        %v7635 = vpack.c.b16 %v7464, %v7461
        %v7636 = vpack.c.b16 %v7372, %v7462
        %v7637 = vpack.c.b16 %v7468, %v7465
        %v7638 = vpack.c.b16 %v7469, %v7466
        %v7639 = vpack.c.b16 %v7470, %v7467
        %v7640 = vpack.c.b16 %v7474, %v7471
        %v7641 = vpack.c.b16 %v7475, %v7472
        %v7642 = vpack.c.b16 %v7476, %v7473
        %v7643 = vpack.c.b16 %v7480, %v7477
        %v7644 = vpack.c.b16 %v7481, %v7478
        %v7645 = vpack.c.b16 %v7482, %v7479
        %v7646 = vpack.c.b16 %v7486, %v7483
        %v7647 = vpack.c.b16 %v7487, %v7484
        %v7648 = vpack.c.b16 %v7372, %v7485
        %v7649 = vpack.c.b16 %v7491, %v7488
        %v7650 = vpack.c.b16 %v7492, %v7489
        %v7651 = vpack.c.b16 %v7493, %v7490
        %v7652 = vpack.c.b16 %v7497, %v7494
        %v7653 = vpack.c.b16 %v7498, %v7495
        %v7654 = vpack.c.b16 %v7499, %v7496
        %v7655 = vpack.c.b16 %v7503, %v7500
        %v7656 = vpack.c.b16 %v7504, %v7501
        %v7657 = vpack.c.b16 %v7505, %v7502
        %v7658 = vpack.c.b16 %v7509, %v7506
        %v7659 = vpack.c.b16 %v7510, %v7507
        %v7660 = vpack.c.b16 %v7372, %v7508
        %v7661 = vpack.c.b16 %v7514, %v7511
        %v7662 = vpack.c.b16 %v7515, %v7512
        %v7663 = vpack.c.b16 %v7516, %v7513
        %v7664 = vpack.c.b16 %v7520, %v7517
        %v7665 = vpack.c.b16 %v7521, %v7518
        %v7666 = vpack.c.b16 %v7522, %v7519
        %v7667 = vpack.c.b16 %v7526, %v7523
        %v7668 = vpack.c.b16 %v7527, %v7524
        %v7669 = vpack.c.b16 %v7528, %v7525
        %v7670 = vpack.c.b16 %v7532, %v7529
        %v7671 = vpack.c.b16 %v7533, %v7530
        %v7672 = vpack.c.b16 %v7372, %v7531
        %v7773 = vunpack.c.l.b16 %v7534
        %v7774 = vunpack.c.l.b16 %v7535
        %v7775 = vunpack.c.l.b16 %v7536
        %v7776 = vunpack.c.l.b16 %v7537
        %v7777 = vunpack.c.l.b16 %v7538
        %v7778 = vunpack.c.l.b16 %v7539
        %v7779 = vunpack.c.l.b16 %v7540
        %v7780 = vunpack.c.l.b16 %v7541
        %v7781 = vunpack.c.l.b16 %v7542
        %v7782 = vunpack.c.l.b16 %v7543
        %v7783 = vunpack.c.l.b16 %v7544
        %v7784 = vunpack.c.l.b16 %v7545
        %v7785 = vunpack.c.l.b16 %v7546
        %v7786 = vunpack.c.l.b16 %v7547
        %v7787 = vunpack.c.l.b16 %v7548
        %v7788 = vunpack.c.l.b16 %v7549
        %v7789 = vunpack.c.l.b16 %v7550
        %v7790 = vunpack.c.l.b16 %v7551
        %v7791 = vunpack.c.l.b16 %v7552
        %v7792 = vunpack.c.l.b16 %v7553
        %v7793 = vunpack.c.l.b16 %v7554
        %v7794 = vunpack.c.l.b16 %v7555
        %v7795 = vunpack.c.l.b16 %v7556
        %v7796 = vunpack.c.l.b16 %v7557
        %v7797 = vunpack.c.l.b16 %v7558
        %v7798 = vunpack.c.l.b16 %v7559
        %v7799 = vunpack.c.l.b16 %v7560
        %v7800 = vunpack.c.l.b16 %v7561
        %v7801 = vunpack.c.l.b16 %v7562
        %v7802 = vunpack.c.l.b16 %v7563
        %v7803 = vunpack.c.l.b16 %v7564
        %v7804 = vunpack.c.l.b16 %v7565
        %v7805 = vunpack.c.l.b16 %v7566
        %v7806 = vunpack.c.l.b16 %v7567
        %v7807 = vunpack.c.l.b16 %v7568
        %v7808 = vunpack.c.l.b16 %v7569
        %v7809 = vpack.c.b16 %v7774, %v7773
        %v7810 = vpack.c.b16 %v7776, %v7775
        %v7811 = vpack.c.b16 %v7778, %v7777
        %v7812 = vpack.c.b16 %v7780, %v7779
        %v7813 = vpack.c.b16 %v7782, %v7781
        %v7814 = vpack.c.b16 %v7784, %v7783
        %v7815 = vpack.c.b16 %v7786, %v7785
        %v7816 = vpack.c.b16 %v7788, %v7787
        %v7817 = vpack.c.b16 %v7790, %v7789
        %v7818 = vpack.c.b16 %v7792, %v7791
        %v7819 = vpack.c.b16 %v7794, %v7793
        %v7820 = vpack.c.b16 %v7796, %v7795
        %v7821 = vpack.c.b16 %v7798, %v7797
        %v7822 = vpack.c.b16 %v7800, %v7799
        %v7823 = vpack.c.b16 %v7802, %v7801
        %v7824 = vpack.c.b16 %v7804, %v7803
        %v7825 = vpack.c.b16 %v7806, %v7805
        %v7826 = vpack.c.b16 %v7808, %v7807
        %v7846 = vsel %vm6429, %v7579, 0
        %v7849 = vsel %vm6429, %v7582, 0
        %v7852 = vsel %vm6429, %v7585, 0
        %v7855 = vsel %vm6429, %v7588, 0
        %v7858 = vsel %vm6429, %v7591, 0
        %v7861 = vsel %vm6429, %v7594, 0
        %v7864 = vsel %vm6429, %v7597, 0
        %v7867 = vsel %vm6429, %v7600, 0
        %v7870 = vsel %vm6429, %v7603, 0
        %v7873 = vsel %vm6429, %v7606, 0
        %v7876 = vsel %vm6429, %v7609, 0
        %v7879 = vsel %vm6429, %v7612, 0
        %v7882 = vsel %vm6429, %v7615, 0
        %v7885 = vsel %vm6429, %v7618, 0
        %v7888 = vsel %vm6429, %v7621, 0
        %v7891 = vsel %vm6429, %v7624, 0
        %v7894 = vsel %vm6429, %v7627, 0
        %v7897 = vsel %vm6429, %v7630, 0
        %v7900 = vsel %vm6429, %v7633, 0
        %v7903 = vsel %vm6429, %v7636, 0
        %v7906 = vsel %vm6429, %v7639, 0
        %v7909 = vsel %vm6429, %v7642, 0
        %v7912 = vsel %vm6429, %v7645, 0
        %v7915 = vsel %vm6429, %v7648, 0
        %v7918 = vsel %vm6429, %v7651, 0
        %v7921 = vsel %vm6429, %v7654, 0
        %v7924 = vsel %vm6429, %v7657, 0
        %v7927 = vsel %vm6429, %v7660, 0
        %v7930 = vsel %vm6429, %v7663, 0
        %v7933 = vsel %vm6429, %v7666, 0
        %v7936 = vsel %vm6429, %v7669, 0
        %v7939 = vsel %vm6429, %v7672, 0
        %7941 = vmatprep.subr.bf16.mxu0 0
        %7942 = vmatpush1.bf16.msra.mxu0 %v7809
        %7943 = vmatprep.subr.bf16.mxu0 0
        %7944 = vmatpush1.bf16.msra.mxu0 %v7810
        %7945 = vmatprep.subr.bf16.mxu0 0
        %7946 = vmatpush1.bf16.msra.mxu0 %v7811
        %7947 = vmatprep.subr.bf16.mxu0 0
        %7948 = vmatpush1.bf16.msra.mxu0 %v7812
        %7949 = vmatprep.subr.bf16.mxu0 0
        %7950 = vmatpush1.bf16.msra.mxu0 %v7813
        %7951 = vmatprep.subr.bf16.mxu0 0
        %7952 = vmatpush1.bf16.msra.mxu0 %v7814
        %7953 = vmatprep.subr.bf16.mxu0 0
        %7954 = vmatpush1.bf16.msra.mxu0 %v7815
        %7955 = vmatprep.subr.bf16.mxu0 0
        %7956 = vmatpush1.bf16.msra.mxu0 %v7816
        %7957 = vmatprep.subr.bf16.mxu0 0
        %7958 = vmatpush1.bf16.msra.mxu0 %v7817
        %7959 = vmatprep.subr.bf16.mxu0 0
        %7960 = vmatpush1.bf16.msra.mxu0 %v7818
        %7961 = vmatprep.subr.bf16.mxu0 0
        %7962 = vmatpush1.bf16.msra.mxu0 %v7819
        %7963 = vmatprep.subr.bf16.mxu0 0
        %7964 = vmatpush1.bf16.msra.mxu0 %v7820
        %7965 = vmatprep.subr.bf16.mxu0 0
        %7966 = vmatpush1.bf16.msra.mxu0 %v7821
        %7967 = vmatprep.subr.bf16.mxu0 0
        %7968 = vmatpush1.bf16.msra.mxu0 %v7822
        %7969 = vmatprep.subr.bf16.mxu0 0
        %7970 = vmatpush1.bf16.msra.mxu0 %v7823
        %7971 = vmatprep.subr.bf16.mxu0 0
        %7972 = vmatpush1.bf16.msra.mxu0 %v7824
        %7973 = vmatprep.mubr.bf16.mxu0 %v7578
        %7974 = vmatmul.mubr.bf16.gmra.mrb[0].mxu0 %v7577
        %v7975 = vpop.f32.mrb[0].mxu0
        %v7976 = vadd.f32 %v7575, %v7975
        %v7977 = vpop.f32.mrb[0].mxu0
        %v7978 = vpop.f32.mrb[0].mxu0
        %v7979 = vadd.f32 %v7575, %v7978
        %v7980 = vpop.f32.mrb[0].mxu0
        %7981 = vmatprep.mubr.bf16.mxu0 %v7581
        %7982 = vmatmul.mubr.bf16.gmra.mrb[0].mxu0 %v7580
        %v7983 = vpop.f32.mrb[0].mxu0
        %v7984 = vadd.f32 %v7575, %v7983
        %v7985 = vpop.f32.mrb[0].mxu0
        %v7986 = vpop.f32.mrb[0].mxu0
        %v7987 = vadd.f32 %v7575, %v7986
        %v7988 = vpop.f32.mrb[0].mxu0
        %7989 = vmatprep.mubr.bf16.mxu0 %v7584
        %7990 = vmatmul.mubr.bf16.gmra.mrb[0].mxu0 %v7583
        %v7991 = vpop.f32.mrb[0].mxu0
        %v7992 = vadd.f32 %v7575, %v7991
        %v7993 = vpop.f32.mrb[0].mxu0
        %v7994 = vpop.f32.mrb[0].mxu0
        %v7995 = vadd.f32 %v7575, %v7994
        %v7996 = vpop.f32.mrb[0].mxu0
        %7997 = vmatprep.mubr.bf16.mxu0 %v7587
        %7998 = vmatmul.mubr.bf16.gmra.mrb[0].mxu0 %v7586
        %v7999 = vpop.f32.mrb[0].mxu0
        %v8000 = vadd.f32 %v7575, %v7999
        %v8001 = vpop.f32.mrb[0].mxu0
        %v8002 = vpop.f32.mrb[0].mxu0
        %v8003 = vadd.f32 %v7575, %v8002
        %v8004 = vpop.f32.mrb[0].mxu0
        %8005 = vmatprep.mubr.bf16.mxu0 %v7590
        %8006 = vmatmul.mubr.bf16.gmra.mrb[0].mxu0 %v7589
        %v8007 = vpop.f32.mrb[0].mxu0
        %v8008 = vadd.f32 %v7575, %v8007
        %v8009 = vpop.f32.mrb[0].mxu0
        %v8010 = vpop.f32.mrb[0].mxu0
        %v8011 = vadd.f32 %v7575, %v8010
        %v8012 = vpop.f32.mrb[0].mxu0
        %8013 = vmatprep.mubr.bf16.mxu0 %v7593
        %8014 = vmatmul.mubr.bf16.gmra.mrb[0].mxu0 %v7592
        %v8015 = vpop.f32.mrb[0].mxu0
        %v8016 = vadd.f32 %v7575, %v8015
        %v8017 = vpop.f32.mrb[0].mxu0
        %v8018 = vpop.f32.mrb[0].mxu0
        %v8019 = vadd.f32 %v7575, %v8018
        %v8020 = vpop.f32.mrb[0].mxu0
        %8021 = vmatprep.mubr.bf16.mxu0 %v7596
        %8022 = vmatmul.mubr.bf16.gmra.mrb[0].mxu0 %v7595
        %v8023 = vpop.f32.mrb[0].mxu0
        %v8024 = vadd.f32 %v7575, %v8023
        %v8025 = vpop.f32.mrb[0].mxu0
        %v8026 = vpop.f32.mrb[0].mxu0
        %v8027 = vadd.f32 %v7575, %v8026
        %v8028 = vpop.f32.mrb[0].mxu0
        %8029 = vmatprep.mubr.bf16.mxu0 %v7599
        %8030 = vmatmul.mubr.bf16.gmra.mrb[0].mxu0 %v7598
        %v8031 = vpop.f32.mrb[0].mxu0
        %v8032 = vadd.f32 %v7575, %v8031
        %v8033 = vpop.f32.mrb[0].mxu0
        %v8034 = vpop.f32.mrb[0].mxu0
        %v8035 = vadd.f32 %v7575, %v8034
        %v8036 = vpop.f32.mrb[0].mxu0
        %8037 = vmatprep.mubr.bf16.mxu0 %v7602
        %8038 = vmatmul.mubr.bf16.gmra.mrb[0].mxu0 %v7601
        %v8039 = vpop.f32.mrb[0].mxu0
        %v8040 = vadd.f32 %v7575, %v8039
        %v8041 = vpop.f32.mrb[0].mxu0
        %v8042 = vpop.f32.mrb[0].mxu0
        %v8043 = vadd.f32 %v7575, %v8042
        %v8044 = vpop.f32.mrb[0].mxu0
        %8045 = vmatprep.mubr.bf16.mxu0 %v7605
        %8046 = vmatmul.mubr.bf16.gmra.mrb[0].mxu0 %v7604
        %v8047 = vpop.f32.mrb[0].mxu0
        %v8048 = vadd.f32 %v7575, %v8047
        %v8049 = vpop.f32.mrb[0].mxu0
        %v8050 = vpop.f32.mrb[0].mxu0
        %v8051 = vadd.f32 %v7575, %v8050
        %v8052 = vpop.f32.mrb[0].mxu0
        %8053 = vmatprep.mubr.bf16.mxu0 %v7608
        %8054 = vmatmul.mubr.bf16.gmra.mrb[0].mxu0 %v7607
        %v8055 = vpop.f32.mrb[0].mxu0
        %v8056 = vadd.f32 %v7575, %v8055
        %v8057 = vpop.f32.mrb[0].mxu0
        %v8058 = vpop.f32.mrb[0].mxu0
        %v8059 = vadd.f32 %v7575, %v8058
        %v8060 = vpop.f32.mrb[0].mxu0
        %8061 = vmatprep.mubr.bf16.mxu0 %v7611
        %8062 = vmatmul.mubr.bf16.gmra.mrb[0].mxu0 %v7610
        %v8063 = vpop.f32.mrb[0].mxu0
        %v8064 = vadd.f32 %v7575, %v8063
        %v8065 = vpop.f32.mrb[0].mxu0
        %v8066 = vpop.f32.mrb[0].mxu0
        %v8067 = vadd.f32 %v7575, %v8066
        %v8068 = vpop.f32.mrb[0].mxu0
        %8069 = vmatprep.mubr.bf16.mxu0 %v7614
        %8070 = vmatmul.mubr.bf16.gmra.mrb[0].mxu0 %v7613
        %v8071 = vpop.f32.mrb[0].mxu0
        %v8072 = vadd.f32 %v7575, %v8071
        %v8073 = vpop.f32.mrb[0].mxu0
        %v8074 = vpop.f32.mrb[0].mxu0
        %v8075 = vadd.f32 %v7575, %v8074
        %v8076 = vpop.f32.mrb[0].mxu0
        %8077 = vmatprep.mubr.bf16.mxu0 %v7617
        %8078 = vmatmul.mubr.bf16.gmra.mrb[0].mxu0 %v7616
        %v8079 = vpop.f32.mrb[0].mxu0
        %v8080 = vadd.f32 %v7575, %v8079
        %v8081 = vpop.f32.mrb[0].mxu0
        %v8082 = vpop.f32.mrb[0].mxu0
        %v8083 = vadd.f32 %v7575, %v8082
        %v8084 = vpop.f32.mrb[0].mxu0
        %8085 = vmatprep.mubr.bf16.mxu0 %v7620
        %8086 = vmatmul.mubr.bf16.gmra.mrb[0].mxu0 %v7619
        %v8087 = vpop.f32.mrb[0].mxu0
        %v8088 = vadd.f32 %v7575, %v8087
        %v8089 = vpop.f32.mrb[0].mxu0
        %v8090 = vpop.f32.mrb[0].mxu0
        %v8091 = vadd.f32 %v7575, %v8090
        %v8092 = vpop.f32.mrb[0].mxu0
        %8093 = vmatprep.mubr.bf16.mxu0 %v7623
        %8094 = vmatmul.mubr.bf16.gmra.mrb[0].mxu0 %v7622
        %v8095 = vpop.f32.mrb[0].mxu0
        %v8096 = vadd.f32 %v7575, %v8095
        %v8097 = vpop.f32.mrb[0].mxu0
        %v8098 = vpop.f32.mrb[0].mxu0
        %v8099 = vadd.f32 %v7575, %v8098
        %v8100 = vpop.f32.mrb[0].mxu0
        %8101 = vmatprep.mubr.bf16.mxu0 %v7626
        %8102 = vmatmul.mubr.bf16.gmra.mrb[0].mxu0 %v7625
        %v8103 = vpop.f32.mrb[0].mxu0
        %v8104 = vadd.f32 %v7575, %v8103
        %v8105 = vpop.f32.mrb[0].mxu0
        %v8106 = vpop.f32.mrb[0].mxu0
        %v8107 = vadd.f32 %v7575, %v8106
        %v8108 = vpop.f32.mrb[0].mxu0
        %8109 = vmatprep.mubr.bf16.mxu0 %v7629
        %8110 = vmatmul.mubr.bf16.gmra.mrb[0].mxu0 %v7628
        %v8111 = vpop.f32.mrb[0].mxu0
        %v8112 = vadd.f32 %v7575, %v8111
        %v8113 = vpop.f32.mrb[0].mxu0
        %v8114 = vpop.f32.mrb[0].mxu0
        %v8115 = vadd.f32 %v7575, %v8114
        %v8116 = vpop.f32.mrb[0].mxu0
        %8117 = vmatprep.mubr.bf16.mxu0 %v7632
        %8118 = vmatmul.mubr.bf16.gmra.mrb[0].mxu0 %v7631
        %v8119 = vpop.f32.mrb[0].mxu0
        %v8120 = vadd.f32 %v7575, %v8119
        %v8121 = vpop.f32.mrb[0].mxu0
        %v8122 = vpop.f32.mrb[0].mxu0
        %v8123 = vadd.f32 %v7575, %v8122
        %v8124 = vpop.f32.mrb[0].mxu0
        %8125 = vmatprep.mubr.bf16.mxu0 %v7635
        %8126 = vmatmul.mubr.bf16.gmra.mrb[0].mxu0 %v7634
        %v8127 = vpop.f32.mrb[0].mxu0
        %v8128 = vadd.f32 %v7575, %v8127
        %v8129 = vpop.f32.mrb[0].mxu0
        %v8130 = vpop.f32.mrb[0].mxu0
        %v8131 = vadd.f32 %v7575, %v8130
        %v8132 = vpop.f32.mrb[0].mxu0
        %8133 = vmatprep.mubr.bf16.mxu0 %v7638
        %8134 = vmatmul.mubr.bf16.gmra.mrb[0].mxu0 %v7637
        %v8135 = vpop.f32.mrb[0].mxu0
        %v8136 = vadd.f32 %v7575, %v8135
        %v8137 = vpop.f32.mrb[0].mxu0
        %v8138 = vpop.f32.mrb[0].mxu0
        %v8139 = vadd.f32 %v7575, %v8138
        %v8140 = vpop.f32.mrb[0].mxu0
        %8141 = vmatprep.mubr.bf16.mxu0 %v7641
        %8142 = vmatmul.mubr.bf16.gmra.mrb[0].mxu0 %v7640
        %v8143 = vpop.f32.mrb[0].mxu0
        %v8144 = vadd.f32 %v7575, %v8143
        %v8145 = vpop.f32.mrb[0].mxu0
        %v8146 = vpop.f32.mrb[0].mxu0
        %v8147 = vadd.f32 %v7575, %v8146
        %v8148 = vpop.f32.mrb[0].mxu0
        %8149 = vmatprep.mubr.bf16.mxu0 %v7644
        %8150 = vmatmul.mubr.bf16.gmra.mrb[0].mxu0 %v7643
        %v8151 = vpop.f32.mrb[0].mxu0
        %v8152 = vadd.f32 %v7575, %v8151
        %v8153 = vpop.f32.mrb[0].mxu0
        %v8154 = vpop.f32.mrb[0].mxu0
        %v8155 = vadd.f32 %v7575, %v8154
        %v8156 = vpop.f32.mrb[0].mxu0
        %8157 = vmatprep.mubr.bf16.mxu0 %v7647
        %8158 = vmatmul.mubr.bf16.gmra.mrb[0].mxu0 %v7646
        %v8159 = vpop.f32.mrb[0].mxu0
        %v8160 = vadd.f32 %v7575, %v8159
        %v8161 = vpop.f32.mrb[0].mxu0
        %v8162 = vpop.f32.mrb[0].mxu0
        %v8163 = vadd.f32 %v7575, %v8162
        %v8164 = vpop.f32.mrb[0].mxu0
        %8165 = vmatprep.mubr.bf16.mxu0 %v7650
        %8166 = vmatmul.mubr.bf16.gmra.mrb[0].mxu0 %v7649
        %v8167 = vpop.f32.mrb[0].mxu0
        %v8168 = vadd.f32 %v7575, %v8167
        %v8169 = vpop.f32.mrb[0].mxu0
        %v8170 = vpop.f32.mrb[0].mxu0
        %v8171 = vadd.f32 %v7575, %v8170
        %v8172 = vpop.f32.mrb[0].mxu0
        %8173 = vmatprep.mubr.bf16.mxu0 %v7653
        %8174 = vmatmul.mubr.bf16.gmra.mrb[0].mxu0 %v7652
        %v8175 = vpop.f32.mrb[0].mxu0
        %v8176 = vadd.f32 %v7575, %v8175
        %v8177 = vpop.f32.mrb[0].mxu0
        %v8178 = vpop.f32.mrb[0].mxu0
        %v8179 = vadd.f32 %v7575, %v8178
        %v8180 = vpop.f32.mrb[0].mxu0
        %8181 = vmatprep.mubr.bf16.mxu0 %v7656
        %8182 = vmatmul.mubr.bf16.gmra.mrb[0].mxu0 %v7655
        %v8183 = vpop.f32.mrb[0].mxu0
        %v8184 = vadd.f32 %v7575, %v8183
        %v8185 = vpop.f32.mrb[0].mxu0
        %v8186 = vpop.f32.mrb[0].mxu0
        %v8187 = vadd.f32 %v7575, %v8186
        %v8188 = vpop.f32.mrb[0].mxu0
        %8189 = vmatprep.mubr.bf16.mxu0 %v7659
        %8190 = vmatmul.mubr.bf16.gmra.mrb[0].mxu0 %v7658
        %v8191 = vpop.f32.mrb[0].mxu0
        %v8192 = vadd.f32 %v7575, %v8191
        %v8193 = vpop.f32.mrb[0].mxu0
        %v8194 = vpop.f32.mrb[0].mxu0
        %v8195 = vadd.f32 %v7575, %v8194
        %v8196 = vpop.f32.mrb[0].mxu0
        %8197 = vmatprep.mubr.bf16.mxu0 %v7662
        %8198 = vmatmul.mubr.bf16.gmra.mrb[0].mxu0 %v7661
        %v8199 = vpop.f32.mrb[0].mxu0
        %v8200 = vadd.f32 %v7575, %v8199
        %v8201 = vpop.f32.mrb[0].mxu0
        %v8202 = vpop.f32.mrb[0].mxu0
        %v8203 = vadd.f32 %v7575, %v8202
        %v8204 = vpop.f32.mrb[0].mxu0
        %8205 = vmatprep.mubr.bf16.mxu0 %v7665
        %8206 = vmatmul.mubr.bf16.gmra.mrb[0].mxu0 %v7664
        %v8207 = vpop.f32.mrb[0].mxu0
        %v8208 = vadd.f32 %v7575, %v8207
        %v8209 = vpop.f32.mrb[0].mxu0
        %v8210 = vpop.f32.mrb[0].mxu0
        %v8211 = vadd.f32 %v7575, %v8210
        %v8212 = vpop.f32.mrb[0].mxu0
        %8213 = vmatprep.mubr.bf16.mxu0 %v7668
        %8214 = vmatmul.mubr.bf16.gmra.mrb[0].mxu0 %v7667
        %v8215 = vpop.f32.mrb[0].mxu0
        %v8216 = vadd.f32 %v7575, %v8215
        %v8217 = vpop.f32.mrb[0].mxu0
        %v8218 = vpop.f32.mrb[0].mxu0
        %v8219 = vadd.f32 %v7575, %v8218
        %v8220 = vpop.f32.mrb[0].mxu0
        %8221 = vmatprep.mubr.bf16.mxu0 %v7671
        %8222 = vmatmul.mubr.bf16.gmra.mrb[0].mxu0 %v7670
        %v8223 = vpop.f32.mrb[0].mxu0
        %v8224 = vadd.f32 %v7575, %v8223
        %v8225 = vpop.f32.mrb[0].mxu0
        %v8226 = vpop.f32.mrb[0].mxu0
        %v8227 = vadd.f32 %v7575, %v8226
        %v8228 = vpop.f32.mrb[0].mxu0
        %8229 = vdwg.mxu0
        %8230 = vmatprep.subr.bf16.mxu0 0
        %8231 = vmatpush1.bf16.msra.mxu0 %v7825
        %8232 = vmatprep.subr.bf16.mxu0 0
        %8233 = vmatpush1.bf16.msra.mxu0 %v7826
        %8234 = vmatprep.subr.bf16.mxu0 0
        %8235 = vmatpush1.bf16.msra.mxu0 0
        %8236 = vmatprep.subr.bf16.mxu0 0
        %8237 = vmatpush1.bf16.msra.mxu0 0
        %8238 = vmatprep.subr.bf16.mxu0 0
        %8239 = vmatpush1.bf16.msra.mxu0 0
        %8240 = vmatprep.subr.bf16.mxu0 0
        %8241 = vmatpush1.bf16.msra.mxu0 0
        %8242 = vmatprep.subr.bf16.mxu0 0
        %8243 = vmatpush1.bf16.msra.mxu0 0
        %8244 = vmatprep.subr.bf16.mxu0 0
        %8245 = vmatpush1.bf16.msra.mxu0 0
        %8246 = vmatprep.subr.bf16.mxu0 0
        %8247 = vmatpush1.bf16.msra.mxu0 0
        %8248 = vmatprep.subr.bf16.mxu0 0
        %8249 = vmatpush1.bf16.msra.mxu0 0
        %8250 = vmatprep.subr.bf16.mxu0 0
        %8251 = vmatpush1.bf16.msra.mxu0 0
        %8252 = vmatprep.subr.bf16.mxu0 0
        %8253 = vmatpush1.bf16.msra.mxu0 0
        %8254 = vmatprep.subr.bf16.mxu0 0
        %8255 = vmatpush1.bf16.msra.mxu0 0
        %8256 = vmatprep.subr.bf16.mxu0 0
        %8257 = vmatpush1.bf16.msra.mxu0 0
        %8258 = vmatprep.subr.bf16.mxu0 0
        %8259 = vmatpush1.bf16.msra.mxu0 0
        %8260 = vmatprep.subr.bf16.mxu0 0
        %8261 = vmatpush1.bf16.msra.mxu0 0
        %8262 = vmatprep.mubr.bf16.mxu0 0
        %8263 = vmatmul.mubr.bf16.gmra.mrb[0].mxu0 %v7846
        %v8264 = vpop.f32.mrb[0].mxu0
        %v8265 = vadd.f32 %v7976, %v8264
        %v8266 = vpop.f32.mrb[0].mxu0
        %v8267 = vpop.f32.mrb[0].mxu0
        %v8268 = vadd.f32 %v7979, %v8267
        %v8269 = vpop.f32.mrb[0].mxu0
        %8270 = vmatprep.mubr.bf16.mxu0 0
        %8271 = vmatmul.mubr.bf16.gmra.mrb[0].mxu0 %v7849
        %v8272 = vpop.f32.mrb[0].mxu0
        %v8273 = vadd.f32 %v7984, %v8272
        %v8274 = vpop.f32.mrb[0].mxu0
        %v8275 = vpop.f32.mrb[0].mxu0
        %v8276 = vadd.f32 %v7987, %v8275
        %v8277 = vpop.f32.mrb[0].mxu0
        %8278 = vmatprep.mubr.bf16.mxu0 0
        %8279 = vmatmul.mubr.bf16.gmra.mrb[0].mxu0 %v7852
        %v8280 = vpop.f32.mrb[0].mxu0
        %v8281 = vadd.f32 %v7992, %v8280
        %v8282 = vpop.f32.mrb[0].mxu0
        %v8283 = vpop.f32.mrb[0].mxu0
        %v8284 = vadd.f32 %v7995, %v8283
        %v8285 = vpop.f32.mrb[0].mxu0
        %8286 = vmatprep.mubr.bf16.mxu0 0
        %8287 = vmatmul.mubr.bf16.gmra.mrb[0].mxu0 %v7855
        %v8288 = vpop.f32.mrb[0].mxu0
        %v8289 = vadd.f32 %v8000, %v8288
        %v8290 = vpop.f32.mrb[0].mxu0
        %v8291 = vpop.f32.mrb[0].mxu0
        %v8292 = vadd.f32 %v8003, %v8291
        %v8293 = vpop.f32.mrb[0].mxu0
        %8294 = vmatprep.mubr.bf16.mxu0 0
        %8295 = vmatmul.mubr.bf16.gmra.mrb[0].mxu0 %v7858
        %v8296 = vpop.f32.mrb[0].mxu0
        %v8297 = vadd.f32 %v8008, %v8296
        %v8298 = vpop.f32.mrb[0].mxu0
        %v8299 = vpop.f32.mrb[0].mxu0
        %v8300 = vadd.f32 %v8011, %v8299
        %v8301 = vpop.f32.mrb[0].mxu0
        %8302 = vmatprep.mubr.bf16.mxu0 0
        %8303 = vmatmul.mubr.bf16.gmra.mrb[0].mxu0 %v7861
        %v8304 = vpop.f32.mrb[0].mxu0
        %v8305 = vadd.f32 %v8016, %v8304
        %v8306 = vpop.f32.mrb[0].mxu0
        %v8307 = vpop.f32.mrb[0].mxu0
        %v8308 = vadd.f32 %v8019, %v8307
        %v8309 = vpop.f32.mrb[0].mxu0
        %8310 = vmatprep.mubr.bf16.mxu0 0
        %8311 = vmatmul.mubr.bf16.gmra.mrb[0].mxu0 %v7864
        %v8312 = vpop.f32.mrb[0].mxu0
        %v8313 = vadd.f32 %v8024, %v8312
        %v8314 = vpop.f32.mrb[0].mxu0
        %v8315 = vpop.f32.mrb[0].mxu0
        %v8316 = vadd.f32 %v8027, %v8315
        %v8317 = vpop.f32.mrb[0].mxu0
        %8318 = vmatprep.mubr.bf16.mxu0 0
        %8319 = vmatmul.mubr.bf16.gmra.mrb[0].mxu0 %v7867
        %v8320 = vpop.f32.mrb[0].mxu0
        %v8321 = vadd.f32 %v8032, %v8320
        %v8322 = vpop.f32.mrb[0].mxu0
        %v8323 = vpop.f32.mrb[0].mxu0
        %v8324 = vadd.f32 %v8035, %v8323
        %v8325 = vpop.f32.mrb[0].mxu0
        %8326 = vmatprep.mubr.bf16.mxu0 0
        %8327 = vmatmul.mubr.bf16.gmra.mrb[0].mxu0 %v7870
        %v8328 = vpop.f32.mrb[0].mxu0
        %v8329 = vadd.f32 %v8040, %v8328
        %v8330 = vpop.f32.mrb[0].mxu0
        %v8331 = vpop.f32.mrb[0].mxu0
        %v8332 = vadd.f32 %v8043, %v8331
        %v8333 = vpop.f32.mrb[0].mxu0
        %8334 = vmatprep.mubr.bf16.mxu0 0
        %8335 = vmatmul.mubr.bf16.gmra.mrb[0].mxu0 %v7873
        %v8336 = vpop.f32.mrb[0].mxu0
        %v8337 = vadd.f32 %v8048, %v8336
        %v8338 = vpop.f32.mrb[0].mxu0
        %v8339 = vpop.f32.mrb[0].mxu0
        %v8340 = vadd.f32 %v8051, %v8339
        %v8341 = vpop.f32.mrb[0].mxu0
        %8342 = vmatprep.mubr.bf16.mxu0 0
        %8343 = vmatmul.mubr.bf16.gmra.mrb[0].mxu0 %v7876
        %v8344 = vpop.f32.mrb[0].mxu0
        %v8345 = vadd.f32 %v8056, %v8344
        %v8346 = vpop.f32.mrb[0].mxu0
        %v8347 = vpop.f32.mrb[0].mxu0
        %v8348 = vadd.f32 %v8059, %v8347
        %v8349 = vpop.f32.mrb[0].mxu0
        %8350 = vmatprep.mubr.bf16.mxu0 0
        %8351 = vmatmul.mubr.bf16.gmra.mrb[0].mxu0 %v7879
        %v8352 = vpop.f32.mrb[0].mxu0
        %v8353 = vadd.f32 %v8064, %v8352
        %v8354 = vpop.f32.mrb[0].mxu0
        %v8355 = vpop.f32.mrb[0].mxu0
        %v8356 = vadd.f32 %v8067, %v8355
        %v8357 = vpop.f32.mrb[0].mxu0
        %8358 = vmatprep.mubr.bf16.mxu0 0
        %8359 = vmatmul.mubr.bf16.gmra.mrb[0].mxu0 %v7882
        %v8360 = vpop.f32.mrb[0].mxu0
        %v8361 = vadd.f32 %v8072, %v8360
        %v8362 = vpop.f32.mrb[0].mxu0
        %v8363 = vpop.f32.mrb[0].mxu0
        %v8364 = vadd.f32 %v8075, %v8363
        %v8365 = vpop.f32.mrb[0].mxu0
        %8366 = vmatprep.mubr.bf16.mxu0 0
        %8367 = vmatmul.mubr.bf16.gmra.mrb[0].mxu0 %v7885
        %v8368 = vpop.f32.mrb[0].mxu0
        %v8369 = vadd.f32 %v8080, %v8368
        %v8370 = vpop.f32.mrb[0].mxu0
        %v8371 = vpop.f32.mrb[0].mxu0
        %v8372 = vadd.f32 %v8083, %v8371
        %v8373 = vpop.f32.mrb[0].mxu0
        %8374 = vmatprep.mubr.bf16.mxu0 0
        %8375 = vmatmul.mubr.bf16.gmra.mrb[0].mxu0 %v7888
        %v8376 = vpop.f32.mrb[0].mxu0
        %v8377 = vadd.f32 %v8088, %v8376
        %v8378 = vpop.f32.mrb[0].mxu0
        %v8379 = vpop.f32.mrb[0].mxu0
        %v8380 = vadd.f32 %v8091, %v8379
        %v8381 = vpop.f32.mrb[0].mxu0
        %8382 = vmatprep.mubr.bf16.mxu0 0
        %8383 = vmatmul.mubr.bf16.gmra.mrb[0].mxu0 %v7891
        %v8384 = vpop.f32.mrb[0].mxu0
        %v8385 = vadd.f32 %v8096, %v8384
        %v8386 = vpop.f32.mrb[0].mxu0
        %v8387 = vpop.f32.mrb[0].mxu0
        %v8388 = vadd.f32 %v8099, %v8387
        %v8389 = vpop.f32.mrb[0].mxu0
        %8390 = vmatprep.mubr.bf16.mxu0 0
        %8391 = vmatmul.mubr.bf16.gmra.mrb[0].mxu0 %v7894
        %v8392 = vpop.f32.mrb[0].mxu0
        %v8393 = vadd.f32 %v8104, %v8392
        %v8394 = vpop.f32.mrb[0].mxu0
        %v8395 = vpop.f32.mrb[0].mxu0
        %v8396 = vadd.f32 %v8107, %v8395
        %v8397 = vpop.f32.mrb[0].mxu0
        %8398 = vmatprep.mubr.bf16.mxu0 0
        %8399 = vmatmul.mubr.bf16.gmra.mrb[0].mxu0 %v7897
        %v8400 = vpop.f32.mrb[0].mxu0
        %v8401 = vadd.f32 %v8112, %v8400
        %v8402 = vpop.f32.mrb[0].mxu0
        %v8403 = vpop.f32.mrb[0].mxu0
        %v8404 = vadd.f32 %v8115, %v8403
        %v8405 = vpop.f32.mrb[0].mxu0
        %8406 = vmatprep.mubr.bf16.mxu0 0
        %8407 = vmatmul.mubr.bf16.gmra.mrb[0].mxu0 %v7900
        %v8408 = vpop.f32.mrb[0].mxu0
        %v8409 = vadd.f32 %v8120, %v8408
        %v8410 = vpop.f32.mrb[0].mxu0
        %v8411 = vpop.f32.mrb[0].mxu0
        %v8412 = vadd.f32 %v8123, %v8411
        %v8413 = vpop.f32.mrb[0].mxu0
        %8414 = vmatprep.mubr.bf16.mxu0 0
        %8415 = vmatmul.mubr.bf16.gmra.mrb[0].mxu0 %v7903
        %v8416 = vpop.f32.mrb[0].mxu0
        %v8417 = vadd.f32 %v8128, %v8416
        %v8418 = vpop.f32.mrb[0].mxu0
        %v8419 = vpop.f32.mrb[0].mxu0
        %v8420 = vadd.f32 %v8131, %v8419
        %v8421 = vpop.f32.mrb[0].mxu0
        %8422 = vmatprep.mubr.bf16.mxu0 0
        %8423 = vmatmul.mubr.bf16.gmra.mrb[0].mxu0 %v7906
        %v8424 = vpop.f32.mrb[0].mxu0
        %v8425 = vadd.f32 %v8136, %v8424
        %v8426 = vpop.f32.mrb[0].mxu0
        %v8427 = vpop.f32.mrb[0].mxu0
        %v8428 = vadd.f32 %v8139, %v8427
        %v8429 = vpop.f32.mrb[0].mxu0
        %8430 = vmatprep.mubr.bf16.mxu0 0
        %8431 = vmatmul.mubr.bf16.gmra.mrb[0].mxu0 %v7909
        %v8432 = vpop.f32.mrb[0].mxu0
        %v8433 = vadd.f32 %v8144, %v8432
        %v8434 = vpop.f32.mrb[0].mxu0
        %v8435 = vpop.f32.mrb[0].mxu0
        %v8436 = vadd.f32 %v8147, %v8435
        %v8437 = vpop.f32.mrb[0].mxu0
        %8438 = vmatprep.mubr.bf16.mxu0 0
        %8439 = vmatmul.mubr.bf16.gmra.mrb[0].mxu0 %v7912
        %v8440 = vpop.f32.mrb[0].mxu0
        %v8441 = vadd.f32 %v8152, %v8440
        %v8442 = vpop.f32.mrb[0].mxu0
        %v8443 = vpop.f32.mrb[0].mxu0
        %v8444 = vadd.f32 %v8155, %v8443
        %v8445 = vpop.f32.mrb[0].mxu0
        %8446 = vmatprep.mubr.bf16.mxu0 0
        %8447 = vmatmul.mubr.bf16.gmra.mrb[0].mxu0 %v7915
        %v8448 = vpop.f32.mrb[0].mxu0
        %v8449 = vadd.f32 %v8160, %v8448
        %v8450 = vpop.f32.mrb[0].mxu0
        %v8451 = vpop.f32.mrb[0].mxu0
        %v8452 = vadd.f32 %v8163, %v8451
        %v8453 = vpop.f32.mrb[0].mxu0
        %8454 = vmatprep.mubr.bf16.mxu0 0
        %8455 = vmatmul.mubr.bf16.gmra.mrb[0].mxu0 %v7918
        %v8456 = vpop.f32.mrb[0].mxu0
        %v8457 = vadd.f32 %v8168, %v8456
        %v8458 = vpop.f32.mrb[0].mxu0
        %v8459 = vpop.f32.mrb[0].mxu0
        %v8460 = vadd.f32 %v8171, %v8459
        %v8461 = vpop.f32.mrb[0].mxu0
        %8462 = vmatprep.mubr.bf16.mxu0 0
        %8463 = vmatmul.mubr.bf16.gmra.mrb[0].mxu0 %v7921
        %v8464 = vpop.f32.mrb[0].mxu0
        %v8465 = vadd.f32 %v8176, %v8464
        %v8466 = vpop.f32.mrb[0].mxu0
        %v8467 = vpop.f32.mrb[0].mxu0
        %v8468 = vadd.f32 %v8179, %v8467
        %v8469 = vpop.f32.mrb[0].mxu0
        %8470 = vmatprep.mubr.bf16.mxu0 0
        %8471 = vmatmul.mubr.bf16.gmra.mrb[0].mxu0 %v7924
        %v8472 = vpop.f32.mrb[0].mxu0
        %v8473 = vadd.f32 %v8184, %v8472
        %v8474 = vpop.f32.mrb[0].mxu0
        %v8475 = vpop.f32.mrb[0].mxu0
        %v8476 = vadd.f32 %v8187, %v8475
        %v8477 = vpop.f32.mrb[0].mxu0
        %8478 = vmatprep.mubr.bf16.mxu0 0
        %8479 = vmatmul.mubr.bf16.gmra.mrb[0].mxu0 %v7927
        %v8480 = vpop.f32.mrb[0].mxu0
        %v8481 = vadd.f32 %v8192, %v8480
        %v8482 = vpop.f32.mrb[0].mxu0
        %v8483 = vpop.f32.mrb[0].mxu0
        %v8484 = vadd.f32 %v8195, %v8483
        %v8485 = vpop.f32.mrb[0].mxu0
        %8486 = vmatprep.mubr.bf16.mxu0 0
        %8487 = vmatmul.mubr.bf16.gmra.mrb[0].mxu0 %v7930
        %v8488 = vpop.f32.mrb[0].mxu0
        %v8489 = vadd.f32 %v8200, %v8488
        %v8490 = vpop.f32.mrb[0].mxu0
        %v8491 = vpop.f32.mrb[0].mxu0
        %v8492 = vadd.f32 %v8203, %v8491
        %v8493 = vpop.f32.mrb[0].mxu0
        %8494 = vmatprep.mubr.bf16.mxu0 0
        %8495 = vmatmul.mubr.bf16.gmra.mrb[0].mxu0 %v7933
        %v8496 = vpop.f32.mrb[0].mxu0
        %v8497 = vadd.f32 %v8208, %v8496
        %v8498 = vpop.f32.mrb[0].mxu0
        %v8499 = vpop.f32.mrb[0].mxu0
        %v8500 = vadd.f32 %v8211, %v8499
        %v8501 = vpop.f32.mrb[0].mxu0
        %8502 = vmatprep.mubr.bf16.mxu0 0
        %8503 = vmatmul.mubr.bf16.gmra.mrb[0].mxu0 %v7936
        %v8504 = vpop.f32.mrb[0].mxu0
        %v8505 = vadd.f32 %v8216, %v8504
        %v8506 = vpop.f32.mrb[0].mxu0
        %v8507 = vpop.f32.mrb[0].mxu0
        %v8508 = vadd.f32 %v8219, %v8507
        %v8509 = vpop.f32.mrb[0].mxu0
        %8510 = vmatprep.mubr.bf16.mxu0 0
        %8511 = vmatmul.mubr.bf16.gmra.mrb[0].mxu0 %v7939
        %v8512 = vpop.f32.mrb[0].mxu0
        %v8513 = vadd.f32 %v8224, %v8512
        %v8514 = vpop.f32.mrb[0].mxu0
        %v8515 = vpop.f32.mrb[0].mxu0
        %v8516 = vadd.f32 %v8227, %v8515
        %v8517 = vpop.f32.mrb[0].mxu0
        %8518 = vdwg.mxu0
        %v8519 = vmax.f32 %v8265, 0.0
        %v8520 = vmax.f32 %v8268, 0.0
        %v8521 = vmax.f32 %v8273, 0.0
        %v8522 = vmax.f32 %v8276, 0.0
        %v8523 = vmax.f32 %v8281, 0.0
        %v8524 = vmax.f32 %v8284, 0.0
        %v8525 = vmax.f32 %v8289, 0.0
        %v8526 = vmax.f32 %v8292, 0.0
        %v8527 = vmax.f32 %v8297, 0.0
        %v8528 = vmax.f32 %v8300, 0.0
        %v8529 = vmax.f32 %v8305, 0.0
        %v8530 = vmax.f32 %v8308, 0.0
        %v8531 = vmax.f32 %v8313, 0.0
        %v8532 = vmax.f32 %v8316, 0.0
        %v8533 = vmax.f32 %v8321, 0.0
        %v8534 = vmax.f32 %v8324, 0.0
        %v8535 = vmax.f32 %v8329, 0.0
        %v8536 = vmax.f32 %v8332, 0.0
        %v8537 = vmax.f32 %v8337, 0.0
        %v8538 = vmax.f32 %v8340, 0.0
        %v8539 = vmax.f32 %v8345, 0.0
        %v8540 = vmax.f32 %v8348, 0.0
        %v8541 = vmax.f32 %v8353, 0.0
        %v8542 = vmax.f32 %v8356, 0.0
        %v8543 = vmax.f32 %v8361, 0.0
        %v8544 = vmax.f32 %v8364, 0.0
        %v8545 = vmax.f32 %v8369, 0.0
        %v8546 = vmax.f32 %v8372, 0.0
        %v8547 = vmax.f32 %v8377, 0.0
        %v8548 = vmax.f32 %v8380, 0.0
        %v8549 = vmax.f32 %v8385, 0.0
        %v8550 = vmax.f32 %v8388, 0.0
        %v8551 = vmax.f32 %v8393, 0.0
        %v8552 = vmax.f32 %v8396, 0.0
        %v8553 = vmax.f32 %v8401, 0.0
        %v8554 = vmax.f32 %v8404, 0.0
        %v8555 = vmax.f32 %v8409, 0.0
        %v8556 = vmax.f32 %v8412, 0.0
        %v8557 = vmax.f32 %v8417, 0.0
        %v8558 = vmax.f32 %v8420, 0.0
        %v8559 = vmax.f32 %v8425, 0.0
        %v8560 = vmax.f32 %v8428, 0.0
        %v8561 = vmax.f32 %v8433, 0.0
        %v8562 = vmax.f32 %v8436, 0.0
        %v8563 = vmax.f32 %v8441, 0.0
        %v8564 = vmax.f32 %v8444, 0.0
        %v8565 = vmax.f32 %v8449, 0.0
        %v8566 = vmax.f32 %v8452, 0.0
        %v8567 = vmax.f32 %v8457, 0.0
        %v8568 = vmax.f32 %v8460, 0.0
        %v8569 = vmax.f32 %v8465, 0.0
        %v8570 = vmax.f32 %v8468, 0.0
        %v8571 = vmax.f32 %v8473, 0.0
        %v8572 = vmax.f32 %v8476, 0.0
        %v8573 = vmax.f32 %v8481, 0.0
        %v8574 = vmax.f32 %v8484, 0.0
        %v8575 = vmax.f32 %v8489, 0.0
        %v8576 = vmax.f32 %v8492, 0.0
        %v8577 = vmax.f32 %v8497, 0.0
        %v8578 = vmax.f32 %v8500, 0.0
        %v8579 = vmax.f32 %v8505, 0.0
        %v8580 = vmax.f32 %v8508, 0.0
        %v8581 = vmax.f32 %v8513, 0.0
        %v8582 = vmax.f32 %v8516, 0.0
        %v8583 = vsel %vm6544, %v8519, -inf
        %v8584 = vsel %vm6544, %v8520, -inf
        %v8585 = vmax.f32 %v8583, %v8584
        %v8586 = vsel %vm6544, %v8521, -inf
        %v8587 = vmax.f32 %v8585, %v8586
        %v8588 = vsel %vm6544, %v8522, -inf
        %v8589 = vmax.f32 %v8587, %v8588
        %v8590 = vsel %vm6544, %v8523, -inf
        %v8591 = vmax.f32 %v8589, %v8590
        %v8592 = vsel %vm6544, %v8524, -inf
        %v8593 = vmax.f32 %v8591, %v8592
        %v8594 = vsel %vm6544, %v8525, -inf
        %v8595 = vmax.f32 %v8593, %v8594
        %v8596 = vsel %vm6544, %v8526, -inf
        %v8597 = vmax.f32 %v8595, %v8596
        %v8598 = vrot.slane %v8597, 4
        %v8599 = vmax.f32 %v8597, %v8598
        %v8600 = vrot.slane %v8599, 2
        %v8601 = vmax.f32 %v8599, %v8600
        %v8602 = vrot.slane %v8601, 1
        %v8603 = vmax.f32 %v8601, %v8602
        %v8604 = vsel %vm6544, %v8527, -inf
        %v8605 = vsel %vm6544, %v8528, -inf
        %v8606 = vmax.f32 %v8604, %v8605
        %v8607 = vsel %vm6544, %v8529, -inf
        %v8608 = vmax.f32 %v8606, %v8607
        %v8609 = vsel %vm6544, %v8530, -inf
        %v8610 = vmax.f32 %v8608, %v8609
        %v8611 = vsel %vm6544, %v8531, -inf
        %v8612 = vmax.f32 %v8610, %v8611
        %v8613 = vsel %vm6544, %v8532, -inf
        %v8614 = vmax.f32 %v8612, %v8613
        %v8615 = vsel %vm6544, %v8533, -inf
        %v8616 = vmax.f32 %v8614, %v8615
        %v8617 = vsel %vm6544, %v8534, -inf
        %v8618 = vmax.f32 %v8616, %v8617
        %v8619 = vrot.slane %v8618, 4
        %v8620 = vmax.f32 %v8618, %v8619
        %v8621 = vrot.slane %v8620, 2
        %v8622 = vmax.f32 %v8620, %v8621
        %v8623 = vrot.slane %v8622, 1
        %v8624 = vmax.f32 %v8622, %v8623
        %v8625 = vsel %vm6544, %v8535, -inf
        %v8626 = vsel %vm6544, %v8536, -inf
        %v8627 = vmax.f32 %v8625, %v8626
        %v8628 = vsel %vm6544, %v8537, -inf
        %v8629 = vmax.f32 %v8627, %v8628
        %v8630 = vsel %vm6544, %v8538, -inf
        %v8631 = vmax.f32 %v8629, %v8630
        %v8632 = vsel %vm6544, %v8539, -inf
        %v8633 = vmax.f32 %v8631, %v8632
        %v8634 = vsel %vm6544, %v8540, -inf
        %v8635 = vmax.f32 %v8633, %v8634
        %v8636 = vsel %vm6544, %v8541, -inf
        %v8637 = vmax.f32 %v8635, %v8636
        %v8638 = vsel %vm6544, %v8542, -inf
        %v8639 = vmax.f32 %v8637, %v8638
        %v8640 = vrot.slane %v8639, 4
        %v8641 = vmax.f32 %v8639, %v8640
        %v8642 = vrot.slane %v8641, 2
        %v8643 = vmax.f32 %v8641, %v8642
        %v8644 = vrot.slane %v8643, 1
        %v8645 = vmax.f32 %v8643, %v8644
        %v8646 = vsel %vm6544, %v8543, -inf
        %v8647 = vsel %vm6544, %v8544, -inf
        %v8648 = vmax.f32 %v8646, %v8647
        %v8649 = vsel %vm6544, %v8545, -inf
        %v8650 = vmax.f32 %v8648, %v8649
        %v8651 = vsel %vm6544, %v8546, -inf
        %v8652 = vmax.f32 %v8650, %v8651
        %v8653 = vsel %vm6544, %v8547, -inf
        %v8654 = vmax.f32 %v8652, %v8653
        %v8655 = vsel %vm6544, %v8548, -inf
        %v8656 = vmax.f32 %v8654, %v8655
        %v8657 = vsel %vm6544, %v8549, -inf
        %v8658 = vmax.f32 %v8656, %v8657
        %v8659 = vsel %vm6544, %v8550, -inf
        %v8660 = vmax.f32 %v8658, %v8659
        %v8661 = vrot.slane %v8660, 4
        %v8662 = vmax.f32 %v8660, %v8661
        %v8663 = vrot.slane %v8662, 2
        %v8664 = vmax.f32 %v8662, %v8663
        %v8665 = vrot.slane %v8664, 1
        %v8666 = vmax.f32 %v8664, %v8665
        %v8667 = vsel %vm6544, %v8551, -inf
        %v8668 = vsel %vm6544, %v8552, -inf
        %v8669 = vmax.f32 %v8667, %v8668
        %v8670 = vsel %vm6544, %v8553, -inf
        %v8671 = vmax.f32 %v8669, %v8670
        %v8672 = vsel %vm6544, %v8554, -inf
        %v8673 = vmax.f32 %v8671, %v8672
        %v8674 = vsel %vm6544, %v8555, -inf
        %v8675 = vmax.f32 %v8673, %v8674
        %v8676 = vsel %vm6544, %v8556, -inf
        %v8677 = vmax.f32 %v8675, %v8676
        %v8678 = vsel %vm6544, %v8557, -inf
        %v8679 = vmax.f32 %v8677, %v8678
        %v8680 = vsel %vm6544, %v8558, -inf
        %v8681 = vmax.f32 %v8679, %v8680
        %v8682 = vrot.slane %v8681, 4
        %v8683 = vmax.f32 %v8681, %v8682
        %v8684 = vrot.slane %v8683, 2
        %v8685 = vmax.f32 %v8683, %v8684
        %v8686 = vrot.slane %v8685, 1
        %v8687 = vmax.f32 %v8685, %v8686
        %v8688 = vsel %vm6544, %v8559, -inf
        %v8689 = vsel %vm6544, %v8560, -inf
        %v8690 = vmax.f32 %v8688, %v8689
        %v8691 = vsel %vm6544, %v8561, -inf
        %v8692 = vmax.f32 %v8690, %v8691
        %v8693 = vsel %vm6544, %v8562, -inf
        %v8694 = vmax.f32 %v8692, %v8693
        %v8695 = vsel %vm6544, %v8563, -inf
        %v8696 = vmax.f32 %v8694, %v8695
        %v8697 = vsel %vm6544, %v8564, -inf
        %v8698 = vmax.f32 %v8696, %v8697
        %v8699 = vsel %vm6544, %v8565, -inf
        %v8700 = vmax.f32 %v8698, %v8699
        %v8701 = vsel %vm6544, %v8566, -inf
        %v8702 = vmax.f32 %v8700, %v8701
        %v8703 = vrot.slane %v8702, 4
        %v8704 = vmax.f32 %v8702, %v8703
        %v8705 = vrot.slane %v8704, 2
        %v8706 = vmax.f32 %v8704, %v8705
        %v8707 = vrot.slane %v8706, 1
        %v8708 = vmax.f32 %v8706, %v8707
        %v8709 = vsel %vm6544, %v8567, -inf
        %v8710 = vsel %vm6544, %v8568, -inf
        %v8711 = vmax.f32 %v8709, %v8710
        %v8712 = vsel %vm6544, %v8569, -inf
        %v8713 = vmax.f32 %v8711, %v8712
        %v8714 = vsel %vm6544, %v8570, -inf
        %v8715 = vmax.f32 %v8713, %v8714
        %v8716 = vsel %vm6544, %v8571, -inf
        %v8717 = vmax.f32 %v8715, %v8716
        %v8718 = vsel %vm6544, %v8572, -inf
        %v8719 = vmax.f32 %v8717, %v8718
        %v8720 = vsel %vm6544, %v8573, -inf
        %v8721 = vmax.f32 %v8719, %v8720
        %v8722 = vsel %vm6544, %v8574, -inf
        %v8723 = vmax.f32 %v8721, %v8722
        %v8724 = vrot.slane %v8723, 4
        %v8725 = vmax.f32 %v8723, %v8724
        %v8726 = vrot.slane %v8725, 2
        %v8727 = vmax.f32 %v8725, %v8726
        %v8728 = vrot.slane %v8727, 1
        %v8729 = vmax.f32 %v8727, %v8728
        %v8730 = vsel %vm6544, %v8575, -inf
        %v8731 = vsel %vm6544, %v8576, -inf
        %v8732 = vmax.f32 %v8730, %v8731
        %v8733 = vsel %vm6544, %v8577, -inf
        %v8734 = vmax.f32 %v8732, %v8733
        %v8735 = vsel %vm6544, %v8578, -inf
        %v8736 = vmax.f32 %v8734, %v8735
        %v8737 = vsel %vm6544, %v8579, -inf
        %v8738 = vmax.f32 %v8736, %v8737
        %v8739 = vsel %vm6544, %v8580, -inf
        %v8740 = vmax.f32 %v8738, %v8739
        %v8741 = vsel %vm6544, %v8581, -inf
        %v8742 = vmax.f32 %v8740, %v8741
        %v8743 = vsel %vm6544, %v8582, -inf
        %v8744 = vmax.f32 %v8742, %v8743
        %v8745 = vrot.slane %v8744, 4
        %v8746 = vmax.f32 %v8744, %v8745
        %v8747 = vrot.slane %v8746, 2
        %v8748 = vmax.f32 %v8746, %v8747
        %v8749 = vrot.slane %v8748, 1
        %v8750 = vmax.f32 %v8748, %v8749
        %v8751 = vld [vmem:[%s5] sm:$0xff]
        %v8752 = vld [vmem:[%s5 + $0x8] sm:$0xff]
        %v8753 = vld [vmem:[%s5 + $0x10] sm:$0xff]
        %v8754 = vld [vmem:[%s5 + $0x18] sm:$0xff]
        %v8755 = vld [vmem:[%s5 + $0x20] sm:$0xff]
        %v8756 = vld [vmem:[%s5 + $0x28] sm:$0xff]
        %v8757 = vld [vmem:[%s5 + $0x30] sm:$0xff]
        %v8758 = vld [vmem:[%s5 + $0x38] sm:$0xff]
        %v8759 = vld [vmem:[%s6] sm:$0x1]
        %v8761 = vlaneseq
        %v8762 = vshrl.u32 %v8761, 7
        %v8763 = vsub.s32 0, %v8762
        %v8764 = vrot.slane %v8759, %v8763
        %vm8774 = vcmask 1041409
        %v8775 = vsel %vm8774, %v8624, %v8603
        %vm8776 = vcmask 1042434
        %v8777 = vsel %vm8776, %v8645, %v8775
        %vm8778 = vcmask 1043459
        %v8779 = vsel %vm8778, %v8666, %v8777
        %vm8780 = vcmask 1044484
        %v8781 = vsel %vm8780, %v8687, %v8779
        %vm8782 = vcmask 1045509
        %v8783 = vsel %vm8782, %v8708, %v8781
        %vm8784 = vcmask 1046534
        %v8785 = vsel %vm8784, %v8729, %v8783
        %vm8786 = vcmask 1047559
        %v8787 = vsel %vm8786, %v8750, %v8785
        %v8788 = vsel %vm6544, %v8787, 0
        %8790 = vmatprep.subr.mxu0 0.0
        %8791 = vmatpush1.msra.mxu0 %v8751
        %8792 = vmatprep.subr.mxu0 0.0
        %8793 = vmatpush1.msra.mxu0 %v8752
        %8794 = vmatprep.subr.mxu0 0.0
        %8795 = vmatpush1.msra.mxu0 %v8753
        %8796 = vmatprep.subr.mxu0 0.0
        %8797 = vmatpush1.msra.mxu0 %v8754
        %8798 = vmatprep.subr.mxu0 0.0
        %8799 = vmatpush1.msra.mxu0 %v8755
        %8800 = vmatprep.subr.mxu0 0.0
        %8801 = vmatpush1.msra.mxu0 %v8756
        %8802 = vmatprep.subr.mxu0 0.0
        %8803 = vmatpush1.msra.mxu0 %v8757
        %8804 = vmatprep.subr.mxu0 0.0
        %8805 = vmatpush1.msra.mxu0 %v8758
        %8806 = vmatprep.subr.mxu0 0.0
        %8807 = vmatpush1.msra.mxu0 0.0
        %8808 = vmatprep.subr.mxu0 0.0
        %8809 = vmatpush1.msra.mxu0 0.0
        %8810 = vmatprep.subr.mxu0 0.0
        %8811 = vmatpush1.msra.mxu0 0.0
        %8812 = vmatprep.subr.mxu0 0.0
        %8813 = vmatpush1.msra.mxu0 0.0
        %8814 = vmatprep.subr.mxu0 0.0
        %8815 = vmatpush1.msra.mxu0 0.0
        %8816 = vmatprep.subr.mxu0 0.0
        %8817 = vmatpush1.msra.mxu0 0.0
        %8818 = vmatprep.subr.mxu0 0.0
        %8819 = vmatpush1.msra.mxu0 0.0
        %8820 = vmatprep.subr.mxu0 0.0
        %8821 = vmatpush1.msra.mxu0 0.0
        %8822 = vmatprep.subr.mxu0 0.0
        %8823 = vmatpush1.msra.mxu0 0.0
        %8824 = vmatprep.subr.mxu0 0.0
        %8825 = vmatpush1.msra.mxu0 0.0
        %8826 = vmatprep.subr.mxu0 0.0
        %8827 = vmatpush1.msra.mxu0 0.0
        %8828 = vmatprep.subr.mxu0 0.0
        %8829 = vmatpush1.msra.mxu0 0.0
        %8830 = vmatprep.subr.mxu0 0.0
        %8831 = vmatpush1.msra.mxu0 0.0
        %8832 = vmatprep.subr.mxu0 0.0
        %8833 = vmatpush1.msra.mxu0 0.0
        %8834 = vmatprep.subr.mxu0 0.0
        %8835 = vmatpush1.msra.mxu0 0.0
        %8836 = vmatprep.subr.mxu0 0.0
        %8837 = vmatpush1.msra.mxu0 0.0
        %8838 = vmatprep.subr.mxu0 0.0
        %8839 = vmatpush1.msra.mxu0 0.0
        %8840 = vmatprep.subr.mxu0 0.0
        %8841 = vmatpush1.msra.mxu0 0.0
        %8842 = vmatprep.subr.mxu0 0.0
        %8843 = vmatpush1.msra.mxu0 0.0
        %8844 = vmatprep.subr.mxu0 0.0
        %8845 = vmatpush1.msra.mxu0 0.0
        %8846 = vmatprep.subr.mxu0 0.0
        %8847 = vmatpush1.msra.mxu0 0.0
        %8848 = vmatprep.subr.mxu0 0.0
        %8849 = vmatpush1.msra.mxu0 0.0
        %8850 = vmatprep.subr.mxu0 0.0
        %8851 = vmatpush1.msra.mxu0 0.0
        %8852 = vmatprep.subr.mxu0 0.0
        %8853 = vmatpush1.msra.mxu0 0.0
        %8854 = vmatprep.mubr.f32.mxu0 0.0
        %8855 = vmatmul.mubr.f32.gmra.mrb[0].mxu0 %v8788
        %v8856 = vpop.f32.mrb[0].mxu0
        %v8857 = vadd.f32 %v8764, %v8856
        %v8858 = vpop.f32.mrb[0].mxu0
        %8859 = vdwg.mxu0
        %v8860 = vmax.f32 %v8857, 0.0
        %v8861 = vld [vmem:[%s7] sm:$0xff]
        %v8862 = vld [vmem:[%s7 + $0x8] sm:$0xff]
        %v8863 = vld [vmem:[%s7 + $0x10] sm:$0xff]
        %v8864 = vld [vmem:[%s7 + $0x18] sm:$0xff]
        %v8865 = vld [vmem:[%s7 + $0x20] sm:$0xff]
        %v8866 = vld [vmem:[%s7 + $0x28] sm:$0xff]
        %v8867 = vld [vmem:[%s7 + $0x30] sm:$0xff]
        %v8868 = vld [vmem:[%s7 + $0x38] sm:$0xff]
        %v8869 = vld [vmem:[%s7 + $0x40] sm:$0xff]
        %v8870 = vld [vmem:[%s7 + $0x48] sm:$0xff]
        %v8871 = vld [vmem:[%s7 + $0x50] sm:$0xff]
        %v8872 = vld [vmem:[%s7 + $0x58] sm:$0xff]
        %v8873 = vld [vmem:[%s7 + $0x60] sm:$0xff]
        %v8874 = vld [vmem:[%s7 + $0x68] sm:$0xff]
        %v8875 = vld [vmem:[%s7 + $0x70] sm:$0xff]
        %v8876 = vld [vmem:[%s7 + $0x78] sm:$0xff]
        %v8877 = vld [vmem:[%s8] sm:$0x1]
        %v8879 = vlaneseq
        %v8880 = vshrl.u32 %v8879, 7
        %v8881 = vsub.s32 0, %v8880
        %v8882 = vrot.slane %v8877, %v8881
        %8884 = vmatprep.subr.mxu0 0.0
        %8885 = vmatpush1.msra.mxu0 %v8861
        %8886 = vmatprep.subr.mxu0 0.0
        %8887 = vmatpush1.msra.mxu0 %v8862
        %8888 = vmatprep.subr.mxu0 0.0
        %8889 = vmatpush1.msra.mxu0 %v8863
        %8890 = vmatprep.subr.mxu0 0.0
        %8891 = vmatpush1.msra.mxu0 %v8864
        %8892 = vmatprep.subr.mxu0 0.0
        %8893 = vmatpush1.msra.mxu0 %v8865
        %8894 = vmatprep.subr.mxu0 0.0
        %8895 = vmatpush1.msra.mxu0 %v8866
        %8896 = vmatprep.subr.mxu0 0.0
        %8897 = vmatpush1.msra.mxu0 %v8867
        %8898 = vmatprep.subr.mxu0 0.0
        %8899 = vmatpush1.msra.mxu0 %v8868
        %8900 = vmatprep.subr.mxu0 0.0
        %8901 = vmatpush1.msra.mxu0 %v8869
        %8902 = vmatprep.subr.mxu0 0.0
        %8903 = vmatpush1.msra.mxu0 %v8870
        %8904 = vmatprep.subr.mxu0 0.0
        %8905 = vmatpush1.msra.mxu0 %v8871
        %8906 = vmatprep.subr.mxu0 0.0
        %8907 = vmatpush1.msra.mxu0 %v8872
        %8908 = vmatprep.subr.mxu0 0.0
        %8909 = vmatpush1.msra.mxu0 %v8873
        %8910 = vmatprep.subr.mxu0 0.0
        %8911 = vmatpush1.msra.mxu0 %v8874
        %8912 = vmatprep.subr.mxu0 0.0
        %8913 = vmatpush1.msra.mxu0 %v8875
        %8914 = vmatprep.subr.mxu0 0.0
        %8915 = vmatpush1.msra.mxu0 %v8876
        %8916 = vmatprep.subr.mxu0 0.0
        %8917 = vmatpush1.msra.mxu0 0.0
        %8918 = vmatprep.subr.mxu0 0.0
        %8919 = vmatpush1.msra.mxu0 0.0
        %8920 = vmatprep.subr.mxu0 0.0
        %8921 = vmatpush1.msra.mxu0 0.0
        %8922 = vmatprep.subr.mxu0 0.0
        %8923 = vmatpush1.msra.mxu0 0.0
        %8924 = vmatprep.subr.mxu0 0.0
        %8925 = vmatpush1.msra.mxu0 0.0
        %8926 = vmatprep.subr.mxu0 0.0
        %8927 = vmatpush1.msra.mxu0 0.0
        %8928 = vmatprep.subr.mxu0 0.0
        %8929 = vmatpush1.msra.mxu0 0.0
        %8930 = vmatprep.subr.mxu0 0.0
        %8931 = vmatpush1.msra.mxu0 0.0
        %8932 = vmatprep.subr.mxu0 0.0
        %8933 = vmatpush1.msra.mxu0 0.0
        %8934 = vmatprep.subr.mxu0 0.0
        %8935 = vmatpush1.msra.mxu0 0.0
        %8936 = vmatprep.subr.mxu0 0.0
        %8937 = vmatpush1.msra.mxu0 0.0
        %8938 = vmatprep.subr.mxu0 0.0
        %8939 = vmatpush1.msra.mxu0 0.0
        %8940 = vmatprep.subr.mxu0 0.0
        %8941 = vmatpush1.msra.mxu0 0.0
        %8942 = vmatprep.subr.mxu0 0.0
        %8943 = vmatpush1.msra.mxu0 0.0
        %8944 = vmatprep.subr.mxu0 0.0
        %8945 = vmatpush1.msra.mxu0 0.0
        %8946 = vmatprep.subr.mxu0 0.0
        %8947 = vmatpush1.msra.mxu0 0.0
        %8948 = vmatprep.mubr.f32.mxu0 0.0
        %8949 = vmatmul.mubr.f32.gmra.mrb[0].mxu0 %v8860
        %v8950 = vpop.f32.mrb[0].mxu0
        %v8951 = vadd.f32 %v8882, %v8950
        %v8952 = vpop.f32.mrb[0].mxu0
        %8953 = vdwg.mxu0
        %8954 = vst [vmem:[%s328] sm:$0xff] %v8951
        %s8955 = sand.u32 %s225, 1
        %s8956 = scalar_lea.sflag [#allocation3], %s8955
        %s8957 = sand.u32 %s225, 1
        %s8958 = smul.addr %s8957, 8
        %s8959 = scalar_lea.vmem [#allocation2], %s8958
        // Predicated region
        $region57: #{tpu_custom_call.1} parent=55 // pred_check
          %p8960 = pneg %p235
        $region58: #{tpu_custom_call.1} parent=55 // pred_check_branch
          %8962 = sbr.rel (%p8960) target = $region60
        $region59: #{tpu_custom_call.1} parent=55 // pred_region
          %s8964 = ssub.s32 128, 128
          %8965 = vsyncadd %s8956, %s8964
          %s8966 = smul.addr %s23, 128
          %s8967 = scalar_lea.hbm %s9, %s8966
          %s8969 = sshll.u32 %s8959, 4
          %s8970 = int_to_ptr.vmem [resolvable:$true] %s8969
          %8972 = dma.vmem_to_hbm [thread:$0]  %s8970, 128, %s8967, %s8956
        $region60: #{tpu_custom_call.1} parent=55 // pred_fallthru
          _
      $region56: #{tpu_custom_call.1} parent=5 // pred_fallthru
        _
      %p8973 = scmp.le.s32.totalorder 2, %s18
      // Predicated region
      $region61: #{tpu_custom_call.1} parent=5 // pred_check
        %p8974 = pneg %p8973
      $region62: #{tpu_custom_call.1} parent=5 // pred_check_branch
        %8976 = sbr.rel (%p8974) target = $region64
      $region63: #{tpu_custom_call.1} parent=5 // pred_region
        %s8977 = ssub.s32 %s18, 2
        // Predicated region
        $region65: #{tpu_custom_call.1} parent=63 // pred_check
          %p8978 = pneg %p241
        $region66: #{tpu_custom_call.1} parent=63 // pred_check_branch
          %8980 = sbr.rel (%p8978) target = $region68
        $region67: #{tpu_custom_call.1} parent=63 // pred_region
          %s8981 = sand.u32 %s226, 1
          %s8982 = scalar_lea.sflag [#allocation3], %s8981
          %s8983 = sand.u32 %s226, 1
          %s8984 = smul.addr %s8983, 8
          %s8985 = scalar_lea.vmem [#allocation2], %s8984
          %8986 = dma.done %s8982, 128
        $region68: #{tpu_custom_call.1} parent=63 // pred_fallthru
          _
      $region64: #{tpu_custom_call.1} parent=5 // pred_fallthru
        _
    $region6: #{tpu_custom_call.1} parent=1 // loop_footer
      %s22 = sadd.s32 1, %s18
    $region7: #{tpu_custom_call.1} parent=1 // loop_footer_branch
      %17 = sbr.rel target = $region3
    $region8: #{tpu_custom_call.1} parent=1 // loop_exit
      _
    %8987 = vsyncpa [#allocation3], 1
    %s8988 = scalar_lea.sflag [#allocation3], 1
    %8989 = vsyncpa %s8988, 1

</llo_original>
